<compile_context>
chip_gen: v7x
topology: tpu7x:2x2x1
jax: 0.10.0
libtpu: 0.0.40
codegen_flags: <defaults>
</compile_context>

<pallas_src>
import jax
import jax.numpy as jnp
from jax.experimental import pallas as pl
from jax.experimental.pallas import tpu as pltpu


def _leaky(v, slope):
    return jnp.where(v >= 0, v, slope * v)


def hgat_kernel(x_ref, wih_ref, whh_ref, bias_ref, wslab_ref, coef_ref, p_ref,
                out_ref, gi_ref, hs_ref):
    L, NP, H = hs_ref.shape
    H2, H3 = 2 * H, 3 * H

    bias = bias_ref[...]                       # (3, 3H) f32
    gi_bias = bias[0:1, :]                     # [b_ir+b_hr | b_iz+b_hz | b_in]
    b_hn = bias[1:2, 0:H]                      # (1, H)
    b2 = bias[1:2, H:H2]                       # (1, H)   hatt2 bias
    bl = bias[1:2, H2:H2 + 1]                  # (1, 1)   final linear bias
    wl_row = bias[2:3, 0:H]                    # (1, H)   final linear weight row

    # ---------------- GRU: hoisted input projection for all timesteps ----------------
    # One (L*NP, F) x (F, 3H) bf16 matmul; result staged through VMEM scratch.
    gi_ref[...] = (jnp.dot(x_ref[...], wih_ref[...],
                           preferred_element_type=jnp.float32)
                   + gi_bias).reshape(L, NP, H3)

    whh = whh_ref[...]                         # (H, 3H) f32 — serial recurrence stays f32

    # t = 0: h == 0 -> skip the hidden matmul (pure VPU/EUP work).
    g0 = gi_ref[0]                             # (NP, 3H)
    rz = jax.nn.sigmoid(g0[:, :H2])
    n = jnp.tanh(g0[:, H2:] + rz[:, :H] * b_hn)
    h = (1.0 - rz[:, H:]) * n
    hs_ref[0] = h

    # t = 1 .. L-1: single fused (NP,H)x(H,3H) MXU push per step.
    for t in range(1, L):                      # static unroll, L = 8
        gh = jnp.dot(h, whh, preferred_element_type=jnp.float32)   # (NP, 3H)
        gt = gi_ref[t]                                              # staged load
        rz = jax.nn.sigmoid(gt[:, :H2] + gh[:, :H2])                # r|z in one sigmoid
        r = rz[:, :H]
        z = rz[:, H:]
        n = jnp.tanh(gt[:, H2:] + r * (gh[:, H2:] + b_hn))
        h = (1.0 - z) * n + z * h
        hs_ref[t] = h                                               # context[:, t, :]

    # ---------------- Attention ('general'), vectorized over time ----------------
    wslab = wslab_ref[...]                     # (H, 5H) bf16: [win | wmix | wq | th1 | th2]
    q = jnp.dot(h.astype(jnp.bfloat16), wslab[:, 0:H],
                preferred_element_type=jnp.float32)                  # linear_in(query), (NP, H)

    hs_all = hs_ref[...]                                             # (L, NP, H)
    scores = jnp.sum(hs_all * q[None, :, :], axis=2, keepdims=True)  # (L, NP, 1)
    smax = jnp.max(scores, axis=0, keepdims=True)
    ex = jnp.exp(scores - smax)
    denom = jnp.sum(ex, axis=0, keepdims=True)
    weights = ex * pl.reciprocal(denom, approx=True)                 # softmax over time

    mix = weights * hs_all                                           # (L, NP, H)
    # relu(ae * mix * bt) with coef = ae * bt precomputed (exact rewrite).
    acc = jnp.sum(mix + jnp.maximum(coef_ref[...] * mix, 0.0), axis=0)   # (NP, H)

    # linear_out([mix ; query]) without the lane concat: weight split into two halves.
    att = jnp.tanh(
        jnp.dot(acc.astype(jnp.bfloat16), wslab[:, H:H2],
                preferred_element_type=jnp.float32)
        + jnp.dot(q.astype(jnp.bfloat16), wslab[:, H2:H3],
                  preferred_element_type=jnp.float32))               # (NP, H)

    # ---------------- HypergraphConv x2 (use_attention=False): P @ (X Theta) ----------------
    P = p_ref[...]                                                   # (NP, NP) bf16

    def hconv(xin, theta):
        xt = jnp.dot(xin.astype(jnp.bfloat16), theta,
                     preferred_element_type=jnp.float32)             # X Theta
        return jnp.dot(P, xt.astype(jnp.bfloat16),
                       preferred_element_type=jnp.float32)           # propagate

    x1 = _leaky(hconv(att, wslab[:, H3:4 * H]), 0.2)                 # hatt1 (bias=False)
    x2 = _leaky(hconv(x1, wslab[:, 4 * H:5 * H]) + b2, 0.2)          # hatt2 (bias=True)

    # ---------------- final Linear(H, 1) + leaky_relu(0.01), lane-dense output ----------------
    y = jnp.dot(wl_row, x2.T, preferred_element_type=jnp.float32) + bl   # (1, NP)
    out_ref[...] = _leaky(y, 0.01)


def hgat_forward(price_input, hinc, params, n_pad=128):
    """price_input: (N, L, F) float32 ; hinc: dense hypergraph incidence matrix (N, E) float32."""
    N, L, F = price_input.shape
    H = params["whh_t"].shape[0]
    NP = n_pad
    assert N <= NP
    pad = NP - N
    H2, H3 = 2 * H, 3 * H

    # Time-major, node-padded, flattened input (bf16 MXU operand).
    xp = jnp.pad(price_input, ((0, pad), (0, 0), (0, 0)))
    x_flat = jnp.transpose(xp, (1, 0, 2)).reshape(L * NP, F).astype(jnp.bfloat16)

    # GRU biases (torch gate order r, z, n): r/z biases folded (b_ih + b_hh); n keeps them split.
    b_ih, b_hh = params["b_ih"], params["b_hh"]
    gi_bias = jnp.concatenate([b_ih[:, :H2] + b_hh[:, :H2], b_ih[:, H2:]], axis=1)    # (1, 3H)
    b_hn = b_hh[:, H2:]                                                                # (1, H)

    # Bias / small-vector slab (3, 3H): row0 = gi bias, row1 = [b_hn | b2 | bl], row2 = [wl | 0].
    row1 = jnp.concatenate([b_hn, params["b2"],
                            jnp.broadcast_to(params["bl"], (1, H))], axis=1)
    row2 = jnp.concatenate([params["wl_t"], jnp.zeros((1, H2), jnp.float32)], axis=1)
    bias_slab = jnp.concatenate([gi_bias, row1, row2], axis=0)                         # (3, 3H)

    # Weight slab (H, 5H) bf16: [linear_in | linear_out(mix) | linear_out(query) | Theta1 | Theta2]
    w_slab = jnp.concatenate([params["win_t"],
                              params["wout_t"][:H], params["wout_t"][H:],
                              params["th1_t"], params["th2_t"]],
                             axis=1).astype(jnp.bfloat16)

    # Fused attention coefficient: ae * exp(-ab * delta_t), delta_t = flip(arange(L)).
    ae = jnp.pad(params["ae"], ((0, pad), (0, 0)))                                     # (NP, 1)
    ab = jnp.pad(params["ab"], ((0, pad), (0, 0)))                                     # (NP, 1)
    delta = jnp.arange(L - 1, -1, -1, dtype=jnp.float32)
    coef = ae[None, :, :] * jnp.exp(-ab[None, :, :] * delta[:, None, None])            # (L, NP, 1)

    # Hypergraph propagation matrix P = D^-1 H B^-1 H^T, zero-padded to (NP, NP).
    deg = jnp.sum(hinc, axis=1, keepdims=True)
    d_inv = jnp.where(deg > 0, 1.0 / jnp.where(deg > 0, deg, 1.0), 0.0)
    bdeg = jnp.sum(hinc, axis=0, keepdims=True)
    b_inv = jnp.where(bdeg > 0, 1.0 / jnp.where(bdeg > 0, bdeg, 1.0), 0.0)
    P = (d_inv * hinc) @ (b_inv * hinc).T
    P = jnp.pad(P, ((0, pad), (0, pad))).astype(jnp.bfloat16)                          # (NP, NP)

    args = (x_flat,
            params["wih_t"].astype(jnp.bfloat16),   # (F, 3H) — MXU operand only
            params["whh_t"],                        # (H, 3H) — stays f32 (recurrence)
            bias_slab, w_slab, coef, P)

    vmem = pl.BlockSpec(memory_space=pltpu.MemorySpace.VMEM)
    out = pl.pallas_call(
        hgat_kernel,
        out_shape=jax.ShapeDtypeStruct((1, NP), jnp.float32),        # lane-dense row output
        in_specs=[vmem] * len(args),
        out_specs=vmem,
        scratch_shapes=[pltpu.VMEM((L, NP, H3), jnp.float32),        # staged input projections
                        pltpu.VMEM((L, NP, H), jnp.float32)],        # hidden states
    )(*args)
    return out[0, :N].reshape(N, 1)


if __name__ == "__main__":
    # n_nodes is fixed at 116 by the module's hard-coded ae/ab parameters (shape (116,1,1)).
    N, L, F, H, E = 116, 8, 4, 32, 8

    key = jax.random.PRNGKey(0)
    keys = jax.random.split(key, 16)

    def u(k, shape, scale=0.1):
        return jax.random.uniform(k, shape, jnp.float32, -scale, scale)

    params = {
        # GRU: weight_ih (3H,F)->transposed, weight_hh (3H,H)->transposed, biases as (1,3H)
        "wih_t": u(keys[0], (F, 3 * H)),
        "whh_t": u(keys[1], (H, 3 * H)),
        "b_ih": u(keys[2], (1, 3 * H)),
        "b_hh": u(keys[3], (1, 3 * H)),
        # Attention: linear_in (H,H)^T, linear_out (H,2H)^T, ae/ab (116,1,1) -> (N,1)
        "win_t": u(keys[4], (H, H)),
        "wout_t": u(keys[5], (2 * H, H)),
        "ae": jax.random.uniform(keys[6], (N, 1), jnp.float32, 0.0, 0.5),
        "ab": jax.random.uniform(keys[7], (N, 1), jnp.float32, 0.0, 0.5),
        # HypergraphConv linear weights (H,H)^T, hatt2 bias (1,H)
        "th1_t": u(keys[8], (H, H)),
        "th2_t": u(keys[9], (H, H)),
        "b2": u(keys[10], (1, H)),
        # final Linear(H,1): weight (1,H), bias (1,1)
        "wl_t": u(keys[11], (1, H)),
        "bl": u(keys[12], (1, 1)),
    }

    price_input = jax.random.normal(keys[13], (N, L, F), jnp.float32)
    # Dense incidence matrix standing in for the sparse hyperedge_index `e`.
    hinc = (jax.random.uniform(keys[14], (N, E)) < 0.3).astype(jnp.float32)

    out = hgat_forward(price_input, hinc, params)
    jax.block_until_ready(out)
    assert out.shape == (N, 1) and out.dtype == jnp.float32
    assert bool(jnp.all(jnp.isfinite(out)))
    print("KERNEL_OK")
</pallas_src>

<mosaic_0001>
module attributes {stable_mosaic.version = 11 : i64} {
  func.func @hgat_kernel(%arg0: memref<1024x4xbf16, #tpu.memory_space<vmem>>, %arg1: memref<4x96xbf16, #tpu.memory_space<vmem>>, %arg2: memref<32x96xf32, #tpu.memory_space<vmem>>, %arg3: memref<3x96xf32, #tpu.memory_space<vmem>>, %arg4: memref<32x160xbf16, #tpu.memory_space<vmem>>, %arg5: memref<8x128x1xf32, #tpu.memory_space<vmem>>, %arg6: memref<128x128xbf16, #tpu.memory_space<vmem>>, %arg7: memref<1x128xf32, #tpu.memory_space<vmem>>, %arg8: memref<8x128x96xf32, #tpu.memory_space<vmem>>, %arg9: memref<8x128x32xf32, #tpu.memory_space<vmem>>) attributes {dimension_semantics = [], scalar_prefetch = 0 : i64, scratch_operands = 2 : i64, tpu.core_type = #tpu.core_type<tc>} {
    %c0 = arith.constant 0 : index
    %c0_0 = arith.constant 0 : index
    %0 = vector.load %arg3[%c0, %c0_0] : memref<3x96xf32, #tpu.memory_space<vmem>>, vector<3x96xf32>
    %1 = vector.extract_strided_slice %0 {offsets = [0, 0], sizes = [1, 96], strides = [1, 1]} : vector<3x96xf32> to vector<1x96xf32>
    %2 = vector.extract_strided_slice %0 {offsets = [1, 0], sizes = [1, 32], strides = [1, 1]} : vector<3x96xf32> to vector<1x32xf32>
    %3 = vector.extract_strided_slice %0 {offsets = [1, 32], sizes = [1, 32], strides = [1, 1]} : vector<3x96xf32> to vector<1x32xf32>
    %4 = vector.extract_strided_slice %0 {offsets = [1, 64], sizes = [1, 1], strides = [1, 1]} : vector<3x96xf32> to vector<1x1xf32>
    %5 = vector.extract_strided_slice %0 {offsets = [2, 0], sizes = [1, 32], strides = [1, 1]} : vector<3x96xf32> to vector<1x32xf32>
    %c0_1 = arith.constant 0 : index
    %c0_2 = arith.constant 0 : index
    %6 = vector.load %arg0[%c0_1, %c0_2] : memref<1024x4xbf16, #tpu.memory_space<vmem>>, vector<1024x4xbf16>
    %c0_3 = arith.constant 0 : index
    %c0_4 = arith.constant 0 : index
    %7 = vector.load %arg1[%c0_3, %c0_4] : memref<4x96xbf16, #tpu.memory_space<vmem>>, vector<4x96xbf16>
    %cst = arith.constant dense<0.000000e+00> : vector<1024x96xf32>
    %8 = tpu.matmul %6, %7, %cst {dimension_numbers = #tpu.dot_dimension_numbers<[1], [0], [0], [1], [0, 0, 1, 1], [], []>} : vector<1024x4xbf16>, vector<4x96xbf16>, vector<1024x96xf32> -> vector<1024x96xf32>
    %9 = vector.broadcast %1 : vector<1x96xf32> to vector<1024x96xf32>
    %10 = arith.addf %8, %9 : vector<1024x96xf32>
    %11 = vector.shape_cast %10 : vector<1024x96xf32> to vector<8x128x96xf32>
    %c0_5 = arith.constant 0 : index
    %c0_6 = arith.constant 0 : index
    %c0_7 = arith.constant 0 : index
    %12 = vector.load %arg8[%c0_5, %c0_6, %c0_7] : memref<8x128x96xf32, #tpu.memory_space<vmem>>, vector<8x128x96xf32>
    tpu.vector_store %arg8[%c0_5, %c0_6, %c0_7], %11 {strides = array<i32>} : memref<8x128x96xf32, #tpu.memory_space<vmem>>, vector<8x128x96xf32>,
    %c0_8 = arith.constant 0 : index
    %c0_9 = arith.constant 0 : index
    %13 = vector.load %arg2[%c0_8, %c0_9] : memref<32x96xf32, #tpu.memory_space<vmem>>, vector<32x96xf32>
    %c0_10 = arith.constant 0 : index
    %c0_11 = arith.constant 0 : index
    %c0_12 = arith.constant 0 : index
    %14 = vector.load %arg8[%c0_10, %c0_11, %c0_12] : memref<8x128x96xf32, #tpu.memory_space<vmem>>, vector<1x128x96xf32>
    %15 = vector.shape_cast %14 : vector<1x128x96xf32> to vector<128x96xf32>
    %16 = vector.extract_strided_slice %15 {offsets = [0, 0], sizes = [128, 64], strides = [1, 1]} : vector<128x96xf32> to vector<128x64xf32>
    %17 = arith.negf %16 : vector<128x64xf32>
    %18 = math.exp %17 : vector<128x64xf32>
    %cst_13 = arith.constant 1.000000e+00 : f32
    %19 = vector.broadcast %cst_13 : f32 to vector<128x64xf32>
    %20 = arith.addf %19, %18 : vector<128x64xf32>
    %21 = arith.divf %19, %20 : vector<128x64xf32>
    %22 = vector.extract_strided_slice %15 {offsets = [0, 64], sizes = [128, 32], strides = [1, 1]} : vector<128x96xf32> to vector<128x32xf32>
    %23 = vector.extract_strided_slice %21 {offsets = [0, 0], sizes = [128, 32], strides = [1, 1]} : vector<128x64xf32> to vector<128x32xf32>
    %24 = vector.broadcast %2 : vector<1x32xf32> to vector<128x32xf32>
    %25 = arith.mulf %23, %24 : vector<128x32xf32>
    %26 = arith.addf %22, %25 : vector<128x32xf32>
    %27 = math.tanh %26 : vector<128x32xf32>
    %28 = vector.extract_strided_slice %21 {offsets = [0, 32], sizes = [128, 32], strides = [1, 1]} : vector<128x64xf32> to vector<128x32xf32>
    %cst_14 = arith.constant 1.000000e+00 : f32
    %29 = vector.broadcast %cst_14 : f32 to vector<128x32xf32>
    %30 = arith.subf %29, %28 : vector<128x32xf32>
    %31 = arith.mulf %30, %27 : vector<128x32xf32>
    %c0_15 = arith.constant 0 : index
    %c0_16 = arith.constant 0 : index
    %c0_17 = arith.constant 0 : index
    %32 = vector.load %arg9[%c0_15, %c0_16, %c0_17] : memref<8x128x32xf32, #tpu.memory_space<vmem>>, vector<1x128x32xf32>
    %33 = vector.shape_cast %32 : vector<1x128x32xf32> to vector<128x32xf32>
    %34 = vector.shape_cast %31 : vector<128x32xf32> to vector<1x128x32xf32>
    tpu.vector_store %arg9[%c0_15, %c0_16, %c0_17], %34 {strides = array<i32>} : memref<8x128x32xf32, #tpu.memory_space<vmem>>, vector<1x128x32xf32>,
    %cst_18 = arith.constant dense<0.000000e+00> : vector<128x96xf32>
    %35 = tpu.matmul %31, %13, %cst_18 {dimension_numbers = #tpu.dot_dimension_numbers<[1], [0], [0], [1], [0, 0, 1, 1], [], []>} : vector<128x32xf32>, vector<32x96xf32>, vector<128x96xf32> -> vector<128x96xf32>
    %c1 = arith.constant 1 : index
    %c0_19 = arith.constant 0 : index
    %c0_20 = arith.constant 0 : index
    %36 = vector.load %arg8[%c1, %c0_19, %c0_20] : memref<8x128x96xf32, #tpu.memory_space<vmem>>, vector<1x128x96xf32>
    %37 = vector.shape_cast %36 : vector<1x128x96xf32> to vector<128x96xf32>
    %38 = vector.extract_strided_slice %37 {offsets = [0, 0], sizes = [128, 64], strides = [1, 1]} : vector<128x96xf32> to vector<128x64xf32>
    %39 = vector.extract_strided_slice %35 {offsets = [0, 0], sizes = [128, 64], strides = [1, 1]} : vector<128x96xf32> to vector<128x64xf32>
    %40 = arith.addf %38, %39 : vector<128x64xf32>
    %41 = arith.negf %40 : vector<128x64xf32>
    %42 = math.exp %41 : vector<128x64xf32>
    %cst_21 = arith.constant 1.000000e+00 : f32
    %43 = vector.broadcast %cst_21 : f32 to vector<128x64xf32>
    %44 = arith.addf %43, %42 : vector<128x64xf32>
    %45 = arith.divf %43, %44 : vector<128x64xf32>
    %46 = vector.extract_strided_slice %45 {offsets = [0, 0], sizes = [128, 32], strides = [1, 1]} : vector<128x64xf32> to vector<128x32xf32>
    %47 = vector.extract_strided_slice %45 {offsets = [0, 32], sizes = [128, 32], strides = [1, 1]} : vector<128x64xf32> to vector<128x32xf32>
    %48 = vector.extract_strided_slice %37 {offsets = [0, 64], sizes = [128, 32], strides = [1, 1]} : vector<128x96xf32> to vector<128x32xf32>
    %49 = vector.extract_strided_slice %35 {offsets = [0, 64], sizes = [128, 32], strides = [1, 1]} : vector<128x96xf32> to vector<128x32xf32>
    %50 = vector.broadcast %2 : vector<1x32xf32> to vector<128x32xf32>
    %51 = arith.addf %49, %50 : vector<128x32xf32>
    %52 = arith.mulf %46, %51 : vector<128x32xf32>
    %53 = arith.addf %48, %52 : vector<128x32xf32>
    %54 = math.tanh %53 : vector<128x32xf32>
    %cst_22 = arith.constant 1.000000e+00 : f32
    %55 = vector.broadcast %cst_22 : f32 to vector<128x32xf32>
    %56 = arith.subf %55, %47 : vector<128x32xf32>
    %57 = arith.mulf %56, %54 : vector<128x32xf32>
    %58 = arith.mulf %47, %31 : vector<128x32xf32>
    %59 = arith.addf %57, %58 : vector<128x32xf32>
    %c1_23 = arith.constant 1 : index
    %c0_24 = arith.constant 0 : index
    %c0_25 = arith.constant 0 : index
    %60 = vector.load %arg9[%c1_23, %c0_24, %c0_25] : memref<8x128x32xf32, #tpu.memory_space<vmem>>, vector<1x128x32xf32>
    %61 = vector.shape_cast %60 : vector<1x128x32xf32> to vector<128x32xf32>
    %62 = vector.shape_cast %59 : vector<128x32xf32> to vector<1x128x32xf32>
    tpu.vector_store %arg9[%c1_23, %c0_24, %c0_25], %62 {strides = array<i32>} : memref<8x128x32xf32, #tpu.memory_space<vmem>>, vector<1x128x32xf32>,
    %cst_26 = arith.constant dense<0.000000e+00> : vector<128x96xf32>
    %63 = tpu.matmul %59, %13, %cst_26 {dimension_numbers = #tpu.dot_dimension_numbers<[1], [0], [0], [1], [0, 0, 1, 1], [], []>} : vector<128x32xf32>, vector<32x96xf32>, vector<128x96xf32> -> vector<128x96xf32>
    %c2 = arith.constant 2 : index
    %c0_27 = arith.constant 0 : index
    %c0_28 = arith.constant 0 : index
    %64 = vector.load %arg8[%c2, %c0_27, %c0_28] : memref<8x128x96xf32, #tpu.memory_space<vmem>>, vector<1x128x96xf32>
    %65 = vector.shape_cast %64 : vector<1x128x96xf32> to vector<128x96xf32>
    %66 = vector.extract_strided_slice %65 {offsets = [0, 0], sizes = [128, 64], strides = [1, 1]} : vector<128x96xf32> to vector<128x64xf32>
    %67 = vector.extract_strided_slice %63 {offsets = [0, 0], sizes = [128, 64], strides = [1, 1]} : vector<128x96xf32> to vector<128x64xf32>
    %68 = arith.addf %66, %67 : vector<128x64xf32>
    %69 = arith.negf %68 : vector<128x64xf32>
    %70 = math.exp %69 : vector<128x64xf32>
    %cst_29 = arith.constant 1.000000e+00 : f32
    %71 = vector.broadcast %cst_29 : f32 to vector<128x64xf32>
    %72 = arith.addf %71, %70 : vector<128x64xf32>
    %73 = arith.divf %71, %72 : vector<128x64xf32>
    %74 = vector.extract_strided_slice %73 {offsets = [0, 0], sizes = [128, 32], strides = [1, 1]} : vector<128x64xf32> to vector<128x32xf32>
    %75 = vector.extract_strided_slice %73 {offsets = [0, 32], sizes = [128, 32], strides = [1, 1]} : vector<128x64xf32> to vector<128x32xf32>
    %76 = vector.extract_strided_slice %65 {offsets = [0, 64], sizes = [128, 32], strides = [1, 1]} : vector<128x96xf32> to vector<128x32xf32>
    %77 = vector.extract_strided_slice %63 {offsets = [0, 64], sizes = [128, 32], strides = [1, 1]} : vector<128x96xf32> to vector<128x32xf32>
    %78 = vector.broadcast %2 : vector<1x32xf32> to vector<128x32xf32>
    %79 = arith.addf %77, %78 : vector<128x32xf32>
    %80 = arith.mulf %74, %79 : vector<128x32xf32>
    %81 = arith.addf %76, %80 : vector<128x32xf32>
    %82 = math.tanh %81 : vector<128x32xf32>
    %cst_30 = arith.constant 1.000000e+00 : f32
    %83 = vector.broadcast %cst_30 : f32 to vector<128x32xf32>
    %84 = arith.subf %83, %75 : vector<128x32xf32>
    %85 = arith.mulf %84, %82 : vector<128x32xf32>
    %86 = arith.mulf %75, %59 : vector<128x32xf32>
    %87 = arith.addf %85, %86 : vector<128x32xf32>
    %c2_31 = arith.constant 2 : index
    %c0_32 = arith.constant 0 : index
    %c0_33 = arith.constant 0 : index
    %88 = vector.load %arg9[%c2_31, %c0_32, %c0_33] : memref<8x128x32xf32, #tpu.memory_space<vmem>>, vector<1x128x32xf32>
    %89 = vector.shape_cast %88 : vector<1x128x32xf32> to vector<128x32xf32>
    %90 = vector.shape_cast %87 : vector<128x32xf32> to vector<1x128x32xf32>
    tpu.vector_store %arg9[%c2_31, %c0_32, %c0_33], %90 {strides = array<i32>} : memref<8x128x32xf32, #tpu.memory_space<vmem>>, vector<1x128x32xf32>,
    %cst_34 = arith.constant dense<0.000000e+00> : vector<128x96xf32>
    %91 = tpu.matmul %87, %13, %cst_34 {dimension_numbers = #tpu.dot_dimension_numbers<[1], [0], [0], [1], [0, 0, 1, 1], [], []>} : vector<128x32xf32>, vector<32x96xf32>, vector<128x96xf32> -> vector<128x96xf32>
    %c3 = arith.constant 3 : index
    %c0_35 = arith.constant 0 : index
    %c0_36 = arith.constant 0 : index
    %92 = vector.load %arg8[%c3, %c0_35, %c0_36] : memref<8x128x96xf32, #tpu.memory_space<vmem>>, vector<1x128x96xf32>
    %93 = vector.shape_cast %92 : vector<1x128x96xf32> to vector<128x96xf32>
    %94 = vector.extract_strided_slice %93 {offsets = [0, 0], sizes = [128, 64], strides = [1, 1]} : vector<128x96xf32> to vector<128x64xf32>
    %95 = vector.extract_strided_slice %91 {offsets = [0, 0], sizes = [128, 64], strides = [1, 1]} : vector<128x96xf32> to vector<128x64xf32>
    %96 = arith.addf %94, %95 : vector<128x64xf32>
    %97 = arith.negf %96 : vector<128x64xf32>
    %98 = math.exp %97 : vector<128x64xf32>
    %cst_37 = arith.constant 1.000000e+00 : f32
    %99 = vector.broadcast %cst_37 : f32 to vector<128x64xf32>
    %100 = arith.addf %99, %98 : vector<128x64xf32>
    %101 = arith.divf %99, %100 : vector<128x64xf32>
    %102 = vector.extract_strided_slice %101 {offsets = [0, 0], sizes = [128, 32], strides = [1, 1]} : vector<128x64xf32> to vector<128x32xf32>
    %103 = vector.extract_strided_slice %101 {offsets = [0, 32], sizes = [128, 32], strides = [1, 1]} : vector<128x64xf32> to vector<128x32xf32>
    %104 = vector.extract_strided_slice %93 {offsets = [0, 64], sizes = [128, 32], strides = [1, 1]} : vector<128x96xf32> to vector<128x32xf32>
    %105 = vector.extract_strided_slice %91 {offsets = [0, 64], sizes = [128, 32], strides = [1, 1]} : vector<128x96xf32> to vector<128x32xf32>
    %106 = vector.broadcast %2 : vector<1x32xf32> to vector<128x32xf32>
    %107 = arith.addf %105, %106 : vector<128x32xf32>
    %108 = arith.mulf %102, %107 : vector<128x32xf32>
    %109 = arith.addf %104, %108 : vector<128x32xf32>
    %110 = math.tanh %109 : vector<128x32xf32>
    %cst_38 = arith.constant 1.000000e+00 : f32
    %111 = vector.broadcast %cst_38 : f32 to vector<128x32xf32>
    %112 = arith.subf %111, %103 : vector<128x32xf32>
    %113 = arith.mulf %112, %110 : vector<128x32xf32>
    %114 = arith.mulf %103, %87 : vector<128x32xf32>
    %115 = arith.addf %113, %114 : vector<128x32xf32>
    %c3_39 = arith.constant 3 : index
    %c0_40 = arith.constant 0 : index
    %c0_41 = arith.constant 0 : index
    %116 = vector.load %arg9[%c3_39, %c0_40, %c0_41] : memref<8x128x32xf32, #tpu.memory_space<vmem>>, vector<1x128x32xf32>
    %117 = vector.shape_cast %116 : vector<1x128x32xf32> to vector<128x32xf32>
    %118 = vector.shape_cast %115 : vector<128x32xf32> to vector<1x128x32xf32>
    tpu.vector_store %arg9[%c3_39, %c0_40, %c0_41], %118 {strides = array<i32>} : memref<8x128x32xf32, #tpu.memory_space<vmem>>, vector<1x128x32xf32>,
    %cst_42 = arith.constant dense<0.000000e+00> : vector<128x96xf32>
    %119 = tpu.matmul %115, %13, %cst_42 {dimension_numbers = #tpu.dot_dimension_numbers<[1], [0], [0], [1], [0, 0, 1, 1], [], []>} : vector<128x32xf32>, vector<32x96xf32>, vector<128x96xf32> -> vector<128x96xf32>
    %c4 = arith.constant 4 : index
    %c0_43 = arith.constant 0 : index
    %c0_44 = arith.constant 0 : index
    %120 = vector.load %arg8[%c4, %c0_43, %c0_44] : memref<8x128x96xf32, #tpu.memory_space<vmem>>, vector<1x128x96xf32>
    %121 = vector.shape_cast %120 : vector<1x128x96xf32> to vector<128x96xf32>
    %122 = vector.extract_strided_slice %121 {offsets = [0, 0], sizes = [128, 64], strides = [1, 1]} : vector<128x96xf32> to vector<128x64xf32>
    %123 = vector.extract_strided_slice %119 {offsets = [0, 0], sizes = [128, 64], strides = [1, 1]} : vector<128x96xf32> to vector<128x64xf32>
    %124 = arith.addf %122, %123 : vector<128x64xf32>
    %125 = arith.negf %124 : vector<128x64xf32>
    %126 = math.exp %125 : vector<128x64xf32>
    %cst_45 = arith.constant 1.000000e+00 : f32
    %127 = vector.broadcast %cst_45 : f32 to vector<128x64xf32>
    %128 = arith.addf %127, %126 : vector<128x64xf32>
    %129 = arith.divf %127, %128 : vector<128x64xf32>
    %130 = vector.extract_strided_slice %129 {offsets = [0, 0], sizes = [128, 32], strides = [1, 1]} : vector<128x64xf32> to vector<128x32xf32>
    %131 = vector.extract_strided_slice %129 {offsets = [0, 32], sizes = [128, 32], strides = [1, 1]} : vector<128x64xf32> to vector<128x32xf32>
    %132 = vector.extract_strided_slice %121 {offsets = [0, 64], sizes = [128, 32], strides = [1, 1]} : vector<128x96xf32> to vector<128x32xf32>
    %133 = vector.extract_strided_slice %119 {offsets = [0, 64], sizes = [128, 32], strides = [1, 1]} : vector<128x96xf32> to vector<128x32xf32>
    %134 = vector.broadcast %2 : vector<1x32xf32> to vector<128x32xf32>
    %135 = arith.addf %133, %134 : vector<128x32xf32>
    %136 = arith.mulf %130, %135 : vector<128x32xf32>
    %137 = arith.addf %132, %136 : vector<128x32xf32>
    %138 = math.tanh %137 : vector<128x32xf32>
    %cst_46 = arith.constant 1.000000e+00 : f32
    %139 = vector.broadcast %cst_46 : f32 to vector<128x32xf32>
    %140 = arith.subf %139, %131 : vector<128x32xf32>
    %141 = arith.mulf %140, %138 : vector<128x32xf32>
    %142 = arith.mulf %131, %115 : vector<128x32xf32>
    %143 = arith.addf %141, %142 : vector<128x32xf32>
    %c4_47 = arith.constant 4 : index
    %c0_48 = arith.constant 0 : index
    %c0_49 = arith.constant 0 : index
    %144 = vector.load %arg9[%c4_47, %c0_48, %c0_49] : memref<8x128x32xf32, #tpu.memory_space<vmem>>, vector<1x128x32xf32>
    %145 = vector.shape_cast %144 : vector<1x128x32xf32> to vector<128x32xf32>
    %146 = vector.shape_cast %143 : vector<128x32xf32> to vector<1x128x32xf32>
    tpu.vector_store %arg9[%c4_47, %c0_48, %c0_49], %146 {strides = array<i32>} : memref<8x128x32xf32, #tpu.memory_space<vmem>>, vector<1x128x32xf32>,
    %cst_50 = arith.constant dense<0.000000e+00> : vector<128x96xf32>
    %147 = tpu.matmul %143, %13, %cst_50 {dimension_numbers = #tpu.dot_dimension_numbers<[1], [0], [0], [1], [0, 0, 1, 1], [], []>} : vector<128x32xf32>, vector<32x96xf32>, vector<128x96xf32> -> vector<128x96xf32>
    %c5 = arith.constant 5 : index
    %c0_51 = arith.constant 0 : index
    %c0_52 = arith.constant 0 : index
    %148 = vector.load %arg8[%c5, %c0_51, %c0_52] : memref<8x128x96xf32, #tpu.memory_space<vmem>>, vector<1x128x96xf32>
    %149 = vector.shape_cast %148 : vector<1x128x96xf32> to vector<128x96xf32>
    %150 = vector.extract_strided_slice %149 {offsets = [0, 0], sizes = [128, 64], strides = [1, 1]} : vector<128x96xf32> to vector<128x64xf32>
    %151 = vector.extract_strided_slice %147 {offsets = [0, 0], sizes = [128, 64], strides = [1, 1]} : vector<128x96xf32> to vector<128x64xf32>
    %152 = arith.addf %150, %151 : vector<128x64xf32>
    %153 = arith.negf %152 : vector<128x64xf32>
    %154 = math.exp %153 : vector<128x64xf32>
    %cst_53 = arith.constant 1.000000e+00 : f32
    %155 = vector.broadcast %cst_53 : f32 to vector<128x64xf32>
    %156 = arith.addf %155, %154 : vector<128x64xf32>
    %157 = arith.divf %155, %156 : vector<128x64xf32>
    %158 = vector.extract_strided_slice %157 {offsets = [0, 0], sizes = [128, 32], strides = [1, 1]} : vector<128x64xf32> to vector<128x32xf32>
    %159 = vector.extract_strided_slice %157 {offsets = [0, 32], sizes = [128, 32], strides = [1, 1]} : vector<128x64xf32> to vector<128x32xf32>
    %160 = vector.extract_strided_slice %149 {offsets = [0, 64], sizes = [128, 32], strides = [1, 1]} : vector<128x96xf32> to vector<128x32xf32>
    %161 = vector.extract_strided_slice %147 {offsets = [0, 64], sizes = [128, 32], strides = [1, 1]} : vector<128x96xf32> to vector<128x32xf32>
    %162 = vector.broadcast %2 : vector<1x32xf32> to vector<128x32xf32>
    %163 = arith.addf %161, %162 : vector<128x32xf32>
    %164 = arith.mulf %158, %163 : vector<128x32xf32>
    %165 = arith.addf %160, %164 : vector<128x32xf32>
    %166 = math.tanh %165 : vector<128x32xf32>
    %cst_54 = arith.constant 1.000000e+00 : f32
    %167 = vector.broadcast %cst_54 : f32 to vector<128x32xf32>
    %168 = arith.subf %167, %159 : vector<128x32xf32>
    %169 = arith.mulf %168, %166 : vector<128x32xf32>
    %170 = arith.mulf %159, %143 : vector<128x32xf32>
    %171 = arith.addf %169, %170 : vector<128x32xf32>
    %c5_55 = arith.constant 5 : index
    %c0_56 = arith.constant 0 : index
    %c0_57 = arith.constant 0 : index
    %172 = vector.load %arg9[%c5_55, %c0_56, %c0_57] : memref<8x128x32xf32, #tpu.memory_space<vmem>>, vector<1x128x32xf32>
    %173 = vector.shape_cast %172 : vector<1x128x32xf32> to vector<128x32xf32>
    %174 = vector.shape_cast %171 : vector<128x32xf32> to vector<1x128x32xf32>
    tpu.vector_store %arg9[%c5_55, %c0_56, %c0_57], %174 {strides = array<i32>} : memref<8x128x32xf32, #tpu.memory_space<vmem>>, vector<1x128x32xf32>,
    %cst_58 = arith.constant dense<0.000000e+00> : vector<128x96xf32>
    %175 = tpu.matmul %171, %13, %cst_58 {dimension_numbers = #tpu.dot_dimension_numbers<[1], [0], [0], [1], [0, 0, 1, 1], [], []>} : vector<128x32xf32>, vector<32x96xf32>, vector<128x96xf32> -> vector<128x96xf32>
    %c6 = arith.constant 6 : index
    %c0_59 = arith.constant 0 : index
    %c0_60 = arith.constant 0 : index
    %176 = vector.load %arg8[%c6, %c0_59, %c0_60] : memref<8x128x96xf32, #tpu.memory_space<vmem>>, vector<1x128x96xf32>
    %177 = vector.shape_cast %176 : vector<1x128x96xf32> to vector<128x96xf32>
    %178 = vector.extract_strided_slice %177 {offsets = [0, 0], sizes = [128, 64], strides = [1, 1]} : vector<128x96xf32> to vector<128x64xf32>
    %179 = vector.extract_strided_slice %175 {offsets = [0, 0], sizes = [128, 64], strides = [1, 1]} : vector<128x96xf32> to vector<128x64xf32>
    %180 = arith.addf %178, %179 : vector<128x64xf32>
    %181 = arith.negf %180 : vector<128x64xf32>
    %182 = math.exp %181 : vector<128x64xf32>
    %cst_61 = arith.constant 1.000000e+00 : f32
    %183 = vector.broadcast %cst_61 : f32 to vector<128x64xf32>
    %184 = arith.addf %183, %182 : vector<128x64xf32>
    %185 = arith.divf %183, %184 : vector<128x64xf32>
    %186 = vector.extract_strided_slice %185 {offsets = [0, 0], sizes = [128, 32], strides = [1, 1]} : vector<128x64xf32> to vector<128x32xf32>
    %187 = vector.extract_strided_slice %185 {offsets = [0, 32], sizes = [128, 32], strides = [1, 1]} : vector<128x64xf32> to vector<128x32xf32>
    %188 = vector.extract_strided_slice %177 {offsets = [0, 64], sizes = [128, 32], strides = [1, 1]} : vector<128x96xf32> to vector<128x32xf32>
    %189 = vector.extract_strided_slice %175 {offsets = [0, 64], sizes = [128, 32], strides = [1, 1]} : vector<128x96xf32> to vector<128x32xf32>
    %190 = vector.broadcast %2 : vector<1x32xf32> to vector<128x32xf32>
    %191 = arith.addf %189, %190 : vector<128x32xf32>
    %192 = arith.mulf %186, %191 : vector<128x32xf32>
    %193 = arith.addf %188, %192 : vector<128x32xf32>
    %194 = math.tanh %193 : vector<128x32xf32>
    %cst_62 = arith.constant 1.000000e+00 : f32
    %195 = vector.broadcast %cst_62 : f32 to vector<128x32xf32>
    %196 = arith.subf %195, %187 : vector<128x32xf32>
    %197 = arith.mulf %196, %194 : vector<128x32xf32>
    %198 = arith.mulf %187, %171 : vector<128x32xf32>
    %199 = arith.addf %197, %198 : vector<128x32xf32>
    %c6_63 = arith.constant 6 : index
    %c0_64 = arith.constant 0 : index
    %c0_65 = arith.constant 0 : index
    %200 = vector.load %arg9[%c6_63, %c0_64, %c0_65] : memref<8x128x32xf32, #tpu.memory_space<vmem>>, vector<1x128x32xf32>
    %201 = vector.shape_cast %200 : vector<1x128x32xf32> to vector<128x32xf32>
    %202 = vector.shape_cast %199 : vector<128x32xf32> to vector<1x128x32xf32>
    tpu.vector_store %arg9[%c6_63, %c0_64, %c0_65], %202 {strides = array<i32>} : memref<8x128x32xf32, #tpu.memory_space<vmem>>, vector<1x128x32xf32>,
    %cst_66 = arith.constant dense<0.000000e+00> : vector<128x96xf32>
    %203 = tpu.matmul %199, %13, %cst_66 {dimension_numbers = #tpu.dot_dimension_numbers<[1], [0], [0], [1], [0, 0, 1, 1], [], []>} : vector<128x32xf32>, vector<32x96xf32>, vector<128x96xf32> -> vector<128x96xf32>
    %c7 = arith.constant 7 : index
    %c0_67 = arith.constant 0 : index
    %c0_68 = arith.constant 0 : index
    %204 = vector.load %arg8[%c7, %c0_67, %c0_68] : memref<8x128x96xf32, #tpu.memory_space<vmem>>, vector<1x128x96xf32>
    %205 = vector.shape_cast %204 : vector<1x128x96xf32> to vector<128x96xf32>
    %206 = vector.extract_strided_slice %205 {offsets = [0, 0], sizes = [128, 64], strides = [1, 1]} : vector<128x96xf32> to vector<128x64xf32>
    %207 = vector.extract_strided_slice %203 {offsets = [0, 0], sizes = [128, 64], strides = [1, 1]} : vector<128x96xf32> to vector<128x64xf32>
    %208 = arith.addf %206, %207 : vector<128x64xf32>
    %209 = arith.negf %208 : vector<128x64xf32>
    %210 = math.exp %209 : vector<128x64xf32>
    %cst_69 = arith.constant 1.000000e+00 : f32
    %211 = vector.broadcast %cst_69 : f32 to vector<128x64xf32>
    %212 = arith.addf %211, %210 : vector<128x64xf32>
    %213 = arith.divf %211, %212 : vector<128x64xf32>
    %214 = vector.extract_strided_slice %213 {offsets = [0, 0], sizes = [128, 32], strides = [1, 1]} : vector<128x64xf32> to vector<128x32xf32>
    %215 = vector.extract_strided_slice %213 {offsets = [0, 32], sizes = [128, 32], strides = [1, 1]} : vector<128x64xf32> to vector<128x32xf32>
    %216 = vector.extract_strided_slice %205 {offsets = [0, 64], sizes = [128, 32], strides = [1, 1]} : vector<128x96xf32> to vector<128x32xf32>
    %217 = vector.extract_strided_slice %203 {offsets = [0, 64], sizes = [128, 32], strides = [1, 1]} : vector<128x96xf32> to vector<128x32xf32>
    %218 = vector.broadcast %2 : vector<1x32xf32> to vector<128x32xf32>
    %219 = arith.addf %217, %218 : vector<128x32xf32>
    %220 = arith.mulf %214, %219 : vector<128x32xf32>
    %221 = arith.addf %216, %220 : vector<128x32xf32>
    %222 = math.tanh %221 : vector<128x32xf32>
    %cst_70 = arith.constant 1.000000e+00 : f32
    %223 = vector.broadcast %cst_70 : f32 to vector<128x32xf32>
    %224 = arith.subf %223, %215 : vector<128x32xf32>
    %225 = arith.mulf %224, %222 : vector<128x32xf32>
    %226 = arith.mulf %215, %199 : vector<128x32xf32>
    %227 = arith.addf %225, %226 : vector<128x32xf32>
    %c7_71 = arith.constant 7 : index
    %c0_72 = arith.constant 0 : index
    %c0_73 = arith.constant 0 : index
    %228 = vector.load %arg9[%c7_71, %c0_72, %c0_73] : memref<8x128x32xf32, #tpu.memory_space<vmem>>, vector<1x128x32xf32>
    %229 = vector.shape_cast %228 : vector<1x128x32xf32> to vector<128x32xf32>
    %230 = vector.shape_cast %227 : vector<128x32xf32> to vector<1x128x32xf32>
    tpu.vector_store %arg9[%c7_71, %c0_72, %c0_73], %230 {strides = array<i32>} : memref<8x128x32xf32, #tpu.memory_space<vmem>>, vector<1x128x32xf32>,
    %c0_74 = arith.constant 0 : index
    %c0_75 = arith.constant 0 : index
    %231 = vector.load %arg4[%c0_74, %c0_75] : memref<32x160xbf16, #tpu.memory_space<vmem>>, vector<32x160xbf16>
    %232 = arith.truncf %227 : vector<128x32xf32> to vector<128x32xbf16>
    %233 = vector.extract_strided_slice %231 {offsets = [0, 0], sizes = [32, 32], strides = [1, 1]} : vector<32x160xbf16> to vector<32x32xbf16>
    %cst_76 = arith.constant dense<0.000000e+00> : vector<128x32xf32>
    %234 = tpu.matmul %232, %233, %cst_76 {dimension_numbers = #tpu.dot_dimension_numbers<[1], [0], [0], [1], [0, 0, 1, 1], [], []>} : vector<128x32xbf16>, vector<32x32xbf16>, vector<128x32xf32> -> vector<128x32xf32>
    %c0_77 = arith.constant 0 : index
    %c0_78 = arith.constant 0 : index
    %c0_79 = arith.constant 0 : index
    %235 = vector.load %arg9[%c0_77, %c0_78, %c0_79] : memref<8x128x32xf32, #tpu.memory_space<vmem>>, vector<8x128x32xf32>
    %236 = vector.shape_cast %234 : vector<128x32xf32> to vector<1x128x32xf32>
    %237 = vector.broadcast %236 : vector<1x128x32xf32> to vector<8x128x32xf32>
    %238 = arith.mulf %235, %237 : vector<8x128x32xf32>
    %cst_80 = arith.constant dense<0.000000e+00> : vector<8x128xf32>
    %239 = vector.multi_reduction <add>, %238, %cst_80 [2] : vector<8x128x32xf32> to vector<8x128xf32>
    %240 = vector.shape_cast %239 : vector<8x128xf32> to vector<8x128x1xf32>
    %cst_81 = arith.constant dense<0xFF800000> : vector<128x1xf32>
    %241 = vector.multi_reduction <maximumf>, %240, %cst_81 [0] : vector<8x128x1xf32> to vector<128x1xf32>
    %242 = vector.shape_cast %241 : vector<128x1xf32> to vector<1x128x1xf32>
    %243 = vector.broadcast %242 : vector<1x128x1xf32> to vector<8x128x1xf32>
    %244 = arith.subf %240, %243 : vector<8x128x1xf32>
    %245 = math.exp %244 : vector<8x128x1xf32>
    %cst_82 = arith.constant dense<0.000000e+00> : vector<128x1xf32>
    %246 = vector.multi_reduction <add>, %245, %cst_82 [0] : vector<8x128x1xf32> to vector<128x1xf32>
    %247 = vector.shape_cast %246 : vector<128x1xf32> to vector<1x128x1xf32>
    %248 = tpu.reciprocal %247 {approx = true} : vector<1x128x1xf32> -> vector<1x128x1xf32>
    %249 = vector.broadcast %248 : vector<1x128x1xf32> to vector<8x128x1xf32>
    %250 = arith.mulf %245, %249 : vector<8x128x1xf32>
    %251 = vector.broadcast %250 : vector<8x128x1xf32> to vector<8x128x32xf32>
    %252 = arith.mulf %251, %235 : vector<8x128x32xf32>
    %c0_83 = arith.constant 0 : index
    %c0_84 = arith.constant 0 : index
    %c0_85 = arith.constant 0 : index
    %253 = vector.load %arg5[%c0_83, %c0_84, %c0_85] : memref<8x128x1xf32, #tpu.memory_space<vmem>>, vector<8x128x1xf32>
    %254 = vector.broadcast %253 : vector<8x128x1xf32> to vector<8x128x32xf32>
    %255 = arith.mulf %254, %252 : vector<8x128x32xf32>
    %cst_86 = arith.constant 0.000000e+00 : f32
    %256 = vector.broadcast %cst_86 : f32 to vector<8x128x32xf32>
    %257 = arith.maximumf %255, %256 : vector<8x128x32xf32>
    %258 = arith.addf %252, %257 : vector<8x128x32xf32>
    %cst_87 = arith.constant dense<0.000000e+00> : vector<128x32xf32>
    %259 = vector.multi_reduction <add>, %258, %cst_87 [0] : vector<8x128x32xf32> to vector<128x32xf32>
    %260 = arith.truncf %259 : vector<128x32xf32> to vector<128x32xbf16>
    %261 = vector.extract_strided_slice %231 {offsets = [0, 32], sizes = [32, 32], strides = [1, 1]} : vector<32x160xbf16> to vector<32x32xbf16>
    %cst_88 = arith.constant dense<0.000000e+00> : vector<128x32xf32>
    %262 = tpu.matmul %260, %261, %cst_88 {dimension_numbers = #tpu.dot_dimension_numbers<[1], [0], [0], [1], [0, 0, 1, 1], [], []>} : vector<128x32xbf16>, vector<32x32xbf16>, vector<128x32xf32> -> vector<128x32xf32>
    %263 = arith.truncf %234 : vector<128x32xf32> to vector<128x32xbf16>
    %264 = vector.extract_strided_slice %231 {offsets = [0, 64], sizes = [32, 32], strides = [1, 1]} : vector<32x160xbf16> to vector<32x32xbf16>
    %cst_89 = arith.constant dense<0.000000e+00> : vector<128x32xf32>
    %265 = tpu.matmul %263, %264, %cst_89 {dimension_numbers = #tpu.dot_dimension_numbers<[1], [0], [0], [1], [0, 0, 1, 1], [], []>} : vector<128x32xbf16>, vector<32x32xbf16>, vector<128x32xf32> -> vector<128x32xf32>
    %266 = arith.addf %262, %265 : vector<128x32xf32>
    %267 = math.tanh %266 : vector<128x32xf32>
    %c0_90 = arith.constant 0 : index
    %c0_91 = arith.constant 0 : index
    %268 = vector.load %arg6[%c0_90, %c0_91] : memref<128x128xbf16, #tpu.memory_space<vmem>>, vector<128x128xbf16>
    %269 = vector.extract_strided_slice %231 {offsets = [0, 96], sizes = [32, 32], strides = [1, 1]} : vector<32x160xbf16> to vector<32x32xbf16>
    %270 = arith.truncf %267 : vector<128x32xf32> to vector<128x32xbf16>
    %cst_92 = arith.constant dense<0.000000e+00> : vector<128x32xf32>
    %271 = tpu.matmul %270, %269, %cst_92 {dimension_numbers = #tpu.dot_dimension_numbers<[1], [0], [0], [1], [0, 0, 1, 1], [], []>} : vector<128x32xbf16>, vector<32x32xbf16>, vector<128x32xf32> -> vector<128x32xf32>
    %272 = arith.truncf %271 : vector<128x32xf32> to vector<128x32xbf16>
    %cst_93 = arith.constant dense<0.000000e+00> : vector<128x32xf32>
    %273 = tpu.matmul %268, %272, %cst_93 {dimension_numbers = #tpu.dot_dimension_numbers<[1], [0], [0], [1], [0, 0, 1, 1], [], []>} : vector<128x128xbf16>, vector<128x32xbf16>, vector<128x32xf32> -> vector<128x32xf32>
    %cst_94 = arith.constant 0.000000e+00 : f32
    %274 = vector.broadcast %cst_94 : f32 to vector<128x32xf32>
    %275 = arith.cmpf oge, %273, %274 : vector<128x32xf32>
    %cst_95 = arith.constant 2.000000e-01 : f32
    %276 = vector.broadcast %cst_95 : f32 to vector<128x32xf32>
    %277 = arith.mulf %276, %273 : vector<128x32xf32>
    %278 = arith.select %275, %273, %277 : vector<128x32xi1>, vector<128x32xf32>
    %279 = vector.extract_strided_slice %231 {offsets = [0, 128], sizes = [32, 32], strides = [1, 1]} : vector<32x160xbf16> to vector<32x32xbf16>
    %280 = arith.truncf %278 : vector<128x32xf32> to vector<128x32xbf16>
    %cst_96 = arith.constant dense<0.000000e+00> : vector<128x32xf32>
    %281 = tpu.matmul %280, %279, %cst_96 {dimension_numbers = #tpu.dot_dimension_numbers<[1], [0], [0], [1], [0, 0, 1, 1], [], []>} : vector<128x32xbf16>, vector<32x32xbf16>, vector<128x32xf32> -> vector<128x32xf32>
    %282 = arith.truncf %281 : vector<128x32xf32> to vector<128x32xbf16>
    %cst_97 = arith.constant dense<0.000000e+00> : vector<128x32xf32>
    %283 = tpu.matmul %268, %282, %cst_97 {dimension_numbers = #tpu.dot_dimension_numbers<[1], [0], [0], [1], [0, 0, 1, 1], [], []>} : vector<128x128xbf16>, vector<128x32xbf16>, vector<128x32xf32> -> vector<128x32xf32>
    %284 = vector.broadcast %3 : vector<1x32xf32> to vector<128x32xf32>
    %285 = arith.addf %283, %284 : vector<128x32xf32>
    %cst_98 = arith.constant 0.000000e+00 : f32
    %286 = vector.broadcast %cst_98 : f32 to vector<128x32xf32>
    %287 = arith.cmpf oge, %285, %286 : vector<128x32xf32>
    %cst_99 = arith.constant 2.000000e-01 : f32
    %288 = vector.broadcast %cst_99 : f32 to vector<128x32xf32>
    %289 = arith.mulf %288, %285 : vector<128x32xf32>
    %290 = arith.select %287, %285, %289 : vector<128x32xi1>, vector<128x32xf32>
    %291 = tpu.transpose %290, [1, 0] : vector<128x32xf32> -> vector<32x128xf32>
    %cst_100 = arith.constant dense<0.000000e+00> : vector<1x128xf32>
    %292 = tpu.matmul %5, %291, %cst_100 {dimension_numbers = #tpu.dot_dimension_numbers<[1], [0], [0], [1], [0, 0, 1, 1], [], []>} : vector<1x32xf32>, vector<32x128xf32>, vector<1x128xf32> -> vector<1x128xf32>
    %293 = vector.broadcast %4 : vector<1x1xf32> to vector<1x128xf32>
    %294 = arith.addf %292, %293 : vector<1x128xf32>
    %cst_101 = arith.constant 0.000000e+00 : f32
    %295 = vector.broadcast %cst_101 : f32 to vector<1x128xf32>
    %296 = arith.cmpf oge, %294, %295 : vector<1x128xf32>
    %cst_102 = arith.constant 0.00999999977 : f32
    %297 = vector.broadcast %cst_102 : f32 to vector<1x128xf32>
    %298 = arith.mulf %297, %294 : vector<1x128xf32>
    %299 = arith.select %296, %294, %298 : vector<1x128xi1>, vector<1x128xf32>
    %c0_103 = arith.constant 0 : index
    %c0_104 = arith.constant 0 : index
    %300 = vector.load %arg7[%c0_103, %c0_104] : memref<1x128xf32, #tpu.memory_space<vmem>>, vector<1x128xf32>
    tpu.vector_store %arg7[%c0_103, %c0_104], %299 {strides = array<i32>} : memref<1x128xf32, #tpu.memory_space<vmem>>, vector<1x128xf32>,
    return
  }
}

</mosaic_0001>

<llo_original>
// kernel: tpu_custom_call.1
$region0: #{tpu_custom_call.1}
  #allocation0 [shape = 'u32[]', space=smem, size = 0x4, offset = 0x4, fixed_abs, tag = 'smem constant byte address 0x4 - core index']
  #allocation1 [shape = 'u32[144,128]{1,0:T(1,128)}', space=vmem, size = 0x12000, scoped, tag = 'internal scratch']
  #allocation2 [shape = 'f32[8,128,96]{2,1,0:T(8,128)}', space=vmem, size = 0x80000, scoped, tag = 'scratch operand']
  #allocation3 [shape = 'f32[8,128,32]{2,1,0:T(8,128)}', space=vmem, size = 0x80000, scoped, tag = 'scratch operand']
  %s0 = inlined_call_operand.vmem [shape: bf16[1024,4], index: 0, kind: input, shape index: {}]
  %s1 = inlined_call_operand.vmem [shape: bf16[4,96], index: 1, kind: input, shape index: {}]
  %s2 = inlined_call_operand.vmem [shape: f32[32,96], index: 2, kind: input, shape index: {}]
  %s3 = inlined_call_operand.vmem [shape: f32[3,96], index: 3, kind: input, shape index: {}]
  %s4 = inlined_call_operand.vmem [shape: bf16[32,160], index: 4, kind: input, shape index: {}]
  %s5 = inlined_call_operand.vmem [shape: f32[8,128,1], index: 5, kind: input, shape index: {}]
  %s6 = inlined_call_operand.vmem [shape: bf16[128,128], index: 6, kind: input, shape index: {}]
  %s7 = inlined_call_operand.hbm [shape: f32[1,128], index: 7, kind: output, shape index: {}]
  %s8 = sld [smem:[#allocation0]]
  $region38: #{tpu_custom_call.1} parent=0
    _
  %s10 = ssub.s32 1, %s8
  %s11 = scalar_select 0, %s10, %s8
  $region1: #{tpu_custom_call.1} parent=0
    #allocation4 [shape = 'u8[512]{0}', space=vmem, size = 0x400, scoped, tag = 'output window, operand 0, single buffered']
    #allocation5 [shape = 's32[1]{0}', space=sflag, size = 0x4, scoped, tag = 'scoped memory for tpu_custom_call.1']
    %12 = vsyncpa [#allocation5], 0
    // Predicated region
    $region2: #{tpu_custom_call.1} parent=1 // pred_check
      _
    $region3: #{tpu_custom_call.1} parent=1 // pred_check_branch
      %14 = sbr.rel (0) target = $region5
    $region4: #{tpu_custom_call.1} parent=1 // pred_region
      _
    $region5: #{tpu_custom_call.1} parent=1 // pred_fallthru
      _
    // Predicated region
    $region6: #{tpu_custom_call.1} parent=1 // pred_check
      _
    $region7: #{tpu_custom_call.1} parent=1 // pred_check_branch
      %16 = sbr.rel (0) target = $region9
    $region8: #{tpu_custom_call.1} parent=1 // pred_region
      _
    $region9: #{tpu_custom_call.1} parent=1 // pred_fallthru
      _
    // Predicated region
    $region10: #{tpu_custom_call.1} parent=1 // pred_check
      _
    $region11: #{tpu_custom_call.1} parent=1 // pred_check_branch
      %18 = sbr.rel (0) target = $region13
    $region12: #{tpu_custom_call.1} parent=1 // pred_region
      _
    $region13: #{tpu_custom_call.1} parent=1 // pred_fallthru
      _
    // Predicated region
    $region14: #{tpu_custom_call.1} parent=1 // pred_check
      _
    $region15: #{tpu_custom_call.1} parent=1 // pred_check_branch
      %20 = sbr.rel (0) target = $region17
    $region16: #{tpu_custom_call.1} parent=1 // pred_region
      _
    $region17: #{tpu_custom_call.1} parent=1 // pred_fallthru
      _
    // Predicated region
    $region18: #{tpu_custom_call.1} parent=1 // pred_check
      _
    $region19: #{tpu_custom_call.1} parent=1 // pred_check_branch
      %22 = sbr.rel (0) target = $region21
    $region20: #{tpu_custom_call.1} parent=1 // pred_region
      _
    $region21: #{tpu_custom_call.1} parent=1 // pred_fallthru
      _
    // Predicated region
    $region22: #{tpu_custom_call.1} parent=1 // pred_check
      _
    $region23: #{tpu_custom_call.1} parent=1 // pred_check_branch
      %24 = sbr.rel (0) target = $region25
    $region24: #{tpu_custom_call.1} parent=1 // pred_region
      _
    $region25: #{tpu_custom_call.1} parent=1 // pred_fallthru
      _
    // Predicated region
    $region26: #{tpu_custom_call.1} parent=1 // pred_check
      _
    $region27: #{tpu_custom_call.1} parent=1 // pred_check_branch
      %26 = sbr.rel (0) target = $region29
    $region28: #{tpu_custom_call.1} parent=1 // pred_region
      _
    $region29: #{tpu_custom_call.1} parent=1 // pred_fallthru
      _
    %v28 = vld [vmem:[%s3] sm:$0x7]
    %v29 = vld [vmem:[%s0] sm:$0xf]
    %v30 = vld [vmem:[%s0 + $0x4] sm:$0xf]
    %v31 = vld [vmem:[%s0 + $0x8] sm:$0xf]
    %v32 = vld [vmem:[%s0 + $0xc] sm:$0xf]
    %v33 = vld [vmem:[%s0 + $0x10] sm:$0xf]
    %v34 = vld [vmem:[%s0 + $0x14] sm:$0xf]
    %v35 = vld [vmem:[%s0 + $0x18] sm:$0xf]
    %v36 = vld [vmem:[%s0 + $0x1c] sm:$0xf]
    %v37 = vld [vmem:[%s0 + $0x20] sm:$0xf]
    %v38 = vld [vmem:[%s0 + $0x24] sm:$0xf]
    %v39 = vld [vmem:[%s0 + $0x28] sm:$0xf]
    %v40 = vld [vmem:[%s0 + $0x2c] sm:$0xf]
    %v41 = vld [vmem:[%s0 + $0x30] sm:$0xf]
    %v42 = vld [vmem:[%s0 + $0x34] sm:$0xf]
    %v43 = vld [vmem:[%s0 + $0x38] sm:$0xf]
    %v44 = vld [vmem:[%s0 + $0x3c] sm:$0xf]
    %v45 = vld [vmem:[%s0 + $0x40] sm:$0xf]
    %v46 = vld [vmem:[%s0 + $0x44] sm:$0xf]
    %v47 = vld [vmem:[%s0 + $0x48] sm:$0xf]
    %v48 = vld [vmem:[%s0 + $0x4c] sm:$0xf]
    %v49 = vld [vmem:[%s0 + $0x50] sm:$0xf]
    %v50 = vld [vmem:[%s0 + $0x54] sm:$0xf]
    %v51 = vld [vmem:[%s0 + $0x58] sm:$0xf]
    %v52 = vld [vmem:[%s0 + $0x5c] sm:$0xf]
    %v53 = vld [vmem:[%s0 + $0x60] sm:$0xf]
    %v54 = vld [vmem:[%s0 + $0x64] sm:$0xf]
    %v55 = vld [vmem:[%s0 + $0x68] sm:$0xf]
    %v56 = vld [vmem:[%s0 + $0x6c] sm:$0xf]
    %v57 = vld [vmem:[%s0 + $0x70] sm:$0xf]
    %v58 = vld [vmem:[%s0 + $0x74] sm:$0xf]
    %v59 = vld [vmem:[%s0 + $0x78] sm:$0xf]
    %v60 = vld [vmem:[%s0 + $0x7c] sm:$0xf]
    %v61 = vld [vmem:[%s0 + $0x80] sm:$0xf]
    %v62 = vld [vmem:[%s0 + $0x84] sm:$0xf]
    %v63 = vld [vmem:[%s0 + $0x88] sm:$0xf]
    %v64 = vld [vmem:[%s0 + $0x8c] sm:$0xf]
    %v65 = vld [vmem:[%s0 + $0x90] sm:$0xf]
    %v66 = vld [vmem:[%s0 + $0x94] sm:$0xf]
    %v67 = vld [vmem:[%s0 + $0x98] sm:$0xf]
    %v68 = vld [vmem:[%s0 + $0x9c] sm:$0xf]
    %v69 = vld [vmem:[%s0 + $0xa0] sm:$0xf]
    %v70 = vld [vmem:[%s0 + $0xa4] sm:$0xf]
    %v71 = vld [vmem:[%s0 + $0xa8] sm:$0xf]
    %v72 = vld [vmem:[%s0 + $0xac] sm:$0xf]
    %v73 = vld [vmem:[%s0 + $0xb0] sm:$0xf]
    %v74 = vld [vmem:[%s0 + $0xb4] sm:$0xf]
    %v75 = vld [vmem:[%s0 + $0xb8] sm:$0xf]
    %v76 = vld [vmem:[%s0 + $0xbc] sm:$0xf]
    %v77 = vld [vmem:[%s0 + $0xc0] sm:$0xf]
    %v78 = vld [vmem:[%s0 + $0xc4] sm:$0xf]
    %v79 = vld [vmem:[%s0 + $0xc8] sm:$0xf]
    %v80 = vld [vmem:[%s0 + $0xcc] sm:$0xf]
    %v81 = vld [vmem:[%s0 + $0xd0] sm:$0xf]
    %v82 = vld [vmem:[%s0 + $0xd4] sm:$0xf]
    %v83 = vld [vmem:[%s0 + $0xd8] sm:$0xf]
    %v84 = vld [vmem:[%s0 + $0xdc] sm:$0xf]
    %v85 = vld [vmem:[%s0 + $0xe0] sm:$0xf]
    %v86 = vld [vmem:[%s0 + $0xe4] sm:$0xf]
    %v87 = vld [vmem:[%s0 + $0xe8] sm:$0xf]
    %v88 = vld [vmem:[%s0 + $0xec] sm:$0xf]
    %v89 = vld [vmem:[%s0 + $0xf0] sm:$0xf]
    %v90 = vld [vmem:[%s0 + $0xf4] sm:$0xf]
    %v91 = vld [vmem:[%s0 + $0xf8] sm:$0xf]
    %v92 = vld [vmem:[%s0 + $0xfc] sm:$0xf]
    %v93 = vld [vmem:[%s0 + $0x100] sm:$0xf]
    %v94 = vld [vmem:[%s0 + $0x104] sm:$0xf]
    %v95 = vld [vmem:[%s0 + $0x108] sm:$0xf]
    %v96 = vld [vmem:[%s0 + $0x10c] sm:$0xf]
    %v97 = vld [vmem:[%s0 + $0x110] sm:$0xf]
    %v98 = vld [vmem:[%s0 + $0x114] sm:$0xf]
    %v99 = vld [vmem:[%s0 + $0x118] sm:$0xf]
    %v100 = vld [vmem:[%s0 + $0x11c] sm:$0xf]
    %v101 = vld [vmem:[%s0 + $0x120] sm:$0xf]
    %v102 = vld [vmem:[%s0 + $0x124] sm:$0xf]
    %v103 = vld [vmem:[%s0 + $0x128] sm:$0xf]
    %v104 = vld [vmem:[%s0 + $0x12c] sm:$0xf]
    %v105 = vld [vmem:[%s0 + $0x130] sm:$0xf]
    %v106 = vld [vmem:[%s0 + $0x134] sm:$0xf]
    %v107 = vld [vmem:[%s0 + $0x138] sm:$0xf]
    %v108 = vld [vmem:[%s0 + $0x13c] sm:$0xf]
    %v109 = vld [vmem:[%s0 + $0x140] sm:$0xf]
    %v110 = vld [vmem:[%s0 + $0x144] sm:$0xf]
    %v111 = vld [vmem:[%s0 + $0x148] sm:$0xf]
    %v112 = vld [vmem:[%s0 + $0x14c] sm:$0xf]
    %v113 = vld [vmem:[%s0 + $0x150] sm:$0xf]
    %v114 = vld [vmem:[%s0 + $0x154] sm:$0xf]
    %v115 = vld [vmem:[%s0 + $0x158] sm:$0xf]
    %v116 = vld [vmem:[%s0 + $0x15c] sm:$0xf]
    %v117 = vld [vmem:[%s0 + $0x160] sm:$0xf]
    %v118 = vld [vmem:[%s0 + $0x164] sm:$0xf]
    %v119 = vld [vmem:[%s0 + $0x168] sm:$0xf]
    %v120 = vld [vmem:[%s0 + $0x16c] sm:$0xf]
    %v121 = vld [vmem:[%s0 + $0x170] sm:$0xf]
    %v122 = vld [vmem:[%s0 + $0x174] sm:$0xf]
    %v123 = vld [vmem:[%s0 + $0x178] sm:$0xf]
    %v124 = vld [vmem:[%s0 + $0x17c] sm:$0xf]
    %v125 = vld [vmem:[%s0 + $0x180] sm:$0xf]
    %v126 = vld [vmem:[%s0 + $0x184] sm:$0xf]
    %v127 = vld [vmem:[%s0 + $0x188] sm:$0xf]
    %v128 = vld [vmem:[%s0 + $0x18c] sm:$0xf]
    %v129 = vld [vmem:[%s0 + $0x190] sm:$0xf]
    %v130 = vld [vmem:[%s0 + $0x194] sm:$0xf]
    %v131 = vld [vmem:[%s0 + $0x198] sm:$0xf]
    %v132 = vld [vmem:[%s0 + $0x19c] sm:$0xf]
    %v133 = vld [vmem:[%s0 + $0x1a0] sm:$0xf]
    %v134 = vld [vmem:[%s0 + $0x1a4] sm:$0xf]
    %v135 = vld [vmem:[%s0 + $0x1a8] sm:$0xf]
    %v136 = vld [vmem:[%s0 + $0x1ac] sm:$0xf]
    %v137 = vld [vmem:[%s0 + $0x1b0] sm:$0xf]
    %v138 = vld [vmem:[%s0 + $0x1b4] sm:$0xf]
    %v139 = vld [vmem:[%s0 + $0x1b8] sm:$0xf]
    %v140 = vld [vmem:[%s0 + $0x1bc] sm:$0xf]
    %v141 = vld [vmem:[%s0 + $0x1c0] sm:$0xf]
    %v142 = vld [vmem:[%s0 + $0x1c4] sm:$0xf]
    %v143 = vld [vmem:[%s0 + $0x1c8] sm:$0xf]
    %v144 = vld [vmem:[%s0 + $0x1cc] sm:$0xf]
    %v145 = vld [vmem:[%s0 + $0x1d0] sm:$0xf]
    %v146 = vld [vmem:[%s0 + $0x1d4] sm:$0xf]
    %v147 = vld [vmem:[%s0 + $0x1d8] sm:$0xf]
    %v148 = vld [vmem:[%s0 + $0x1dc] sm:$0xf]
    %v149 = vld [vmem:[%s0 + $0x1e0] sm:$0xf]
    %v150 = vld [vmem:[%s0 + $0x1e4] sm:$0xf]
    %v151 = vld [vmem:[%s0 + $0x1e8] sm:$0xf]
    %v152 = vld [vmem:[%s0 + $0x1ec] sm:$0xf]
    %v153 = vld [vmem:[%s0 + $0x1f0] sm:$0xf]
    %v154 = vld [vmem:[%s0 + $0x1f4] sm:$0xf]
    %v155 = vld [vmem:[%s0 + $0x1f8] sm:$0xf]
    %v156 = vld [vmem:[%s0 + $0x1fc] sm:$0xf]
    %v157 = vld [vmem:[%s1] sm:$0x3]
    %v158 = vlaneseq
    %v159 = vshrl.u32 %v158, 7
    %v160 = vsub.s32 0, %v159
    %v161 = vrot.slane %v28, %v160
    %v290 = vunpack.c.l.b16 %v29
    %v291 = vunpack.c.l.b16 %v30
    %v292 = vunpack.c.l.b16 %v31
    %v293 = vunpack.c.l.b16 %v32
    %v294 = vunpack.c.l.b16 %v33
    %v295 = vunpack.c.l.b16 %v34
    %v296 = vunpack.c.l.b16 %v35
    %v297 = vunpack.c.l.b16 %v36
    %v298 = vunpack.c.l.b16 %v37
    %v299 = vunpack.c.l.b16 %v38
    %v300 = vunpack.c.l.b16 %v39
    %v301 = vunpack.c.l.b16 %v40
    %v302 = vunpack.c.l.b16 %v41
    %v303 = vunpack.c.l.b16 %v42
    %v304 = vunpack.c.l.b16 %v43
    %v305 = vunpack.c.l.b16 %v44
    %v306 = vunpack.c.l.b16 %v45
    %v307 = vunpack.c.l.b16 %v46
    %v308 = vunpack.c.l.b16 %v47
    %v309 = vunpack.c.l.b16 %v48
    %v310 = vunpack.c.l.b16 %v49
    %v311 = vunpack.c.l.b16 %v50
    %v312 = vunpack.c.l.b16 %v51
    %v313 = vunpack.c.l.b16 %v52
    %v314 = vunpack.c.l.b16 %v53
    %v315 = vunpack.c.l.b16 %v54
    %v316 = vunpack.c.l.b16 %v55
    %v317 = vunpack.c.l.b16 %v56
    %v318 = vunpack.c.l.b16 %v57
    %v319 = vunpack.c.l.b16 %v58
    %v320 = vunpack.c.l.b16 %v59
    %v321 = vunpack.c.l.b16 %v60
    %v322 = vunpack.c.l.b16 %v61
    %v323 = vunpack.c.l.b16 %v62
    %v324 = vunpack.c.l.b16 %v63
    %v325 = vunpack.c.l.b16 %v64
    %v326 = vunpack.c.l.b16 %v65
    %v327 = vunpack.c.l.b16 %v66
    %v328 = vunpack.c.l.b16 %v67
    %v329 = vunpack.c.l.b16 %v68
    %v330 = vunpack.c.l.b16 %v69
    %v331 = vunpack.c.l.b16 %v70
    %v332 = vunpack.c.l.b16 %v71
    %v333 = vunpack.c.l.b16 %v72
    %v334 = vunpack.c.l.b16 %v73
    %v335 = vunpack.c.l.b16 %v74
    %v336 = vunpack.c.l.b16 %v75
    %v337 = vunpack.c.l.b16 %v76
    %v338 = vunpack.c.l.b16 %v77
    %v339 = vunpack.c.l.b16 %v78
    %v340 = vunpack.c.l.b16 %v79
    %v341 = vunpack.c.l.b16 %v80
    %v342 = vunpack.c.l.b16 %v81
    %v343 = vunpack.c.l.b16 %v82
    %v344 = vunpack.c.l.b16 %v83
    %v345 = vunpack.c.l.b16 %v84
    %v346 = vunpack.c.l.b16 %v85
    %v347 = vunpack.c.l.b16 %v86
    %v348 = vunpack.c.l.b16 %v87
    %v349 = vunpack.c.l.b16 %v88
    %v350 = vunpack.c.l.b16 %v89
    %v351 = vunpack.c.l.b16 %v90
    %v352 = vunpack.c.l.b16 %v91
    %v353 = vunpack.c.l.b16 %v92
    %v354 = vunpack.c.l.b16 %v93
    %v355 = vunpack.c.l.b16 %v94
    %v356 = vunpack.c.l.b16 %v95
    %v357 = vunpack.c.l.b16 %v96
    %v358 = vunpack.c.l.b16 %v97
    %v359 = vunpack.c.l.b16 %v98
    %v360 = vunpack.c.l.b16 %v99
    %v361 = vunpack.c.l.b16 %v100
    %v362 = vunpack.c.l.b16 %v101
    %v363 = vunpack.c.l.b16 %v102
    %v364 = vunpack.c.l.b16 %v103
    %v365 = vunpack.c.l.b16 %v104
    %v366 = vunpack.c.l.b16 %v105
    %v367 = vunpack.c.l.b16 %v106
    %v368 = vunpack.c.l.b16 %v107
    %v369 = vunpack.c.l.b16 %v108
    %v370 = vunpack.c.l.b16 %v109
    %v371 = vunpack.c.l.b16 %v110
    %v372 = vunpack.c.l.b16 %v111
    %v373 = vunpack.c.l.b16 %v112
    %v374 = vunpack.c.l.b16 %v113
    %v375 = vunpack.c.l.b16 %v114
    %v376 = vunpack.c.l.b16 %v115
    %v377 = vunpack.c.l.b16 %v116
    %v378 = vunpack.c.l.b16 %v117
    %v379 = vunpack.c.l.b16 %v118
    %v380 = vunpack.c.l.b16 %v119
    %v381 = vunpack.c.l.b16 %v120
    %v382 = vunpack.c.l.b16 %v121
    %v383 = vunpack.c.l.b16 %v122
    %v384 = vunpack.c.l.b16 %v123
    %v385 = vunpack.c.l.b16 %v124
    %v386 = vunpack.c.l.b16 %v125
    %v387 = vunpack.c.l.b16 %v126
    %v388 = vunpack.c.l.b16 %v127
    %v389 = vunpack.c.l.b16 %v128
    %v390 = vunpack.c.l.b16 %v129
    %v391 = vunpack.c.l.b16 %v130
    %v392 = vunpack.c.l.b16 %v131
    %v393 = vunpack.c.l.b16 %v132
    %v394 = vunpack.c.l.b16 %v133
    %v395 = vunpack.c.l.b16 %v134
    %v396 = vunpack.c.l.b16 %v135
    %v397 = vunpack.c.l.b16 %v136
    %v398 = vunpack.c.l.b16 %v137
    %v399 = vunpack.c.l.b16 %v138
    %v400 = vunpack.c.l.b16 %v139
    %v401 = vunpack.c.l.b16 %v140
    %v402 = vunpack.c.l.b16 %v141
    %v403 = vunpack.c.l.b16 %v142
    %v404 = vunpack.c.l.b16 %v143
    %v405 = vunpack.c.l.b16 %v144
    %v406 = vunpack.c.l.b16 %v145
    %v407 = vunpack.c.l.b16 %v146
    %v408 = vunpack.c.l.b16 %v147
    %v409 = vunpack.c.l.b16 %v148
    %v410 = vunpack.c.l.b16 %v149
    %v411 = vunpack.c.l.b16 %v150
    %v412 = vunpack.c.l.b16 %v151
    %v413 = vunpack.c.l.b16 %v152
    %v414 = vunpack.c.l.b16 %v153
    %v415 = vunpack.c.l.b16 %v154
    %v416 = vunpack.c.l.b16 %v155
    %v417 = vunpack.c.l.b16 %v156
    %v418 = vpack.c.b16 %v291, %v290
    %v419 = vpack.c.b16 %v293, %v292
    %v420 = vpack.c.b16 %v295, %v294
    %v421 = vpack.c.b16 %v297, %v296
    %v422 = vpack.c.b16 %v299, %v298
    %v423 = vpack.c.b16 %v301, %v300
    %v424 = vpack.c.b16 %v303, %v302
    %v425 = vpack.c.b16 %v305, %v304
    %v426 = vpack.c.b16 %v307, %v306
    %v427 = vpack.c.b16 %v309, %v308
    %v428 = vpack.c.b16 %v311, %v310
    %v429 = vpack.c.b16 %v313, %v312
    %v430 = vpack.c.b16 %v315, %v314
    %v431 = vpack.c.b16 %v317, %v316
    %v432 = vpack.c.b16 %v319, %v318
    %v433 = vpack.c.b16 %v321, %v320
    %v434 = vpack.c.b16 %v323, %v322
    %v435 = vpack.c.b16 %v325, %v324
    %v436 = vpack.c.b16 %v327, %v326
    %v437 = vpack.c.b16 %v329, %v328
    %v438 = vpack.c.b16 %v331, %v330
    %v439 = vpack.c.b16 %v333, %v332
    %v440 = vpack.c.b16 %v335, %v334
    %v441 = vpack.c.b16 %v337, %v336
    %v442 = vpack.c.b16 %v339, %v338
    %v443 = vpack.c.b16 %v341, %v340
    %v444 = vpack.c.b16 %v343, %v342
    %v445 = vpack.c.b16 %v345, %v344
    %v446 = vpack.c.b16 %v347, %v346
    %v447 = vpack.c.b16 %v349, %v348
    %v448 = vpack.c.b16 %v351, %v350
    %v449 = vpack.c.b16 %v353, %v352
    %v450 = vpack.c.b16 %v355, %v354
    %v451 = vpack.c.b16 %v357, %v356
    %v452 = vpack.c.b16 %v359, %v358
    %v453 = vpack.c.b16 %v361, %v360
    %v454 = vpack.c.b16 %v363, %v362
    %v455 = vpack.c.b16 %v365, %v364
    %v456 = vpack.c.b16 %v367, %v366
    %v457 = vpack.c.b16 %v369, %v368
    %v458 = vpack.c.b16 %v371, %v370
    %v459 = vpack.c.b16 %v373, %v372
    %v460 = vpack.c.b16 %v375, %v374
    %v461 = vpack.c.b16 %v377, %v376
    %v462 = vpack.c.b16 %v379, %v378
    %v463 = vpack.c.b16 %v381, %v380
    %v464 = vpack.c.b16 %v383, %v382
    %v465 = vpack.c.b16 %v385, %v384
    %v466 = vpack.c.b16 %v387, %v386
    %v467 = vpack.c.b16 %v389, %v388
    %v468 = vpack.c.b16 %v391, %v390
    %v469 = vpack.c.b16 %v393, %v392
    %v470 = vpack.c.b16 %v395, %v394
    %v471 = vpack.c.b16 %v397, %v396
    %v472 = vpack.c.b16 %v399, %v398
    %v473 = vpack.c.b16 %v401, %v400
    %v474 = vpack.c.b16 %v403, %v402
    %v475 = vpack.c.b16 %v405, %v404
    %v476 = vpack.c.b16 %v407, %v406
    %v477 = vpack.c.b16 %v409, %v408
    %v478 = vpack.c.b16 %v411, %v410
    %v479 = vpack.c.b16 %v413, %v412
    %v480 = vpack.c.b16 %v415, %v414
    %v481 = vpack.c.b16 %v417, %v416
    %vm482 = vcmask 31744
    %v484 = vsel %vm482, %v418, 0
    %v487 = vsel %vm482, %v419, 0
    %v490 = vsel %vm482, %v420, 0
    %v493 = vsel %vm482, %v421, 0
    %v496 = vsel %vm482, %v422, 0
    %v499 = vsel %vm482, %v423, 0
    %v502 = vsel %vm482, %v424, 0
    %v505 = vsel %vm482, %v425, 0
    %v508 = vsel %vm482, %v426, 0
    %v511 = vsel %vm482, %v427, 0
    %v514 = vsel %vm482, %v428, 0
    %v517 = vsel %vm482, %v429, 0
    %v520 = vsel %vm482, %v430, 0
    %v523 = vsel %vm482, %v431, 0
    %v526 = vsel %vm482, %v432, 0
    %v529 = vsel %vm482, %v433, 0
    %v532 = vsel %vm482, %v434, 0
    %v535 = vsel %vm482, %v435, 0
    %v538 = vsel %vm482, %v436, 0
    %v541 = vsel %vm482, %v437, 0
    %v544 = vsel %vm482, %v438, 0
    %v547 = vsel %vm482, %v439, 0
    %v550 = vsel %vm482, %v440, 0
    %v553 = vsel %vm482, %v441, 0
    %v556 = vsel %vm482, %v442, 0
    %v559 = vsel %vm482, %v443, 0
    %v562 = vsel %vm482, %v444, 0
    %v565 = vsel %vm482, %v445, 0
    %v568 = vsel %vm482, %v446, 0
    %v571 = vsel %vm482, %v447, 0
    %v574 = vsel %vm482, %v448, 0
    %v577 = vsel %vm482, %v449, 0
    %v580 = vsel %vm482, %v450, 0
    %v583 = vsel %vm482, %v451, 0
    %v586 = vsel %vm482, %v452, 0
    %v589 = vsel %vm482, %v453, 0
    %v592 = vsel %vm482, %v454, 0
    %v595 = vsel %vm482, %v455, 0
    %v598 = vsel %vm482, %v456, 0
    %v601 = vsel %vm482, %v457, 0
    %v604 = vsel %vm482, %v458, 0
    %v607 = vsel %vm482, %v459, 0
    %v610 = vsel %vm482, %v460, 0
    %v613 = vsel %vm482, %v461, 0
    %v616 = vsel %vm482, %v462, 0
    %v619 = vsel %vm482, %v463, 0
    %v622 = vsel %vm482, %v464, 0
    %v625 = vsel %vm482, %v465, 0
    %v628 = vsel %vm482, %v466, 0
    %v631 = vsel %vm482, %v467, 0
    %v634 = vsel %vm482, %v468, 0
    %v637 = vsel %vm482, %v469, 0
    %v640 = vsel %vm482, %v470, 0
    %v643 = vsel %vm482, %v471, 0
    %v646 = vsel %vm482, %v472, 0
    %v649 = vsel %vm482, %v473, 0
    %v652 = vsel %vm482, %v474, 0
    %v655 = vsel %vm482, %v475, 0
    %v658 = vsel %vm482, %v476, 0
    %v661 = vsel %vm482, %v477, 0
    %v664 = vsel %vm482, %v478, 0
    %v667 = vsel %vm482, %v479, 0
    %v670 = vsel %vm482, %v480, 0
    %v673 = vsel %vm482, %v481, 0
    %vm675 = vcmask 1041408
    %v677 = vsel %vm675, %v157, 0
    %679 = vmatprep.subr.bf16.mxu0 0
    %680 = vmatpush1.bf16.msra.mxu0 %v677
    %681 = vmatprep.subr.bf16.mxu0 0
    %682 = vmatpush1.bf16.msra.mxu0 0
    %683 = vmatprep.subr.bf16.mxu0 0
    %684 = vmatpush1.bf16.msra.mxu0 0
    %685 = vmatprep.subr.bf16.mxu0 0
    %686 = vmatpush1.bf16.msra.mxu0 0
    %687 = vmatprep.subr.bf16.mxu0 0
    %688 = vmatpush1.bf16.msra.mxu0 0
    %689 = vmatprep.subr.bf16.mxu0 0
    %690 = vmatpush1.bf16.msra.mxu0 0
    %691 = vmatprep.subr.bf16.mxu0 0
    %692 = vmatpush1.bf16.msra.mxu0 0
    %693 = vmatprep.subr.bf16.mxu0 0
    %694 = vmatpush1.bf16.msra.mxu0 0
    %695 = vmatprep.subr.bf16.mxu0 0
    %696 = vmatpush1.bf16.msra.mxu0 0
    %697 = vmatprep.subr.bf16.mxu0 0
    %698 = vmatpush1.bf16.msra.mxu0 0
    %699 = vmatprep.subr.bf16.mxu0 0
    %700 = vmatpush1.bf16.msra.mxu0 0
    %701 = vmatprep.subr.bf16.mxu0 0
    %702 = vmatpush1.bf16.msra.mxu0 0
    %703 = vmatprep.subr.bf16.mxu0 0
    %704 = vmatpush1.bf16.msra.mxu0 0
    %705 = vmatprep.subr.bf16.mxu0 0
    %706 = vmatpush1.bf16.msra.mxu0 0
    %707 = vmatprep.subr.bf16.mxu0 0
    %708 = vmatpush1.bf16.msra.mxu0 0
    %709 = vmatprep.subr.bf16.mxu0 0
    %710 = vmatpush1.bf16.msra.mxu0 0
    %711 = vmatprep.mubr.bf16.mxu0 0
    %712 = vmatmul.mubr.bf16.gmra.mrb[0].mxu0 %v484
    %v713 = vpop.f32.mrb[0].mxu0
    %v714 = vadd.f32 %v161, %v713
    %v715 = vpop.f32.mrb[0].mxu0
    %v716 = vpop.f32.mrb[0].mxu0
    %v717 = vadd.f32 %v161, %v716
    %v718 = vpop.f32.mrb[0].mxu0
    %719 = vmatprep.mubr.bf16.mxu0 0
    %720 = vmatmul.mubr.bf16.gmra.mrb[0].mxu0 %v487
    %v721 = vpop.f32.mrb[0].mxu0
    %v722 = vadd.f32 %v161, %v721
    %v723 = vpop.f32.mrb[0].mxu0
    %v724 = vpop.f32.mrb[0].mxu0
    %v725 = vadd.f32 %v161, %v724
    %v726 = vpop.f32.mrb[0].mxu0
    %727 = vmatprep.mubr.bf16.mxu0 0
    %728 = vmatmul.mubr.bf16.gmra.mrb[0].mxu0 %v490
    %v729 = vpop.f32.mrb[0].mxu0
    %v730 = vadd.f32 %v161, %v729
    %v731 = vpop.f32.mrb[0].mxu0
    %v732 = vpop.f32.mrb[0].mxu0
    %v733 = vadd.f32 %v161, %v732
    %v734 = vpop.f32.mrb[0].mxu0
    %735 = vmatprep.mubr.bf16.mxu0 0
    %736 = vmatmul.mubr.bf16.gmra.mrb[0].mxu0 %v493
    %v737 = vpop.f32.mrb[0].mxu0
    %v738 = vadd.f32 %v161, %v737
    %v739 = vpop.f32.mrb[0].mxu0
    %v740 = vpop.f32.mrb[0].mxu0
    %v741 = vadd.f32 %v161, %v740
    %v742 = vpop.f32.mrb[0].mxu0
    %743 = vmatprep.mubr.bf16.mxu0 0
    %744 = vmatmul.mubr.bf16.gmra.mrb[0].mxu0 %v496
    %v745 = vpop.f32.mrb[0].mxu0
    %v746 = vadd.f32 %v161, %v745
    %v747 = vpop.f32.mrb[0].mxu0
    %v748 = vpop.f32.mrb[0].mxu0
    %v749 = vadd.f32 %v161, %v748
    %v750 = vpop.f32.mrb[0].mxu0
    %751 = vmatprep.mubr.bf16.mxu0 0
    %752 = vmatmul.mubr.bf16.gmra.mrb[0].mxu0 %v499
    %v753 = vpop.f32.mrb[0].mxu0
    %v754 = vadd.f32 %v161, %v753
    %v755 = vpop.f32.mrb[0].mxu0
    %v756 = vpop.f32.mrb[0].mxu0
    %v757 = vadd.f32 %v161, %v756
    %v758 = vpop.f32.mrb[0].mxu0
    %759 = vmatprep.mubr.bf16.mxu0 0
    %760 = vmatmul.mubr.bf16.gmra.mrb[0].mxu0 %v502
    %v761 = vpop.f32.mrb[0].mxu0
    %v762 = vadd.f32 %v161, %v761
    %v763 = vpop.f32.mrb[0].mxu0
    %v764 = vpop.f32.mrb[0].mxu0
    %v765 = vadd.f32 %v161, %v764
    %v766 = vpop.f32.mrb[0].mxu0
    %767 = vmatprep.mubr.bf16.mxu0 0
    %768 = vmatmul.mubr.bf16.gmra.mrb[0].mxu0 %v505
    %v769 = vpop.f32.mrb[0].mxu0
    %v770 = vadd.f32 %v161, %v769
    %v771 = vpop.f32.mrb[0].mxu0
    %v772 = vpop.f32.mrb[0].mxu0
    %v773 = vadd.f32 %v161, %v772
    %v774 = vpop.f32.mrb[0].mxu0
    %775 = vmatprep.mubr.bf16.mxu0 0
    %776 = vmatmul.mubr.bf16.gmra.mrb[0].mxu0 %v508
    %v777 = vpop.f32.mrb[0].mxu0
    %v778 = vadd.f32 %v161, %v777
    %v779 = vpop.f32.mrb[0].mxu0
    %v780 = vpop.f32.mrb[0].mxu0
    %v781 = vadd.f32 %v161, %v780
    %v782 = vpop.f32.mrb[0].mxu0
    %783 = vmatprep.mubr.bf16.mxu0 0
    %784 = vmatmul.mubr.bf16.gmra.mrb[0].mxu0 %v511
    %v785 = vpop.f32.mrb[0].mxu0
    %v786 = vadd.f32 %v161, %v785
    %v787 = vpop.f32.mrb[0].mxu0
    %v788 = vpop.f32.mrb[0].mxu0
    %v789 = vadd.f32 %v161, %v788
    %v790 = vpop.f32.mrb[0].mxu0
    %791 = vmatprep.mubr.bf16.mxu0 0
    %792 = vmatmul.mubr.bf16.gmra.mrb[0].mxu0 %v514
    %v793 = vpop.f32.mrb[0].mxu0
    %v794 = vadd.f32 %v161, %v793
    %v795 = vpop.f32.mrb[0].mxu0
    %v796 = vpop.f32.mrb[0].mxu0
    %v797 = vadd.f32 %v161, %v796
    %v798 = vpop.f32.mrb[0].mxu0
    %799 = vmatprep.mubr.bf16.mxu0 0
    %800 = vmatmul.mubr.bf16.gmra.mrb[0].mxu0 %v517
    %v801 = vpop.f32.mrb[0].mxu0
    %v802 = vadd.f32 %v161, %v801
    %v803 = vpop.f32.mrb[0].mxu0
    %v804 = vpop.f32.mrb[0].mxu0
    %v805 = vadd.f32 %v161, %v804
    %v806 = vpop.f32.mrb[0].mxu0
    %807 = vmatprep.mubr.bf16.mxu0 0
    %808 = vmatmul.mubr.bf16.gmra.mrb[0].mxu0 %v520
    %v809 = vpop.f32.mrb[0].mxu0
    %v810 = vadd.f32 %v161, %v809
    %v811 = vpop.f32.mrb[0].mxu0
    %v812 = vpop.f32.mrb[0].mxu0
    %v813 = vadd.f32 %v161, %v812
    %v814 = vpop.f32.mrb[0].mxu0
    %815 = vmatprep.mubr.bf16.mxu0 0
    %816 = vmatmul.mubr.bf16.gmra.mrb[0].mxu0 %v523
    %v817 = vpop.f32.mrb[0].mxu0
    %v818 = vadd.f32 %v161, %v817
    %v819 = vpop.f32.mrb[0].mxu0
    %v820 = vpop.f32.mrb[0].mxu0
    %v821 = vadd.f32 %v161, %v820
    %v822 = vpop.f32.mrb[0].mxu0
    %823 = vmatprep.mubr.bf16.mxu0 0
    %824 = vmatmul.mubr.bf16.gmra.mrb[0].mxu0 %v526
    %v825 = vpop.f32.mrb[0].mxu0
    %v826 = vadd.f32 %v161, %v825
    %v827 = vpop.f32.mrb[0].mxu0
    %v828 = vpop.f32.mrb[0].mxu0
    %v829 = vadd.f32 %v161, %v828
    %v830 = vpop.f32.mrb[0].mxu0
    %831 = vmatprep.mubr.bf16.mxu0 0
    %832 = vmatmul.mubr.bf16.gmra.mrb[0].mxu0 %v529
    %v833 = vpop.f32.mrb[0].mxu0
    %v834 = vadd.f32 %v161, %v833
    %v835 = vpop.f32.mrb[0].mxu0
    %v836 = vpop.f32.mrb[0].mxu0
    %v837 = vadd.f32 %v161, %v836
    %v838 = vpop.f32.mrb[0].mxu0
    %839 = vmatprep.mubr.bf16.mxu0 0
    %840 = vmatmul.mubr.bf16.gmra.mrb[0].mxu0 %v532
    %v841 = vpop.f32.mrb[0].mxu0
    %v842 = vadd.f32 %v161, %v841
    %v843 = vpop.f32.mrb[0].mxu0
    %v844 = vpop.f32.mrb[0].mxu0
    %v845 = vadd.f32 %v161, %v844
    %v846 = vpop.f32.mrb[0].mxu0
    %847 = vmatprep.mubr.bf16.mxu0 0
    %848 = vmatmul.mubr.bf16.gmra.mrb[0].mxu0 %v535
    %v849 = vpop.f32.mrb[0].mxu0
    %v850 = vadd.f32 %v161, %v849
    %v851 = vpop.f32.mrb[0].mxu0
    %v852 = vpop.f32.mrb[0].mxu0
    %v853 = vadd.f32 %v161, %v852
    %v854 = vpop.f32.mrb[0].mxu0
    %855 = vmatprep.mubr.bf16.mxu0 0
    %856 = vmatmul.mubr.bf16.gmra.mrb[0].mxu0 %v538
    %v857 = vpop.f32.mrb[0].mxu0
    %v858 = vadd.f32 %v161, %v857
    %v859 = vpop.f32.mrb[0].mxu0
    %v860 = vpop.f32.mrb[0].mxu0
    %v861 = vadd.f32 %v161, %v860
    %v862 = vpop.f32.mrb[0].mxu0
    %863 = vmatprep.mubr.bf16.mxu0 0
    %864 = vmatmul.mubr.bf16.gmra.mrb[0].mxu0 %v541
    %v865 = vpop.f32.mrb[0].mxu0
    %v866 = vadd.f32 %v161, %v865
    %v867 = vpop.f32.mrb[0].mxu0
    %v868 = vpop.f32.mrb[0].mxu0
    %v869 = vadd.f32 %v161, %v868
    %v870 = vpop.f32.mrb[0].mxu0
    %871 = vmatprep.mubr.bf16.mxu0 0
    %872 = vmatmul.mubr.bf16.gmra.mrb[0].mxu0 %v544
    %v873 = vpop.f32.mrb[0].mxu0
    %v874 = vadd.f32 %v161, %v873
    %v875 = vpop.f32.mrb[0].mxu0
    %v876 = vpop.f32.mrb[0].mxu0
    %v877 = vadd.f32 %v161, %v876
    %v878 = vpop.f32.mrb[0].mxu0
    %879 = vmatprep.mubr.bf16.mxu0 0
    %880 = vmatmul.mubr.bf16.gmra.mrb[0].mxu0 %v547
    %v881 = vpop.f32.mrb[0].mxu0
    %v882 = vadd.f32 %v161, %v881
    %v883 = vpop.f32.mrb[0].mxu0
    %v884 = vpop.f32.mrb[0].mxu0
    %v885 = vadd.f32 %v161, %v884
    %v886 = vpop.f32.mrb[0].mxu0
    %887 = vmatprep.mubr.bf16.mxu0 0
    %888 = vmatmul.mubr.bf16.gmra.mrb[0].mxu0 %v550
    %v889 = vpop.f32.mrb[0].mxu0
    %v890 = vadd.f32 %v161, %v889
    %v891 = vpop.f32.mrb[0].mxu0
    %v892 = vpop.f32.mrb[0].mxu0
    %v893 = vadd.f32 %v161, %v892
    %v894 = vpop.f32.mrb[0].mxu0
    %895 = vmatprep.mubr.bf16.mxu0 0
    %896 = vmatmul.mubr.bf16.gmra.mrb[0].mxu0 %v553
    %v897 = vpop.f32.mrb[0].mxu0
    %v898 = vadd.f32 %v161, %v897
    %v899 = vpop.f32.mrb[0].mxu0
    %v900 = vpop.f32.mrb[0].mxu0
    %v901 = vadd.f32 %v161, %v900
    %v902 = vpop.f32.mrb[0].mxu0
    %903 = vmatprep.mubr.bf16.mxu0 0
    %904 = vmatmul.mubr.bf16.gmra.mrb[0].mxu0 %v556
    %v905 = vpop.f32.mrb[0].mxu0
    %v906 = vadd.f32 %v161, %v905
    %v907 = vpop.f32.mrb[0].mxu0
    %v908 = vpop.f32.mrb[0].mxu0
    %v909 = vadd.f32 %v161, %v908
    %v910 = vpop.f32.mrb[0].mxu0
    %911 = vmatprep.mubr.bf16.mxu0 0
    %912 = vmatmul.mubr.bf16.gmra.mrb[0].mxu0 %v559
    %v913 = vpop.f32.mrb[0].mxu0
    %v914 = vadd.f32 %v161, %v913
    %v915 = vpop.f32.mrb[0].mxu0
    %v916 = vpop.f32.mrb[0].mxu0
    %v917 = vadd.f32 %v161, %v916
    %v918 = vpop.f32.mrb[0].mxu0
    %919 = vmatprep.mubr.bf16.mxu0 0
    %920 = vmatmul.mubr.bf16.gmra.mrb[0].mxu0 %v562
    %v921 = vpop.f32.mrb[0].mxu0
    %v922 = vadd.f32 %v161, %v921
    %v923 = vpop.f32.mrb[0].mxu0
    %v924 = vpop.f32.mrb[0].mxu0
    %v925 = vadd.f32 %v161, %v924
    %v926 = vpop.f32.mrb[0].mxu0
    %927 = vmatprep.mubr.bf16.mxu0 0
    %928 = vmatmul.mubr.bf16.gmra.mrb[0].mxu0 %v565
    %v929 = vpop.f32.mrb[0].mxu0
    %v930 = vadd.f32 %v161, %v929
    %v931 = vpop.f32.mrb[0].mxu0
    %v932 = vpop.f32.mrb[0].mxu0
    %v933 = vadd.f32 %v161, %v932
    %v934 = vpop.f32.mrb[0].mxu0
    %935 = vmatprep.mubr.bf16.mxu0 0
    %936 = vmatmul.mubr.bf16.gmra.mrb[0].mxu0 %v568
    %v937 = vpop.f32.mrb[0].mxu0
    %v938 = vadd.f32 %v161, %v937
    %v939 = vpop.f32.mrb[0].mxu0
    %v940 = vpop.f32.mrb[0].mxu0
    %v941 = vadd.f32 %v161, %v940
    %v942 = vpop.f32.mrb[0].mxu0
    %943 = vmatprep.mubr.bf16.mxu0 0
    %944 = vmatmul.mubr.bf16.gmra.mrb[0].mxu0 %v571
    %v945 = vpop.f32.mrb[0].mxu0
    %v946 = vadd.f32 %v161, %v945
    %v947 = vpop.f32.mrb[0].mxu0
    %v948 = vpop.f32.mrb[0].mxu0
    %v949 = vadd.f32 %v161, %v948
    %v950 = vpop.f32.mrb[0].mxu0
    %951 = vmatprep.mubr.bf16.mxu0 0
    %952 = vmatmul.mubr.bf16.gmra.mrb[0].mxu0 %v574
    %v953 = vpop.f32.mrb[0].mxu0
    %v954 = vadd.f32 %v161, %v953
    %v955 = vpop.f32.mrb[0].mxu0
    %v956 = vpop.f32.mrb[0].mxu0
    %v957 = vadd.f32 %v161, %v956
    %v958 = vpop.f32.mrb[0].mxu0
    %959 = vmatprep.mubr.bf16.mxu0 0
    %960 = vmatmul.mubr.bf16.gmra.mrb[0].mxu0 %v577
    %v961 = vpop.f32.mrb[0].mxu0
    %v962 = vadd.f32 %v161, %v961
    %v963 = vpop.f32.mrb[0].mxu0
    %v964 = vpop.f32.mrb[0].mxu0
    %v965 = vadd.f32 %v161, %v964
    %v966 = vpop.f32.mrb[0].mxu0
    %967 = vmatprep.mubr.bf16.mxu0 0
    %968 = vmatmul.mubr.bf16.gmra.mrb[0].mxu0 %v580
    %v969 = vpop.f32.mrb[0].mxu0
    %v970 = vadd.f32 %v161, %v969
    %v971 = vpop.f32.mrb[0].mxu0
    %v972 = vpop.f32.mrb[0].mxu0
    %v973 = vadd.f32 %v161, %v972
    %v974 = vpop.f32.mrb[0].mxu0
    %975 = vmatprep.mubr.bf16.mxu0 0
    %976 = vmatmul.mubr.bf16.gmra.mrb[0].mxu0 %v583
    %v977 = vpop.f32.mrb[0].mxu0
    %v978 = vadd.f32 %v161, %v977
    %v979 = vpop.f32.mrb[0].mxu0
    %v980 = vpop.f32.mrb[0].mxu0
    %v981 = vadd.f32 %v161, %v980
    %v982 = vpop.f32.mrb[0].mxu0
    %983 = vmatprep.mubr.bf16.mxu0 0
    %984 = vmatmul.mubr.bf16.gmra.mrb[0].mxu0 %v586
    %v985 = vpop.f32.mrb[0].mxu0
    %v986 = vadd.f32 %v161, %v985
    %v987 = vpop.f32.mrb[0].mxu0
    %v988 = vpop.f32.mrb[0].mxu0
    %v989 = vadd.f32 %v161, %v988
    %v990 = vpop.f32.mrb[0].mxu0
    %991 = vmatprep.mubr.bf16.mxu0 0
    %992 = vmatmul.mubr.bf16.gmra.mrb[0].mxu0 %v589
    %v993 = vpop.f32.mrb[0].mxu0
    %v994 = vadd.f32 %v161, %v993
    %v995 = vpop.f32.mrb[0].mxu0
    %v996 = vpop.f32.mrb[0].mxu0
    %v997 = vadd.f32 %v161, %v996
    %v998 = vpop.f32.mrb[0].mxu0
    %999 = vmatprep.mubr.bf16.mxu0 0
    %1000 = vmatmul.mubr.bf16.gmra.mrb[0].mxu0 %v592
    %v1001 = vpop.f32.mrb[0].mxu0
    %v1002 = vadd.f32 %v161, %v1001
    %v1003 = vpop.f32.mrb[0].mxu0
    %v1004 = vpop.f32.mrb[0].mxu0
    %v1005 = vadd.f32 %v161, %v1004
    %v1006 = vpop.f32.mrb[0].mxu0
    %1007 = vmatprep.mubr.bf16.mxu0 0
    %1008 = vmatmul.mubr.bf16.gmra.mrb[0].mxu0 %v595
    %v1009 = vpop.f32.mrb[0].mxu0
    %v1010 = vadd.f32 %v161, %v1009
    %v1011 = vpop.f32.mrb[0].mxu0
    %v1012 = vpop.f32.mrb[0].mxu0
    %v1013 = vadd.f32 %v161, %v1012
    %v1014 = vpop.f32.mrb[0].mxu0
    %1015 = vmatprep.mubr.bf16.mxu0 0
    %1016 = vmatmul.mubr.bf16.gmra.mrb[0].mxu0 %v598
    %v1017 = vpop.f32.mrb[0].mxu0
    %v1018 = vadd.f32 %v161, %v1017
    %v1019 = vpop.f32.mrb[0].mxu0
    %v1020 = vpop.f32.mrb[0].mxu0
    %v1021 = vadd.f32 %v161, %v1020
    %v1022 = vpop.f32.mrb[0].mxu0
    %1023 = vmatprep.mubr.bf16.mxu0 0
    %1024 = vmatmul.mubr.bf16.gmra.mrb[0].mxu0 %v601
    %v1025 = vpop.f32.mrb[0].mxu0
    %v1026 = vadd.f32 %v161, %v1025
    %v1027 = vpop.f32.mrb[0].mxu0
    %v1028 = vpop.f32.mrb[0].mxu0
    %v1029 = vadd.f32 %v161, %v1028
    %v1030 = vpop.f32.mrb[0].mxu0
    %1031 = vmatprep.mubr.bf16.mxu0 0
    %1032 = vmatmul.mubr.bf16.gmra.mrb[0].mxu0 %v604
    %v1033 = vpop.f32.mrb[0].mxu0
    %v1034 = vadd.f32 %v161, %v1033
    %v1035 = vpop.f32.mrb[0].mxu0
    %v1036 = vpop.f32.mrb[0].mxu0
    %v1037 = vadd.f32 %v161, %v1036
    %v1038 = vpop.f32.mrb[0].mxu0
    %1039 = vmatprep.mubr.bf16.mxu0 0
    %1040 = vmatmul.mubr.bf16.gmra.mrb[0].mxu0 %v607
    %v1041 = vpop.f32.mrb[0].mxu0
    %v1042 = vadd.f32 %v161, %v1041
    %v1043 = vpop.f32.mrb[0].mxu0
    %v1044 = vpop.f32.mrb[0].mxu0
    %v1045 = vadd.f32 %v161, %v1044
    %v1046 = vpop.f32.mrb[0].mxu0
    %1047 = vmatprep.mubr.bf16.mxu0 0
    %1048 = vmatmul.mubr.bf16.gmra.mrb[0].mxu0 %v610
    %v1049 = vpop.f32.mrb[0].mxu0
    %v1050 = vadd.f32 %v161, %v1049
    %v1051 = vpop.f32.mrb[0].mxu0
    %v1052 = vpop.f32.mrb[0].mxu0
    %v1053 = vadd.f32 %v161, %v1052
    %v1054 = vpop.f32.mrb[0].mxu0
    %1055 = vmatprep.mubr.bf16.mxu0 0
    %1056 = vmatmul.mubr.bf16.gmra.mrb[0].mxu0 %v613
    %v1057 = vpop.f32.mrb[0].mxu0
    %v1058 = vadd.f32 %v161, %v1057
    %v1059 = vpop.f32.mrb[0].mxu0
    %v1060 = vpop.f32.mrb[0].mxu0
    %v1061 = vadd.f32 %v161, %v1060
    %v1062 = vpop.f32.mrb[0].mxu0
    %1063 = vmatprep.mubr.bf16.mxu0 0
    %1064 = vmatmul.mubr.bf16.gmra.mrb[0].mxu0 %v616
    %v1065 = vpop.f32.mrb[0].mxu0
    %v1066 = vadd.f32 %v161, %v1065
    %v1067 = vpop.f32.mrb[0].mxu0
    %v1068 = vpop.f32.mrb[0].mxu0
    %v1069 = vadd.f32 %v161, %v1068
    %v1070 = vpop.f32.mrb[0].mxu0
    %1071 = vmatprep.mubr.bf16.mxu0 0
    %1072 = vmatmul.mubr.bf16.gmra.mrb[0].mxu0 %v619
    %v1073 = vpop.f32.mrb[0].mxu0
    %v1074 = vadd.f32 %v161, %v1073
    %v1075 = vpop.f32.mrb[0].mxu0
    %v1076 = vpop.f32.mrb[0].mxu0
    %v1077 = vadd.f32 %v161, %v1076
    %v1078 = vpop.f32.mrb[0].mxu0
    %1079 = vmatprep.mubr.bf16.mxu0 0
    %1080 = vmatmul.mubr.bf16.gmra.mrb[0].mxu0 %v622
    %v1081 = vpop.f32.mrb[0].mxu0
    %v1082 = vadd.f32 %v161, %v1081
    %v1083 = vpop.f32.mrb[0].mxu0
    %v1084 = vpop.f32.mrb[0].mxu0
    %v1085 = vadd.f32 %v161, %v1084
    %v1086 = vpop.f32.mrb[0].mxu0
    %1087 = vmatprep.mubr.bf16.mxu0 0
    %1088 = vmatmul.mubr.bf16.gmra.mrb[0].mxu0 %v625
    %v1089 = vpop.f32.mrb[0].mxu0
    %v1090 = vadd.f32 %v161, %v1089
    %v1091 = vpop.f32.mrb[0].mxu0
    %v1092 = vpop.f32.mrb[0].mxu0
    %v1093 = vadd.f32 %v161, %v1092
    %v1094 = vpop.f32.mrb[0].mxu0
    %1095 = vmatprep.mubr.bf16.mxu0 0
    %1096 = vmatmul.mubr.bf16.gmra.mrb[0].mxu0 %v628
    %v1097 = vpop.f32.mrb[0].mxu0
    %v1098 = vadd.f32 %v161, %v1097
    %v1099 = vpop.f32.mrb[0].mxu0
    %v1100 = vpop.f32.mrb[0].mxu0
    %v1101 = vadd.f32 %v161, %v1100
    %v1102 = vpop.f32.mrb[0].mxu0
    %1103 = vmatprep.mubr.bf16.mxu0 0
    %1104 = vmatmul.mubr.bf16.gmra.mrb[0].mxu0 %v631
    %v1105 = vpop.f32.mrb[0].mxu0
    %v1106 = vadd.f32 %v161, %v1105
    %v1107 = vpop.f32.mrb[0].mxu0
    %v1108 = vpop.f32.mrb[0].mxu0
    %v1109 = vadd.f32 %v161, %v1108
    %v1110 = vpop.f32.mrb[0].mxu0
    %1111 = vmatprep.mubr.bf16.mxu0 0
    %1112 = vmatmul.mubr.bf16.gmra.mrb[0].mxu0 %v634
    %v1113 = vpop.f32.mrb[0].mxu0
    %v1114 = vadd.f32 %v161, %v1113
    %v1115 = vpop.f32.mrb[0].mxu0
    %v1116 = vpop.f32.mrb[0].mxu0
    %v1117 = vadd.f32 %v161, %v1116
    %v1118 = vpop.f32.mrb[0].mxu0
    %1119 = vmatprep.mubr.bf16.mxu0 0
    %1120 = vmatmul.mubr.bf16.gmra.mrb[0].mxu0 %v637
    %v1121 = vpop.f32.mrb[0].mxu0
    %v1122 = vadd.f32 %v161, %v1121
    %v1123 = vpop.f32.mrb[0].mxu0
    %v1124 = vpop.f32.mrb[0].mxu0
    %v1125 = vadd.f32 %v161, %v1124
    %v1126 = vpop.f32.mrb[0].mxu0
    %1127 = vmatprep.mubr.bf16.mxu0 0
    %1128 = vmatmul.mubr.bf16.gmra.mrb[0].mxu0 %v640
    %v1129 = vpop.f32.mrb[0].mxu0
    %v1130 = vadd.f32 %v161, %v1129
    %v1131 = vpop.f32.mrb[0].mxu0
    %v1132 = vpop.f32.mrb[0].mxu0
    %v1133 = vadd.f32 %v161, %v1132
    %v1134 = vpop.f32.mrb[0].mxu0
    %1135 = vmatprep.mubr.bf16.mxu0 0
    %1136 = vmatmul.mubr.bf16.gmra.mrb[0].mxu0 %v643
    %v1137 = vpop.f32.mrb[0].mxu0
    %v1138 = vadd.f32 %v161, %v1137
    %v1139 = vpop.f32.mrb[0].mxu0
    %v1140 = vpop.f32.mrb[0].mxu0
    %v1141 = vadd.f32 %v161, %v1140
    %v1142 = vpop.f32.mrb[0].mxu0
    %1143 = vmatprep.mubr.bf16.mxu0 0
    %1144 = vmatmul.mubr.bf16.gmra.mrb[0].mxu0 %v646
    %v1145 = vpop.f32.mrb[0].mxu0
    %v1146 = vadd.f32 %v161, %v1145
    %v1147 = vpop.f32.mrb[0].mxu0
    %v1148 = vpop.f32.mrb[0].mxu0
    %v1149 = vadd.f32 %v161, %v1148
    %v1150 = vpop.f32.mrb[0].mxu0
    %1151 = vmatprep.mubr.bf16.mxu0 0
    %1152 = vmatmul.mubr.bf16.gmra.mrb[0].mxu0 %v649
    %v1153 = vpop.f32.mrb[0].mxu0
    %v1154 = vadd.f32 %v161, %v1153
    %v1155 = vpop.f32.mrb[0].mxu0
    %v1156 = vpop.f32.mrb[0].mxu0
    %v1157 = vadd.f32 %v161, %v1156
    %v1158 = vpop.f32.mrb[0].mxu0
    %1159 = vmatprep.mubr.bf16.mxu0 0
    %1160 = vmatmul.mubr.bf16.gmra.mrb[0].mxu0 %v652
    %v1161 = vpop.f32.mrb[0].mxu0
    %v1162 = vadd.f32 %v161, %v1161
    %v1163 = vpop.f32.mrb[0].mxu0
    %v1164 = vpop.f32.mrb[0].mxu0
    %v1165 = vadd.f32 %v161, %v1164
    %v1166 = vpop.f32.mrb[0].mxu0
    %1167 = vmatprep.mubr.bf16.mxu0 0
    %1168 = vmatmul.mubr.bf16.gmra.mrb[0].mxu0 %v655
    %v1169 = vpop.f32.mrb[0].mxu0
    %v1170 = vadd.f32 %v161, %v1169
    %v1171 = vpop.f32.mrb[0].mxu0
    %v1172 = vpop.f32.mrb[0].mxu0
    %v1173 = vadd.f32 %v161, %v1172
    %v1174 = vpop.f32.mrb[0].mxu0
    %1175 = vmatprep.mubr.bf16.mxu0 0
    %1176 = vmatmul.mubr.bf16.gmra.mrb[0].mxu0 %v658
    %v1177 = vpop.f32.mrb[0].mxu0
    %v1178 = vadd.f32 %v161, %v1177
    %v1179 = vpop.f32.mrb[0].mxu0
    %v1180 = vpop.f32.mrb[0].mxu0
    %v1181 = vadd.f32 %v161, %v1180
    %v1182 = vpop.f32.mrb[0].mxu0
    %1183 = vmatprep.mubr.bf16.mxu0 0
    %1184 = vmatmul.mubr.bf16.gmra.mrb[0].mxu0 %v661
    %v1185 = vpop.f32.mrb[0].mxu0
    %v1186 = vadd.f32 %v161, %v1185
    %v1187 = vpop.f32.mrb[0].mxu0
    %v1188 = vpop.f32.mrb[0].mxu0
    %v1189 = vadd.f32 %v161, %v1188
    %v1190 = vpop.f32.mrb[0].mxu0
    %1191 = vmatprep.mubr.bf16.mxu0 0
    %1192 = vmatmul.mubr.bf16.gmra.mrb[0].mxu0 %v664
    %v1193 = vpop.f32.mrb[0].mxu0
    %v1194 = vadd.f32 %v161, %v1193
    %v1195 = vpop.f32.mrb[0].mxu0
    %v1196 = vpop.f32.mrb[0].mxu0
    %v1197 = vadd.f32 %v161, %v1196
    %v1198 = vpop.f32.mrb[0].mxu0
    %1199 = vmatprep.mubr.bf16.mxu0 0
    %1200 = vmatmul.mubr.bf16.gmra.mrb[0].mxu0 %v667
    %v1201 = vpop.f32.mrb[0].mxu0
    %v1202 = vadd.f32 %v161, %v1201
    %v1203 = vpop.f32.mrb[0].mxu0
    %v1204 = vpop.f32.mrb[0].mxu0
    %v1205 = vadd.f32 %v161, %v1204
    %v1206 = vpop.f32.mrb[0].mxu0
    %1207 = vmatprep.mubr.bf16.mxu0 0
    %1208 = vmatmul.mubr.bf16.gmra.mrb[0].mxu0 %v670
    %v1209 = vpop.f32.mrb[0].mxu0
    %v1210 = vadd.f32 %v161, %v1209
    %v1211 = vpop.f32.mrb[0].mxu0
    %v1212 = vpop.f32.mrb[0].mxu0
    %v1213 = vadd.f32 %v161, %v1212
    %v1214 = vpop.f32.mrb[0].mxu0
    %1215 = vmatprep.mubr.bf16.mxu0 0
    %1216 = vmatmul.mubr.bf16.gmra.mrb[0].mxu0 %v673
    %v1217 = vpop.f32.mrb[0].mxu0
    %v1218 = vadd.f32 %v161, %v1217
    %v1219 = vpop.f32.mrb[0].mxu0
    %v1220 = vpop.f32.mrb[0].mxu0
    %v1221 = vadd.f32 %v161, %v1220
    %v1222 = vpop.f32.mrb[0].mxu0
    %1223 = vdwg.mxu0
    %vm1224 = vcmask 785408
    %1225 = vst.msk [vmem:[#allocation2] sm:$0xff] %vm1224, %v714
    %1226 = vst.msk [vmem:[#allocation2 + $0x8] sm:$0xff] %vm1224, %v717
    %1227 = vst.msk [vmem:[#allocation2 + $0x10] sm:$0xff] %vm1224, %v722
    %1228 = vst.msk [vmem:[#allocation2 + $0x18] sm:$0xff] %vm1224, %v725
    %1229 = vst.msk [vmem:[#allocation2 + $0x20] sm:$0xff] %vm1224, %v730
    %1230 = vst.msk [vmem:[#allocation2 + $0x28] sm:$0xff] %vm1224, %v733
    %1231 = vst.msk [vmem:[#allocation2 + $0x30] sm:$0xff] %vm1224, %v738
    %1232 = vst.msk [vmem:[#allocation2 + $0x38] sm:$0xff] %vm1224, %v741
    %1233 = vst.msk [vmem:[#allocation2 + $0x40] sm:$0xff] %vm1224, %v746
    %1234 = vst.msk [vmem:[#allocation2 + $0x48] sm:$0xff] %vm1224, %v749
    %1235 = vst.msk [vmem:[#allocation2 + $0x50] sm:$0xff] %vm1224, %v754
    %1236 = vst.msk [vmem:[#allocation2 + $0x58] sm:$0xff] %vm1224, %v757
    %1237 = vst.msk [vmem:[#allocation2 + $0x60] sm:$0xff] %vm1224, %v762
    %1238 = vst.msk [vmem:[#allocation2 + $0x68] sm:$0xff] %vm1224, %v765
    %1239 = vst.msk [vmem:[#allocation2 + $0x70] sm:$0xff] %vm1224, %v770
    %1240 = vst.msk [vmem:[#allocation2 + $0x78] sm:$0xff] %vm1224, %v773
    %1241 = vst.msk [vmem:[#allocation2 + $0x80] sm:$0xff] %vm1224, %v778
    %1242 = vst.msk [vmem:[#allocation2 + $0x88] sm:$0xff] %vm1224, %v781
    %1243 = vst.msk [vmem:[#allocation2 + $0x90] sm:$0xff] %vm1224, %v786
    %1244 = vst.msk [vmem:[#allocation2 + $0x98] sm:$0xff] %vm1224, %v789
    %1245 = vst.msk [vmem:[#allocation2 + $0xa0] sm:$0xff] %vm1224, %v794
    %1246 = vst.msk [vmem:[#allocation2 + $0xa8] sm:$0xff] %vm1224, %v797
    %1247 = vst.msk [vmem:[#allocation2 + $0xb0] sm:$0xff] %vm1224, %v802
    %1248 = vst.msk [vmem:[#allocation2 + $0xb8] sm:$0xff] %vm1224, %v805
    %1249 = vst.msk [vmem:[#allocation2 + $0xc0] sm:$0xff] %vm1224, %v810
    %1250 = vst.msk [vmem:[#allocation2 + $0xc8] sm:$0xff] %vm1224, %v813
    %1251 = vst.msk [vmem:[#allocation2 + $0xd0] sm:$0xff] %vm1224, %v818
    %1252 = vst.msk [vmem:[#allocation2 + $0xd8] sm:$0xff] %vm1224, %v821
    %1253 = vst.msk [vmem:[#allocation2 + $0xe0] sm:$0xff] %vm1224, %v826
    %1254 = vst.msk [vmem:[#allocation2 + $0xe8] sm:$0xff] %vm1224, %v829
    %1255 = vst.msk [vmem:[#allocation2 + $0xf0] sm:$0xff] %vm1224, %v834
    %1256 = vst.msk [vmem:[#allocation2 + $0xf8] sm:$0xff] %vm1224, %v837
    %1257 = vst.msk [vmem:[#allocation2 + $0x100] sm:$0xff] %vm1224, %v842
    %1258 = vst.msk [vmem:[#allocation2 + $0x108] sm:$0xff] %vm1224, %v845
    %1259 = vst.msk [vmem:[#allocation2 + $0x110] sm:$0xff] %vm1224, %v850
    %1260 = vst.msk [vmem:[#allocation2 + $0x118] sm:$0xff] %vm1224, %v853
    %1261 = vst.msk [vmem:[#allocation2 + $0x120] sm:$0xff] %vm1224, %v858
    %1262 = vst.msk [vmem:[#allocation2 + $0x128] sm:$0xff] %vm1224, %v861
    %1263 = vst.msk [vmem:[#allocation2 + $0x130] sm:$0xff] %vm1224, %v866
    %1264 = vst.msk [vmem:[#allocation2 + $0x138] sm:$0xff] %vm1224, %v869
    %1265 = vst.msk [vmem:[#allocation2 + $0x140] sm:$0xff] %vm1224, %v874
    %1266 = vst.msk [vmem:[#allocation2 + $0x148] sm:$0xff] %vm1224, %v877
    %1267 = vst.msk [vmem:[#allocation2 + $0x150] sm:$0xff] %vm1224, %v882
    %1268 = vst.msk [vmem:[#allocation2 + $0x158] sm:$0xff] %vm1224, %v885
    %1269 = vst.msk [vmem:[#allocation2 + $0x160] sm:$0xff] %vm1224, %v890
    %1270 = vst.msk [vmem:[#allocation2 + $0x168] sm:$0xff] %vm1224, %v893
    %1271 = vst.msk [vmem:[#allocation2 + $0x170] sm:$0xff] %vm1224, %v898
    %1272 = vst.msk [vmem:[#allocation2 + $0x178] sm:$0xff] %vm1224, %v901
    %1273 = vst.msk [vmem:[#allocation2 + $0x180] sm:$0xff] %vm1224, %v906
    %1274 = vst.msk [vmem:[#allocation2 + $0x188] sm:$0xff] %vm1224, %v909
    %1275 = vst.msk [vmem:[#allocation2 + $0x190] sm:$0xff] %vm1224, %v914
    %1276 = vst.msk [vmem:[#allocation2 + $0x198] sm:$0xff] %vm1224, %v917
    %1277 = vst.msk [vmem:[#allocation2 + $0x1a0] sm:$0xff] %vm1224, %v922
    %1278 = vst.msk [vmem:[#allocation2 + $0x1a8] sm:$0xff] %vm1224, %v925
    %1279 = vst.msk [vmem:[#allocation2 + $0x1b0] sm:$0xff] %vm1224, %v930
    %1280 = vst.msk [vmem:[#allocation2 + $0x1b8] sm:$0xff] %vm1224, %v933
    %1281 = vst.msk [vmem:[#allocation2 + $0x1c0] sm:$0xff] %vm1224, %v938
    %1282 = vst.msk [vmem:[#allocation2 + $0x1c8] sm:$0xff] %vm1224, %v941
    %1283 = vst.msk [vmem:[#allocation2 + $0x1d0] sm:$0xff] %vm1224, %v946
    %1284 = vst.msk [vmem:[#allocation2 + $0x1d8] sm:$0xff] %vm1224, %v949
    %1285 = vst.msk [vmem:[#allocation2 + $0x1e0] sm:$0xff] %vm1224, %v954
    %1286 = vst.msk [vmem:[#allocation2 + $0x1e8] sm:$0xff] %vm1224, %v957
    %1287 = vst.msk [vmem:[#allocation2 + $0x1f0] sm:$0xff] %vm1224, %v962
    %1288 = vst.msk [vmem:[#allocation2 + $0x1f8] sm:$0xff] %vm1224, %v965
    %1289 = vst.msk [vmem:[#allocation2 + $0x200] sm:$0xff] %vm1224, %v970
    %1290 = vst.msk [vmem:[#allocation2 + $0x208] sm:$0xff] %vm1224, %v973
    %1291 = vst.msk [vmem:[#allocation2 + $0x210] sm:$0xff] %vm1224, %v978
    %1292 = vst.msk [vmem:[#allocation2 + $0x218] sm:$0xff] %vm1224, %v981
    %1293 = vst.msk [vmem:[#allocation2 + $0x220] sm:$0xff] %vm1224, %v986
    %1294 = vst.msk [vmem:[#allocation2 + $0x228] sm:$0xff] %vm1224, %v989
    %1295 = vst.msk [vmem:[#allocation2 + $0x230] sm:$0xff] %vm1224, %v994
    %1296 = vst.msk [vmem:[#allocation2 + $0x238] sm:$0xff] %vm1224, %v997
    %1297 = vst.msk [vmem:[#allocation2 + $0x240] sm:$0xff] %vm1224, %v1002
    %1298 = vst.msk [vmem:[#allocation2 + $0x248] sm:$0xff] %vm1224, %v1005
    %1299 = vst.msk [vmem:[#allocation2 + $0x250] sm:$0xff] %vm1224, %v1010
    %1300 = vst.msk [vmem:[#allocation2 + $0x258] sm:$0xff] %vm1224, %v1013
    %1301 = vst.msk [vmem:[#allocation2 + $0x260] sm:$0xff] %vm1224, %v1018
    %1302 = vst.msk [vmem:[#allocation2 + $0x268] sm:$0xff] %vm1224, %v1021
    %1303 = vst.msk [vmem:[#allocation2 + $0x270] sm:$0xff] %vm1224, %v1026
    %1304 = vst.msk [vmem:[#allocation2 + $0x278] sm:$0xff] %vm1224, %v1029
    %1305 = vst.msk [vmem:[#allocation2 + $0x280] sm:$0xff] %vm1224, %v1034
    %1306 = vst.msk [vmem:[#allocation2 + $0x288] sm:$0xff] %vm1224, %v1037
    %1307 = vst.msk [vmem:[#allocation2 + $0x290] sm:$0xff] %vm1224, %v1042
    %1308 = vst.msk [vmem:[#allocation2 + $0x298] sm:$0xff] %vm1224, %v1045
    %1309 = vst.msk [vmem:[#allocation2 + $0x2a0] sm:$0xff] %vm1224, %v1050
    %1310 = vst.msk [vmem:[#allocation2 + $0x2a8] sm:$0xff] %vm1224, %v1053
    %1311 = vst.msk [vmem:[#allocation2 + $0x2b0] sm:$0xff] %vm1224, %v1058
    %1312 = vst.msk [vmem:[#allocation2 + $0x2b8] sm:$0xff] %vm1224, %v1061
    %1313 = vst.msk [vmem:[#allocation2 + $0x2c0] sm:$0xff] %vm1224, %v1066
    %1314 = vst.msk [vmem:[#allocation2 + $0x2c8] sm:$0xff] %vm1224, %v1069
    %1315 = vst.msk [vmem:[#allocation2 + $0x2d0] sm:$0xff] %vm1224, %v1074
    %1316 = vst.msk [vmem:[#allocation2 + $0x2d8] sm:$0xff] %vm1224, %v1077
    %1317 = vst.msk [vmem:[#allocation2 + $0x2e0] sm:$0xff] %vm1224, %v1082
    %1318 = vst.msk [vmem:[#allocation2 + $0x2e8] sm:$0xff] %vm1224, %v1085
    %1319 = vst.msk [vmem:[#allocation2 + $0x2f0] sm:$0xff] %vm1224, %v1090
    %1320 = vst.msk [vmem:[#allocation2 + $0x2f8] sm:$0xff] %vm1224, %v1093
    %1321 = vst.msk [vmem:[#allocation2 + $0x300] sm:$0xff] %vm1224, %v1098
    %1322 = vst.msk [vmem:[#allocation2 + $0x308] sm:$0xff] %vm1224, %v1101
    %1323 = vst.msk [vmem:[#allocation2 + $0x310] sm:$0xff] %vm1224, %v1106
    %1324 = vst.msk [vmem:[#allocation2 + $0x318] sm:$0xff] %vm1224, %v1109
    %1325 = vst.msk [vmem:[#allocation2 + $0x320] sm:$0xff] %vm1224, %v1114
    %1326 = vst.msk [vmem:[#allocation2 + $0x328] sm:$0xff] %vm1224, %v1117
    %1327 = vst.msk [vmem:[#allocation2 + $0x330] sm:$0xff] %vm1224, %v1122
    %1328 = vst.msk [vmem:[#allocation2 + $0x338] sm:$0xff] %vm1224, %v1125
    %1329 = vst.msk [vmem:[#allocation2 + $0x340] sm:$0xff] %vm1224, %v1130
    %1330 = vst.msk [vmem:[#allocation2 + $0x348] sm:$0xff] %vm1224, %v1133
    %1331 = vst.msk [vmem:[#allocation2 + $0x350] sm:$0xff] %vm1224, %v1138
    %1332 = vst.msk [vmem:[#allocation2 + $0x358] sm:$0xff] %vm1224, %v1141
    %1333 = vst.msk [vmem:[#allocation2 + $0x360] sm:$0xff] %vm1224, %v1146
    %1334 = vst.msk [vmem:[#allocation2 + $0x368] sm:$0xff] %vm1224, %v1149
    %1335 = vst.msk [vmem:[#allocation2 + $0x370] sm:$0xff] %vm1224, %v1154
    %1336 = vst.msk [vmem:[#allocation2 + $0x378] sm:$0xff] %vm1224, %v1157
    %1337 = vst.msk [vmem:[#allocation2 + $0x380] sm:$0xff] %vm1224, %v1162
    %1338 = vst.msk [vmem:[#allocation2 + $0x388] sm:$0xff] %vm1224, %v1165
    %1339 = vst.msk [vmem:[#allocation2 + $0x390] sm:$0xff] %vm1224, %v1170
    %1340 = vst.msk [vmem:[#allocation2 + $0x398] sm:$0xff] %vm1224, %v1173
    %1341 = vst.msk [vmem:[#allocation2 + $0x3a0] sm:$0xff] %vm1224, %v1178
    %1342 = vst.msk [vmem:[#allocation2 + $0x3a8] sm:$0xff] %vm1224, %v1181
    %1343 = vst.msk [vmem:[#allocation2 + $0x3b0] sm:$0xff] %vm1224, %v1186
    %1344 = vst.msk [vmem:[#allocation2 + $0x3b8] sm:$0xff] %vm1224, %v1189
    %1345 = vst.msk [vmem:[#allocation2 + $0x3c0] sm:$0xff] %vm1224, %v1194
    %1346 = vst.msk [vmem:[#allocation2 + $0x3c8] sm:$0xff] %vm1224, %v1197
    %1347 = vst.msk [vmem:[#allocation2 + $0x3d0] sm:$0xff] %vm1224, %v1202
    %1348 = vst.msk [vmem:[#allocation2 + $0x3d8] sm:$0xff] %vm1224, %v1205
    %1349 = vst.msk [vmem:[#allocation2 + $0x3e0] sm:$0xff] %vm1224, %v1210
    %1350 = vst.msk [vmem:[#allocation2 + $0x3e8] sm:$0xff] %vm1224, %v1213
    %1351 = vst.msk [vmem:[#allocation2 + $0x3f0] sm:$0xff] %vm1224, %v1218
    %1352 = vst.msk [vmem:[#allocation2 + $0x3f8] sm:$0xff] %vm1224, %v1221
    %v1353 = vld [vmem:[%s2] sm:$0xff]
    %v1354 = vld [vmem:[%s2 + $0x8] sm:$0xff]
    %v1355 = vld [vmem:[%s2 + $0x10] sm:$0xff]
    %v1356 = vld [vmem:[%s2 + $0x18] sm:$0xff]
    %v1357 = vld [vmem:[#allocation2] sm:$0xff]
    %v1358 = vld [vmem:[#allocation2 + $0x8] sm:$0xff]
    %v1359 = vld [vmem:[#allocation2 + $0x10] sm:$0xff]
    %v1360 = vld [vmem:[#allocation2 + $0x18] sm:$0xff]
    %v1361 = vld [vmem:[#allocation2 + $0x20] sm:$0xff]
    %v1362 = vld [vmem:[#allocation2 + $0x28] sm:$0xff]
    %v1363 = vld [vmem:[#allocation2 + $0x30] sm:$0xff]
    %v1364 = vld [vmem:[#allocation2 + $0x38] sm:$0xff]
    %v1365 = vld [vmem:[#allocation2 + $0x40] sm:$0xff]
    %v1366 = vld [vmem:[#allocation2 + $0x48] sm:$0xff]
    %v1367 = vld [vmem:[#allocation2 + $0x50] sm:$0xff]
    %v1368 = vld [vmem:[#allocation2 + $0x58] sm:$0xff]
    %v1369 = vld [vmem:[#allocation2 + $0x60] sm:$0xff]
    %v1370 = vld [vmem:[#allocation2 + $0x68] sm:$0xff]
    %v1371 = vld [vmem:[#allocation2 + $0x70] sm:$0xff]
    %v1372 = vld [vmem:[#allocation2 + $0x78] sm:$0xff]
    %v1373 = vxor.u32 %v1357, 2147483648
    %v1374 = vxor.u32 %v1358, 2147483648
    %v1375 = vxor.u32 %v1359, 2147483648
    %v1376 = vxor.u32 %v1360, 2147483648
    %v1377 = vxor.u32 %v1361, 2147483648
    %v1378 = vxor.u32 %v1362, 2147483648
    %v1379 = vxor.u32 %v1363, 2147483648
    %v1380 = vxor.u32 %v1364, 2147483648
    %v1381 = vxor.u32 %v1365, 2147483648
    %v1382 = vxor.u32 %v1366, 2147483648
    %v1383 = vxor.u32 %v1367, 2147483648
    %v1384 = vxor.u32 %v1368, 2147483648
    %v1385 = vxor.u32 %v1369, 2147483648
    %v1386 = vxor.u32 %v1370, 2147483648
    %v1387 = vxor.u32 %v1371, 2147483648
    %v1388 = vxor.u32 %v1372, 2147483648
    %v1389 = vmul.f32 %v1373, 1.442695
    %v1390 = vpow.pop %v1389
    %v1391 = vmul.f32 %v1374, 1.442695
    %v1392 = vpow.pop %v1391
    %v1393 = vmul.f32 %v1375, 1.442695
    %v1394 = vpow.pop %v1393
    %v1395 = vmul.f32 %v1376, 1.442695
    %v1396 = vpow.pop %v1395
    %v1397 = vmul.f32 %v1377, 1.442695
    %v1398 = vpow.pop %v1397
    %v1399 = vmul.f32 %v1378, 1.442695
    %v1400 = vpow.pop %v1399
    %v1401 = vmul.f32 %v1379, 1.442695
    %v1402 = vpow.pop %v1401
    %v1403 = vmul.f32 %v1380, 1.442695
    %v1404 = vpow.pop %v1403
    %v1405 = vmul.f32 %v1381, 1.442695
    %v1406 = vpow.pop %v1405
    %v1407 = vmul.f32 %v1382, 1.442695
    %v1408 = vpow.pop %v1407
    %v1409 = vmul.f32 %v1383, 1.442695
    %v1410 = vpow.pop %v1409
    %v1411 = vmul.f32 %v1384, 1.442695
    %v1412 = vpow.pop %v1411
    %v1413 = vmul.f32 %v1385, 1.442695
    %v1414 = vpow.pop %v1413
    %v1415 = vmul.f32 %v1386, 1.442695
    %v1416 = vpow.pop %v1415
    %v1417 = vmul.f32 %v1387, 1.442695
    %v1418 = vpow.pop %v1417
    %v1419 = vmul.f32 %v1388, 1.442695
    %v1420 = vpow.pop %v1419
    %v1421 = vadd.f32 %v1390, 1.0
    %v1422 = vadd.f32 %v1392, 1.0
    %v1423 = vadd.f32 %v1394, 1.0
    %v1424 = vadd.f32 %v1396, 1.0
    %v1425 = vadd.f32 %v1398, 1.0
    %v1426 = vadd.f32 %v1400, 1.0
    %v1427 = vadd.f32 %v1402, 1.0
    %v1428 = vadd.f32 %v1404, 1.0
    %v1429 = vadd.f32 %v1406, 1.0
    %v1430 = vadd.f32 %v1408, 1.0
    %v1431 = vadd.f32 %v1410, 1.0
    %v1432 = vadd.f32 %v1412, 1.0
    %v1433 = vadd.f32 %v1414, 1.0
    %v1434 = vadd.f32 %v1416, 1.0
    %v1435 = vadd.f32 %v1418, 1.0
    %v1436 = vadd.f32 %v1420, 1.0
    %v1437 = vrcp.pop %v1421
    %v1438 = vmul.f32 1.0, %v1437
    %v1439 = vrcp.pop %v1422
    %v1440 = vmul.f32 1.0, %v1439
    %v1441 = vrcp.pop %v1423
    %v1442 = vmul.f32 1.0, %v1441
    %v1443 = vrcp.pop %v1424
    %v1444 = vmul.f32 1.0, %v1443
    %v1445 = vrcp.pop %v1425
    %v1446 = vmul.f32 1.0, %v1445
    %v1447 = vrcp.pop %v1426
    %v1448 = vmul.f32 1.0, %v1447
    %v1449 = vrcp.pop %v1427
    %v1450 = vmul.f32 1.0, %v1449
    %v1451 = vrcp.pop %v1428
    %v1452 = vmul.f32 1.0, %v1451
    %v1453 = vrcp.pop %v1429
    %v1454 = vmul.f32 1.0, %v1453
    %v1455 = vrcp.pop %v1430
    %v1456 = vmul.f32 1.0, %v1455
    %v1457 = vrcp.pop %v1431
    %v1458 = vmul.f32 1.0, %v1457
    %v1459 = vrcp.pop %v1432
    %v1460 = vmul.f32 1.0, %v1459
    %v1461 = vrcp.pop %v1433
    %v1462 = vmul.f32 1.0, %v1461
    %v1463 = vrcp.pop %v1434
    %v1464 = vmul.f32 1.0, %v1463
    %v1465 = vrcp.pop %v1435
    %v1466 = vmul.f32 1.0, %v1465
    %v1467 = vrcp.pop %v1436
    %v1468 = vmul.f32 1.0, %v1467
    %v1469 = vlaneseq
    %v1470 = vshrl.u32 %v1469, 7
    %v1471 = vsub.s32 1, %v1470
    %v1472 = vrot.slane %v28, %v1471
    %v1473 = vmul.f32 %v1438, %v1472
    %v1474 = vmul.f32 %v1440, %v1472
    %v1475 = vmul.f32 %v1442, %v1472
    %v1476 = vmul.f32 %v1444, %v1472
    %v1477 = vmul.f32 %v1446, %v1472
    %v1478 = vmul.f32 %v1448, %v1472
    %v1479 = vmul.f32 %v1450, %v1472
    %v1480 = vmul.f32 %v1452, %v1472
    %v1481 = vmul.f32 %v1454, %v1472
    %v1482 = vmul.f32 %v1456, %v1472
    %v1483 = vmul.f32 %v1458, %v1472
    %v1484 = vmul.f32 %v1460, %v1472
    %v1485 = vmul.f32 %v1462, %v1472
    %v1486 = vmul.f32 %v1464, %v1472
    %v1487 = vmul.f32 %v1466, %v1472
    %v1488 = vmul.f32 %v1468, %v1472
    %1505 = vrot.lane.b32.xlu0 %v1473, 64
    %v1506 = vpop.permute.xlu0 %1505
    %1507 = vrot.lane.b32.xlu0 %v1474, 64
    %v1508 = vpop.permute.xlu0 %1507
    %1509 = vrot.lane.b32.xlu0 %v1475, 64
    %v1510 = vpop.permute.xlu0 %1509
    %1511 = vrot.lane.b32.xlu0 %v1476, 64
    %v1512 = vpop.permute.xlu0 %1511
    %1513 = vrot.lane.b32.xlu0 %v1477, 64
    %v1514 = vpop.permute.xlu0 %1513
    %1515 = vrot.lane.b32.xlu0 %v1478, 64
    %v1516 = vpop.permute.xlu0 %1515
    %1517 = vrot.lane.b32.xlu0 %v1479, 64
    %v1518 = vpop.permute.xlu0 %1517
    %1519 = vrot.lane.b32.xlu0 %v1480, 64
    %v1520 = vpop.permute.xlu0 %1519
    %1521 = vrot.lane.b32.xlu0 %v1481, 64
    %v1522 = vpop.permute.xlu0 %1521
    %1523 = vrot.lane.b32.xlu0 %v1482, 64
    %v1524 = vpop.permute.xlu0 %1523
    %1525 = vrot.lane.b32.xlu0 %v1483, 64
    %v1526 = vpop.permute.xlu0 %1525
    %1527 = vrot.lane.b32.xlu0 %v1484, 64
    %v1528 = vpop.permute.xlu0 %1527
    %1529 = vrot.lane.b32.xlu0 %v1485, 64
    %v1530 = vpop.permute.xlu0 %1529
    %1531 = vrot.lane.b32.xlu0 %v1486, 64
    %v1532 = vpop.permute.xlu0 %1531
    %1533 = vrot.lane.b32.xlu0 %v1487, 64
    %v1534 = vpop.permute.xlu0 %1533
    %1535 = vrot.lane.b32.xlu0 %v1488, 64
    %v1536 = vpop.permute.xlu0 %1535
    %v1553 = vadd.f32 %v1357, %v1506
    %v1554 = vadd.f32 %v1358, %v1508
    %v1555 = vadd.f32 %v1359, %v1510
    %v1556 = vadd.f32 %v1360, %v1512
    %v1557 = vadd.f32 %v1361, %v1514
    %v1558 = vadd.f32 %v1362, %v1516
    %v1559 = vadd.f32 %v1363, %v1518
    %v1560 = vadd.f32 %v1364, %v1520
    %v1561 = vadd.f32 %v1365, %v1522
    %v1562 = vadd.f32 %v1366, %v1524
    %v1563 = vadd.f32 %v1367, %v1526
    %v1564 = vadd.f32 %v1368, %v1528
    %v1565 = vadd.f32 %v1369, %v1530
    %v1566 = vadd.f32 %v1370, %v1532
    %v1567 = vadd.f32 %v1371, %v1534
    %v1568 = vadd.f32 %v1372, %v1536
    %v1569 = vtanh.pop %v1553
    %v1570 = vtanh.pop %v1554
    %v1571 = vtanh.pop %v1555
    %v1572 = vtanh.pop %v1556
    %v1573 = vtanh.pop %v1557
    %v1574 = vtanh.pop %v1558
    %v1575 = vtanh.pop %v1559
    %v1576 = vtanh.pop %v1560
    %v1577 = vtanh.pop %v1561
    %v1578 = vtanh.pop %v1562
    %v1579 = vtanh.pop %v1563
    %v1580 = vtanh.pop %v1564
    %v1581 = vtanh.pop %v1565
    %v1582 = vtanh.pop %v1566
    %v1583 = vtanh.pop %v1567
    %v1584 = vtanh.pop %v1568
    %v1585 = vsub.f32 1.0, %v1438
    %v1586 = vsub.f32 1.0, %v1440
    %v1587 = vsub.f32 1.0, %v1442
    %v1588 = vsub.f32 1.0, %v1444
    %v1589 = vsub.f32 1.0, %v1446
    %v1590 = vsub.f32 1.0, %v1448
    %v1591 = vsub.f32 1.0, %v1450
    %v1592 = vsub.f32 1.0, %v1452
    %v1593 = vsub.f32 1.0, %v1454
    %v1594 = vsub.f32 1.0, %v1456
    %v1595 = vsub.f32 1.0, %v1458
    %v1596 = vsub.f32 1.0, %v1460
    %v1597 = vsub.f32 1.0, %v1462
    %v1598 = vsub.f32 1.0, %v1464
    %v1599 = vsub.f32 1.0, %v1466
    %v1600 = vsub.f32 1.0, %v1468
    %1617 = vrot.lane.b32.xlu0 %v1569, 96
    %v1618 = vpop.permute.xlu0 %1617
    %1619 = vrot.lane.b32.xlu0 %v1570, 96
    %v1620 = vpop.permute.xlu0 %1619
    %1621 = vrot.lane.b32.xlu0 %v1571, 96
    %v1622 = vpop.permute.xlu0 %1621
    %1623 = vrot.lane.b32.xlu0 %v1572, 96
    %v1624 = vpop.permute.xlu0 %1623
    %1625 = vrot.lane.b32.xlu0 %v1573, 96
    %v1626 = vpop.permute.xlu0 %1625
    %1627 = vrot.lane.b32.xlu0 %v1574, 96
    %v1628 = vpop.permute.xlu0 %1627
    %1629 = vrot.lane.b32.xlu0 %v1575, 96
    %v1630 = vpop.permute.xlu0 %1629
    %1631 = vrot.lane.b32.xlu0 %v1576, 96
    %v1632 = vpop.permute.xlu0 %1631
    %1633 = vrot.lane.b32.xlu0 %v1577, 96
    %v1634 = vpop.permute.xlu0 %1633
    %1635 = vrot.lane.b32.xlu0 %v1578, 96
    %v1636 = vpop.permute.xlu0 %1635
    %1637 = vrot.lane.b32.xlu0 %v1579, 96
    %v1638 = vpop.permute.xlu0 %1637
    %1639 = vrot.lane.b32.xlu0 %v1580, 96
    %v1640 = vpop.permute.xlu0 %1639
    %1641 = vrot.lane.b32.xlu0 %v1581, 96
    %v1642 = vpop.permute.xlu0 %1641
    %1643 = vrot.lane.b32.xlu0 %v1582, 96
    %v1644 = vpop.permute.xlu0 %1643
    %1645 = vrot.lane.b32.xlu0 %v1583, 96
    %v1646 = vpop.permute.xlu0 %1645
    %1647 = vrot.lane.b32.xlu0 %v1584, 96
    %v1648 = vpop.permute.xlu0 %1647
    %v1665 = vmul.f32 %v1585, %v1618
    %v1666 = vmul.f32 %v1586, %v1620
    %v1667 = vmul.f32 %v1587, %v1622
    %v1668 = vmul.f32 %v1588, %v1624
    %v1669 = vmul.f32 %v1589, %v1626
    %v1670 = vmul.f32 %v1590, %v1628
    %v1671 = vmul.f32 %v1591, %v1630
    %v1672 = vmul.f32 %v1592, %v1632
    %v1673 = vmul.f32 %v1593, %v1634
    %v1674 = vmul.f32 %v1594, %v1636
    %v1675 = vmul.f32 %v1595, %v1638
    %v1676 = vmul.f32 %v1596, %v1640
    %v1677 = vmul.f32 %v1597, %v1642
    %v1678 = vmul.f32 %v1598, %v1644
    %v1679 = vmul.f32 %v1599, %v1646
    %v1680 = vmul.f32 %v1600, %v1648
    %1697 = vrot.lane.b32.xlu0 %v1665, 96
    %v1698 = vpop.permute.xlu0 %1697
    %1699 = vrot.lane.b32.xlu0 %v1666, 96
    %v1700 = vpop.permute.xlu0 %1699
    %1701 = vrot.lane.b32.xlu0 %v1667, 96
    %v1702 = vpop.permute.xlu0 %1701
    %1703 = vrot.lane.b32.xlu0 %v1668, 96
    %v1704 = vpop.permute.xlu0 %1703
    %1705 = vrot.lane.b32.xlu0 %v1669, 96
    %v1706 = vpop.permute.xlu0 %1705
    %1707 = vrot.lane.b32.xlu0 %v1670, 96
    %v1708 = vpop.permute.xlu0 %1707
    %1709 = vrot.lane.b32.xlu0 %v1671, 96
    %v1710 = vpop.permute.xlu0 %1709
    %1711 = vrot.lane.b32.xlu0 %v1672, 96
    %v1712 = vpop.permute.xlu0 %1711
    %1713 = vrot.lane.b32.xlu0 %v1673, 96
    %v1714 = vpop.permute.xlu0 %1713
    %1715 = vrot.lane.b32.xlu0 %v1674, 96
    %v1716 = vpop.permute.xlu0 %1715
    %1717 = vrot.lane.b32.xlu0 %v1675, 96
    %v1718 = vpop.permute.xlu0 %1717
    %1719 = vrot.lane.b32.xlu0 %v1676, 96
    %v1720 = vpop.permute.xlu0 %1719
    %1721 = vrot.lane.b32.xlu0 %v1677, 96
    %v1722 = vpop.permute.xlu0 %1721
    %1723 = vrot.lane.b32.xlu0 %v1678, 96
    %v1724 = vpop.permute.xlu0 %1723
    %1725 = vrot.lane.b32.xlu0 %v1679, 96
    %v1726 = vpop.permute.xlu0 %1725
    %1727 = vrot.lane.b32.xlu0 %v1680, 96
    %v1728 = vpop.permute.xlu0 %1727
    %vm1745 = vcmask 261120
    %1746 = vst.msk [vmem:[#allocation3] sm:$0xff] %vm1745, %v1698
    %1747 = vst.msk [vmem:[#allocation3 + $0x8] sm:$0xff] %vm1745, %v1700
    %1748 = vst.msk [vmem:[#allocation3 + $0x10] sm:$0xff] %vm1745, %v1702
    %1749 = vst.msk [vmem:[#allocation3 + $0x18] sm:$0xff] %vm1745, %v1704
    %1750 = vst.msk [vmem:[#allocation3 + $0x20] sm:$0xff] %vm1745, %v1706
    %1751 = vst.msk [vmem:[#allocation3 + $0x28] sm:$0xff] %vm1745, %v1708
    %1752 = vst.msk [vmem:[#allocation3 + $0x30] sm:$0xff] %vm1745, %v1710
    %1753 = vst.msk [vmem:[#allocation3 + $0x38] sm:$0xff] %vm1745, %v1712
    %1754 = vst.msk [vmem:[#allocation3 + $0x40] sm:$0xff] %vm1745, %v1714
    %1755 = vst.msk [vmem:[#allocation3 + $0x48] sm:$0xff] %vm1745, %v1716
    %1756 = vst.msk [vmem:[#allocation3 + $0x50] sm:$0xff] %vm1745, %v1718
    %1757 = vst.msk [vmem:[#allocation3 + $0x58] sm:$0xff] %vm1745, %v1720
    %1758 = vst.msk [vmem:[#allocation3 + $0x60] sm:$0xff] %vm1745, %v1722
    %1759 = vst.msk [vmem:[#allocation3 + $0x68] sm:$0xff] %vm1745, %v1724
    %1760 = vst.msk [vmem:[#allocation3 + $0x70] sm:$0xff] %vm1745, %v1726
    %1761 = vst.msk [vmem:[#allocation3 + $0x78] sm:$0xff] %vm1745, %v1728
    %v1762 = vsel %vm1745, %v1698, 0
    %v1764 = vsel %vm1745, %v1700, 0
    %v1766 = vsel %vm1745, %v1702, 0
    %v1768 = vsel %vm1745, %v1704, 0
    %v1770 = vsel %vm1745, %v1706, 0
    %v1772 = vsel %vm1745, %v1708, 0
    %v1774 = vsel %vm1745, %v1710, 0
    %v1776 = vsel %vm1745, %v1712, 0
    %v1778 = vsel %vm1745, %v1714, 0
    %v1780 = vsel %vm1745, %v1716, 0
    %v1782 = vsel %vm1745, %v1718, 0
    %v1784 = vsel %vm1745, %v1720, 0
    %v1786 = vsel %vm1745, %v1722, 0
    %v1788 = vsel %vm1745, %v1724, 0
    %v1790 = vsel %vm1745, %v1726, 0
    %v1792 = vsel %vm1745, %v1728, 0
    %1794 = vmatprep.subr.mxu0 0.0
    %1795 = vmatpush1.msra.mxu0 %v1353
    %1796 = vmatprep.subr.mxu0 0.0
    %1797 = vmatpush1.msra.mxu0 %v1354
    %1798 = vmatprep.subr.mxu0 0.0
    %1799 = vmatpush1.msra.mxu0 %v1355
    %1800 = vmatprep.subr.mxu0 0.0
    %1801 = vmatpush1.msra.mxu0 %v1356
    %1802 = vmatprep.subr.mxu0 0.0
    %1803 = vmatpush1.msra.mxu0 0.0
    %1804 = vmatprep.subr.mxu0 0.0
    %1805 = vmatpush1.msra.mxu0 0.0
    %1806 = vmatprep.subr.mxu0 0.0
    %1807 = vmatpush1.msra.mxu0 0.0
    %1808 = vmatprep.subr.mxu0 0.0
    %1809 = vmatpush1.msra.mxu0 0.0
    %1810 = vmatprep.subr.mxu0 0.0
    %1811 = vmatpush1.msra.mxu0 0.0
    %1812 = vmatprep.subr.mxu0 0.0
    %1813 = vmatpush1.msra.mxu0 0.0
    %1814 = vmatprep.subr.mxu0 0.0
    %1815 = vmatpush1.msra.mxu0 0.0
    %1816 = vmatprep.subr.mxu0 0.0
    %1817 = vmatpush1.msra.mxu0 0.0
    %1818 = vmatprep.subr.mxu0 0.0
    %1819 = vmatpush1.msra.mxu0 0.0
    %1820 = vmatprep.subr.mxu0 0.0
    %1821 = vmatpush1.msra.mxu0 0.0
    %1822 = vmatprep.subr.mxu0 0.0
    %1823 = vmatpush1.msra.mxu0 0.0
    %1824 = vmatprep.subr.mxu0 0.0
    %1825 = vmatpush1.msra.mxu0 0.0
    %1826 = vmatprep.subr.mxu0 0.0
    %1827 = vmatpush1.msra.mxu0 0.0
    %1828 = vmatprep.subr.mxu0 0.0
    %1829 = vmatpush1.msra.mxu0 0.0
    %1830 = vmatprep.subr.mxu0 0.0
    %1831 = vmatpush1.msra.mxu0 0.0
    %1832 = vmatprep.subr.mxu0 0.0
    %1833 = vmatpush1.msra.mxu0 0.0
    %1834 = vmatprep.subr.mxu0 0.0
    %1835 = vmatpush1.msra.mxu0 0.0
    %1836 = vmatprep.subr.mxu0 0.0
    %1837 = vmatpush1.msra.mxu0 0.0
    %1838 = vmatprep.subr.mxu0 0.0
    %1839 = vmatpush1.msra.mxu0 0.0
    %1840 = vmatprep.subr.mxu0 0.0
    %1841 = vmatpush1.msra.mxu0 0.0
    %1842 = vmatprep.subr.mxu0 0.0
    %1843 = vmatpush1.msra.mxu0 0.0
    %1844 = vmatprep.subr.mxu0 0.0
    %1845 = vmatpush1.msra.mxu0 0.0
    %1846 = vmatprep.subr.mxu0 0.0
    %1847 = vmatpush1.msra.mxu0 0.0
    %1848 = vmatprep.subr.mxu0 0.0
    %1849 = vmatpush1.msra.mxu0 0.0
    %1850 = vmatprep.subr.mxu0 0.0
    %1851 = vmatpush1.msra.mxu0 0.0
    %1852 = vmatprep.subr.mxu0 0.0
    %1853 = vmatpush1.msra.mxu0 0.0
    %1854 = vmatprep.subr.mxu0 0.0
    %1855 = vmatpush1.msra.mxu0 0.0
    %1856 = vmatprep.subr.mxu0 0.0
    %1857 = vmatpush1.msra.mxu0 0.0
    %1858 = vmatprep.mubr.f32.mxu0 0.0
    %1859 = vmatmul.mubr.f32.gmra.mrb[0].mxu0 %v1762
    %v1860 = vpop.f32.mrb[0].mxu0
    %v1861 = vadd.f32 0.0, %v1860
    %v1862 = vpop.f32.mrb[0].mxu0
    %1863 = vmatprep.mubr.f32.mxu0 0.0
    %1864 = vmatmul.mubr.f32.gmra.mrb[0].mxu0 %v1764
    %v1865 = vpop.f32.mrb[0].mxu0
    %v1866 = vadd.f32 0.0, %v1865
    %v1867 = vpop.f32.mrb[0].mxu0
    %1868 = vmatprep.mubr.f32.mxu0 0.0
    %1869 = vmatmul.mubr.f32.gmra.mrb[0].mxu0 %v1766
    %v1870 = vpop.f32.mrb[0].mxu0
    %v1871 = vadd.f32 0.0, %v1870
    %v1872 = vpop.f32.mrb[0].mxu0
    %1873 = vmatprep.mubr.f32.mxu0 0.0
    %1874 = vmatmul.mubr.f32.gmra.mrb[0].mxu0 %v1768
    %v1875 = vpop.f32.mrb[0].mxu0
    %v1876 = vadd.f32 0.0, %v1875
    %v1877 = vpop.f32.mrb[0].mxu0
    %1878 = vmatprep.mubr.f32.mxu0 0.0
    %1879 = vmatmul.mubr.f32.gmra.mrb[0].mxu0 %v1770
    %v1880 = vpop.f32.mrb[0].mxu0
    %v1881 = vadd.f32 0.0, %v1880
    %v1882 = vpop.f32.mrb[0].mxu0
    %1883 = vmatprep.mubr.f32.mxu0 0.0
    %1884 = vmatmul.mubr.f32.gmra.mrb[0].mxu0 %v1772
    %v1885 = vpop.f32.mrb[0].mxu0
    %v1886 = vadd.f32 0.0, %v1885
    %v1887 = vpop.f32.mrb[0].mxu0
    %1888 = vmatprep.mubr.f32.mxu0 0.0
    %1889 = vmatmul.mubr.f32.gmra.mrb[0].mxu0 %v1774
    %v1890 = vpop.f32.mrb[0].mxu0
    %v1891 = vadd.f32 0.0, %v1890
    %v1892 = vpop.f32.mrb[0].mxu0
    %1893 = vmatprep.mubr.f32.mxu0 0.0
    %1894 = vmatmul.mubr.f32.gmra.mrb[0].mxu0 %v1776
    %v1895 = vpop.f32.mrb[0].mxu0
    %v1896 = vadd.f32 0.0, %v1895
    %v1897 = vpop.f32.mrb[0].mxu0
    %1898 = vmatprep.mubr.f32.mxu0 0.0
    %1899 = vmatmul.mubr.f32.gmra.mrb[0].mxu0 %v1778
    %v1900 = vpop.f32.mrb[0].mxu0
    %v1901 = vadd.f32 0.0, %v1900
    %v1902 = vpop.f32.mrb[0].mxu0
    %1903 = vmatprep.mubr.f32.mxu0 0.0
    %1904 = vmatmul.mubr.f32.gmra.mrb[0].mxu0 %v1780
    %v1905 = vpop.f32.mrb[0].mxu0
    %v1906 = vadd.f32 0.0, %v1905
    %v1907 = vpop.f32.mrb[0].mxu0
    %1908 = vmatprep.mubr.f32.mxu0 0.0
    %1909 = vmatmul.mubr.f32.gmra.mrb[0].mxu0 %v1782
    %v1910 = vpop.f32.mrb[0].mxu0
    %v1911 = vadd.f32 0.0, %v1910
    %v1912 = vpop.f32.mrb[0].mxu0
    %1913 = vmatprep.mubr.f32.mxu0 0.0
    %1914 = vmatmul.mubr.f32.gmra.mrb[0].mxu0 %v1784
    %v1915 = vpop.f32.mrb[0].mxu0
    %v1916 = vadd.f32 0.0, %v1915
    %v1917 = vpop.f32.mrb[0].mxu0
    %1918 = vmatprep.mubr.f32.mxu0 0.0
    %1919 = vmatmul.mubr.f32.gmra.mrb[0].mxu0 %v1786
    %v1920 = vpop.f32.mrb[0].mxu0
    %v1921 = vadd.f32 0.0, %v1920
    %v1922 = vpop.f32.mrb[0].mxu0
    %1923 = vmatprep.mubr.f32.mxu0 0.0
    %1924 = vmatmul.mubr.f32.gmra.mrb[0].mxu0 %v1788
    %v1925 = vpop.f32.mrb[0].mxu0
    %v1926 = vadd.f32 0.0, %v1925
    %v1927 = vpop.f32.mrb[0].mxu0
    %1928 = vmatprep.mubr.f32.mxu0 0.0
    %1929 = vmatmul.mubr.f32.gmra.mrb[0].mxu0 %v1790
    %v1930 = vpop.f32.mrb[0].mxu0
    %v1931 = vadd.f32 0.0, %v1930
    %v1932 = vpop.f32.mrb[0].mxu0
    %1933 = vmatprep.mubr.f32.mxu0 0.0
    %1934 = vmatmul.mubr.f32.gmra.mrb[0].mxu0 %v1792
    %v1935 = vpop.f32.mrb[0].mxu0
    %v1936 = vadd.f32 0.0, %v1935
    %v1937 = vpop.f32.mrb[0].mxu0
    %1938 = vdwg.mxu0
    %s1939 = scalar_lea.vmem [#allocation2], 128
    %v1940 = vld [vmem:[%s1939] sm:$0xff]
    %v1941 = vld [vmem:[%s1939 + $0x8] sm:$0xff]
    %v1942 = vld [vmem:[%s1939 + $0x10] sm:$0xff]
    %v1943 = vld [vmem:[%s1939 + $0x18] sm:$0xff]
    %v1944 = vld [vmem:[%s1939 + $0x20] sm:$0xff]
    %v1945 = vld [vmem:[%s1939 + $0x28] sm:$0xff]
    %v1946 = vld [vmem:[%s1939 + $0x30] sm:$0xff]
    %v1947 = vld [vmem:[%s1939 + $0x38] sm:$0xff]
    %v1948 = vld [vmem:[%s1939 + $0x40] sm:$0xff]
    %v1949 = vld [vmem:[%s1939 + $0x48] sm:$0xff]
    %v1950 = vld [vmem:[%s1939 + $0x50] sm:$0xff]
    %v1951 = vld [vmem:[%s1939 + $0x58] sm:$0xff]
    %v1952 = vld [vmem:[%s1939 + $0x60] sm:$0xff]
    %v1953 = vld [vmem:[%s1939 + $0x68] sm:$0xff]
    %v1954 = vld [vmem:[%s1939 + $0x70] sm:$0xff]
    %v1955 = vld [vmem:[%s1939 + $0x78] sm:$0xff]
    %v1956 = vadd.f32 %v1940, %v1861
    %v1957 = vadd.f32 %v1941, %v1866
    %v1958 = vadd.f32 %v1942, %v1871
    %v1959 = vadd.f32 %v1943, %v1876
    %v1960 = vadd.f32 %v1944, %v1881
    %v1961 = vadd.f32 %v1945, %v1886
    %v1962 = vadd.f32 %v1946, %v1891
    %v1963 = vadd.f32 %v1947, %v1896
    %v1964 = vadd.f32 %v1948, %v1901
    %v1965 = vadd.f32 %v1949, %v1906
    %v1966 = vadd.f32 %v1950, %v1911
    %v1967 = vadd.f32 %v1951, %v1916
    %v1968 = vadd.f32 %v1952, %v1921
    %v1969 = vadd.f32 %v1953, %v1926
    %v1970 = vadd.f32 %v1954, %v1931
    %v1971 = vadd.f32 %v1955, %v1936
    %v1972 = vxor.u32 %v1956, 2147483648
    %v1973 = vxor.u32 %v1957, 2147483648
    %v1974 = vxor.u32 %v1958, 2147483648
    %v1975 = vxor.u32 %v1959, 2147483648
    %v1976 = vxor.u32 %v1960, 2147483648
    %v1977 = vxor.u32 %v1961, 2147483648
    %v1978 = vxor.u32 %v1962, 2147483648
    %v1979 = vxor.u32 %v1963, 2147483648
    %v1980 = vxor.u32 %v1964, 2147483648
    %v1981 = vxor.u32 %v1965, 2147483648
    %v1982 = vxor.u32 %v1966, 2147483648
    %v1983 = vxor.u32 %v1967, 2147483648
    %v1984 = vxor.u32 %v1968, 2147483648
    %v1985 = vxor.u32 %v1969, 2147483648
    %v1986 = vxor.u32 %v1970, 2147483648
    %v1987 = vxor.u32 %v1971, 2147483648
    %v1988 = vmul.f32 %v1972, 1.442695
    %v1989 = vpow.pop %v1988
    %v1990 = vmul.f32 %v1973, 1.442695
    %v1991 = vpow.pop %v1990
    %v1992 = vmul.f32 %v1974, 1.442695
    %v1993 = vpow.pop %v1992
    %v1994 = vmul.f32 %v1975, 1.442695
    %v1995 = vpow.pop %v1994
    %v1996 = vmul.f32 %v1976, 1.442695
    %v1997 = vpow.pop %v1996
    %v1998 = vmul.f32 %v1977, 1.442695
    %v1999 = vpow.pop %v1998
    %v2000 = vmul.f32 %v1978, 1.442695
    %v2001 = vpow.pop %v2000
    %v2002 = vmul.f32 %v1979, 1.442695
    %v2003 = vpow.pop %v2002
    %v2004 = vmul.f32 %v1980, 1.442695
    %v2005 = vpow.pop %v2004
    %v2006 = vmul.f32 %v1981, 1.442695
    %v2007 = vpow.pop %v2006
    %v2008 = vmul.f32 %v1982, 1.442695
    %v2009 = vpow.pop %v2008
    %v2010 = vmul.f32 %v1983, 1.442695
    %v2011 = vpow.pop %v2010
    %v2012 = vmul.f32 %v1984, 1.442695
    %v2013 = vpow.pop %v2012
    %v2014 = vmul.f32 %v1985, 1.442695
    %v2015 = vpow.pop %v2014
    %v2016 = vmul.f32 %v1986, 1.442695
    %v2017 = vpow.pop %v2016
    %v2018 = vmul.f32 %v1987, 1.442695
    %v2019 = vpow.pop %v2018
    %v2020 = vadd.f32 %v1989, 1.0
    %v2021 = vadd.f32 %v1991, 1.0
    %v2022 = vadd.f32 %v1993, 1.0
    %v2023 = vadd.f32 %v1995, 1.0
    %v2024 = vadd.f32 %v1997, 1.0
    %v2025 = vadd.f32 %v1999, 1.0
    %v2026 = vadd.f32 %v2001, 1.0
    %v2027 = vadd.f32 %v2003, 1.0
    %v2028 = vadd.f32 %v2005, 1.0
    %v2029 = vadd.f32 %v2007, 1.0
    %v2030 = vadd.f32 %v2009, 1.0
    %v2031 = vadd.f32 %v2011, 1.0
    %v2032 = vadd.f32 %v2013, 1.0
    %v2033 = vadd.f32 %v2015, 1.0
    %v2034 = vadd.f32 %v2017, 1.0
    %v2035 = vadd.f32 %v2019, 1.0
    %v2036 = vrcp.pop %v2020
    %v2037 = vmul.f32 1.0, %v2036
    %v2038 = vrcp.pop %v2021
    %v2039 = vmul.f32 1.0, %v2038
    %v2040 = vrcp.pop %v2022
    %v2041 = vmul.f32 1.0, %v2040
    %v2042 = vrcp.pop %v2023
    %v2043 = vmul.f32 1.0, %v2042
    %v2044 = vrcp.pop %v2024
    %v2045 = vmul.f32 1.0, %v2044
    %v2046 = vrcp.pop %v2025
    %v2047 = vmul.f32 1.0, %v2046
    %v2048 = vrcp.pop %v2026
    %v2049 = vmul.f32 1.0, %v2048
    %v2050 = vrcp.pop %v2027
    %v2051 = vmul.f32 1.0, %v2050
    %v2052 = vrcp.pop %v2028
    %v2053 = vmul.f32 1.0, %v2052
    %v2054 = vrcp.pop %v2029
    %v2055 = vmul.f32 1.0, %v2054
    %v2056 = vrcp.pop %v2030
    %v2057 = vmul.f32 1.0, %v2056
    %v2058 = vrcp.pop %v2031
    %v2059 = vmul.f32 1.0, %v2058
    %v2060 = vrcp.pop %v2032
    %v2061 = vmul.f32 1.0, %v2060
    %v2062 = vrcp.pop %v2033
    %v2063 = vmul.f32 1.0, %v2062
    %v2064 = vrcp.pop %v2034
    %v2065 = vmul.f32 1.0, %v2064
    %v2066 = vrcp.pop %v2035
    %v2067 = vmul.f32 1.0, %v2066
    %2069 = vrot.lane.b32.xlu0 %v1472, 64
    %v2070 = vpop.permute.xlu0 %2069
    %v2072 = vadd.f32 %v1861, %v2070
    %v2073 = vadd.f32 %v1866, %v2070
    %v2074 = vadd.f32 %v1871, %v2070
    %v2075 = vadd.f32 %v1876, %v2070
    %v2076 = vadd.f32 %v1881, %v2070
    %v2077 = vadd.f32 %v1886, %v2070
    %v2078 = vadd.f32 %v1891, %v2070
    %v2079 = vadd.f32 %v1896, %v2070
    %v2080 = vadd.f32 %v1901, %v2070
    %v2081 = vadd.f32 %v1906, %v2070
    %v2082 = vadd.f32 %v1911, %v2070
    %v2083 = vadd.f32 %v1916, %v2070
    %v2084 = vadd.f32 %v1921, %v2070
    %v2085 = vadd.f32 %v1926, %v2070
    %v2086 = vadd.f32 %v1931, %v2070
    %v2087 = vadd.f32 %v1936, %v2070
    %2104 = vrot.lane.b32.xlu0 %v2072, 64
    %v2105 = vpop.permute.xlu0 %2104
    %2106 = vrot.lane.b32.xlu0 %v2073, 64
    %v2107 = vpop.permute.xlu0 %2106
    %2108 = vrot.lane.b32.xlu0 %v2074, 64
    %v2109 = vpop.permute.xlu0 %2108
    %2110 = vrot.lane.b32.xlu0 %v2075, 64
    %v2111 = vpop.permute.xlu0 %2110
    %2112 = vrot.lane.b32.xlu0 %v2076, 64
    %v2113 = vpop.permute.xlu0 %2112
    %2114 = vrot.lane.b32.xlu0 %v2077, 64
    %v2115 = vpop.permute.xlu0 %2114
    %2116 = vrot.lane.b32.xlu0 %v2078, 64
    %v2117 = vpop.permute.xlu0 %2116
    %2118 = vrot.lane.b32.xlu0 %v2079, 64
    %v2119 = vpop.permute.xlu0 %2118
    %2120 = vrot.lane.b32.xlu0 %v2080, 64
    %v2121 = vpop.permute.xlu0 %2120
    %2122 = vrot.lane.b32.xlu0 %v2081, 64
    %v2123 = vpop.permute.xlu0 %2122
    %2124 = vrot.lane.b32.xlu0 %v2082, 64
    %v2125 = vpop.permute.xlu0 %2124
    %2126 = vrot.lane.b32.xlu0 %v2083, 64
    %v2127 = vpop.permute.xlu0 %2126
    %2128 = vrot.lane.b32.xlu0 %v2084, 64
    %v2129 = vpop.permute.xlu0 %2128
    %2130 = vrot.lane.b32.xlu0 %v2085, 64
    %v2131 = vpop.permute.xlu0 %2130
    %2132 = vrot.lane.b32.xlu0 %v2086, 64
    %v2133 = vpop.permute.xlu0 %2132
    %2134 = vrot.lane.b32.xlu0 %v2087, 64
    %v2135 = vpop.permute.xlu0 %2134
    %v2152 = vmul.f32 %v2037, %v2105
    %v2153 = vmul.f32 %v2039, %v2107
    %v2154 = vmul.f32 %v2041, %v2109
    %v2155 = vmul.f32 %v2043, %v2111
    %v2156 = vmul.f32 %v2045, %v2113
    %v2157 = vmul.f32 %v2047, %v2115
    %v2158 = vmul.f32 %v2049, %v2117
    %v2159 = vmul.f32 %v2051, %v2119
    %v2160 = vmul.f32 %v2053, %v2121
    %v2161 = vmul.f32 %v2055, %v2123
    %v2162 = vmul.f32 %v2057, %v2125
    %v2163 = vmul.f32 %v2059, %v2127
    %v2164 = vmul.f32 %v2061, %v2129
    %v2165 = vmul.f32 %v2063, %v2131
    %v2166 = vmul.f32 %v2065, %v2133
    %v2167 = vmul.f32 %v2067, %v2135
    %2184 = vrot.lane.b32.xlu0 %v2152, 64
    %v2185 = vpop.permute.xlu0 %2184
    %2186 = vrot.lane.b32.xlu0 %v2153, 64
    %v2187 = vpop.permute.xlu0 %2186
    %2188 = vrot.lane.b32.xlu0 %v2154, 64
    %v2189 = vpop.permute.xlu0 %2188
    %2190 = vrot.lane.b32.xlu0 %v2155, 64
    %v2191 = vpop.permute.xlu0 %2190
    %2192 = vrot.lane.b32.xlu0 %v2156, 64
    %v2193 = vpop.permute.xlu0 %2192
    %2194 = vrot.lane.b32.xlu0 %v2157, 64
    %v2195 = vpop.permute.xlu0 %2194
    %2196 = vrot.lane.b32.xlu0 %v2158, 64
    %v2197 = vpop.permute.xlu0 %2196
    %2198 = vrot.lane.b32.xlu0 %v2159, 64
    %v2199 = vpop.permute.xlu0 %2198
    %2200 = vrot.lane.b32.xlu0 %v2160, 64
    %v2201 = vpop.permute.xlu0 %2200
    %2202 = vrot.lane.b32.xlu0 %v2161, 64
    %v2203 = vpop.permute.xlu0 %2202
    %2204 = vrot.lane.b32.xlu0 %v2162, 64
    %v2205 = vpop.permute.xlu0 %2204
    %2206 = vrot.lane.b32.xlu0 %v2163, 64
    %v2207 = vpop.permute.xlu0 %2206
    %2208 = vrot.lane.b32.xlu0 %v2164, 64
    %v2209 = vpop.permute.xlu0 %2208
    %2210 = vrot.lane.b32.xlu0 %v2165, 64
    %v2211 = vpop.permute.xlu0 %2210
    %2212 = vrot.lane.b32.xlu0 %v2166, 64
    %v2213 = vpop.permute.xlu0 %2212
    %2214 = vrot.lane.b32.xlu0 %v2167, 64
    %v2215 = vpop.permute.xlu0 %2214
    %v2232 = vadd.f32 %v1940, %v2185
    %v2233 = vadd.f32 %v1941, %v2187
    %v2234 = vadd.f32 %v1942, %v2189
    %v2235 = vadd.f32 %v1943, %v2191
    %v2236 = vadd.f32 %v1944, %v2193
    %v2237 = vadd.f32 %v1945, %v2195
    %v2238 = vadd.f32 %v1946, %v2197
    %v2239 = vadd.f32 %v1947, %v2199
    %v2240 = vadd.f32 %v1948, %v2201
    %v2241 = vadd.f32 %v1949, %v2203
    %v2242 = vadd.f32 %v1950, %v2205
    %v2243 = vadd.f32 %v1951, %v2207
    %v2244 = vadd.f32 %v1952, %v2209
    %v2245 = vadd.f32 %v1953, %v2211
    %v2246 = vadd.f32 %v1954, %v2213
    %v2247 = vadd.f32 %v1955, %v2215
    %v2248 = vtanh.pop %v2232
    %v2249 = vtanh.pop %v2233
    %v2250 = vtanh.pop %v2234
    %v2251 = vtanh.pop %v2235
    %v2252 = vtanh.pop %v2236
    %v2253 = vtanh.pop %v2237
    %v2254 = vtanh.pop %v2238
    %v2255 = vtanh.pop %v2239
    %v2256 = vtanh.pop %v2240
    %v2257 = vtanh.pop %v2241
    %v2258 = vtanh.pop %v2242
    %v2259 = vtanh.pop %v2243
    %v2260 = vtanh.pop %v2244
    %v2261 = vtanh.pop %v2245
    %v2262 = vtanh.pop %v2246
    %v2263 = vtanh.pop %v2247
    %v2264 = vsub.f32 1.0, %v2037
    %v2265 = vsub.f32 1.0, %v2039
    %v2266 = vsub.f32 1.0, %v2041
    %v2267 = vsub.f32 1.0, %v2043
    %v2268 = vsub.f32 1.0, %v2045
    %v2269 = vsub.f32 1.0, %v2047
    %v2270 = vsub.f32 1.0, %v2049
    %v2271 = vsub.f32 1.0, %v2051
    %v2272 = vsub.f32 1.0, %v2053
    %v2273 = vsub.f32 1.0, %v2055
    %v2274 = vsub.f32 1.0, %v2057
    %v2275 = vsub.f32 1.0, %v2059
    %v2276 = vsub.f32 1.0, %v2061
    %v2277 = vsub.f32 1.0, %v2063
    %v2278 = vsub.f32 1.0, %v2065
    %v2279 = vsub.f32 1.0, %v2067
    %2296 = vrot.lane.b32.xlu0 %v2248, 96
    %v2297 = vpop.permute.xlu0 %2296
    %2298 = vrot.lane.b32.xlu0 %v2249, 96
    %v2299 = vpop.permute.xlu0 %2298
    %2300 = vrot.lane.b32.xlu0 %v2250, 96
    %v2301 = vpop.permute.xlu0 %2300
    %2302 = vrot.lane.b32.xlu0 %v2251, 96
    %v2303 = vpop.permute.xlu0 %2302
    %2304 = vrot.lane.b32.xlu0 %v2252, 96
    %v2305 = vpop.permute.xlu0 %2304
    %2306 = vrot.lane.b32.xlu0 %v2253, 96
    %v2307 = vpop.permute.xlu0 %2306
    %2308 = vrot.lane.b32.xlu0 %v2254, 96
    %v2309 = vpop.permute.xlu0 %2308
    %2310 = vrot.lane.b32.xlu0 %v2255, 96
    %v2311 = vpop.permute.xlu0 %2310
    %2312 = vrot.lane.b32.xlu0 %v2256, 96
    %v2313 = vpop.permute.xlu0 %2312
    %2314 = vrot.lane.b32.xlu0 %v2257, 96
    %v2315 = vpop.permute.xlu0 %2314
    %2316 = vrot.lane.b32.xlu0 %v2258, 96
    %v2317 = vpop.permute.xlu0 %2316
    %2318 = vrot.lane.b32.xlu0 %v2259, 96
    %v2319 = vpop.permute.xlu0 %2318
    %2320 = vrot.lane.b32.xlu0 %v2260, 96
    %v2321 = vpop.permute.xlu0 %2320
    %2322 = vrot.lane.b32.xlu0 %v2261, 96
    %v2323 = vpop.permute.xlu0 %2322
    %2324 = vrot.lane.b32.xlu0 %v2262, 96
    %v2325 = vpop.permute.xlu0 %2324
    %2326 = vrot.lane.b32.xlu0 %v2263, 96
    %v2327 = vpop.permute.xlu0 %2326
    %v2344 = vmul.f32 %v2264, %v2297
    %v2345 = vmul.f32 %v2265, %v2299
    %v2346 = vmul.f32 %v2266, %v2301
    %v2347 = vmul.f32 %v2267, %v2303
    %v2348 = vmul.f32 %v2268, %v2305
    %v2349 = vmul.f32 %v2269, %v2307
    %v2350 = vmul.f32 %v2270, %v2309
    %v2351 = vmul.f32 %v2271, %v2311
    %v2352 = vmul.f32 %v2272, %v2313
    %v2353 = vmul.f32 %v2273, %v2315
    %v2354 = vmul.f32 %v2274, %v2317
    %v2355 = vmul.f32 %v2275, %v2319
    %v2356 = vmul.f32 %v2276, %v2321
    %v2357 = vmul.f32 %v2277, %v2323
    %v2358 = vmul.f32 %v2278, %v2325
    %v2359 = vmul.f32 %v2279, %v2327
    %v2360 = vmul.f32 %v2037, %v1665
    %v2361 = vmul.f32 %v2039, %v1666
    %v2362 = vmul.f32 %v2041, %v1667
    %v2363 = vmul.f32 %v2043, %v1668
    %v2364 = vmul.f32 %v2045, %v1669
    %v2365 = vmul.f32 %v2047, %v1670
    %v2366 = vmul.f32 %v2049, %v1671
    %v2367 = vmul.f32 %v2051, %v1672
    %v2368 = vmul.f32 %v2053, %v1673
    %v2369 = vmul.f32 %v2055, %v1674
    %v2370 = vmul.f32 %v2057, %v1675
    %v2371 = vmul.f32 %v2059, %v1676
    %v2372 = vmul.f32 %v2061, %v1677
    %v2373 = vmul.f32 %v2063, %v1678
    %v2374 = vmul.f32 %v2065, %v1679
    %v2375 = vmul.f32 %v2067, %v1680
    %v2376 = vadd.f32 %v2344, %v2360
    %v2377 = vadd.f32 %v2345, %v2361
    %v2378 = vadd.f32 %v2346, %v2362
    %v2379 = vadd.f32 %v2347, %v2363
    %v2380 = vadd.f32 %v2348, %v2364
    %v2381 = vadd.f32 %v2349, %v2365
    %v2382 = vadd.f32 %v2350, %v2366
    %v2383 = vadd.f32 %v2351, %v2367
    %v2384 = vadd.f32 %v2352, %v2368
    %v2385 = vadd.f32 %v2353, %v2369
    %v2386 = vadd.f32 %v2354, %v2370
    %v2387 = vadd.f32 %v2355, %v2371
    %v2388 = vadd.f32 %v2356, %v2372
    %v2389 = vadd.f32 %v2357, %v2373
    %v2390 = vadd.f32 %v2358, %v2374
    %v2391 = vadd.f32 %v2359, %v2375
    %2408 = vrot.lane.b32.xlu0 %v2376, 96
    %v2409 = vpop.permute.xlu0 %2408
    %2410 = vrot.lane.b32.xlu0 %v2377, 96
    %v2411 = vpop.permute.xlu0 %2410
    %2412 = vrot.lane.b32.xlu0 %v2378, 96
    %v2413 = vpop.permute.xlu0 %2412
    %2414 = vrot.lane.b32.xlu0 %v2379, 96
    %v2415 = vpop.permute.xlu0 %2414
    %2416 = vrot.lane.b32.xlu0 %v2380, 96
    %v2417 = vpop.permute.xlu0 %2416
    %2418 = vrot.lane.b32.xlu0 %v2381, 96
    %v2419 = vpop.permute.xlu0 %2418
    %2420 = vrot.lane.b32.xlu0 %v2382, 96
    %v2421 = vpop.permute.xlu0 %2420
    %2422 = vrot.lane.b32.xlu0 %v2383, 96
    %v2423 = vpop.permute.xlu0 %2422
    %2424 = vrot.lane.b32.xlu0 %v2384, 96
    %v2425 = vpop.permute.xlu0 %2424
    %2426 = vrot.lane.b32.xlu0 %v2385, 96
    %v2427 = vpop.permute.xlu0 %2426
    %2428 = vrot.lane.b32.xlu0 %v2386, 96
    %v2429 = vpop.permute.xlu0 %2428
    %2430 = vrot.lane.b32.xlu0 %v2387, 96
    %v2431 = vpop.permute.xlu0 %2430
    %2432 = vrot.lane.b32.xlu0 %v2388, 96
    %v2433 = vpop.permute.xlu0 %2432
    %2434 = vrot.lane.b32.xlu0 %v2389, 96
    %v2435 = vpop.permute.xlu0 %2434
    %2436 = vrot.lane.b32.xlu0 %v2390, 96
    %v2437 = vpop.permute.xlu0 %2436
    %2438 = vrot.lane.b32.xlu0 %v2391, 96
    %v2439 = vpop.permute.xlu0 %2438
    %s2456 = scalar_lea.vmem [#allocation3], 128
    %2457 = vst.msk [vmem:[%s2456] sm:$0xff] %vm1745, %v2409
    %2458 = vst.msk [vmem:[%s2456 + $0x8] sm:$0xff] %vm1745, %v2411
    %2459 = vst.msk [vmem:[%s2456 + $0x10] sm:$0xff] %vm1745, %v2413
    %2460 = vst.msk [vmem:[%s2456 + $0x18] sm:$0xff] %vm1745, %v2415
    %2461 = vst.msk [vmem:[%s2456 + $0x20] sm:$0xff] %vm1745, %v2417
    %2462 = vst.msk [vmem:[%s2456 + $0x28] sm:$0xff] %vm1745, %v2419
    %2463 = vst.msk [vmem:[%s2456 + $0x30] sm:$0xff] %vm1745, %v2421
    %2464 = vst.msk [vmem:[%s2456 + $0x38] sm:$0xff] %vm1745, %v2423
    %2465 = vst.msk [vmem:[%s2456 + $0x40] sm:$0xff] %vm1745, %v2425
    %2466 = vst.msk [vmem:[%s2456 + $0x48] sm:$0xff] %vm1745, %v2427
    %2467 = vst.msk [vmem:[%s2456 + $0x50] sm:$0xff] %vm1745, %v2429
    %2468 = vst.msk [vmem:[%s2456 + $0x58] sm:$0xff] %vm1745, %v2431
    %2469 = vst.msk [vmem:[%s2456 + $0x60] sm:$0xff] %vm1745, %v2433
    %2470 = vst.msk [vmem:[%s2456 + $0x68] sm:$0xff] %vm1745, %v2435
    %2471 = vst.msk [vmem:[%s2456 + $0x70] sm:$0xff] %vm1745, %v2437
    %2472 = vst.msk [vmem:[%s2456 + $0x78] sm:$0xff] %vm1745, %v2439
    %v2473 = vsel %vm1745, %v2409, 0
    %v2475 = vsel %vm1745, %v2411, 0
    %v2477 = vsel %vm1745, %v2413, 0
    %v2479 = vsel %vm1745, %v2415, 0
    %v2481 = vsel %vm1745, %v2417, 0
    %v2483 = vsel %vm1745, %v2419, 0
    %v2485 = vsel %vm1745, %v2421, 0
    %v2487 = vsel %vm1745, %v2423, 0
    %v2489 = vsel %vm1745, %v2425, 0
    %v2491 = vsel %vm1745, %v2427, 0
    %v2493 = vsel %vm1745, %v2429, 0
    %v2495 = vsel %vm1745, %v2431, 0
    %v2497 = vsel %vm1745, %v2433, 0
    %v2499 = vsel %vm1745, %v2435, 0
    %v2501 = vsel %vm1745, %v2437, 0
    %v2503 = vsel %vm1745, %v2439, 0
    %2505 = vmatprep.subr.mxu0 0.0
    %2506 = vmatpush1.msra.mxu0 %v1353
    %2507 = vmatprep.subr.mxu0 0.0
    %2508 = vmatpush1.msra.mxu0 %v1354
    %2509 = vmatprep.subr.mxu0 0.0
    %2510 = vmatpush1.msra.mxu0 %v1355
    %2511 = vmatprep.subr.mxu0 0.0
    %2512 = vmatpush1.msra.mxu0 %v1356
    %2513 = vmatprep.subr.mxu0 0.0
    %2514 = vmatpush1.msra.mxu0 0.0
    %2515 = vmatprep.subr.mxu0 0.0
    %2516 = vmatpush1.msra.mxu0 0.0
    %2517 = vmatprep.subr.mxu0 0.0
    %2518 = vmatpush1.msra.mxu0 0.0
    %2519 = vmatprep.subr.mxu0 0.0
    %2520 = vmatpush1.msra.mxu0 0.0
    %2521 = vmatprep.subr.mxu0 0.0
    %2522 = vmatpush1.msra.mxu0 0.0
    %2523 = vmatprep.subr.mxu0 0.0
    %2524 = vmatpush1.msra.mxu0 0.0
    %2525 = vmatprep.subr.mxu0 0.0
    %2526 = vmatpush1.msra.mxu0 0.0
    %2527 = vmatprep.subr.mxu0 0.0
    %2528 = vmatpush1.msra.mxu0 0.0
    %2529 = vmatprep.subr.mxu0 0.0
    %2530 = vmatpush1.msra.mxu0 0.0
    %2531 = vmatprep.subr.mxu0 0.0
    %2532 = vmatpush1.msra.mxu0 0.0
    %2533 = vmatprep.subr.mxu0 0.0
    %2534 = vmatpush1.msra.mxu0 0.0
    %2535 = vmatprep.subr.mxu0 0.0
    %2536 = vmatpush1.msra.mxu0 0.0
    %2537 = vmatprep.subr.mxu0 0.0
    %2538 = vmatpush1.msra.mxu0 0.0
    %2539 = vmatprep.subr.mxu0 0.0
    %2540 = vmatpush1.msra.mxu0 0.0
    %2541 = vmatprep.subr.mxu0 0.0
    %2542 = vmatpush1.msra.mxu0 0.0
    %2543 = vmatprep.subr.mxu0 0.0
    %2544 = vmatpush1.msra.mxu0 0.0
    %2545 = vmatprep.subr.mxu0 0.0
    %2546 = vmatpush1.msra.mxu0 0.0
    %2547 = vmatprep.subr.mxu0 0.0
    %2548 = vmatpush1.msra.mxu0 0.0
    %2549 = vmatprep.subr.mxu0 0.0
    %2550 = vmatpush1.msra.mxu0 0.0
    %2551 = vmatprep.subr.mxu0 0.0
    %2552 = vmatpush1.msra.mxu0 0.0
    %2553 = vmatprep.subr.mxu0 0.0
    %2554 = vmatpush1.msra.mxu0 0.0
    %2555 = vmatprep.subr.mxu0 0.0
    %2556 = vmatpush1.msra.mxu0 0.0
    %2557 = vmatprep.subr.mxu0 0.0
    %2558 = vmatpush1.msra.mxu0 0.0
    %2559 = vmatprep.subr.mxu0 0.0
    %2560 = vmatpush1.msra.mxu0 0.0
    %2561 = vmatprep.subr.mxu0 0.0
    %2562 = vmatpush1.msra.mxu0 0.0
    %2563 = vmatprep.subr.mxu0 0.0
    %2564 = vmatpush1.msra.mxu0 0.0
    %2565 = vmatprep.subr.mxu0 0.0
    %2566 = vmatpush1.msra.mxu0 0.0
    %2567 = vmatprep.subr.mxu0 0.0
    %2568 = vmatpush1.msra.mxu0 0.0
    %2569 = vmatprep.mubr.f32.mxu0 0.0
    %2570 = vmatmul.mubr.f32.gmra.mrb[0].mxu0 %v2473
    %v2571 = vpop.f32.mrb[0].mxu0
    %v2572 = vadd.f32 0.0, %v2571
    %v2573 = vpop.f32.mrb[0].mxu0
    %2574 = vmatprep.mubr.f32.mxu0 0.0
    %2575 = vmatmul.mubr.f32.gmra.mrb[0].mxu0 %v2475
    %v2576 = vpop.f32.mrb[0].mxu0
    %v2577 = vadd.f32 0.0, %v2576
    %v2578 = vpop.f32.mrb[0].mxu0
    %2579 = vmatprep.mubr.f32.mxu0 0.0
    %2580 = vmatmul.mubr.f32.gmra.mrb[0].mxu0 %v2477
    %v2581 = vpop.f32.mrb[0].mxu0
    %v2582 = vadd.f32 0.0, %v2581
    %v2583 = vpop.f32.mrb[0].mxu0
    %2584 = vmatprep.mubr.f32.mxu0 0.0
    %2585 = vmatmul.mubr.f32.gmra.mrb[0].mxu0 %v2479
    %v2586 = vpop.f32.mrb[0].mxu0
    %v2587 = vadd.f32 0.0, %v2586
    %v2588 = vpop.f32.mrb[0].mxu0
    %2589 = vmatprep.mubr.f32.mxu0 0.0
    %2590 = vmatmul.mubr.f32.gmra.mrb[0].mxu0 %v2481
    %v2591 = vpop.f32.mrb[0].mxu0
    %v2592 = vadd.f32 0.0, %v2591
    %v2593 = vpop.f32.mrb[0].mxu0
    %2594 = vmatprep.mubr.f32.mxu0 0.0
    %2595 = vmatmul.mubr.f32.gmra.mrb[0].mxu0 %v2483
    %v2596 = vpop.f32.mrb[0].mxu0
    %v2597 = vadd.f32 0.0, %v2596
    %v2598 = vpop.f32.mrb[0].mxu0
    %2599 = vmatprep.mubr.f32.mxu0 0.0
    %2600 = vmatmul.mubr.f32.gmra.mrb[0].mxu0 %v2485
    %v2601 = vpop.f32.mrb[0].mxu0
    %v2602 = vadd.f32 0.0, %v2601
    %v2603 = vpop.f32.mrb[0].mxu0
    %2604 = vmatprep.mubr.f32.mxu0 0.0
    %2605 = vmatmul.mubr.f32.gmra.mrb[0].mxu0 %v2487
    %v2606 = vpop.f32.mrb[0].mxu0
    %v2607 = vadd.f32 0.0, %v2606
    %v2608 = vpop.f32.mrb[0].mxu0
    %2609 = vmatprep.mubr.f32.mxu0 0.0
    %2610 = vmatmul.mubr.f32.gmra.mrb[0].mxu0 %v2489
    %v2611 = vpop.f32.mrb[0].mxu0
    %v2612 = vadd.f32 0.0, %v2611
    %v2613 = vpop.f32.mrb[0].mxu0
    %2614 = vmatprep.mubr.f32.mxu0 0.0
    %2615 = vmatmul.mubr.f32.gmra.mrb[0].mxu0 %v2491
    %v2616 = vpop.f32.mrb[0].mxu0
    %v2617 = vadd.f32 0.0, %v2616
    %v2618 = vpop.f32.mrb[0].mxu0
    %2619 = vmatprep.mubr.f32.mxu0 0.0
    %2620 = vmatmul.mubr.f32.gmra.mrb[0].mxu0 %v2493
    %v2621 = vpop.f32.mrb[0].mxu0
    %v2622 = vadd.f32 0.0, %v2621
    %v2623 = vpop.f32.mrb[0].mxu0
    %2624 = vmatprep.mubr.f32.mxu0 0.0
    %2625 = vmatmul.mubr.f32.gmra.mrb[0].mxu0 %v2495
    %v2626 = vpop.f32.mrb[0].mxu0
    %v2627 = vadd.f32 0.0, %v2626
    %v2628 = vpop.f32.mrb[0].mxu0
    %2629 = vmatprep.mubr.f32.mxu0 0.0
    %2630 = vmatmul.mubr.f32.gmra.mrb[0].mxu0 %v2497
    %v2631 = vpop.f32.mrb[0].mxu0
    %v2632 = vadd.f32 0.0, %v2631
    %v2633 = vpop.f32.mrb[0].mxu0
    %2634 = vmatprep.mubr.f32.mxu0 0.0
    %2635 = vmatmul.mubr.f32.gmra.mrb[0].mxu0 %v2499
    %v2636 = vpop.f32.mrb[0].mxu0
    %v2637 = vadd.f32 0.0, %v2636
    %v2638 = vpop.f32.mrb[0].mxu0
    %2639 = vmatprep.mubr.f32.mxu0 0.0
    %2640 = vmatmul.mubr.f32.gmra.mrb[0].mxu0 %v2501
    %v2641 = vpop.f32.mrb[0].mxu0
    %v2642 = vadd.f32 0.0, %v2641
    %v2643 = vpop.f32.mrb[0].mxu0
    %2644 = vmatprep.mubr.f32.mxu0 0.0
    %2645 = vmatmul.mubr.f32.gmra.mrb[0].mxu0 %v2503
    %v2646 = vpop.f32.mrb[0].mxu0
    %v2647 = vadd.f32 0.0, %v2646
    %v2648 = vpop.f32.mrb[0].mxu0
    %2649 = vdwg.mxu0
    %s2650 = scalar_lea.vmem [#allocation2], 256
    %v2651 = vld [vmem:[%s2650] sm:$0xff]
    %v2652 = vld [vmem:[%s2650 + $0x8] sm:$0xff]
    %v2653 = vld [vmem:[%s2650 + $0x10] sm:$0xff]
    %v2654 = vld [vmem:[%s2650 + $0x18] sm:$0xff]
    %v2655 = vld [vmem:[%s2650 + $0x20] sm:$0xff]
    %v2656 = vld [vmem:[%s2650 + $0x28] sm:$0xff]
    %v2657 = vld [vmem:[%s2650 + $0x30] sm:$0xff]
    %v2658 = vld [vmem:[%s2650 + $0x38] sm:$0xff]
    %v2659 = vld [vmem:[%s2650 + $0x40] sm:$0xff]
    %v2660 = vld [vmem:[%s2650 + $0x48] sm:$0xff]
    %v2661 = vld [vmem:[%s2650 + $0x50] sm:$0xff]
    %v2662 = vld [vmem:[%s2650 + $0x58] sm:$0xff]
    %v2663 = vld [vmem:[%s2650 + $0x60] sm:$0xff]
    %v2664 = vld [vmem:[%s2650 + $0x68] sm:$0xff]
    %v2665 = vld [vmem:[%s2650 + $0x70] sm:$0xff]
    %v2666 = vld [vmem:[%s2650 + $0x78] sm:$0xff]
    %v2667 = vadd.f32 %v2651, %v2572
    %v2668 = vadd.f32 %v2652, %v2577
    %v2669 = vadd.f32 %v2653, %v2582
    %v2670 = vadd.f32 %v2654, %v2587
    %v2671 = vadd.f32 %v2655, %v2592
    %v2672 = vadd.f32 %v2656, %v2597
    %v2673 = vadd.f32 %v2657, %v2602
    %v2674 = vadd.f32 %v2658, %v2607
    %v2675 = vadd.f32 %v2659, %v2612
    %v2676 = vadd.f32 %v2660, %v2617
    %v2677 = vadd.f32 %v2661, %v2622
    %v2678 = vadd.f32 %v2662, %v2627
    %v2679 = vadd.f32 %v2663, %v2632
    %v2680 = vadd.f32 %v2664, %v2637
    %v2681 = vadd.f32 %v2665, %v2642
    %v2682 = vadd.f32 %v2666, %v2647
    %v2683 = vxor.u32 %v2667, 2147483648
    %v2684 = vxor.u32 %v2668, 2147483648
    %v2685 = vxor.u32 %v2669, 2147483648
    %v2686 = vxor.u32 %v2670, 2147483648
    %v2687 = vxor.u32 %v2671, 2147483648
    %v2688 = vxor.u32 %v2672, 2147483648
    %v2689 = vxor.u32 %v2673, 2147483648
    %v2690 = vxor.u32 %v2674, 2147483648
    %v2691 = vxor.u32 %v2675, 2147483648
    %v2692 = vxor.u32 %v2676, 2147483648
    %v2693 = vxor.u32 %v2677, 2147483648
    %v2694 = vxor.u32 %v2678, 2147483648
    %v2695 = vxor.u32 %v2679, 2147483648
    %v2696 = vxor.u32 %v2680, 2147483648
    %v2697 = vxor.u32 %v2681, 2147483648
    %v2698 = vxor.u32 %v2682, 2147483648
    %v2699 = vmul.f32 %v2683, 1.442695
    %v2700 = vpow.pop %v2699
    %v2701 = vmul.f32 %v2684, 1.442695
    %v2702 = vpow.pop %v2701
    %v2703 = vmul.f32 %v2685, 1.442695
    %v2704 = vpow.pop %v2703
    %v2705 = vmul.f32 %v2686, 1.442695
    %v2706 = vpow.pop %v2705
    %v2707 = vmul.f32 %v2687, 1.442695
    %v2708 = vpow.pop %v2707
    %v2709 = vmul.f32 %v2688, 1.442695
    %v2710 = vpow.pop %v2709
    %v2711 = vmul.f32 %v2689, 1.442695
    %v2712 = vpow.pop %v2711
    %v2713 = vmul.f32 %v2690, 1.442695
    %v2714 = vpow.pop %v2713
    %v2715 = vmul.f32 %v2691, 1.442695
    %v2716 = vpow.pop %v2715
    %v2717 = vmul.f32 %v2692, 1.442695
    %v2718 = vpow.pop %v2717
    %v2719 = vmul.f32 %v2693, 1.442695
    %v2720 = vpow.pop %v2719
    %v2721 = vmul.f32 %v2694, 1.442695
    %v2722 = vpow.pop %v2721
    %v2723 = vmul.f32 %v2695, 1.442695
    %v2724 = vpow.pop %v2723
    %v2725 = vmul.f32 %v2696, 1.442695
    %v2726 = vpow.pop %v2725
    %v2727 = vmul.f32 %v2697, 1.442695
    %v2728 = vpow.pop %v2727
    %v2729 = vmul.f32 %v2698, 1.442695
    %v2730 = vpow.pop %v2729
    %v2731 = vadd.f32 %v2700, 1.0
    %v2732 = vadd.f32 %v2702, 1.0
    %v2733 = vadd.f32 %v2704, 1.0
    %v2734 = vadd.f32 %v2706, 1.0
    %v2735 = vadd.f32 %v2708, 1.0
    %v2736 = vadd.f32 %v2710, 1.0
    %v2737 = vadd.f32 %v2712, 1.0
    %v2738 = vadd.f32 %v2714, 1.0
    %v2739 = vadd.f32 %v2716, 1.0
    %v2740 = vadd.f32 %v2718, 1.0
    %v2741 = vadd.f32 %v2720, 1.0
    %v2742 = vadd.f32 %v2722, 1.0
    %v2743 = vadd.f32 %v2724, 1.0
    %v2744 = vadd.f32 %v2726, 1.0
    %v2745 = vadd.f32 %v2728, 1.0
    %v2746 = vadd.f32 %v2730, 1.0
    %v2747 = vrcp.pop %v2731
    %v2748 = vmul.f32 1.0, %v2747
    %v2749 = vrcp.pop %v2732
    %v2750 = vmul.f32 1.0, %v2749
    %v2751 = vrcp.pop %v2733
    %v2752 = vmul.f32 1.0, %v2751
    %v2753 = vrcp.pop %v2734
    %v2754 = vmul.f32 1.0, %v2753
    %v2755 = vrcp.pop %v2735
    %v2756 = vmul.f32 1.0, %v2755
    %v2757 = vrcp.pop %v2736
    %v2758 = vmul.f32 1.0, %v2757
    %v2759 = vrcp.pop %v2737
    %v2760 = vmul.f32 1.0, %v2759
    %v2761 = vrcp.pop %v2738
    %v2762 = vmul.f32 1.0, %v2761
    %v2763 = vrcp.pop %v2739
    %v2764 = vmul.f32 1.0, %v2763
    %v2765 = vrcp.pop %v2740
    %v2766 = vmul.f32 1.0, %v2765
    %v2767 = vrcp.pop %v2741
    %v2768 = vmul.f32 1.0, %v2767
    %v2769 = vrcp.pop %v2742
    %v2770 = vmul.f32 1.0, %v2769
    %v2771 = vrcp.pop %v2743
    %v2772 = vmul.f32 1.0, %v2771
    %v2773 = vrcp.pop %v2744
    %v2774 = vmul.f32 1.0, %v2773
    %v2775 = vrcp.pop %v2745
    %v2776 = vmul.f32 1.0, %v2775
    %v2777 = vrcp.pop %v2746
    %v2778 = vmul.f32 1.0, %v2777
    %v2779 = vadd.f32 %v2572, %v2070
    %v2780 = vadd.f32 %v2577, %v2070
    %v2781 = vadd.f32 %v2582, %v2070
    %v2782 = vadd.f32 %v2587, %v2070
    %v2783 = vadd.f32 %v2592, %v2070
    %v2784 = vadd.f32 %v2597, %v2070
    %v2785 = vadd.f32 %v2602, %v2070
    %v2786 = vadd.f32 %v2607, %v2070
    %v2787 = vadd.f32 %v2612, %v2070
    %v2788 = vadd.f32 %v2617, %v2070
    %v2789 = vadd.f32 %v2622, %v2070
    %v2790 = vadd.f32 %v2627, %v2070
    %v2791 = vadd.f32 %v2632, %v2070
    %v2792 = vadd.f32 %v2637, %v2070
    %v2793 = vadd.f32 %v2642, %v2070
    %v2794 = vadd.f32 %v2647, %v2070
    %2811 = vrot.lane.b32.xlu0 %v2779, 64
    %v2812 = vpop.permute.xlu0 %2811
    %2813 = vrot.lane.b32.xlu0 %v2780, 64
    %v2814 = vpop.permute.xlu0 %2813
    %2815 = vrot.lane.b32.xlu0 %v2781, 64
    %v2816 = vpop.permute.xlu0 %2815
    %2817 = vrot.lane.b32.xlu0 %v2782, 64
    %v2818 = vpop.permute.xlu0 %2817
    %2819 = vrot.lane.b32.xlu0 %v2783, 64
    %v2820 = vpop.permute.xlu0 %2819
    %2821 = vrot.lane.b32.xlu0 %v2784, 64
    %v2822 = vpop.permute.xlu0 %2821
    %2823 = vrot.lane.b32.xlu0 %v2785, 64
    %v2824 = vpop.permute.xlu0 %2823
    %2825 = vrot.lane.b32.xlu0 %v2786, 64
    %v2826 = vpop.permute.xlu0 %2825
    %2827 = vrot.lane.b32.xlu0 %v2787, 64
    %v2828 = vpop.permute.xlu0 %2827
    %2829 = vrot.lane.b32.xlu0 %v2788, 64
    %v2830 = vpop.permute.xlu0 %2829
    %2831 = vrot.lane.b32.xlu0 %v2789, 64
    %v2832 = vpop.permute.xlu0 %2831
    %2833 = vrot.lane.b32.xlu0 %v2790, 64
    %v2834 = vpop.permute.xlu0 %2833
    %2835 = vrot.lane.b32.xlu0 %v2791, 64
    %v2836 = vpop.permute.xlu0 %2835
    %2837 = vrot.lane.b32.xlu0 %v2792, 64
    %v2838 = vpop.permute.xlu0 %2837
    %2839 = vrot.lane.b32.xlu0 %v2793, 64
    %v2840 = vpop.permute.xlu0 %2839
    %2841 = vrot.lane.b32.xlu0 %v2794, 64
    %v2842 = vpop.permute.xlu0 %2841
    %v2859 = vmul.f32 %v2748, %v2812
    %v2860 = vmul.f32 %v2750, %v2814
    %v2861 = vmul.f32 %v2752, %v2816
    %v2862 = vmul.f32 %v2754, %v2818
    %v2863 = vmul.f32 %v2756, %v2820
    %v2864 = vmul.f32 %v2758, %v2822
    %v2865 = vmul.f32 %v2760, %v2824
    %v2866 = vmul.f32 %v2762, %v2826
    %v2867 = vmul.f32 %v2764, %v2828
    %v2868 = vmul.f32 %v2766, %v2830
    %v2869 = vmul.f32 %v2768, %v2832
    %v2870 = vmul.f32 %v2770, %v2834
    %v2871 = vmul.f32 %v2772, %v2836
    %v2872 = vmul.f32 %v2774, %v2838
    %v2873 = vmul.f32 %v2776, %v2840
    %v2874 = vmul.f32 %v2778, %v2842
    %2891 = vrot.lane.b32.xlu0 %v2859, 64
    %v2892 = vpop.permute.xlu0 %2891
    %2893 = vrot.lane.b32.xlu0 %v2860, 64
    %v2894 = vpop.permute.xlu0 %2893
    %2895 = vrot.lane.b32.xlu0 %v2861, 64
    %v2896 = vpop.permute.xlu0 %2895
    %2897 = vrot.lane.b32.xlu0 %v2862, 64
    %v2898 = vpop.permute.xlu0 %2897
    %2899 = vrot.lane.b32.xlu0 %v2863, 64
    %v2900 = vpop.permute.xlu0 %2899
    %2901 = vrot.lane.b32.xlu0 %v2864, 64
    %v2902 = vpop.permute.xlu0 %2901
    %2903 = vrot.lane.b32.xlu0 %v2865, 64
    %v2904 = vpop.permute.xlu0 %2903
    %2905 = vrot.lane.b32.xlu0 %v2866, 64
    %v2906 = vpop.permute.xlu0 %2905
    %2907 = vrot.lane.b32.xlu0 %v2867, 64
    %v2908 = vpop.permute.xlu0 %2907
    %2909 = vrot.lane.b32.xlu0 %v2868, 64
    %v2910 = vpop.permute.xlu0 %2909
    %2911 = vrot.lane.b32.xlu0 %v2869, 64
    %v2912 = vpop.permute.xlu0 %2911
    %2913 = vrot.lane.b32.xlu0 %v2870, 64
    %v2914 = vpop.permute.xlu0 %2913
    %2915 = vrot.lane.b32.xlu0 %v2871, 64
    %v2916 = vpop.permute.xlu0 %2915
    %2917 = vrot.lane.b32.xlu0 %v2872, 64
    %v2918 = vpop.permute.xlu0 %2917
    %2919 = vrot.lane.b32.xlu0 %v2873, 64
    %v2920 = vpop.permute.xlu0 %2919
    %2921 = vrot.lane.b32.xlu0 %v2874, 64
    %v2922 = vpop.permute.xlu0 %2921
    %v2939 = vadd.f32 %v2651, %v2892
    %v2940 = vadd.f32 %v2652, %v2894
    %v2941 = vadd.f32 %v2653, %v2896
    %v2942 = vadd.f32 %v2654, %v2898
    %v2943 = vadd.f32 %v2655, %v2900
    %v2944 = vadd.f32 %v2656, %v2902
    %v2945 = vadd.f32 %v2657, %v2904
    %v2946 = vadd.f32 %v2658, %v2906
    %v2947 = vadd.f32 %v2659, %v2908
    %v2948 = vadd.f32 %v2660, %v2910
    %v2949 = vadd.f32 %v2661, %v2912
    %v2950 = vadd.f32 %v2662, %v2914
    %v2951 = vadd.f32 %v2663, %v2916
    %v2952 = vadd.f32 %v2664, %v2918
    %v2953 = vadd.f32 %v2665, %v2920
    %v2954 = vadd.f32 %v2666, %v2922
    %v2955 = vtanh.pop %v2939
    %v2956 = vtanh.pop %v2940
    %v2957 = vtanh.pop %v2941
    %v2958 = vtanh.pop %v2942
    %v2959 = vtanh.pop %v2943
    %v2960 = vtanh.pop %v2944
    %v2961 = vtanh.pop %v2945
    %v2962 = vtanh.pop %v2946
    %v2963 = vtanh.pop %v2947
    %v2964 = vtanh.pop %v2948
    %v2965 = vtanh.pop %v2949
    %v2966 = vtanh.pop %v2950
    %v2967 = vtanh.pop %v2951
    %v2968 = vtanh.pop %v2952
    %v2969 = vtanh.pop %v2953
    %v2970 = vtanh.pop %v2954
    %v2971 = vsub.f32 1.0, %v2748
    %v2972 = vsub.f32 1.0, %v2750
    %v2973 = vsub.f32 1.0, %v2752
    %v2974 = vsub.f32 1.0, %v2754
    %v2975 = vsub.f32 1.0, %v2756
    %v2976 = vsub.f32 1.0, %v2758
    %v2977 = vsub.f32 1.0, %v2760
    %v2978 = vsub.f32 1.0, %v2762
    %v2979 = vsub.f32 1.0, %v2764
    %v2980 = vsub.f32 1.0, %v2766
    %v2981 = vsub.f32 1.0, %v2768
    %v2982 = vsub.f32 1.0, %v2770
    %v2983 = vsub.f32 1.0, %v2772
    %v2984 = vsub.f32 1.0, %v2774
    %v2985 = vsub.f32 1.0, %v2776
    %v2986 = vsub.f32 1.0, %v2778
    %3003 = vrot.lane.b32.xlu0 %v2955, 96
    %v3004 = vpop.permute.xlu0 %3003
    %3005 = vrot.lane.b32.xlu0 %v2956, 96
    %v3006 = vpop.permute.xlu0 %3005
    %3007 = vrot.lane.b32.xlu0 %v2957, 96
    %v3008 = vpop.permute.xlu0 %3007
    %3009 = vrot.lane.b32.xlu0 %v2958, 96
    %v3010 = vpop.permute.xlu0 %3009
    %3011 = vrot.lane.b32.xlu0 %v2959, 96
    %v3012 = vpop.permute.xlu0 %3011
    %3013 = vrot.lane.b32.xlu0 %v2960, 96
    %v3014 = vpop.permute.xlu0 %3013
    %3015 = vrot.lane.b32.xlu0 %v2961, 96
    %v3016 = vpop.permute.xlu0 %3015
    %3017 = vrot.lane.b32.xlu0 %v2962, 96
    %v3018 = vpop.permute.xlu0 %3017
    %3019 = vrot.lane.b32.xlu0 %v2963, 96
    %v3020 = vpop.permute.xlu0 %3019
    %3021 = vrot.lane.b32.xlu0 %v2964, 96
    %v3022 = vpop.permute.xlu0 %3021
    %3023 = vrot.lane.b32.xlu0 %v2965, 96
    %v3024 = vpop.permute.xlu0 %3023
    %3025 = vrot.lane.b32.xlu0 %v2966, 96
    %v3026 = vpop.permute.xlu0 %3025
    %3027 = vrot.lane.b32.xlu0 %v2967, 96
    %v3028 = vpop.permute.xlu0 %3027
    %3029 = vrot.lane.b32.xlu0 %v2968, 96
    %v3030 = vpop.permute.xlu0 %3029
    %3031 = vrot.lane.b32.xlu0 %v2969, 96
    %v3032 = vpop.permute.xlu0 %3031
    %3033 = vrot.lane.b32.xlu0 %v2970, 96
    %v3034 = vpop.permute.xlu0 %3033
    %v3051 = vmul.f32 %v2971, %v3004
    %v3052 = vmul.f32 %v2972, %v3006
    %v3053 = vmul.f32 %v2973, %v3008
    %v3054 = vmul.f32 %v2974, %v3010
    %v3055 = vmul.f32 %v2975, %v3012
    %v3056 = vmul.f32 %v2976, %v3014
    %v3057 = vmul.f32 %v2977, %v3016
    %v3058 = vmul.f32 %v2978, %v3018
    %v3059 = vmul.f32 %v2979, %v3020
    %v3060 = vmul.f32 %v2980, %v3022
    %v3061 = vmul.f32 %v2981, %v3024
    %v3062 = vmul.f32 %v2982, %v3026
    %v3063 = vmul.f32 %v2983, %v3028
    %v3064 = vmul.f32 %v2984, %v3030
    %v3065 = vmul.f32 %v2985, %v3032
    %v3066 = vmul.f32 %v2986, %v3034
    %v3067 = vmul.f32 %v2748, %v2376
    %v3068 = vmul.f32 %v2750, %v2377
    %v3069 = vmul.f32 %v2752, %v2378
    %v3070 = vmul.f32 %v2754, %v2379
    %v3071 = vmul.f32 %v2756, %v2380
    %v3072 = vmul.f32 %v2758, %v2381
    %v3073 = vmul.f32 %v2760, %v2382
    %v3074 = vmul.f32 %v2762, %v2383
    %v3075 = vmul.f32 %v2764, %v2384
    %v3076 = vmul.f32 %v2766, %v2385
    %v3077 = vmul.f32 %v2768, %v2386
    %v3078 = vmul.f32 %v2770, %v2387
    %v3079 = vmul.f32 %v2772, %v2388
    %v3080 = vmul.f32 %v2774, %v2389
    %v3081 = vmul.f32 %v2776, %v2390
    %v3082 = vmul.f32 %v2778, %v2391
    %v3083 = vadd.f32 %v3051, %v3067
    %v3084 = vadd.f32 %v3052, %v3068
    %v3085 = vadd.f32 %v3053, %v3069
    %v3086 = vadd.f32 %v3054, %v3070
    %v3087 = vadd.f32 %v3055, %v3071
    %v3088 = vadd.f32 %v3056, %v3072
    %v3089 = vadd.f32 %v3057, %v3073
    %v3090 = vadd.f32 %v3058, %v3074
    %v3091 = vadd.f32 %v3059, %v3075
    %v3092 = vadd.f32 %v3060, %v3076
    %v3093 = vadd.f32 %v3061, %v3077
    %v3094 = vadd.f32 %v3062, %v3078
    %v3095 = vadd.f32 %v3063, %v3079
    %v3096 = vadd.f32 %v3064, %v3080
    %v3097 = vadd.f32 %v3065, %v3081
    %v3098 = vadd.f32 %v3066, %v3082
    %3115 = vrot.lane.b32.xlu0 %v3083, 96
    %v3116 = vpop.permute.xlu0 %3115
    %3117 = vrot.lane.b32.xlu0 %v3084, 96
    %v3118 = vpop.permute.xlu0 %3117
    %3119 = vrot.lane.b32.xlu0 %v3085, 96
    %v3120 = vpop.permute.xlu0 %3119
    %3121 = vrot.lane.b32.xlu0 %v3086, 96
    %v3122 = vpop.permute.xlu0 %3121
    %3123 = vrot.lane.b32.xlu0 %v3087, 96
    %v3124 = vpop.permute.xlu0 %3123
    %3125 = vrot.lane.b32.xlu0 %v3088, 96
    %v3126 = vpop.permute.xlu0 %3125
    %3127 = vrot.lane.b32.xlu0 %v3089, 96
    %v3128 = vpop.permute.xlu0 %3127
    %3129 = vrot.lane.b32.xlu0 %v3090, 96
    %v3130 = vpop.permute.xlu0 %3129
    %3131 = vrot.lane.b32.xlu0 %v3091, 96
    %v3132 = vpop.permute.xlu0 %3131
    %3133 = vrot.lane.b32.xlu0 %v3092, 96
    %v3134 = vpop.permute.xlu0 %3133
    %3135 = vrot.lane.b32.xlu0 %v3093, 96
    %v3136 = vpop.permute.xlu0 %3135
    %3137 = vrot.lane.b32.xlu0 %v3094, 96
    %v3138 = vpop.permute.xlu0 %3137
    %3139 = vrot.lane.b32.xlu0 %v3095, 96
    %v3140 = vpop.permute.xlu0 %3139
    %3141 = vrot.lane.b32.xlu0 %v3096, 96
    %v3142 = vpop.permute.xlu0 %3141
    %3143 = vrot.lane.b32.xlu0 %v3097, 96
    %v3144 = vpop.permute.xlu0 %3143
    %3145 = vrot.lane.b32.xlu0 %v3098, 96
    %v3146 = vpop.permute.xlu0 %3145
    %s3163 = scalar_lea.vmem [#allocation3], 256
    %3164 = vst.msk [vmem:[%s3163] sm:$0xff] %vm1745, %v3116
    %3165 = vst.msk [vmem:[%s3163 + $0x8] sm:$0xff] %vm1745, %v3118
    %3166 = vst.msk [vmem:[%s3163 + $0x10] sm:$0xff] %vm1745, %v3120
    %3167 = vst.msk [vmem:[%s3163 + $0x18] sm:$0xff] %vm1745, %v3122
    %3168 = vst.msk [vmem:[%s3163 + $0x20] sm:$0xff] %vm1745, %v3124
    %3169 = vst.msk [vmem:[%s3163 + $0x28] sm:$0xff] %vm1745, %v3126
    %3170 = vst.msk [vmem:[%s3163 + $0x30] sm:$0xff] %vm1745, %v3128
    %3171 = vst.msk [vmem:[%s3163 + $0x38] sm:$0xff] %vm1745, %v3130
    %3172 = vst.msk [vmem:[%s3163 + $0x40] sm:$0xff] %vm1745, %v3132
    %3173 = vst.msk [vmem:[%s3163 + $0x48] sm:$0xff] %vm1745, %v3134
    %3174 = vst.msk [vmem:[%s3163 + $0x50] sm:$0xff] %vm1745, %v3136
    %3175 = vst.msk [vmem:[%s3163 + $0x58] sm:$0xff] %vm1745, %v3138
    %3176 = vst.msk [vmem:[%s3163 + $0x60] sm:$0xff] %vm1745, %v3140
    %3177 = vst.msk [vmem:[%s3163 + $0x68] sm:$0xff] %vm1745, %v3142
    %3178 = vst.msk [vmem:[%s3163 + $0x70] sm:$0xff] %vm1745, %v3144
    %3179 = vst.msk [vmem:[%s3163 + $0x78] sm:$0xff] %vm1745, %v3146
    %v3180 = vsel %vm1745, %v3116, 0
    %v3182 = vsel %vm1745, %v3118, 0
    %v3184 = vsel %vm1745, %v3120, 0
    %v3186 = vsel %vm1745, %v3122, 0
    %v3188 = vsel %vm1745, %v3124, 0
    %v3190 = vsel %vm1745, %v3126, 0
    %v3192 = vsel %vm1745, %v3128, 0
    %v3194 = vsel %vm1745, %v3130, 0
    %v3196 = vsel %vm1745, %v3132, 0
    %v3198 = vsel %vm1745, %v3134, 0
    %v3200 = vsel %vm1745, %v3136, 0
    %v3202 = vsel %vm1745, %v3138, 0
    %v3204 = vsel %vm1745, %v3140, 0
    %v3206 = vsel %vm1745, %v3142, 0
    %v3208 = vsel %vm1745, %v3144, 0
    %v3210 = vsel %vm1745, %v3146, 0
    %3212 = vmatprep.subr.mxu0 0.0
    %3213 = vmatpush1.msra.mxu0 %v1353
    %3214 = vmatprep.subr.mxu0 0.0
    %3215 = vmatpush1.msra.mxu0 %v1354
    %3216 = vmatprep.subr.mxu0 0.0
    %3217 = vmatpush1.msra.mxu0 %v1355
    %3218 = vmatprep.subr.mxu0 0.0
    %3219 = vmatpush1.msra.mxu0 %v1356
    %3220 = vmatprep.subr.mxu0 0.0
    %3221 = vmatpush1.msra.mxu0 0.0
    %3222 = vmatprep.subr.mxu0 0.0
    %3223 = vmatpush1.msra.mxu0 0.0
    %3224 = vmatprep.subr.mxu0 0.0
    %3225 = vmatpush1.msra.mxu0 0.0
    %3226 = vmatprep.subr.mxu0 0.0
    %3227 = vmatpush1.msra.mxu0 0.0
    %3228 = vmatprep.subr.mxu0 0.0
    %3229 = vmatpush1.msra.mxu0 0.0
    %3230 = vmatprep.subr.mxu0 0.0
    %3231 = vmatpush1.msra.mxu0 0.0
    %3232 = vmatprep.subr.mxu0 0.0
    %3233 = vmatpush1.msra.mxu0 0.0
    %3234 = vmatprep.subr.mxu0 0.0
    %3235 = vmatpush1.msra.mxu0 0.0
    %3236 = vmatprep.subr.mxu0 0.0
    %3237 = vmatpush1.msra.mxu0 0.0
    %3238 = vmatprep.subr.mxu0 0.0
    %3239 = vmatpush1.msra.mxu0 0.0
    %3240 = vmatprep.subr.mxu0 0.0
    %3241 = vmatpush1.msra.mxu0 0.0
    %3242 = vmatprep.subr.mxu0 0.0
    %3243 = vmatpush1.msra.mxu0 0.0
    %3244 = vmatprep.subr.mxu0 0.0
    %3245 = vmatpush1.msra.mxu0 0.0
    %3246 = vmatprep.subr.mxu0 0.0
    %3247 = vmatpush1.msra.mxu0 0.0
    %3248 = vmatprep.subr.mxu0 0.0
    %3249 = vmatpush1.msra.mxu0 0.0
    %3250 = vmatprep.subr.mxu0 0.0
    %3251 = vmatpush1.msra.mxu0 0.0
    %3252 = vmatprep.subr.mxu0 0.0
    %3253 = vmatpush1.msra.mxu0 0.0
    %3254 = vmatprep.subr.mxu0 0.0
    %3255 = vmatpush1.msra.mxu0 0.0
    %3256 = vmatprep.subr.mxu0 0.0
    %3257 = vmatpush1.msra.mxu0 0.0
    %3258 = vmatprep.subr.mxu0 0.0
    %3259 = vmatpush1.msra.mxu0 0.0
    %3260 = vmatprep.subr.mxu0 0.0
    %3261 = vmatpush1.msra.mxu0 0.0
    %3262 = vmatprep.subr.mxu0 0.0
    %3263 = vmatpush1.msra.mxu0 0.0
    %3264 = vmatprep.subr.mxu0 0.0
    %3265 = vmatpush1.msra.mxu0 0.0
    %3266 = vmatprep.subr.mxu0 0.0
    %3267 = vmatpush1.msra.mxu0 0.0
    %3268 = vmatprep.subr.mxu0 0.0
    %3269 = vmatpush1.msra.mxu0 0.0
    %3270 = vmatprep.subr.mxu0 0.0
    %3271 = vmatpush1.msra.mxu0 0.0
    %3272 = vmatprep.subr.mxu0 0.0
    %3273 = vmatpush1.msra.mxu0 0.0
    %3274 = vmatprep.subr.mxu0 0.0
    %3275 = vmatpush1.msra.mxu0 0.0
    %3276 = vmatprep.mubr.f32.mxu0 0.0
    %3277 = vmatmul.mubr.f32.gmra.mrb[0].mxu0 %v3180
    %v3278 = vpop.f32.mrb[0].mxu0
    %v3279 = vadd.f32 0.0, %v3278
    %v3280 = vpop.f32.mrb[0].mxu0
    %3281 = vmatprep.mubr.f32.mxu0 0.0
    %3282 = vmatmul.mubr.f32.gmra.mrb[0].mxu0 %v3182
    %v3283 = vpop.f32.mrb[0].mxu0
    %v3284 = vadd.f32 0.0, %v3283
    %v3285 = vpop.f32.mrb[0].mxu0
    %3286 = vmatprep.mubr.f32.mxu0 0.0
    %3287 = vmatmul.mubr.f32.gmra.mrb[0].mxu0 %v3184
    %v3288 = vpop.f32.mrb[0].mxu0
    %v3289 = vadd.f32 0.0, %v3288
    %v3290 = vpop.f32.mrb[0].mxu0
    %3291 = vmatprep.mubr.f32.mxu0 0.0
    %3292 = vmatmul.mubr.f32.gmra.mrb[0].mxu0 %v3186
    %v3293 = vpop.f32.mrb[0].mxu0
    %v3294 = vadd.f32 0.0, %v3293
    %v3295 = vpop.f32.mrb[0].mxu0
    %3296 = vmatprep.mubr.f32.mxu0 0.0
    %3297 = vmatmul.mubr.f32.gmra.mrb[0].mxu0 %v3188
    %v3298 = vpop.f32.mrb[0].mxu0
    %v3299 = vadd.f32 0.0, %v3298
    %v3300 = vpop.f32.mrb[0].mxu0
    %3301 = vmatprep.mubr.f32.mxu0 0.0
    %3302 = vmatmul.mubr.f32.gmra.mrb[0].mxu0 %v3190
    %v3303 = vpop.f32.mrb[0].mxu0
    %v3304 = vadd.f32 0.0, %v3303
    %v3305 = vpop.f32.mrb[0].mxu0
    %3306 = vmatprep.mubr.f32.mxu0 0.0
    %3307 = vmatmul.mubr.f32.gmra.mrb[0].mxu0 %v3192
    %v3308 = vpop.f32.mrb[0].mxu0
    %v3309 = vadd.f32 0.0, %v3308
    %v3310 = vpop.f32.mrb[0].mxu0
    %3311 = vmatprep.mubr.f32.mxu0 0.0
    %3312 = vmatmul.mubr.f32.gmra.mrb[0].mxu0 %v3194
    %v3313 = vpop.f32.mrb[0].mxu0
    %v3314 = vadd.f32 0.0, %v3313
    %v3315 = vpop.f32.mrb[0].mxu0
    %3316 = vmatprep.mubr.f32.mxu0 0.0
    %3317 = vmatmul.mubr.f32.gmra.mrb[0].mxu0 %v3196
    %v3318 = vpop.f32.mrb[0].mxu0
    %v3319 = vadd.f32 0.0, %v3318
    %v3320 = vpop.f32.mrb[0].mxu0
    %3321 = vmatprep.mubr.f32.mxu0 0.0
    %3322 = vmatmul.mubr.f32.gmra.mrb[0].mxu0 %v3198
    %v3323 = vpop.f32.mrb[0].mxu0
    %v3324 = vadd.f32 0.0, %v3323
    %v3325 = vpop.f32.mrb[0].mxu0
    %3326 = vmatprep.mubr.f32.mxu0 0.0
    %3327 = vmatmul.mubr.f32.gmra.mrb[0].mxu0 %v3200
    %v3328 = vpop.f32.mrb[0].mxu0
    %v3329 = vadd.f32 0.0, %v3328
    %v3330 = vpop.f32.mrb[0].mxu0
    %3331 = vmatprep.mubr.f32.mxu0 0.0
    %3332 = vmatmul.mubr.f32.gmra.mrb[0].mxu0 %v3202
    %v3333 = vpop.f32.mrb[0].mxu0
    %v3334 = vadd.f32 0.0, %v3333
    %v3335 = vpop.f32.mrb[0].mxu0
    %3336 = vmatprep.mubr.f32.mxu0 0.0
    %3337 = vmatmul.mubr.f32.gmra.mrb[0].mxu0 %v3204
    %v3338 = vpop.f32.mrb[0].mxu0
    %v3339 = vadd.f32 0.0, %v3338
    %v3340 = vpop.f32.mrb[0].mxu0
    %3341 = vmatprep.mubr.f32.mxu0 0.0
    %3342 = vmatmul.mubr.f32.gmra.mrb[0].mxu0 %v3206
    %v3343 = vpop.f32.mrb[0].mxu0
    %v3344 = vadd.f32 0.0, %v3343
    %v3345 = vpop.f32.mrb[0].mxu0
    %3346 = vmatprep.mubr.f32.mxu0 0.0
    %3347 = vmatmul.mubr.f32.gmra.mrb[0].mxu0 %v3208
    %v3348 = vpop.f32.mrb[0].mxu0
    %v3349 = vadd.f32 0.0, %v3348
    %v3350 = vpop.f32.mrb[0].mxu0
    %3351 = vmatprep.mubr.f32.mxu0 0.0
    %3352 = vmatmul.mubr.f32.gmra.mrb[0].mxu0 %v3210
    %v3353 = vpop.f32.mrb[0].mxu0
    %v3354 = vadd.f32 0.0, %v3353
    %v3355 = vpop.f32.mrb[0].mxu0
    %3356 = vdwg.mxu0
    %s3357 = scalar_lea.vmem [#allocation2], 384
    %v3358 = vld [vmem:[%s3357] sm:$0xff]
    %v3359 = vld [vmem:[%s3357 + $0x8] sm:$0xff]
    %v3360 = vld [vmem:[%s3357 + $0x10] sm:$0xff]
    %v3361 = vld [vmem:[%s3357 + $0x18] sm:$0xff]
    %v3362 = vld [vmem:[%s3357 + $0x20] sm:$0xff]
    %v3363 = vld [vmem:[%s3357 + $0x28] sm:$0xff]
    %v3364 = vld [vmem:[%s3357 + $0x30] sm:$0xff]
    %v3365 = vld [vmem:[%s3357 + $0x38] sm:$0xff]
    %v3366 = vld [vmem:[%s3357 + $0x40] sm:$0xff]
    %v3367 = vld [vmem:[%s3357 + $0x48] sm:$0xff]
    %v3368 = vld [vmem:[%s3357 + $0x50] sm:$0xff]
    %v3369 = vld [vmem:[%s3357 + $0x58] sm:$0xff]
    %v3370 = vld [vmem:[%s3357 + $0x60] sm:$0xff]
    %v3371 = vld [vmem:[%s3357 + $0x68] sm:$0xff]
    %v3372 = vld [vmem:[%s3357 + $0x70] sm:$0xff]
    %v3373 = vld [vmem:[%s3357 + $0x78] sm:$0xff]
    %v3374 = vadd.f32 %v3358, %v3279
    %v3375 = vadd.f32 %v3359, %v3284
    %v3376 = vadd.f32 %v3360, %v3289
    %v3377 = vadd.f32 %v3361, %v3294
    %v3378 = vadd.f32 %v3362, %v3299
    %v3379 = vadd.f32 %v3363, %v3304
    %v3380 = vadd.f32 %v3364, %v3309
    %v3381 = vadd.f32 %v3365, %v3314
    %v3382 = vadd.f32 %v3366, %v3319
    %v3383 = vadd.f32 %v3367, %v3324
    %v3384 = vadd.f32 %v3368, %v3329
    %v3385 = vadd.f32 %v3369, %v3334
    %v3386 = vadd.f32 %v3370, %v3339
    %v3387 = vadd.f32 %v3371, %v3344
    %v3388 = vadd.f32 %v3372, %v3349
    %v3389 = vadd.f32 %v3373, %v3354
    %v3390 = vxor.u32 %v3374, 2147483648
    %v3391 = vxor.u32 %v3375, 2147483648
    %v3392 = vxor.u32 %v3376, 2147483648
    %v3393 = vxor.u32 %v3377, 2147483648
    %v3394 = vxor.u32 %v3378, 2147483648
    %v3395 = vxor.u32 %v3379, 2147483648
    %v3396 = vxor.u32 %v3380, 2147483648
    %v3397 = vxor.u32 %v3381, 2147483648
    %v3398 = vxor.u32 %v3382, 2147483648
    %v3399 = vxor.u32 %v3383, 2147483648
    %v3400 = vxor.u32 %v3384, 2147483648
    %v3401 = vxor.u32 %v3385, 2147483648
    %v3402 = vxor.u32 %v3386, 2147483648
    %v3403 = vxor.u32 %v3387, 2147483648
    %v3404 = vxor.u32 %v3388, 2147483648
    %v3405 = vxor.u32 %v3389, 2147483648
    %v3406 = vmul.f32 %v3390, 1.442695
    %v3407 = vpow.pop %v3406
    %v3408 = vmul.f32 %v3391, 1.442695
    %v3409 = vpow.pop %v3408
    %v3410 = vmul.f32 %v3392, 1.442695
    %v3411 = vpow.pop %v3410
    %v3412 = vmul.f32 %v3393, 1.442695
    %v3413 = vpow.pop %v3412
    %v3414 = vmul.f32 %v3394, 1.442695
    %v3415 = vpow.pop %v3414
    %v3416 = vmul.f32 %v3395, 1.442695
    %v3417 = vpow.pop %v3416
    %v3418 = vmul.f32 %v3396, 1.442695
    %v3419 = vpow.pop %v3418
    %v3420 = vmul.f32 %v3397, 1.442695
    %v3421 = vpow.pop %v3420
    %v3422 = vmul.f32 %v3398, 1.442695
    %v3423 = vpow.pop %v3422
    %v3424 = vmul.f32 %v3399, 1.442695
    %v3425 = vpow.pop %v3424
    %v3426 = vmul.f32 %v3400, 1.442695
    %v3427 = vpow.pop %v3426
    %v3428 = vmul.f32 %v3401, 1.442695
    %v3429 = vpow.pop %v3428
    %v3430 = vmul.f32 %v3402, 1.442695
    %v3431 = vpow.pop %v3430
    %v3432 = vmul.f32 %v3403, 1.442695
    %v3433 = vpow.pop %v3432
    %v3434 = vmul.f32 %v3404, 1.442695
    %v3435 = vpow.pop %v3434
    %v3436 = vmul.f32 %v3405, 1.442695
    %v3437 = vpow.pop %v3436
    %v3438 = vadd.f32 %v3407, 1.0
    %v3439 = vadd.f32 %v3409, 1.0
    %v3440 = vadd.f32 %v3411, 1.0
    %v3441 = vadd.f32 %v3413, 1.0
    %v3442 = vadd.f32 %v3415, 1.0
    %v3443 = vadd.f32 %v3417, 1.0
    %v3444 = vadd.f32 %v3419, 1.0
    %v3445 = vadd.f32 %v3421, 1.0
    %v3446 = vadd.f32 %v3423, 1.0
    %v3447 = vadd.f32 %v3425, 1.0
    %v3448 = vadd.f32 %v3427, 1.0
    %v3449 = vadd.f32 %v3429, 1.0
    %v3450 = vadd.f32 %v3431, 1.0
    %v3451 = vadd.f32 %v3433, 1.0
    %v3452 = vadd.f32 %v3435, 1.0
    %v3453 = vadd.f32 %v3437, 1.0
    %v3454 = vrcp.pop %v3438
    %v3455 = vmul.f32 1.0, %v3454
    %v3456 = vrcp.pop %v3439
    %v3457 = vmul.f32 1.0, %v3456
    %v3458 = vrcp.pop %v3440
    %v3459 = vmul.f32 1.0, %v3458
    %v3460 = vrcp.pop %v3441
    %v3461 = vmul.f32 1.0, %v3460
    %v3462 = vrcp.pop %v3442
    %v3463 = vmul.f32 1.0, %v3462
    %v3464 = vrcp.pop %v3443
    %v3465 = vmul.f32 1.0, %v3464
    %v3466 = vrcp.pop %v3444
    %v3467 = vmul.f32 1.0, %v3466
    %v3468 = vrcp.pop %v3445
    %v3469 = vmul.f32 1.0, %v3468
    %v3470 = vrcp.pop %v3446
    %v3471 = vmul.f32 1.0, %v3470
    %v3472 = vrcp.pop %v3447
    %v3473 = vmul.f32 1.0, %v3472
    %v3474 = vrcp.pop %v3448
    %v3475 = vmul.f32 1.0, %v3474
    %v3476 = vrcp.pop %v3449
    %v3477 = vmul.f32 1.0, %v3476
    %v3478 = vrcp.pop %v3450
    %v3479 = vmul.f32 1.0, %v3478
    %v3480 = vrcp.pop %v3451
    %v3481 = vmul.f32 1.0, %v3480
    %v3482 = vrcp.pop %v3452
    %v3483 = vmul.f32 1.0, %v3482
    %v3484 = vrcp.pop %v3453
    %v3485 = vmul.f32 1.0, %v3484
    %v3486 = vadd.f32 %v3279, %v2070
    %v3487 = vadd.f32 %v3284, %v2070
    %v3488 = vadd.f32 %v3289, %v2070
    %v3489 = vadd.f32 %v3294, %v2070
    %v3490 = vadd.f32 %v3299, %v2070
    %v3491 = vadd.f32 %v3304, %v2070
    %v3492 = vadd.f32 %v3309, %v2070
    %v3493 = vadd.f32 %v3314, %v2070
    %v3494 = vadd.f32 %v3319, %v2070
    %v3495 = vadd.f32 %v3324, %v2070
    %v3496 = vadd.f32 %v3329, %v2070
    %v3497 = vadd.f32 %v3334, %v2070
    %v3498 = vadd.f32 %v3339, %v2070
    %v3499 = vadd.f32 %v3344, %v2070
    %v3500 = vadd.f32 %v3349, %v2070
    %v3501 = vadd.f32 %v3354, %v2070
    %3518 = vrot.lane.b32.xlu0 %v3486, 64
    %v3519 = vpop.permute.xlu0 %3518
    %3520 = vrot.lane.b32.xlu0 %v3487, 64
    %v3521 = vpop.permute.xlu0 %3520
    %3522 = vrot.lane.b32.xlu0 %v3488, 64
    %v3523 = vpop.permute.xlu0 %3522
    %3524 = vrot.lane.b32.xlu0 %v3489, 64
    %v3525 = vpop.permute.xlu0 %3524
    %3526 = vrot.lane.b32.xlu0 %v3490, 64
    %v3527 = vpop.permute.xlu0 %3526
    %3528 = vrot.lane.b32.xlu0 %v3491, 64
    %v3529 = vpop.permute.xlu0 %3528
    %3530 = vrot.lane.b32.xlu0 %v3492, 64
    %v3531 = vpop.permute.xlu0 %3530
    %3532 = vrot.lane.b32.xlu0 %v3493, 64
    %v3533 = vpop.permute.xlu0 %3532
    %3534 = vrot.lane.b32.xlu0 %v3494, 64
    %v3535 = vpop.permute.xlu0 %3534
    %3536 = vrot.lane.b32.xlu0 %v3495, 64
    %v3537 = vpop.permute.xlu0 %3536
    %3538 = vrot.lane.b32.xlu0 %v3496, 64
    %v3539 = vpop.permute.xlu0 %3538
    %3540 = vrot.lane.b32.xlu0 %v3497, 64
    %v3541 = vpop.permute.xlu0 %3540
    %3542 = vrot.lane.b32.xlu0 %v3498, 64
    %v3543 = vpop.permute.xlu0 %3542
    %3544 = vrot.lane.b32.xlu0 %v3499, 64
    %v3545 = vpop.permute.xlu0 %3544
    %3546 = vrot.lane.b32.xlu0 %v3500, 64
    %v3547 = vpop.permute.xlu0 %3546
    %3548 = vrot.lane.b32.xlu0 %v3501, 64
    %v3549 = vpop.permute.xlu0 %3548
    %v3566 = vmul.f32 %v3455, %v3519
    %v3567 = vmul.f32 %v3457, %v3521
    %v3568 = vmul.f32 %v3459, %v3523
    %v3569 = vmul.f32 %v3461, %v3525
    %v3570 = vmul.f32 %v3463, %v3527
    %v3571 = vmul.f32 %v3465, %v3529
    %v3572 = vmul.f32 %v3467, %v3531
    %v3573 = vmul.f32 %v3469, %v3533
    %v3574 = vmul.f32 %v3471, %v3535
    %v3575 = vmul.f32 %v3473, %v3537
    %v3576 = vmul.f32 %v3475, %v3539
    %v3577 = vmul.f32 %v3477, %v3541
    %v3578 = vmul.f32 %v3479, %v3543
    %v3579 = vmul.f32 %v3481, %v3545
    %v3580 = vmul.f32 %v3483, %v3547
    %v3581 = vmul.f32 %v3485, %v3549
    %3598 = vrot.lane.b32.xlu0 %v3566, 64
    %v3599 = vpop.permute.xlu0 %3598
    %3600 = vrot.lane.b32.xlu0 %v3567, 64
    %v3601 = vpop.permute.xlu0 %3600
    %3602 = vrot.lane.b32.xlu0 %v3568, 64
    %v3603 = vpop.permute.xlu0 %3602
    %3604 = vrot.lane.b32.xlu0 %v3569, 64
    %v3605 = vpop.permute.xlu0 %3604
    %3606 = vrot.lane.b32.xlu0 %v3570, 64
    %v3607 = vpop.permute.xlu0 %3606
    %3608 = vrot.lane.b32.xlu0 %v3571, 64
    %v3609 = vpop.permute.xlu0 %3608
    %3610 = vrot.lane.b32.xlu0 %v3572, 64
    %v3611 = vpop.permute.xlu0 %3610
    %3612 = vrot.lane.b32.xlu0 %v3573, 64
    %v3613 = vpop.permute.xlu0 %3612
    %3614 = vrot.lane.b32.xlu0 %v3574, 64
    %v3615 = vpop.permute.xlu0 %3614
    %3616 = vrot.lane.b32.xlu0 %v3575, 64
    %v3617 = vpop.permute.xlu0 %3616
    %3618 = vrot.lane.b32.xlu0 %v3576, 64
    %v3619 = vpop.permute.xlu0 %3618
    %3620 = vrot.lane.b32.xlu0 %v3577, 64
    %v3621 = vpop.permute.xlu0 %3620
    %3622 = vrot.lane.b32.xlu0 %v3578, 64
    %v3623 = vpop.permute.xlu0 %3622
    %3624 = vrot.lane.b32.xlu0 %v3579, 64
    %v3625 = vpop.permute.xlu0 %3624
    %3626 = vrot.lane.b32.xlu0 %v3580, 64
    %v3627 = vpop.permute.xlu0 %3626
    %3628 = vrot.lane.b32.xlu0 %v3581, 64
    %v3629 = vpop.permute.xlu0 %3628
    %v3646 = vadd.f32 %v3358, %v3599
    %v3647 = vadd.f32 %v3359, %v3601
    %v3648 = vadd.f32 %v3360, %v3603
    %v3649 = vadd.f32 %v3361, %v3605
    %v3650 = vadd.f32 %v3362, %v3607
    %v3651 = vadd.f32 %v3363, %v3609
    %v3652 = vadd.f32 %v3364, %v3611
    %v3653 = vadd.f32 %v3365, %v3613
    %v3654 = vadd.f32 %v3366, %v3615
    %v3655 = vadd.f32 %v3367, %v3617
    %v3656 = vadd.f32 %v3368, %v3619
    %v3657 = vadd.f32 %v3369, %v3621
    %v3658 = vadd.f32 %v3370, %v3623
    %v3659 = vadd.f32 %v3371, %v3625
    %v3660 = vadd.f32 %v3372, %v3627
    %v3661 = vadd.f32 %v3373, %v3629
    %v3662 = vtanh.pop %v3646
    %v3663 = vtanh.pop %v3647
    %v3664 = vtanh.pop %v3648
    %v3665 = vtanh.pop %v3649
    %v3666 = vtanh.pop %v3650
    %v3667 = vtanh.pop %v3651
    %v3668 = vtanh.pop %v3652
    %v3669 = vtanh.pop %v3653
    %v3670 = vtanh.pop %v3654
    %v3671 = vtanh.pop %v3655
    %v3672 = vtanh.pop %v3656
    %v3673 = vtanh.pop %v3657
    %v3674 = vtanh.pop %v3658
    %v3675 = vtanh.pop %v3659
    %v3676 = vtanh.pop %v3660
    %v3677 = vtanh.pop %v3661
    %v3678 = vsub.f32 1.0, %v3455
    %v3679 = vsub.f32 1.0, %v3457
    %v3680 = vsub.f32 1.0, %v3459
    %v3681 = vsub.f32 1.0, %v3461
    %v3682 = vsub.f32 1.0, %v3463
    %v3683 = vsub.f32 1.0, %v3465
    %v3684 = vsub.f32 1.0, %v3467
    %v3685 = vsub.f32 1.0, %v3469
    %v3686 = vsub.f32 1.0, %v3471
    %v3687 = vsub.f32 1.0, %v3473
    %v3688 = vsub.f32 1.0, %v3475
    %v3689 = vsub.f32 1.0, %v3477
    %v3690 = vsub.f32 1.0, %v3479
    %v3691 = vsub.f32 1.0, %v3481
    %v3692 = vsub.f32 1.0, %v3483
    %v3693 = vsub.f32 1.0, %v3485
    %3710 = vrot.lane.b32.xlu0 %v3662, 96
    %v3711 = vpop.permute.xlu0 %3710
    %3712 = vrot.lane.b32.xlu0 %v3663, 96
    %v3713 = vpop.permute.xlu0 %3712
    %3714 = vrot.lane.b32.xlu0 %v3664, 96
    %v3715 = vpop.permute.xlu0 %3714
    %3716 = vrot.lane.b32.xlu0 %v3665, 96
    %v3717 = vpop.permute.xlu0 %3716
    %3718 = vrot.lane.b32.xlu0 %v3666, 96
    %v3719 = vpop.permute.xlu0 %3718
    %3720 = vrot.lane.b32.xlu0 %v3667, 96
    %v3721 = vpop.permute.xlu0 %3720
    %3722 = vrot.lane.b32.xlu0 %v3668, 96
    %v3723 = vpop.permute.xlu0 %3722
    %3724 = vrot.lane.b32.xlu0 %v3669, 96
    %v3725 = vpop.permute.xlu0 %3724
    %3726 = vrot.lane.b32.xlu0 %v3670, 96
    %v3727 = vpop.permute.xlu0 %3726
    %3728 = vrot.lane.b32.xlu0 %v3671, 96
    %v3729 = vpop.permute.xlu0 %3728
    %3730 = vrot.lane.b32.xlu0 %v3672, 96
    %v3731 = vpop.permute.xlu0 %3730
    %3732 = vrot.lane.b32.xlu0 %v3673, 96
    %v3733 = vpop.permute.xlu0 %3732
    %3734 = vrot.lane.b32.xlu0 %v3674, 96
    %v3735 = vpop.permute.xlu0 %3734
    %3736 = vrot.lane.b32.xlu0 %v3675, 96
    %v3737 = vpop.permute.xlu0 %3736
    %3738 = vrot.lane.b32.xlu0 %v3676, 96
    %v3739 = vpop.permute.xlu0 %3738
    %3740 = vrot.lane.b32.xlu0 %v3677, 96
    %v3741 = vpop.permute.xlu0 %3740
    %v3758 = vmul.f32 %v3678, %v3711
    %v3759 = vmul.f32 %v3679, %v3713
    %v3760 = vmul.f32 %v3680, %v3715
    %v3761 = vmul.f32 %v3681, %v3717
    %v3762 = vmul.f32 %v3682, %v3719
    %v3763 = vmul.f32 %v3683, %v3721
    %v3764 = vmul.f32 %v3684, %v3723
    %v3765 = vmul.f32 %v3685, %v3725
    %v3766 = vmul.f32 %v3686, %v3727
    %v3767 = vmul.f32 %v3687, %v3729
    %v3768 = vmul.f32 %v3688, %v3731
    %v3769 = vmul.f32 %v3689, %v3733
    %v3770 = vmul.f32 %v3690, %v3735
    %v3771 = vmul.f32 %v3691, %v3737
    %v3772 = vmul.f32 %v3692, %v3739
    %v3773 = vmul.f32 %v3693, %v3741
    %v3774 = vmul.f32 %v3455, %v3083
    %v3775 = vmul.f32 %v3457, %v3084
    %v3776 = vmul.f32 %v3459, %v3085
    %v3777 = vmul.f32 %v3461, %v3086
    %v3778 = vmul.f32 %v3463, %v3087
    %v3779 = vmul.f32 %v3465, %v3088
    %v3780 = vmul.f32 %v3467, %v3089
    %v3781 = vmul.f32 %v3469, %v3090
    %v3782 = vmul.f32 %v3471, %v3091
    %v3783 = vmul.f32 %v3473, %v3092
    %v3784 = vmul.f32 %v3475, %v3093
    %v3785 = vmul.f32 %v3477, %v3094
    %v3786 = vmul.f32 %v3479, %v3095
    %v3787 = vmul.f32 %v3481, %v3096
    %v3788 = vmul.f32 %v3483, %v3097
    %v3789 = vmul.f32 %v3485, %v3098
    %v3790 = vadd.f32 %v3758, %v3774
    %v3791 = vadd.f32 %v3759, %v3775
    %v3792 = vadd.f32 %v3760, %v3776
    %v3793 = vadd.f32 %v3761, %v3777
    %v3794 = vadd.f32 %v3762, %v3778
    %v3795 = vadd.f32 %v3763, %v3779
    %v3796 = vadd.f32 %v3764, %v3780
    %v3797 = vadd.f32 %v3765, %v3781
    %v3798 = vadd.f32 %v3766, %v3782
    %v3799 = vadd.f32 %v3767, %v3783
    %v3800 = vadd.f32 %v3768, %v3784
    %v3801 = vadd.f32 %v3769, %v3785
    %v3802 = vadd.f32 %v3770, %v3786
    %v3803 = vadd.f32 %v3771, %v3787
    %v3804 = vadd.f32 %v3772, %v3788
    %v3805 = vadd.f32 %v3773, %v3789
    %3822 = vrot.lane.b32.xlu0 %v3790, 96
    %v3823 = vpop.permute.xlu0 %3822
    %3824 = vrot.lane.b32.xlu0 %v3791, 96
    %v3825 = vpop.permute.xlu0 %3824
    %3826 = vrot.lane.b32.xlu0 %v3792, 96
    %v3827 = vpop.permute.xlu0 %3826
    %3828 = vrot.lane.b32.xlu0 %v3793, 96
    %v3829 = vpop.permute.xlu0 %3828
    %3830 = vrot.lane.b32.xlu0 %v3794, 96
    %v3831 = vpop.permute.xlu0 %3830
    %3832 = vrot.lane.b32.xlu0 %v3795, 96
    %v3833 = vpop.permute.xlu0 %3832
    %3834 = vrot.lane.b32.xlu0 %v3796, 96
    %v3835 = vpop.permute.xlu0 %3834
    %3836 = vrot.lane.b32.xlu0 %v3797, 96
    %v3837 = vpop.permute.xlu0 %3836
    %3838 = vrot.lane.b32.xlu0 %v3798, 96
    %v3839 = vpop.permute.xlu0 %3838
    %3840 = vrot.lane.b32.xlu0 %v3799, 96
    %v3841 = vpop.permute.xlu0 %3840
    %3842 = vrot.lane.b32.xlu0 %v3800, 96
    %v3843 = vpop.permute.xlu0 %3842
    %3844 = vrot.lane.b32.xlu0 %v3801, 96
    %v3845 = vpop.permute.xlu0 %3844
    %3846 = vrot.lane.b32.xlu0 %v3802, 96
    %v3847 = vpop.permute.xlu0 %3846
    %3848 = vrot.lane.b32.xlu0 %v3803, 96
    %v3849 = vpop.permute.xlu0 %3848
    %3850 = vrot.lane.b32.xlu0 %v3804, 96
    %v3851 = vpop.permute.xlu0 %3850
    %3852 = vrot.lane.b32.xlu0 %v3805, 96
    %v3853 = vpop.permute.xlu0 %3852
    %s3870 = scalar_lea.vmem [#allocation3], 384
    %3871 = vst.msk [vmem:[%s3870] sm:$0xff] %vm1745, %v3823
    %3872 = vst.msk [vmem:[%s3870 + $0x8] sm:$0xff] %vm1745, %v3825
    %3873 = vst.msk [vmem:[%s3870 + $0x10] sm:$0xff] %vm1745, %v3827
    %3874 = vst.msk [vmem:[%s3870 + $0x18] sm:$0xff] %vm1745, %v3829
    %3875 = vst.msk [vmem:[%s3870 + $0x20] sm:$0xff] %vm1745, %v3831
    %3876 = vst.msk [vmem:[%s3870 + $0x28] sm:$0xff] %vm1745, %v3833
    %3877 = vst.msk [vmem:[%s3870 + $0x30] sm:$0xff] %vm1745, %v3835
    %3878 = vst.msk [vmem:[%s3870 + $0x38] sm:$0xff] %vm1745, %v3837
    %3879 = vst.msk [vmem:[%s3870 + $0x40] sm:$0xff] %vm1745, %v3839
    %3880 = vst.msk [vmem:[%s3870 + $0x48] sm:$0xff] %vm1745, %v3841
    %3881 = vst.msk [vmem:[%s3870 + $0x50] sm:$0xff] %vm1745, %v3843
    %3882 = vst.msk [vmem:[%s3870 + $0x58] sm:$0xff] %vm1745, %v3845
    %3883 = vst.msk [vmem:[%s3870 + $0x60] sm:$0xff] %vm1745, %v3847
    %3884 = vst.msk [vmem:[%s3870 + $0x68] sm:$0xff] %vm1745, %v3849
    %3885 = vst.msk [vmem:[%s3870 + $0x70] sm:$0xff] %vm1745, %v3851
    %3886 = vst.msk [vmem:[%s3870 + $0x78] sm:$0xff] %vm1745, %v3853
    %v3887 = vsel %vm1745, %v3823, 0
    %v3889 = vsel %vm1745, %v3825, 0
    %v3891 = vsel %vm1745, %v3827, 0
    %v3893 = vsel %vm1745, %v3829, 0
    %v3895 = vsel %vm1745, %v3831, 0
    %v3897 = vsel %vm1745, %v3833, 0
    %v3899 = vsel %vm1745, %v3835, 0
    %v3901 = vsel %vm1745, %v3837, 0
    %v3903 = vsel %vm1745, %v3839, 0
    %v3905 = vsel %vm1745, %v3841, 0
    %v3907 = vsel %vm1745, %v3843, 0
    %v3909 = vsel %vm1745, %v3845, 0
    %v3911 = vsel %vm1745, %v3847, 0
    %v3913 = vsel %vm1745, %v3849, 0
    %v3915 = vsel %vm1745, %v3851, 0
    %v3917 = vsel %vm1745, %v3853, 0
    %3919 = vmatprep.subr.mxu0 0.0
    %3920 = vmatpush1.msra.mxu0 %v1353
    %3921 = vmatprep.subr.mxu0 0.0
    %3922 = vmatpush1.msra.mxu0 %v1354
    %3923 = vmatprep.subr.mxu0 0.0
    %3924 = vmatpush1.msra.mxu0 %v1355
    %3925 = vmatprep.subr.mxu0 0.0
    %3926 = vmatpush1.msra.mxu0 %v1356
    %3927 = vmatprep.subr.mxu0 0.0
    %3928 = vmatpush1.msra.mxu0 0.0
    %3929 = vmatprep.subr.mxu0 0.0
    %3930 = vmatpush1.msra.mxu0 0.0
    %3931 = vmatprep.subr.mxu0 0.0
    %3932 = vmatpush1.msra.mxu0 0.0
    %3933 = vmatprep.subr.mxu0 0.0
    %3934 = vmatpush1.msra.mxu0 0.0
    %3935 = vmatprep.subr.mxu0 0.0
    %3936 = vmatpush1.msra.mxu0 0.0
    %3937 = vmatprep.subr.mxu0 0.0
    %3938 = vmatpush1.msra.mxu0 0.0
    %3939 = vmatprep.subr.mxu0 0.0
    %3940 = vmatpush1.msra.mxu0 0.0
    %3941 = vmatprep.subr.mxu0 0.0
    %3942 = vmatpush1.msra.mxu0 0.0
    %3943 = vmatprep.subr.mxu0 0.0
    %3944 = vmatpush1.msra.mxu0 0.0
    %3945 = vmatprep.subr.mxu0 0.0
    %3946 = vmatpush1.msra.mxu0 0.0
    %3947 = vmatprep.subr.mxu0 0.0
    %3948 = vmatpush1.msra.mxu0 0.0
    %3949 = vmatprep.subr.mxu0 0.0
    %3950 = vmatpush1.msra.mxu0 0.0
    %3951 = vmatprep.subr.mxu0 0.0
    %3952 = vmatpush1.msra.mxu0 0.0
    %3953 = vmatprep.subr.mxu0 0.0
    %3954 = vmatpush1.msra.mxu0 0.0
    %3955 = vmatprep.subr.mxu0 0.0
    %3956 = vmatpush1.msra.mxu0 0.0
    %3957 = vmatprep.subr.mxu0 0.0
    %3958 = vmatpush1.msra.mxu0 0.0
    %3959 = vmatprep.subr.mxu0 0.0
    %3960 = vmatpush1.msra.mxu0 0.0
    %3961 = vmatprep.subr.mxu0 0.0
    %3962 = vmatpush1.msra.mxu0 0.0
    %3963 = vmatprep.subr.mxu0 0.0
    %3964 = vmatpush1.msra.mxu0 0.0
    %3965 = vmatprep.subr.mxu0 0.0
    %3966 = vmatpush1.msra.mxu0 0.0
    %3967 = vmatprep.subr.mxu0 0.0
    %3968 = vmatpush1.msra.mxu0 0.0
    %3969 = vmatprep.subr.mxu0 0.0
    %3970 = vmatpush1.msra.mxu0 0.0
    %3971 = vmatprep.subr.mxu0 0.0
    %3972 = vmatpush1.msra.mxu0 0.0
    %3973 = vmatprep.subr.mxu0 0.0
    %3974 = vmatpush1.msra.mxu0 0.0
    %3975 = vmatprep.subr.mxu0 0.0
    %3976 = vmatpush1.msra.mxu0 0.0
    %3977 = vmatprep.subr.mxu0 0.0
    %3978 = vmatpush1.msra.mxu0 0.0
    %3979 = vmatprep.subr.mxu0 0.0
    %3980 = vmatpush1.msra.mxu0 0.0
    %3981 = vmatprep.subr.mxu0 0.0
    %3982 = vmatpush1.msra.mxu0 0.0
    %3983 = vmatprep.mubr.f32.mxu0 0.0
    %3984 = vmatmul.mubr.f32.gmra.mrb[0].mxu0 %v3887
    %v3985 = vpop.f32.mrb[0].mxu0
    %v3986 = vadd.f32 0.0, %v3985
    %v3987 = vpop.f32.mrb[0].mxu0
    %3988 = vmatprep.mubr.f32.mxu0 0.0
    %3989 = vmatmul.mubr.f32.gmra.mrb[0].mxu0 %v3889
    %v3990 = vpop.f32.mrb[0].mxu0
    %v3991 = vadd.f32 0.0, %v3990
    %v3992 = vpop.f32.mrb[0].mxu0
    %3993 = vmatprep.mubr.f32.mxu0 0.0
    %3994 = vmatmul.mubr.f32.gmra.mrb[0].mxu0 %v3891
    %v3995 = vpop.f32.mrb[0].mxu0
    %v3996 = vadd.f32 0.0, %v3995
    %v3997 = vpop.f32.mrb[0].mxu0
    %3998 = vmatprep.mubr.f32.mxu0 0.0
    %3999 = vmatmul.mubr.f32.gmra.mrb[0].mxu0 %v3893
    %v4000 = vpop.f32.mrb[0].mxu0
    %v4001 = vadd.f32 0.0, %v4000
    %v4002 = vpop.f32.mrb[0].mxu0
    %4003 = vmatprep.mubr.f32.mxu0 0.0
    %4004 = vmatmul.mubr.f32.gmra.mrb[0].mxu0 %v3895
    %v4005 = vpop.f32.mrb[0].mxu0
    %v4006 = vadd.f32 0.0, %v4005
    %v4007 = vpop.f32.mrb[0].mxu0
    %4008 = vmatprep.mubr.f32.mxu0 0.0
    %4009 = vmatmul.mubr.f32.gmra.mrb[0].mxu0 %v3897
    %v4010 = vpop.f32.mrb[0].mxu0
    %v4011 = vadd.f32 0.0, %v4010
    %v4012 = vpop.f32.mrb[0].mxu0
    %4013 = vmatprep.mubr.f32.mxu0 0.0
    %4014 = vmatmul.mubr.f32.gmra.mrb[0].mxu0 %v3899
    %v4015 = vpop.f32.mrb[0].mxu0
    %v4016 = vadd.f32 0.0, %v4015
    %v4017 = vpop.f32.mrb[0].mxu0
    %4018 = vmatprep.mubr.f32.mxu0 0.0
    %4019 = vmatmul.mubr.f32.gmra.mrb[0].mxu0 %v3901
    %v4020 = vpop.f32.mrb[0].mxu0
    %v4021 = vadd.f32 0.0, %v4020
    %v4022 = vpop.f32.mrb[0].mxu0
    %4023 = vmatprep.mubr.f32.mxu0 0.0
    %4024 = vmatmul.mubr.f32.gmra.mrb[0].mxu0 %v3903
    %v4025 = vpop.f32.mrb[0].mxu0
    %v4026 = vadd.f32 0.0, %v4025
    %v4027 = vpop.f32.mrb[0].mxu0
    %4028 = vmatprep.mubr.f32.mxu0 0.0
    %4029 = vmatmul.mubr.f32.gmra.mrb[0].mxu0 %v3905
    %v4030 = vpop.f32.mrb[0].mxu0
    %v4031 = vadd.f32 0.0, %v4030
    %v4032 = vpop.f32.mrb[0].mxu0
    %4033 = vmatprep.mubr.f32.mxu0 0.0
    %4034 = vmatmul.mubr.f32.gmra.mrb[0].mxu0 %v3907
    %v4035 = vpop.f32.mrb[0].mxu0
    %v4036 = vadd.f32 0.0, %v4035
    %v4037 = vpop.f32.mrb[0].mxu0
    %4038 = vmatprep.mubr.f32.mxu0 0.0
    %4039 = vmatmul.mubr.f32.gmra.mrb[0].mxu0 %v3909
    %v4040 = vpop.f32.mrb[0].mxu0
    %v4041 = vadd.f32 0.0, %v4040
    %v4042 = vpop.f32.mrb[0].mxu0
    %4043 = vmatprep.mubr.f32.mxu0 0.0
    %4044 = vmatmul.mubr.f32.gmra.mrb[0].mxu0 %v3911
    %v4045 = vpop.f32.mrb[0].mxu0
    %v4046 = vadd.f32 0.0, %v4045
    %v4047 = vpop.f32.mrb[0].mxu0
    %4048 = vmatprep.mubr.f32.mxu0 0.0
    %4049 = vmatmul.mubr.f32.gmra.mrb[0].mxu0 %v3913
    %v4050 = vpop.f32.mrb[0].mxu0
    %v4051 = vadd.f32 0.0, %v4050
    %v4052 = vpop.f32.mrb[0].mxu0
    %4053 = vmatprep.mubr.f32.mxu0 0.0
    %4054 = vmatmul.mubr.f32.gmra.mrb[0].mxu0 %v3915
    %v4055 = vpop.f32.mrb[0].mxu0
    %v4056 = vadd.f32 0.0, %v4055
    %v4057 = vpop.f32.mrb[0].mxu0
    %4058 = vmatprep.mubr.f32.mxu0 0.0
    %4059 = vmatmul.mubr.f32.gmra.mrb[0].mxu0 %v3917
    %v4060 = vpop.f32.mrb[0].mxu0
    %v4061 = vadd.f32 0.0, %v4060
    %v4062 = vpop.f32.mrb[0].mxu0
    %4063 = vdwg.mxu0
    %s4064 = scalar_lea.vmem [#allocation2], 512
    %v4065 = vld [vmem:[%s4064] sm:$0xff]
    %v4066 = vld [vmem:[%s4064 + $0x8] sm:$0xff]
    %v4067 = vld [vmem:[%s4064 + $0x10] sm:$0xff]
    %v4068 = vld [vmem:[%s4064 + $0x18] sm:$0xff]
    %v4069 = vld [vmem:[%s4064 + $0x20] sm:$0xff]
    %v4070 = vld [vmem:[%s4064 + $0x28] sm:$0xff]
    %v4071 = vld [vmem:[%s4064 + $0x30] sm:$0xff]
    %v4072 = vld [vmem:[%s4064 + $0x38] sm:$0xff]
    %v4073 = vld [vmem:[%s4064 + $0x40] sm:$0xff]
    %v4074 = vld [vmem:[%s4064 + $0x48] sm:$0xff]
    %v4075 = vld [vmem:[%s4064 + $0x50] sm:$0xff]
    %v4076 = vld [vmem:[%s4064 + $0x58] sm:$0xff]
    %v4077 = vld [vmem:[%s4064 + $0x60] sm:$0xff]
    %v4078 = vld [vmem:[%s4064 + $0x68] sm:$0xff]
    %v4079 = vld [vmem:[%s4064 + $0x70] sm:$0xff]
    %v4080 = vld [vmem:[%s4064 + $0x78] sm:$0xff]
    %v4081 = vadd.f32 %v4065, %v3986
    %v4082 = vadd.f32 %v4066, %v3991
    %v4083 = vadd.f32 %v4067, %v3996
    %v4084 = vadd.f32 %v4068, %v4001
    %v4085 = vadd.f32 %v4069, %v4006
    %v4086 = vadd.f32 %v4070, %v4011
    %v4087 = vadd.f32 %v4071, %v4016
    %v4088 = vadd.f32 %v4072, %v4021
    %v4089 = vadd.f32 %v4073, %v4026
    %v4090 = vadd.f32 %v4074, %v4031
    %v4091 = vadd.f32 %v4075, %v4036
    %v4092 = vadd.f32 %v4076, %v4041
    %v4093 = vadd.f32 %v4077, %v4046
    %v4094 = vadd.f32 %v4078, %v4051
    %v4095 = vadd.f32 %v4079, %v4056
    %v4096 = vadd.f32 %v4080, %v4061
    %v4097 = vxor.u32 %v4081, 2147483648
    %v4098 = vxor.u32 %v4082, 2147483648
    %v4099 = vxor.u32 %v4083, 2147483648
    %v4100 = vxor.u32 %v4084, 2147483648
    %v4101 = vxor.u32 %v4085, 2147483648
    %v4102 = vxor.u32 %v4086, 2147483648
    %v4103 = vxor.u32 %v4087, 2147483648
    %v4104 = vxor.u32 %v4088, 2147483648
    %v4105 = vxor.u32 %v4089, 2147483648
    %v4106 = vxor.u32 %v4090, 2147483648
    %v4107 = vxor.u32 %v4091, 2147483648
    %v4108 = vxor.u32 %v4092, 2147483648
    %v4109 = vxor.u32 %v4093, 2147483648
    %v4110 = vxor.u32 %v4094, 2147483648
    %v4111 = vxor.u32 %v4095, 2147483648
    %v4112 = vxor.u32 %v4096, 2147483648
    %v4113 = vmul.f32 %v4097, 1.442695
    %v4114 = vpow.pop %v4113
    %v4115 = vmul.f32 %v4098, 1.442695
    %v4116 = vpow.pop %v4115
    %v4117 = vmul.f32 %v4099, 1.442695
    %v4118 = vpow.pop %v4117
    %v4119 = vmul.f32 %v4100, 1.442695
    %v4120 = vpow.pop %v4119
    %v4121 = vmul.f32 %v4101, 1.442695
    %v4122 = vpow.pop %v4121
    %v4123 = vmul.f32 %v4102, 1.442695
    %v4124 = vpow.pop %v4123
    %v4125 = vmul.f32 %v4103, 1.442695
    %v4126 = vpow.pop %v4125
    %v4127 = vmul.f32 %v4104, 1.442695
    %v4128 = vpow.pop %v4127
    %v4129 = vmul.f32 %v4105, 1.442695
    %v4130 = vpow.pop %v4129
    %v4131 = vmul.f32 %v4106, 1.442695
    %v4132 = vpow.pop %v4131
    %v4133 = vmul.f32 %v4107, 1.442695
    %v4134 = vpow.pop %v4133
    %v4135 = vmul.f32 %v4108, 1.442695
    %v4136 = vpow.pop %v4135
    %v4137 = vmul.f32 %v4109, 1.442695
    %v4138 = vpow.pop %v4137
    %v4139 = vmul.f32 %v4110, 1.442695
    %v4140 = vpow.pop %v4139
    %v4141 = vmul.f32 %v4111, 1.442695
    %v4142 = vpow.pop %v4141
    %v4143 = vmul.f32 %v4112, 1.442695
    %v4144 = vpow.pop %v4143
    %v4145 = vadd.f32 %v4114, 1.0
    %v4146 = vadd.f32 %v4116, 1.0
    %v4147 = vadd.f32 %v4118, 1.0
    %v4148 = vadd.f32 %v4120, 1.0
    %v4149 = vadd.f32 %v4122, 1.0
    %v4150 = vadd.f32 %v4124, 1.0
    %v4151 = vadd.f32 %v4126, 1.0
    %v4152 = vadd.f32 %v4128, 1.0
    %v4153 = vadd.f32 %v4130, 1.0
    %v4154 = vadd.f32 %v4132, 1.0
    %v4155 = vadd.f32 %v4134, 1.0
    %v4156 = vadd.f32 %v4136, 1.0
    %v4157 = vadd.f32 %v4138, 1.0
    %v4158 = vadd.f32 %v4140, 1.0
    %v4159 = vadd.f32 %v4142, 1.0
    %v4160 = vadd.f32 %v4144, 1.0
    %v4161 = vrcp.pop %v4145
    %v4162 = vmul.f32 1.0, %v4161
    %v4163 = vrcp.pop %v4146
    %v4164 = vmul.f32 1.0, %v4163
    %v4165 = vrcp.pop %v4147
    %v4166 = vmul.f32 1.0, %v4165
    %v4167 = vrcp.pop %v4148
    %v4168 = vmul.f32 1.0, %v4167
    %v4169 = vrcp.pop %v4149
    %v4170 = vmul.f32 1.0, %v4169
    %v4171 = vrcp.pop %v4150
    %v4172 = vmul.f32 1.0, %v4171
    %v4173 = vrcp.pop %v4151
    %v4174 = vmul.f32 1.0, %v4173
    %v4175 = vrcp.pop %v4152
    %v4176 = vmul.f32 1.0, %v4175
    %v4177 = vrcp.pop %v4153
    %v4178 = vmul.f32 1.0, %v4177
    %v4179 = vrcp.pop %v4154
    %v4180 = vmul.f32 1.0, %v4179
    %v4181 = vrcp.pop %v4155
    %v4182 = vmul.f32 1.0, %v4181
    %v4183 = vrcp.pop %v4156
    %v4184 = vmul.f32 1.0, %v4183
    %v4185 = vrcp.pop %v4157
    %v4186 = vmul.f32 1.0, %v4185
    %v4187 = vrcp.pop %v4158
    %v4188 = vmul.f32 1.0, %v4187
    %v4189 = vrcp.pop %v4159
    %v4190 = vmul.f32 1.0, %v4189
    %v4191 = vrcp.pop %v4160
    %v4192 = vmul.f32 1.0, %v4191
    %v4193 = vadd.f32 %v3986, %v2070
    %v4194 = vadd.f32 %v3991, %v2070
    %v4195 = vadd.f32 %v3996, %v2070
    %v4196 = vadd.f32 %v4001, %v2070
    %v4197 = vadd.f32 %v4006, %v2070
    %v4198 = vadd.f32 %v4011, %v2070
    %v4199 = vadd.f32 %v4016, %v2070
    %v4200 = vadd.f32 %v4021, %v2070
    %v4201 = vadd.f32 %v4026, %v2070
    %v4202 = vadd.f32 %v4031, %v2070
    %v4203 = vadd.f32 %v4036, %v2070
    %v4204 = vadd.f32 %v4041, %v2070
    %v4205 = vadd.f32 %v4046, %v2070
    %v4206 = vadd.f32 %v4051, %v2070
    %v4207 = vadd.f32 %v4056, %v2070
    %v4208 = vadd.f32 %v4061, %v2070
    %4225 = vrot.lane.b32.xlu0 %v4193, 64
    %v4226 = vpop.permute.xlu0 %4225
    %4227 = vrot.lane.b32.xlu0 %v4194, 64
    %v4228 = vpop.permute.xlu0 %4227
    %4229 = vrot.lane.b32.xlu0 %v4195, 64
    %v4230 = vpop.permute.xlu0 %4229
    %4231 = vrot.lane.b32.xlu0 %v4196, 64
    %v4232 = vpop.permute.xlu0 %4231
    %4233 = vrot.lane.b32.xlu0 %v4197, 64
    %v4234 = vpop.permute.xlu0 %4233
    %4235 = vrot.lane.b32.xlu0 %v4198, 64
    %v4236 = vpop.permute.xlu0 %4235
    %4237 = vrot.lane.b32.xlu0 %v4199, 64
    %v4238 = vpop.permute.xlu0 %4237
    %4239 = vrot.lane.b32.xlu0 %v4200, 64
    %v4240 = vpop.permute.xlu0 %4239
    %4241 = vrot.lane.b32.xlu0 %v4201, 64
    %v4242 = vpop.permute.xlu0 %4241
    %4243 = vrot.lane.b32.xlu0 %v4202, 64
    %v4244 = vpop.permute.xlu0 %4243
    %4245 = vrot.lane.b32.xlu0 %v4203, 64
    %v4246 = vpop.permute.xlu0 %4245
    %4247 = vrot.lane.b32.xlu0 %v4204, 64
    %v4248 = vpop.permute.xlu0 %4247
    %4249 = vrot.lane.b32.xlu0 %v4205, 64
    %v4250 = vpop.permute.xlu0 %4249
    %4251 = vrot.lane.b32.xlu0 %v4206, 64
    %v4252 = vpop.permute.xlu0 %4251
    %4253 = vrot.lane.b32.xlu0 %v4207, 64
    %v4254 = vpop.permute.xlu0 %4253
    %4255 = vrot.lane.b32.xlu0 %v4208, 64
    %v4256 = vpop.permute.xlu0 %4255
    %v4273 = vmul.f32 %v4162, %v4226
    %v4274 = vmul.f32 %v4164, %v4228
    %v4275 = vmul.f32 %v4166, %v4230
    %v4276 = vmul.f32 %v4168, %v4232
    %v4277 = vmul.f32 %v4170, %v4234
    %v4278 = vmul.f32 %v4172, %v4236
    %v4279 = vmul.f32 %v4174, %v4238
    %v4280 = vmul.f32 %v4176, %v4240
    %v4281 = vmul.f32 %v4178, %v4242
    %v4282 = vmul.f32 %v4180, %v4244
    %v4283 = vmul.f32 %v4182, %v4246
    %v4284 = vmul.f32 %v4184, %v4248
    %v4285 = vmul.f32 %v4186, %v4250
    %v4286 = vmul.f32 %v4188, %v4252
    %v4287 = vmul.f32 %v4190, %v4254
    %v4288 = vmul.f32 %v4192, %v4256
    %4305 = vrot.lane.b32.xlu0 %v4273, 64
    %v4306 = vpop.permute.xlu0 %4305
    %4307 = vrot.lane.b32.xlu0 %v4274, 64
    %v4308 = vpop.permute.xlu0 %4307
    %4309 = vrot.lane.b32.xlu0 %v4275, 64
    %v4310 = vpop.permute.xlu0 %4309
    %4311 = vrot.lane.b32.xlu0 %v4276, 64
    %v4312 = vpop.permute.xlu0 %4311
    %4313 = vrot.lane.b32.xlu0 %v4277, 64
    %v4314 = vpop.permute.xlu0 %4313
    %4315 = vrot.lane.b32.xlu0 %v4278, 64
    %v4316 = vpop.permute.xlu0 %4315
    %4317 = vrot.lane.b32.xlu0 %v4279, 64
    %v4318 = vpop.permute.xlu0 %4317
    %4319 = vrot.lane.b32.xlu0 %v4280, 64
    %v4320 = vpop.permute.xlu0 %4319
    %4321 = vrot.lane.b32.xlu0 %v4281, 64
    %v4322 = vpop.permute.xlu0 %4321
    %4323 = vrot.lane.b32.xlu0 %v4282, 64
    %v4324 = vpop.permute.xlu0 %4323
    %4325 = vrot.lane.b32.xlu0 %v4283, 64
    %v4326 = vpop.permute.xlu0 %4325
    %4327 = vrot.lane.b32.xlu0 %v4284, 64
    %v4328 = vpop.permute.xlu0 %4327
    %4329 = vrot.lane.b32.xlu0 %v4285, 64
    %v4330 = vpop.permute.xlu0 %4329
    %4331 = vrot.lane.b32.xlu0 %v4286, 64
    %v4332 = vpop.permute.xlu0 %4331
    %4333 = vrot.lane.b32.xlu0 %v4287, 64
    %v4334 = vpop.permute.xlu0 %4333
    %4335 = vrot.lane.b32.xlu0 %v4288, 64
    %v4336 = vpop.permute.xlu0 %4335
    %v4353 = vadd.f32 %v4065, %v4306
    %v4354 = vadd.f32 %v4066, %v4308
    %v4355 = vadd.f32 %v4067, %v4310
    %v4356 = vadd.f32 %v4068, %v4312
    %v4357 = vadd.f32 %v4069, %v4314
    %v4358 = vadd.f32 %v4070, %v4316
    %v4359 = vadd.f32 %v4071, %v4318
    %v4360 = vadd.f32 %v4072, %v4320
    %v4361 = vadd.f32 %v4073, %v4322
    %v4362 = vadd.f32 %v4074, %v4324
    %v4363 = vadd.f32 %v4075, %v4326
    %v4364 = vadd.f32 %v4076, %v4328
    %v4365 = vadd.f32 %v4077, %v4330
    %v4366 = vadd.f32 %v4078, %v4332
    %v4367 = vadd.f32 %v4079, %v4334
    %v4368 = vadd.f32 %v4080, %v4336
    %v4369 = vtanh.pop %v4353
    %v4370 = vtanh.pop %v4354
    %v4371 = vtanh.pop %v4355
    %v4372 = vtanh.pop %v4356
    %v4373 = vtanh.pop %v4357
    %v4374 = vtanh.pop %v4358
    %v4375 = vtanh.pop %v4359
    %v4376 = vtanh.pop %v4360
    %v4377 = vtanh.pop %v4361
    %v4378 = vtanh.pop %v4362
    %v4379 = vtanh.pop %v4363
    %v4380 = vtanh.pop %v4364
    %v4381 = vtanh.pop %v4365
    %v4382 = vtanh.pop %v4366
    %v4383 = vtanh.pop %v4367
    %v4384 = vtanh.pop %v4368
    %v4385 = vsub.f32 1.0, %v4162
    %v4386 = vsub.f32 1.0, %v4164
    %v4387 = vsub.f32 1.0, %v4166
    %v4388 = vsub.f32 1.0, %v4168
    %v4389 = vsub.f32 1.0, %v4170
    %v4390 = vsub.f32 1.0, %v4172
    %v4391 = vsub.f32 1.0, %v4174
    %v4392 = vsub.f32 1.0, %v4176
    %v4393 = vsub.f32 1.0, %v4178
    %v4394 = vsub.f32 1.0, %v4180
    %v4395 = vsub.f32 1.0, %v4182
    %v4396 = vsub.f32 1.0, %v4184
    %v4397 = vsub.f32 1.0, %v4186
    %v4398 = vsub.f32 1.0, %v4188
    %v4399 = vsub.f32 1.0, %v4190
    %v4400 = vsub.f32 1.0, %v4192
    %4417 = vrot.lane.b32.xlu0 %v4369, 96
    %v4418 = vpop.permute.xlu0 %4417
    %4419 = vrot.lane.b32.xlu0 %v4370, 96
    %v4420 = vpop.permute.xlu0 %4419
    %4421 = vrot.lane.b32.xlu0 %v4371, 96
    %v4422 = vpop.permute.xlu0 %4421
    %4423 = vrot.lane.b32.xlu0 %v4372, 96
    %v4424 = vpop.permute.xlu0 %4423
    %4425 = vrot.lane.b32.xlu0 %v4373, 96
    %v4426 = vpop.permute.xlu0 %4425
    %4427 = vrot.lane.b32.xlu0 %v4374, 96
    %v4428 = vpop.permute.xlu0 %4427
    %4429 = vrot.lane.b32.xlu0 %v4375, 96
    %v4430 = vpop.permute.xlu0 %4429
    %4431 = vrot.lane.b32.xlu0 %v4376, 96
    %v4432 = vpop.permute.xlu0 %4431
    %4433 = vrot.lane.b32.xlu0 %v4377, 96
    %v4434 = vpop.permute.xlu0 %4433
    %4435 = vrot.lane.b32.xlu0 %v4378, 96
    %v4436 = vpop.permute.xlu0 %4435
    %4437 = vrot.lane.b32.xlu0 %v4379, 96
    %v4438 = vpop.permute.xlu0 %4437
    %4439 = vrot.lane.b32.xlu0 %v4380, 96
    %v4440 = vpop.permute.xlu0 %4439
    %4441 = vrot.lane.b32.xlu0 %v4381, 96
    %v4442 = vpop.permute.xlu0 %4441
    %4443 = vrot.lane.b32.xlu0 %v4382, 96
    %v4444 = vpop.permute.xlu0 %4443
    %4445 = vrot.lane.b32.xlu0 %v4383, 96
    %v4446 = vpop.permute.xlu0 %4445
    %4447 = vrot.lane.b32.xlu0 %v4384, 96
    %v4448 = vpop.permute.xlu0 %4447
    %v4465 = vmul.f32 %v4385, %v4418
    %v4466 = vmul.f32 %v4386, %v4420
    %v4467 = vmul.f32 %v4387, %v4422
    %v4468 = vmul.f32 %v4388, %v4424
    %v4469 = vmul.f32 %v4389, %v4426
    %v4470 = vmul.f32 %v4390, %v4428
    %v4471 = vmul.f32 %v4391, %v4430
    %v4472 = vmul.f32 %v4392, %v4432
    %v4473 = vmul.f32 %v4393, %v4434
    %v4474 = vmul.f32 %v4394, %v4436
    %v4475 = vmul.f32 %v4395, %v4438
    %v4476 = vmul.f32 %v4396, %v4440
    %v4477 = vmul.f32 %v4397, %v4442
    %v4478 = vmul.f32 %v4398, %v4444
    %v4479 = vmul.f32 %v4399, %v4446
    %v4480 = vmul.f32 %v4400, %v4448
    %v4481 = vmul.f32 %v4162, %v3790
    %v4482 = vmul.f32 %v4164, %v3791
    %v4483 = vmul.f32 %v4166, %v3792
    %v4484 = vmul.f32 %v4168, %v3793
    %v4485 = vmul.f32 %v4170, %v3794
    %v4486 = vmul.f32 %v4172, %v3795
    %v4487 = vmul.f32 %v4174, %v3796
    %v4488 = vmul.f32 %v4176, %v3797
    %v4489 = vmul.f32 %v4178, %v3798
    %v4490 = vmul.f32 %v4180, %v3799
    %v4491 = vmul.f32 %v4182, %v3800
    %v4492 = vmul.f32 %v4184, %v3801
    %v4493 = vmul.f32 %v4186, %v3802
    %v4494 = vmul.f32 %v4188, %v3803
    %v4495 = vmul.f32 %v4190, %v3804
    %v4496 = vmul.f32 %v4192, %v3805
    %v4497 = vadd.f32 %v4465, %v4481
    %v4498 = vadd.f32 %v4466, %v4482
    %v4499 = vadd.f32 %v4467, %v4483
    %v4500 = vadd.f32 %v4468, %v4484
    %v4501 = vadd.f32 %v4469, %v4485
    %v4502 = vadd.f32 %v4470, %v4486
    %v4503 = vadd.f32 %v4471, %v4487
    %v4504 = vadd.f32 %v4472, %v4488
    %v4505 = vadd.f32 %v4473, %v4489
    %v4506 = vadd.f32 %v4474, %v4490
    %v4507 = vadd.f32 %v4475, %v4491
    %v4508 = vadd.f32 %v4476, %v4492
    %v4509 = vadd.f32 %v4477, %v4493
    %v4510 = vadd.f32 %v4478, %v4494
    %v4511 = vadd.f32 %v4479, %v4495
    %v4512 = vadd.f32 %v4480, %v4496
    %4529 = vrot.lane.b32.xlu0 %v4497, 96
    %v4530 = vpop.permute.xlu0 %4529
    %4531 = vrot.lane.b32.xlu0 %v4498, 96
    %v4532 = vpop.permute.xlu0 %4531
    %4533 = vrot.lane.b32.xlu0 %v4499, 96
    %v4534 = vpop.permute.xlu0 %4533
    %4535 = vrot.lane.b32.xlu0 %v4500, 96
    %v4536 = vpop.permute.xlu0 %4535
    %4537 = vrot.lane.b32.xlu0 %v4501, 96
    %v4538 = vpop.permute.xlu0 %4537
    %4539 = vrot.lane.b32.xlu0 %v4502, 96
    %v4540 = vpop.permute.xlu0 %4539
    %4541 = vrot.lane.b32.xlu0 %v4503, 96
    %v4542 = vpop.permute.xlu0 %4541
    %4543 = vrot.lane.b32.xlu0 %v4504, 96
    %v4544 = vpop.permute.xlu0 %4543
    %4545 = vrot.lane.b32.xlu0 %v4505, 96
    %v4546 = vpop.permute.xlu0 %4545
    %4547 = vrot.lane.b32.xlu0 %v4506, 96
    %v4548 = vpop.permute.xlu0 %4547
    %4549 = vrot.lane.b32.xlu0 %v4507, 96
    %v4550 = vpop.permute.xlu0 %4549
    %4551 = vrot.lane.b32.xlu0 %v4508, 96
    %v4552 = vpop.permute.xlu0 %4551
    %4553 = vrot.lane.b32.xlu0 %v4509, 96
    %v4554 = vpop.permute.xlu0 %4553
    %4555 = vrot.lane.b32.xlu0 %v4510, 96
    %v4556 = vpop.permute.xlu0 %4555
    %4557 = vrot.lane.b32.xlu0 %v4511, 96
    %v4558 = vpop.permute.xlu0 %4557
    %4559 = vrot.lane.b32.xlu0 %v4512, 96
    %v4560 = vpop.permute.xlu0 %4559
    %s4577 = scalar_lea.vmem [#allocation3], 512
    %4578 = vst.msk [vmem:[%s4577] sm:$0xff] %vm1745, %v4530
    %4579 = vst.msk [vmem:[%s4577 + $0x8] sm:$0xff] %vm1745, %v4532
    %4580 = vst.msk [vmem:[%s4577 + $0x10] sm:$0xff] %vm1745, %v4534
    %4581 = vst.msk [vmem:[%s4577 + $0x18] sm:$0xff] %vm1745, %v4536
    %4582 = vst.msk [vmem:[%s4577 + $0x20] sm:$0xff] %vm1745, %v4538
    %4583 = vst.msk [vmem:[%s4577 + $0x28] sm:$0xff] %vm1745, %v4540
    %4584 = vst.msk [vmem:[%s4577 + $0x30] sm:$0xff] %vm1745, %v4542
    %4585 = vst.msk [vmem:[%s4577 + $0x38] sm:$0xff] %vm1745, %v4544
    %4586 = vst.msk [vmem:[%s4577 + $0x40] sm:$0xff] %vm1745, %v4546
    %4587 = vst.msk [vmem:[%s4577 + $0x48] sm:$0xff] %vm1745, %v4548
    %4588 = vst.msk [vmem:[%s4577 + $0x50] sm:$0xff] %vm1745, %v4550
    %4589 = vst.msk [vmem:[%s4577 + $0x58] sm:$0xff] %vm1745, %v4552
    %4590 = vst.msk [vmem:[%s4577 + $0x60] sm:$0xff] %vm1745, %v4554
    %4591 = vst.msk [vmem:[%s4577 + $0x68] sm:$0xff] %vm1745, %v4556
    %4592 = vst.msk [vmem:[%s4577 + $0x70] sm:$0xff] %vm1745, %v4558
    %4593 = vst.msk [vmem:[%s4577 + $0x78] sm:$0xff] %vm1745, %v4560
    %v4594 = vsel %vm1745, %v4530, 0
    %v4596 = vsel %vm1745, %v4532, 0
    %v4598 = vsel %vm1745, %v4534, 0
    %v4600 = vsel %vm1745, %v4536, 0
    %v4602 = vsel %vm1745, %v4538, 0
    %v4604 = vsel %vm1745, %v4540, 0
    %v4606 = vsel %vm1745, %v4542, 0
    %v4608 = vsel %vm1745, %v4544, 0
    %v4610 = vsel %vm1745, %v4546, 0
    %v4612 = vsel %vm1745, %v4548, 0
    %v4614 = vsel %vm1745, %v4550, 0
    %v4616 = vsel %vm1745, %v4552, 0
    %v4618 = vsel %vm1745, %v4554, 0
    %v4620 = vsel %vm1745, %v4556, 0
    %v4622 = vsel %vm1745, %v4558, 0
    %v4624 = vsel %vm1745, %v4560, 0
    %4626 = vmatprep.subr.mxu0 0.0
    %4627 = vmatpush1.msra.mxu0 %v1353
    %4628 = vmatprep.subr.mxu0 0.0
    %4629 = vmatpush1.msra.mxu0 %v1354
    %4630 = vmatprep.subr.mxu0 0.0
    %4631 = vmatpush1.msra.mxu0 %v1355
    %4632 = vmatprep.subr.mxu0 0.0
    %4633 = vmatpush1.msra.mxu0 %v1356
    %4634 = vmatprep.subr.mxu0 0.0
    %4635 = vmatpush1.msra.mxu0 0.0
    %4636 = vmatprep.subr.mxu0 0.0
    %4637 = vmatpush1.msra.mxu0 0.0
    %4638 = vmatprep.subr.mxu0 0.0
    %4639 = vmatpush1.msra.mxu0 0.0
    %4640 = vmatprep.subr.mxu0 0.0
    %4641 = vmatpush1.msra.mxu0 0.0
    %4642 = vmatprep.subr.mxu0 0.0
    %4643 = vmatpush1.msra.mxu0 0.0
    %4644 = vmatprep.subr.mxu0 0.0
    %4645 = vmatpush1.msra.mxu0 0.0
    %4646 = vmatprep.subr.mxu0 0.0
    %4647 = vmatpush1.msra.mxu0 0.0
    %4648 = vmatprep.subr.mxu0 0.0
    %4649 = vmatpush1.msra.mxu0 0.0
    %4650 = vmatprep.subr.mxu0 0.0
    %4651 = vmatpush1.msra.mxu0 0.0
    %4652 = vmatprep.subr.mxu0 0.0
    %4653 = vmatpush1.msra.mxu0 0.0
    %4654 = vmatprep.subr.mxu0 0.0
    %4655 = vmatpush1.msra.mxu0 0.0
    %4656 = vmatprep.subr.mxu0 0.0
    %4657 = vmatpush1.msra.mxu0 0.0
    %4658 = vmatprep.subr.mxu0 0.0
    %4659 = vmatpush1.msra.mxu0 0.0
    %4660 = vmatprep.subr.mxu0 0.0
    %4661 = vmatpush1.msra.mxu0 0.0
    %4662 = vmatprep.subr.mxu0 0.0
    %4663 = vmatpush1.msra.mxu0 0.0
    %4664 = vmatprep.subr.mxu0 0.0
    %4665 = vmatpush1.msra.mxu0 0.0
    %4666 = vmatprep.subr.mxu0 0.0
    %4667 = vmatpush1.msra.mxu0 0.0
    %4668 = vmatprep.subr.mxu0 0.0
    %4669 = vmatpush1.msra.mxu0 0.0
    %4670 = vmatprep.subr.mxu0 0.0
    %4671 = vmatpush1.msra.mxu0 0.0
    %4672 = vmatprep.subr.mxu0 0.0
    %4673 = vmatpush1.msra.mxu0 0.0
    %4674 = vmatprep.subr.mxu0 0.0
    %4675 = vmatpush1.msra.mxu0 0.0
    %4676 = vmatprep.subr.mxu0 0.0
    %4677 = vmatpush1.msra.mxu0 0.0
    %4678 = vmatprep.subr.mxu0 0.0
    %4679 = vmatpush1.msra.mxu0 0.0
    %4680 = vmatprep.subr.mxu0 0.0
    %4681 = vmatpush1.msra.mxu0 0.0
    %4682 = vmatprep.subr.mxu0 0.0
    %4683 = vmatpush1.msra.mxu0 0.0
    %4684 = vmatprep.subr.mxu0 0.0
    %4685 = vmatpush1.msra.mxu0 0.0
    %4686 = vmatprep.subr.mxu0 0.0
    %4687 = vmatpush1.msra.mxu0 0.0
    %4688 = vmatprep.subr.mxu0 0.0
    %4689 = vmatpush1.msra.mxu0 0.0
    %4690 = vmatprep.mubr.f32.mxu0 0.0
    %4691 = vmatmul.mubr.f32.gmra.mrb[0].mxu0 %v4594
    %v4692 = vpop.f32.mrb[0].mxu0
    %v4693 = vadd.f32 0.0, %v4692
    %v4694 = vpop.f32.mrb[0].mxu0
    %4695 = vmatprep.mubr.f32.mxu0 0.0
    %4696 = vmatmul.mubr.f32.gmra.mrb[0].mxu0 %v4596
    %v4697 = vpop.f32.mrb[0].mxu0
    %v4698 = vadd.f32 0.0, %v4697
    %v4699 = vpop.f32.mrb[0].mxu0
    %4700 = vmatprep.mubr.f32.mxu0 0.0
    %4701 = vmatmul.mubr.f32.gmra.mrb[0].mxu0 %v4598
    %v4702 = vpop.f32.mrb[0].mxu0
    %v4703 = vadd.f32 0.0, %v4702
    %v4704 = vpop.f32.mrb[0].mxu0
    %4705 = vmatprep.mubr.f32.mxu0 0.0
    %4706 = vmatmul.mubr.f32.gmra.mrb[0].mxu0 %v4600
    %v4707 = vpop.f32.mrb[0].mxu0
    %v4708 = vadd.f32 0.0, %v4707
    %v4709 = vpop.f32.mrb[0].mxu0
    %4710 = vmatprep.mubr.f32.mxu0 0.0
    %4711 = vmatmul.mubr.f32.gmra.mrb[0].mxu0 %v4602
    %v4712 = vpop.f32.mrb[0].mxu0
    %v4713 = vadd.f32 0.0, %v4712
    %v4714 = vpop.f32.mrb[0].mxu0
    %4715 = vmatprep.mubr.f32.mxu0 0.0
    %4716 = vmatmul.mubr.f32.gmra.mrb[0].mxu0 %v4604
    %v4717 = vpop.f32.mrb[0].mxu0
    %v4718 = vadd.f32 0.0, %v4717
    %v4719 = vpop.f32.mrb[0].mxu0
    %4720 = vmatprep.mubr.f32.mxu0 0.0
    %4721 = vmatmul.mubr.f32.gmra.mrb[0].mxu0 %v4606
    %v4722 = vpop.f32.mrb[0].mxu0
    %v4723 = vadd.f32 0.0, %v4722
    %v4724 = vpop.f32.mrb[0].mxu0
    %4725 = vmatprep.mubr.f32.mxu0 0.0
    %4726 = vmatmul.mubr.f32.gmra.mrb[0].mxu0 %v4608
    %v4727 = vpop.f32.mrb[0].mxu0
    %v4728 = vadd.f32 0.0, %v4727
    %v4729 = vpop.f32.mrb[0].mxu0
    %4730 = vmatprep.mubr.f32.mxu0 0.0
    %4731 = vmatmul.mubr.f32.gmra.mrb[0].mxu0 %v4610
    %v4732 = vpop.f32.mrb[0].mxu0
    %v4733 = vadd.f32 0.0, %v4732
    %v4734 = vpop.f32.mrb[0].mxu0
    %4735 = vmatprep.mubr.f32.mxu0 0.0
    %4736 = vmatmul.mubr.f32.gmra.mrb[0].mxu0 %v4612
    %v4737 = vpop.f32.mrb[0].mxu0
    %v4738 = vadd.f32 0.0, %v4737
    %v4739 = vpop.f32.mrb[0].mxu0
    %4740 = vmatprep.mubr.f32.mxu0 0.0
    %4741 = vmatmul.mubr.f32.gmra.mrb[0].mxu0 %v4614
    %v4742 = vpop.f32.mrb[0].mxu0
    %v4743 = vadd.f32 0.0, %v4742
    %v4744 = vpop.f32.mrb[0].mxu0
    %4745 = vmatprep.mubr.f32.mxu0 0.0
    %4746 = vmatmul.mubr.f32.gmra.mrb[0].mxu0 %v4616
    %v4747 = vpop.f32.mrb[0].mxu0
    %v4748 = vadd.f32 0.0, %v4747
    %v4749 = vpop.f32.mrb[0].mxu0
    %4750 = vmatprep.mubr.f32.mxu0 0.0
    %4751 = vmatmul.mubr.f32.gmra.mrb[0].mxu0 %v4618
    %v4752 = vpop.f32.mrb[0].mxu0
    %v4753 = vadd.f32 0.0, %v4752
    %v4754 = vpop.f32.mrb[0].mxu0
    %4755 = vmatprep.mubr.f32.mxu0 0.0
    %4756 = vmatmul.mubr.f32.gmra.mrb[0].mxu0 %v4620
    %v4757 = vpop.f32.mrb[0].mxu0
    %v4758 = vadd.f32 0.0, %v4757
    %v4759 = vpop.f32.mrb[0].mxu0
    %4760 = vmatprep.mubr.f32.mxu0 0.0
    %4761 = vmatmul.mubr.f32.gmra.mrb[0].mxu0 %v4622
    %v4762 = vpop.f32.mrb[0].mxu0
    %v4763 = vadd.f32 0.0, %v4762
    %v4764 = vpop.f32.mrb[0].mxu0
    %4765 = vmatprep.mubr.f32.mxu0 0.0
    %4766 = vmatmul.mubr.f32.gmra.mrb[0].mxu0 %v4624
    %v4767 = vpop.f32.mrb[0].mxu0
    %v4768 = vadd.f32 0.0, %v4767
    %v4769 = vpop.f32.mrb[0].mxu0
    %4770 = vdwg.mxu0
    %s4771 = scalar_lea.vmem [#allocation2], 640
    %v4772 = vld [vmem:[%s4771] sm:$0xff]
    %v4773 = vld [vmem:[%s4771 + $0x8] sm:$0xff]
    %v4774 = vld [vmem:[%s4771 + $0x10] sm:$0xff]
    %v4775 = vld [vmem:[%s4771 + $0x18] sm:$0xff]
    %v4776 = vld [vmem:[%s4771 + $0x20] sm:$0xff]
    %v4777 = vld [vmem:[%s4771 + $0x28] sm:$0xff]
    %v4778 = vld [vmem:[%s4771 + $0x30] sm:$0xff]
    %v4779 = vld [vmem:[%s4771 + $0x38] sm:$0xff]
    %v4780 = vld [vmem:[%s4771 + $0x40] sm:$0xff]
    %v4781 = vld [vmem:[%s4771 + $0x48] sm:$0xff]
    %v4782 = vld [vmem:[%s4771 + $0x50] sm:$0xff]
    %v4783 = vld [vmem:[%s4771 + $0x58] sm:$0xff]
    %v4784 = vld [vmem:[%s4771 + $0x60] sm:$0xff]
    %v4785 = vld [vmem:[%s4771 + $0x68] sm:$0xff]
    %v4786 = vld [vmem:[%s4771 + $0x70] sm:$0xff]
    %v4787 = vld [vmem:[%s4771 + $0x78] sm:$0xff]
    %v4788 = vadd.f32 %v4772, %v4693
    %v4789 = vadd.f32 %v4773, %v4698
    %v4790 = vadd.f32 %v4774, %v4703
    %v4791 = vadd.f32 %v4775, %v4708
    %v4792 = vadd.f32 %v4776, %v4713
    %v4793 = vadd.f32 %v4777, %v4718
    %v4794 = vadd.f32 %v4778, %v4723
    %v4795 = vadd.f32 %v4779, %v4728
    %v4796 = vadd.f32 %v4780, %v4733
    %v4797 = vadd.f32 %v4781, %v4738
    %v4798 = vadd.f32 %v4782, %v4743
    %v4799 = vadd.f32 %v4783, %v4748
    %v4800 = vadd.f32 %v4784, %v4753
    %v4801 = vadd.f32 %v4785, %v4758
    %v4802 = vadd.f32 %v4786, %v4763
    %v4803 = vadd.f32 %v4787, %v4768
    %v4804 = vxor.u32 %v4788, 2147483648
    %v4805 = vxor.u32 %v4789, 2147483648
    %v4806 = vxor.u32 %v4790, 2147483648
    %v4807 = vxor.u32 %v4791, 2147483648
    %v4808 = vxor.u32 %v4792, 2147483648
    %v4809 = vxor.u32 %v4793, 2147483648
    %v4810 = vxor.u32 %v4794, 2147483648
    %v4811 = vxor.u32 %v4795, 2147483648
    %v4812 = vxor.u32 %v4796, 2147483648
    %v4813 = vxor.u32 %v4797, 2147483648
    %v4814 = vxor.u32 %v4798, 2147483648
    %v4815 = vxor.u32 %v4799, 2147483648
    %v4816 = vxor.u32 %v4800, 2147483648
    %v4817 = vxor.u32 %v4801, 2147483648
    %v4818 = vxor.u32 %v4802, 2147483648
    %v4819 = vxor.u32 %v4803, 2147483648
    %v4820 = vmul.f32 %v4804, 1.442695
    %v4821 = vpow.pop %v4820
    %v4822 = vmul.f32 %v4805, 1.442695
    %v4823 = vpow.pop %v4822
    %v4824 = vmul.f32 %v4806, 1.442695
    %v4825 = vpow.pop %v4824
    %v4826 = vmul.f32 %v4807, 1.442695
    %v4827 = vpow.pop %v4826
    %v4828 = vmul.f32 %v4808, 1.442695
    %v4829 = vpow.pop %v4828
    %v4830 = vmul.f32 %v4809, 1.442695
    %v4831 = vpow.pop %v4830
    %v4832 = vmul.f32 %v4810, 1.442695
    %v4833 = vpow.pop %v4832
    %v4834 = vmul.f32 %v4811, 1.442695
    %v4835 = vpow.pop %v4834
    %v4836 = vmul.f32 %v4812, 1.442695
    %v4837 = vpow.pop %v4836
    %v4838 = vmul.f32 %v4813, 1.442695
    %v4839 = vpow.pop %v4838
    %v4840 = vmul.f32 %v4814, 1.442695
    %v4841 = vpow.pop %v4840
    %v4842 = vmul.f32 %v4815, 1.442695
    %v4843 = vpow.pop %v4842
    %v4844 = vmul.f32 %v4816, 1.442695
    %v4845 = vpow.pop %v4844
    %v4846 = vmul.f32 %v4817, 1.442695
    %v4847 = vpow.pop %v4846
    %v4848 = vmul.f32 %v4818, 1.442695
    %v4849 = vpow.pop %v4848
    %v4850 = vmul.f32 %v4819, 1.442695
    %v4851 = vpow.pop %v4850
    %v4852 = vadd.f32 %v4821, 1.0
    %v4853 = vadd.f32 %v4823, 1.0
    %v4854 = vadd.f32 %v4825, 1.0
    %v4855 = vadd.f32 %v4827, 1.0
    %v4856 = vadd.f32 %v4829, 1.0
    %v4857 = vadd.f32 %v4831, 1.0
    %v4858 = vadd.f32 %v4833, 1.0
    %v4859 = vadd.f32 %v4835, 1.0
    %v4860 = vadd.f32 %v4837, 1.0
    %v4861 = vadd.f32 %v4839, 1.0
    %v4862 = vadd.f32 %v4841, 1.0
    %v4863 = vadd.f32 %v4843, 1.0
    %v4864 = vadd.f32 %v4845, 1.0
    %v4865 = vadd.f32 %v4847, 1.0
    %v4866 = vadd.f32 %v4849, 1.0
    %v4867 = vadd.f32 %v4851, 1.0
    %v4868 = vrcp.pop %v4852
    %v4869 = vmul.f32 1.0, %v4868
    %v4870 = vrcp.pop %v4853
    %v4871 = vmul.f32 1.0, %v4870
    %v4872 = vrcp.pop %v4854
    %v4873 = vmul.f32 1.0, %v4872
    %v4874 = vrcp.pop %v4855
    %v4875 = vmul.f32 1.0, %v4874
    %v4876 = vrcp.pop %v4856
    %v4877 = vmul.f32 1.0, %v4876
    %v4878 = vrcp.pop %v4857
    %v4879 = vmul.f32 1.0, %v4878
    %v4880 = vrcp.pop %v4858
    %v4881 = vmul.f32 1.0, %v4880
    %v4882 = vrcp.pop %v4859
    %v4883 = vmul.f32 1.0, %v4882
    %v4884 = vrcp.pop %v4860
    %v4885 = vmul.f32 1.0, %v4884
    %v4886 = vrcp.pop %v4861
    %v4887 = vmul.f32 1.0, %v4886
    %v4888 = vrcp.pop %v4862
    %v4889 = vmul.f32 1.0, %v4888
    %v4890 = vrcp.pop %v4863
    %v4891 = vmul.f32 1.0, %v4890
    %v4892 = vrcp.pop %v4864
    %v4893 = vmul.f32 1.0, %v4892
    %v4894 = vrcp.pop %v4865
    %v4895 = vmul.f32 1.0, %v4894
    %v4896 = vrcp.pop %v4866
    %v4897 = vmul.f32 1.0, %v4896
    %v4898 = vrcp.pop %v4867
    %v4899 = vmul.f32 1.0, %v4898
    %v4900 = vadd.f32 %v4693, %v2070
    %v4901 = vadd.f32 %v4698, %v2070
    %v4902 = vadd.f32 %v4703, %v2070
    %v4903 = vadd.f32 %v4708, %v2070
    %v4904 = vadd.f32 %v4713, %v2070
    %v4905 = vadd.f32 %v4718, %v2070
    %v4906 = vadd.f32 %v4723, %v2070
    %v4907 = vadd.f32 %v4728, %v2070
    %v4908 = vadd.f32 %v4733, %v2070
    %v4909 = vadd.f32 %v4738, %v2070
    %v4910 = vadd.f32 %v4743, %v2070
    %v4911 = vadd.f32 %v4748, %v2070
    %v4912 = vadd.f32 %v4753, %v2070
    %v4913 = vadd.f32 %v4758, %v2070
    %v4914 = vadd.f32 %v4763, %v2070
    %v4915 = vadd.f32 %v4768, %v2070
    %4932 = vrot.lane.b32.xlu0 %v4900, 64
    %v4933 = vpop.permute.xlu0 %4932
    %4934 = vrot.lane.b32.xlu0 %v4901, 64
    %v4935 = vpop.permute.xlu0 %4934
    %4936 = vrot.lane.b32.xlu0 %v4902, 64
    %v4937 = vpop.permute.xlu0 %4936
    %4938 = vrot.lane.b32.xlu0 %v4903, 64
    %v4939 = vpop.permute.xlu0 %4938
    %4940 = vrot.lane.b32.xlu0 %v4904, 64
    %v4941 = vpop.permute.xlu0 %4940
    %4942 = vrot.lane.b32.xlu0 %v4905, 64
    %v4943 = vpop.permute.xlu0 %4942
    %4944 = vrot.lane.b32.xlu0 %v4906, 64
    %v4945 = vpop.permute.xlu0 %4944
    %4946 = vrot.lane.b32.xlu0 %v4907, 64
    %v4947 = vpop.permute.xlu0 %4946
    %4948 = vrot.lane.b32.xlu0 %v4908, 64
    %v4949 = vpop.permute.xlu0 %4948
    %4950 = vrot.lane.b32.xlu0 %v4909, 64
    %v4951 = vpop.permute.xlu0 %4950
    %4952 = vrot.lane.b32.xlu0 %v4910, 64
    %v4953 = vpop.permute.xlu0 %4952
    %4954 = vrot.lane.b32.xlu0 %v4911, 64
    %v4955 = vpop.permute.xlu0 %4954
    %4956 = vrot.lane.b32.xlu0 %v4912, 64
    %v4957 = vpop.permute.xlu0 %4956
    %4958 = vrot.lane.b32.xlu0 %v4913, 64
    %v4959 = vpop.permute.xlu0 %4958
    %4960 = vrot.lane.b32.xlu0 %v4914, 64
    %v4961 = vpop.permute.xlu0 %4960
    %4962 = vrot.lane.b32.xlu0 %v4915, 64
    %v4963 = vpop.permute.xlu0 %4962
    %v4980 = vmul.f32 %v4869, %v4933
    %v4981 = vmul.f32 %v4871, %v4935
    %v4982 = vmul.f32 %v4873, %v4937
    %v4983 = vmul.f32 %v4875, %v4939
    %v4984 = vmul.f32 %v4877, %v4941
    %v4985 = vmul.f32 %v4879, %v4943
    %v4986 = vmul.f32 %v4881, %v4945
    %v4987 = vmul.f32 %v4883, %v4947
    %v4988 = vmul.f32 %v4885, %v4949
    %v4989 = vmul.f32 %v4887, %v4951
    %v4990 = vmul.f32 %v4889, %v4953
    %v4991 = vmul.f32 %v4891, %v4955
    %v4992 = vmul.f32 %v4893, %v4957
    %v4993 = vmul.f32 %v4895, %v4959
    %v4994 = vmul.f32 %v4897, %v4961
    %v4995 = vmul.f32 %v4899, %v4963
    %5012 = vrot.lane.b32.xlu0 %v4980, 64
    %v5013 = vpop.permute.xlu0 %5012
    %5014 = vrot.lane.b32.xlu0 %v4981, 64
    %v5015 = vpop.permute.xlu0 %5014
    %5016 = vrot.lane.b32.xlu0 %v4982, 64
    %v5017 = vpop.permute.xlu0 %5016
    %5018 = vrot.lane.b32.xlu0 %v4983, 64
    %v5019 = vpop.permute.xlu0 %5018
    %5020 = vrot.lane.b32.xlu0 %v4984, 64
    %v5021 = vpop.permute.xlu0 %5020
    %5022 = vrot.lane.b32.xlu0 %v4985, 64
    %v5023 = vpop.permute.xlu0 %5022
    %5024 = vrot.lane.b32.xlu0 %v4986, 64
    %v5025 = vpop.permute.xlu0 %5024
    %5026 = vrot.lane.b32.xlu0 %v4987, 64
    %v5027 = vpop.permute.xlu0 %5026
    %5028 = vrot.lane.b32.xlu0 %v4988, 64
    %v5029 = vpop.permute.xlu0 %5028
    %5030 = vrot.lane.b32.xlu0 %v4989, 64
    %v5031 = vpop.permute.xlu0 %5030
    %5032 = vrot.lane.b32.xlu0 %v4990, 64
    %v5033 = vpop.permute.xlu0 %5032
    %5034 = vrot.lane.b32.xlu0 %v4991, 64
    %v5035 = vpop.permute.xlu0 %5034
    %5036 = vrot.lane.b32.xlu0 %v4992, 64
    %v5037 = vpop.permute.xlu0 %5036
    %5038 = vrot.lane.b32.xlu0 %v4993, 64
    %v5039 = vpop.permute.xlu0 %5038
    %5040 = vrot.lane.b32.xlu0 %v4994, 64
    %v5041 = vpop.permute.xlu0 %5040
    %5042 = vrot.lane.b32.xlu0 %v4995, 64
    %v5043 = vpop.permute.xlu0 %5042
    %v5060 = vadd.f32 %v4772, %v5013
    %v5061 = vadd.f32 %v4773, %v5015
    %v5062 = vadd.f32 %v4774, %v5017
    %v5063 = vadd.f32 %v4775, %v5019
    %v5064 = vadd.f32 %v4776, %v5021
    %v5065 = vadd.f32 %v4777, %v5023
    %v5066 = vadd.f32 %v4778, %v5025
    %v5067 = vadd.f32 %v4779, %v5027
    %v5068 = vadd.f32 %v4780, %v5029
    %v5069 = vadd.f32 %v4781, %v5031
    %v5070 = vadd.f32 %v4782, %v5033
    %v5071 = vadd.f32 %v4783, %v5035
    %v5072 = vadd.f32 %v4784, %v5037
    %v5073 = vadd.f32 %v4785, %v5039
    %v5074 = vadd.f32 %v4786, %v5041
    %v5075 = vadd.f32 %v4787, %v5043
    %v5076 = vtanh.pop %v5060
    %v5077 = vtanh.pop %v5061
    %v5078 = vtanh.pop %v5062
    %v5079 = vtanh.pop %v5063
    %v5080 = vtanh.pop %v5064
    %v5081 = vtanh.pop %v5065
    %v5082 = vtanh.pop %v5066
    %v5083 = vtanh.pop %v5067
    %v5084 = vtanh.pop %v5068
    %v5085 = vtanh.pop %v5069
    %v5086 = vtanh.pop %v5070
    %v5087 = vtanh.pop %v5071
    %v5088 = vtanh.pop %v5072
    %v5089 = vtanh.pop %v5073
    %v5090 = vtanh.pop %v5074
    %v5091 = vtanh.pop %v5075
    %v5092 = vsub.f32 1.0, %v4869
    %v5093 = vsub.f32 1.0, %v4871
    %v5094 = vsub.f32 1.0, %v4873
    %v5095 = vsub.f32 1.0, %v4875
    %v5096 = vsub.f32 1.0, %v4877
    %v5097 = vsub.f32 1.0, %v4879
    %v5098 = vsub.f32 1.0, %v4881
    %v5099 = vsub.f32 1.0, %v4883
    %v5100 = vsub.f32 1.0, %v4885
    %v5101 = vsub.f32 1.0, %v4887
    %v5102 = vsub.f32 1.0, %v4889
    %v5103 = vsub.f32 1.0, %v4891
    %v5104 = vsub.f32 1.0, %v4893
    %v5105 = vsub.f32 1.0, %v4895
    %v5106 = vsub.f32 1.0, %v4897
    %v5107 = vsub.f32 1.0, %v4899
    %5124 = vrot.lane.b32.xlu0 %v5076, 96
    %v5125 = vpop.permute.xlu0 %5124
    %5126 = vrot.lane.b32.xlu0 %v5077, 96
    %v5127 = vpop.permute.xlu0 %5126
    %5128 = vrot.lane.b32.xlu0 %v5078, 96
    %v5129 = vpop.permute.xlu0 %5128
    %5130 = vrot.lane.b32.xlu0 %v5079, 96
    %v5131 = vpop.permute.xlu0 %5130
    %5132 = vrot.lane.b32.xlu0 %v5080, 96
    %v5133 = vpop.permute.xlu0 %5132
    %5134 = vrot.lane.b32.xlu0 %v5081, 96
    %v5135 = vpop.permute.xlu0 %5134
    %5136 = vrot.lane.b32.xlu0 %v5082, 96
    %v5137 = vpop.permute.xlu0 %5136
    %5138 = vrot.lane.b32.xlu0 %v5083, 96
    %v5139 = vpop.permute.xlu0 %5138
    %5140 = vrot.lane.b32.xlu0 %v5084, 96
    %v5141 = vpop.permute.xlu0 %5140
    %5142 = vrot.lane.b32.xlu0 %v5085, 96
    %v5143 = vpop.permute.xlu0 %5142
    %5144 = vrot.lane.b32.xlu0 %v5086, 96
    %v5145 = vpop.permute.xlu0 %5144
    %5146 = vrot.lane.b32.xlu0 %v5087, 96
    %v5147 = vpop.permute.xlu0 %5146
    %5148 = vrot.lane.b32.xlu0 %v5088, 96
    %v5149 = vpop.permute.xlu0 %5148
    %5150 = vrot.lane.b32.xlu0 %v5089, 96
    %v5151 = vpop.permute.xlu0 %5150
    %5152 = vrot.lane.b32.xlu0 %v5090, 96
    %v5153 = vpop.permute.xlu0 %5152
    %5154 = vrot.lane.b32.xlu0 %v5091, 96
    %v5155 = vpop.permute.xlu0 %5154
    %v5172 = vmul.f32 %v5092, %v5125
    %v5173 = vmul.f32 %v5093, %v5127
    %v5174 = vmul.f32 %v5094, %v5129
    %v5175 = vmul.f32 %v5095, %v5131
    %v5176 = vmul.f32 %v5096, %v5133
    %v5177 = vmul.f32 %v5097, %v5135
    %v5178 = vmul.f32 %v5098, %v5137
    %v5179 = vmul.f32 %v5099, %v5139
    %v5180 = vmul.f32 %v5100, %v5141
    %v5181 = vmul.f32 %v5101, %v5143
    %v5182 = vmul.f32 %v5102, %v5145
    %v5183 = vmul.f32 %v5103, %v5147
    %v5184 = vmul.f32 %v5104, %v5149
    %v5185 = vmul.f32 %v5105, %v5151
    %v5186 = vmul.f32 %v5106, %v5153
    %v5187 = vmul.f32 %v5107, %v5155
    %v5188 = vmul.f32 %v4869, %v4497
    %v5189 = vmul.f32 %v4871, %v4498
    %v5190 = vmul.f32 %v4873, %v4499
    %v5191 = vmul.f32 %v4875, %v4500
    %v5192 = vmul.f32 %v4877, %v4501
    %v5193 = vmul.f32 %v4879, %v4502
    %v5194 = vmul.f32 %v4881, %v4503
    %v5195 = vmul.f32 %v4883, %v4504
    %v5196 = vmul.f32 %v4885, %v4505
    %v5197 = vmul.f32 %v4887, %v4506
    %v5198 = vmul.f32 %v4889, %v4507
    %v5199 = vmul.f32 %v4891, %v4508
    %v5200 = vmul.f32 %v4893, %v4509
    %v5201 = vmul.f32 %v4895, %v4510
    %v5202 = vmul.f32 %v4897, %v4511
    %v5203 = vmul.f32 %v4899, %v4512
    %v5204 = vadd.f32 %v5172, %v5188
    %v5205 = vadd.f32 %v5173, %v5189
    %v5206 = vadd.f32 %v5174, %v5190
    %v5207 = vadd.f32 %v5175, %v5191
    %v5208 = vadd.f32 %v5176, %v5192
    %v5209 = vadd.f32 %v5177, %v5193
    %v5210 = vadd.f32 %v5178, %v5194
    %v5211 = vadd.f32 %v5179, %v5195
    %v5212 = vadd.f32 %v5180, %v5196
    %v5213 = vadd.f32 %v5181, %v5197
    %v5214 = vadd.f32 %v5182, %v5198
    %v5215 = vadd.f32 %v5183, %v5199
    %v5216 = vadd.f32 %v5184, %v5200
    %v5217 = vadd.f32 %v5185, %v5201
    %v5218 = vadd.f32 %v5186, %v5202
    %v5219 = vadd.f32 %v5187, %v5203
    %5236 = vrot.lane.b32.xlu0 %v5204, 96
    %v5237 = vpop.permute.xlu0 %5236
    %5238 = vrot.lane.b32.xlu0 %v5205, 96
    %v5239 = vpop.permute.xlu0 %5238
    %5240 = vrot.lane.b32.xlu0 %v5206, 96
    %v5241 = vpop.permute.xlu0 %5240
    %5242 = vrot.lane.b32.xlu0 %v5207, 96
    %v5243 = vpop.permute.xlu0 %5242
    %5244 = vrot.lane.b32.xlu0 %v5208, 96
    %v5245 = vpop.permute.xlu0 %5244
    %5246 = vrot.lane.b32.xlu0 %v5209, 96
    %v5247 = vpop.permute.xlu0 %5246
    %5248 = vrot.lane.b32.xlu0 %v5210, 96
    %v5249 = vpop.permute.xlu0 %5248
    %5250 = vrot.lane.b32.xlu0 %v5211, 96
    %v5251 = vpop.permute.xlu0 %5250
    %5252 = vrot.lane.b32.xlu0 %v5212, 96
    %v5253 = vpop.permute.xlu0 %5252
    %5254 = vrot.lane.b32.xlu0 %v5213, 96
    %v5255 = vpop.permute.xlu0 %5254
    %5256 = vrot.lane.b32.xlu0 %v5214, 96
    %v5257 = vpop.permute.xlu0 %5256
    %5258 = vrot.lane.b32.xlu0 %v5215, 96
    %v5259 = vpop.permute.xlu0 %5258
    %5260 = vrot.lane.b32.xlu0 %v5216, 96
    %v5261 = vpop.permute.xlu0 %5260
    %5262 = vrot.lane.b32.xlu0 %v5217, 96
    %v5263 = vpop.permute.xlu0 %5262
    %5264 = vrot.lane.b32.xlu0 %v5218, 96
    %v5265 = vpop.permute.xlu0 %5264
    %5266 = vrot.lane.b32.xlu0 %v5219, 96
    %v5267 = vpop.permute.xlu0 %5266
    %s5284 = scalar_lea.vmem [#allocation3], 640
    %5285 = vst.msk [vmem:[%s5284] sm:$0xff] %vm1745, %v5237
    %5286 = vst.msk [vmem:[%s5284 + $0x8] sm:$0xff] %vm1745, %v5239
    %5287 = vst.msk [vmem:[%s5284 + $0x10] sm:$0xff] %vm1745, %v5241
    %5288 = vst.msk [vmem:[%s5284 + $0x18] sm:$0xff] %vm1745, %v5243
    %5289 = vst.msk [vmem:[%s5284 + $0x20] sm:$0xff] %vm1745, %v5245
    %5290 = vst.msk [vmem:[%s5284 + $0x28] sm:$0xff] %vm1745, %v5247
    %5291 = vst.msk [vmem:[%s5284 + $0x30] sm:$0xff] %vm1745, %v5249
    %5292 = vst.msk [vmem:[%s5284 + $0x38] sm:$0xff] %vm1745, %v5251
    %5293 = vst.msk [vmem:[%s5284 + $0x40] sm:$0xff] %vm1745, %v5253
    %5294 = vst.msk [vmem:[%s5284 + $0x48] sm:$0xff] %vm1745, %v5255
    %5295 = vst.msk [vmem:[%s5284 + $0x50] sm:$0xff] %vm1745, %v5257
    %5296 = vst.msk [vmem:[%s5284 + $0x58] sm:$0xff] %vm1745, %v5259
    %5297 = vst.msk [vmem:[%s5284 + $0x60] sm:$0xff] %vm1745, %v5261
    %5298 = vst.msk [vmem:[%s5284 + $0x68] sm:$0xff] %vm1745, %v5263
    %5299 = vst.msk [vmem:[%s5284 + $0x70] sm:$0xff] %vm1745, %v5265
    %5300 = vst.msk [vmem:[%s5284 + $0x78] sm:$0xff] %vm1745, %v5267
    %v5301 = vsel %vm1745, %v5237, 0
    %v5303 = vsel %vm1745, %v5239, 0
    %v5305 = vsel %vm1745, %v5241, 0
    %v5307 = vsel %vm1745, %v5243, 0
    %v5309 = vsel %vm1745, %v5245, 0
    %v5311 = vsel %vm1745, %v5247, 0
    %v5313 = vsel %vm1745, %v5249, 0
    %v5315 = vsel %vm1745, %v5251, 0
    %v5317 = vsel %vm1745, %v5253, 0
    %v5319 = vsel %vm1745, %v5255, 0
    %v5321 = vsel %vm1745, %v5257, 0
    %v5323 = vsel %vm1745, %v5259, 0
    %v5325 = vsel %vm1745, %v5261, 0
    %v5327 = vsel %vm1745, %v5263, 0
    %v5329 = vsel %vm1745, %v5265, 0
    %v5331 = vsel %vm1745, %v5267, 0
    %5333 = vmatprep.subr.mxu0 0.0
    %5334 = vmatpush1.msra.mxu0 %v1353
    %5335 = vmatprep.subr.mxu0 0.0
    %5336 = vmatpush1.msra.mxu0 %v1354
    %5337 = vmatprep.subr.mxu0 0.0
    %5338 = vmatpush1.msra.mxu0 %v1355
    %5339 = vmatprep.subr.mxu0 0.0
    %5340 = vmatpush1.msra.mxu0 %v1356
    %5341 = vmatprep.subr.mxu0 0.0
    %5342 = vmatpush1.msra.mxu0 0.0
    %5343 = vmatprep.subr.mxu0 0.0
    %5344 = vmatpush1.msra.mxu0 0.0
    %5345 = vmatprep.subr.mxu0 0.0
    %5346 = vmatpush1.msra.mxu0 0.0
    %5347 = vmatprep.subr.mxu0 0.0
    %5348 = vmatpush1.msra.mxu0 0.0
    %5349 = vmatprep.subr.mxu0 0.0
    %5350 = vmatpush1.msra.mxu0 0.0
    %5351 = vmatprep.subr.mxu0 0.0
    %5352 = vmatpush1.msra.mxu0 0.0
    %5353 = vmatprep.subr.mxu0 0.0
    %5354 = vmatpush1.msra.mxu0 0.0
    %5355 = vmatprep.subr.mxu0 0.0
    %5356 = vmatpush1.msra.mxu0 0.0
    %5357 = vmatprep.subr.mxu0 0.0
    %5358 = vmatpush1.msra.mxu0 0.0
    %5359 = vmatprep.subr.mxu0 0.0
    %5360 = vmatpush1.msra.mxu0 0.0
    %5361 = vmatprep.subr.mxu0 0.0
    %5362 = vmatpush1.msra.mxu0 0.0
    %5363 = vmatprep.subr.mxu0 0.0
    %5364 = vmatpush1.msra.mxu0 0.0
    %5365 = vmatprep.subr.mxu0 0.0
    %5366 = vmatpush1.msra.mxu0 0.0
    %5367 = vmatprep.subr.mxu0 0.0
    %5368 = vmatpush1.msra.mxu0 0.0
    %5369 = vmatprep.subr.mxu0 0.0
    %5370 = vmatpush1.msra.mxu0 0.0
    %5371 = vmatprep.subr.mxu0 0.0
    %5372 = vmatpush1.msra.mxu0 0.0
    %5373 = vmatprep.subr.mxu0 0.0
    %5374 = vmatpush1.msra.mxu0 0.0
    %5375 = vmatprep.subr.mxu0 0.0
    %5376 = vmatpush1.msra.mxu0 0.0
    %5377 = vmatprep.subr.mxu0 0.0
    %5378 = vmatpush1.msra.mxu0 0.0
    %5379 = vmatprep.subr.mxu0 0.0
    %5380 = vmatpush1.msra.mxu0 0.0
    %5381 = vmatprep.subr.mxu0 0.0
    %5382 = vmatpush1.msra.mxu0 0.0
    %5383 = vmatprep.subr.mxu0 0.0
    %5384 = vmatpush1.msra.mxu0 0.0
    %5385 = vmatprep.subr.mxu0 0.0
    %5386 = vmatpush1.msra.mxu0 0.0
    %5387 = vmatprep.subr.mxu0 0.0
    %5388 = vmatpush1.msra.mxu0 0.0
    %5389 = vmatprep.subr.mxu0 0.0
    %5390 = vmatpush1.msra.mxu0 0.0
    %5391 = vmatprep.subr.mxu0 0.0
    %5392 = vmatpush1.msra.mxu0 0.0
    %5393 = vmatprep.subr.mxu0 0.0
    %5394 = vmatpush1.msra.mxu0 0.0
    %5395 = vmatprep.subr.mxu0 0.0
    %5396 = vmatpush1.msra.mxu0 0.0
    %5397 = vmatprep.mubr.f32.mxu0 0.0
    %5398 = vmatmul.mubr.f32.gmra.mrb[0].mxu0 %v5301
    %v5399 = vpop.f32.mrb[0].mxu0
    %v5400 = vadd.f32 0.0, %v5399
    %v5401 = vpop.f32.mrb[0].mxu0
    %5402 = vmatprep.mubr.f32.mxu0 0.0
    %5403 = vmatmul.mubr.f32.gmra.mrb[0].mxu0 %v5303
    %v5404 = vpop.f32.mrb[0].mxu0
    %v5405 = vadd.f32 0.0, %v5404
    %v5406 = vpop.f32.mrb[0].mxu0
    %5407 = vmatprep.mubr.f32.mxu0 0.0
    %5408 = vmatmul.mubr.f32.gmra.mrb[0].mxu0 %v5305
    %v5409 = vpop.f32.mrb[0].mxu0
    %v5410 = vadd.f32 0.0, %v5409
    %v5411 = vpop.f32.mrb[0].mxu0
    %5412 = vmatprep.mubr.f32.mxu0 0.0
    %5413 = vmatmul.mubr.f32.gmra.mrb[0].mxu0 %v5307
    %v5414 = vpop.f32.mrb[0].mxu0
    %v5415 = vadd.f32 0.0, %v5414
    %v5416 = vpop.f32.mrb[0].mxu0
    %5417 = vmatprep.mubr.f32.mxu0 0.0
    %5418 = vmatmul.mubr.f32.gmra.mrb[0].mxu0 %v5309
    %v5419 = vpop.f32.mrb[0].mxu0
    %v5420 = vadd.f32 0.0, %v5419
    %v5421 = vpop.f32.mrb[0].mxu0
    %5422 = vmatprep.mubr.f32.mxu0 0.0
    %5423 = vmatmul.mubr.f32.gmra.mrb[0].mxu0 %v5311
    %v5424 = vpop.f32.mrb[0].mxu0
    %v5425 = vadd.f32 0.0, %v5424
    %v5426 = vpop.f32.mrb[0].mxu0
    %5427 = vmatprep.mubr.f32.mxu0 0.0
    %5428 = vmatmul.mubr.f32.gmra.mrb[0].mxu0 %v5313
    %v5429 = vpop.f32.mrb[0].mxu0
    %v5430 = vadd.f32 0.0, %v5429
    %v5431 = vpop.f32.mrb[0].mxu0
    %5432 = vmatprep.mubr.f32.mxu0 0.0
    %5433 = vmatmul.mubr.f32.gmra.mrb[0].mxu0 %v5315
    %v5434 = vpop.f32.mrb[0].mxu0
    %v5435 = vadd.f32 0.0, %v5434
    %v5436 = vpop.f32.mrb[0].mxu0
    %5437 = vmatprep.mubr.f32.mxu0 0.0
    %5438 = vmatmul.mubr.f32.gmra.mrb[0].mxu0 %v5317
    %v5439 = vpop.f32.mrb[0].mxu0
    %v5440 = vadd.f32 0.0, %v5439
    %v5441 = vpop.f32.mrb[0].mxu0
    %5442 = vmatprep.mubr.f32.mxu0 0.0
    %5443 = vmatmul.mubr.f32.gmra.mrb[0].mxu0 %v5319
    %v5444 = vpop.f32.mrb[0].mxu0
    %v5445 = vadd.f32 0.0, %v5444
    %v5446 = vpop.f32.mrb[0].mxu0
    %5447 = vmatprep.mubr.f32.mxu0 0.0
    %5448 = vmatmul.mubr.f32.gmra.mrb[0].mxu0 %v5321
    %v5449 = vpop.f32.mrb[0].mxu0
    %v5450 = vadd.f32 0.0, %v5449
    %v5451 = vpop.f32.mrb[0].mxu0
    %5452 = vmatprep.mubr.f32.mxu0 0.0
    %5453 = vmatmul.mubr.f32.gmra.mrb[0].mxu0 %v5323
    %v5454 = vpop.f32.mrb[0].mxu0
    %v5455 = vadd.f32 0.0, %v5454
    %v5456 = vpop.f32.mrb[0].mxu0
    %5457 = vmatprep.mubr.f32.mxu0 0.0
    %5458 = vmatmul.mubr.f32.gmra.mrb[0].mxu0 %v5325
    %v5459 = vpop.f32.mrb[0].mxu0
    %v5460 = vadd.f32 0.0, %v5459
    %v5461 = vpop.f32.mrb[0].mxu0
    %5462 = vmatprep.mubr.f32.mxu0 0.0
    %5463 = vmatmul.mubr.f32.gmra.mrb[0].mxu0 %v5327
    %v5464 = vpop.f32.mrb[0].mxu0
    %v5465 = vadd.f32 0.0, %v5464
    %v5466 = vpop.f32.mrb[0].mxu0
    %5467 = vmatprep.mubr.f32.mxu0 0.0
    %5468 = vmatmul.mubr.f32.gmra.mrb[0].mxu0 %v5329
    %v5469 = vpop.f32.mrb[0].mxu0
    %v5470 = vadd.f32 0.0, %v5469
    %v5471 = vpop.f32.mrb[0].mxu0
    %5472 = vmatprep.mubr.f32.mxu0 0.0
    %5473 = vmatmul.mubr.f32.gmra.mrb[0].mxu0 %v5331
    %v5474 = vpop.f32.mrb[0].mxu0
    %v5475 = vadd.f32 0.0, %v5474
    %v5476 = vpop.f32.mrb[0].mxu0
    %5477 = vdwg.mxu0
    %s5478 = scalar_lea.vmem [#allocation2], 768
    %v5479 = vld [vmem:[%s5478] sm:$0xff]
    %v5480 = vld [vmem:[%s5478 + $0x8] sm:$0xff]
    %v5481 = vld [vmem:[%s5478 + $0x10] sm:$0xff]
    %v5482 = vld [vmem:[%s5478 + $0x18] sm:$0xff]
    %v5483 = vld [vmem:[%s5478 + $0x20] sm:$0xff]
    %v5484 = vld [vmem:[%s5478 + $0x28] sm:$0xff]
    %v5485 = vld [vmem:[%s5478 + $0x30] sm:$0xff]
    %v5486 = vld [vmem:[%s5478 + $0x38] sm:$0xff]
    %v5487 = vld [vmem:[%s5478 + $0x40] sm:$0xff]
    %v5488 = vld [vmem:[%s5478 + $0x48] sm:$0xff]
    %v5489 = vld [vmem:[%s5478 + $0x50] sm:$0xff]
    %v5490 = vld [vmem:[%s5478 + $0x58] sm:$0xff]
    %v5491 = vld [vmem:[%s5478 + $0x60] sm:$0xff]
    %v5492 = vld [vmem:[%s5478 + $0x68] sm:$0xff]
    %v5493 = vld [vmem:[%s5478 + $0x70] sm:$0xff]
    %v5494 = vld [vmem:[%s5478 + $0x78] sm:$0xff]
    %v5495 = vadd.f32 %v5479, %v5400
    %v5496 = vadd.f32 %v5480, %v5405
    %v5497 = vadd.f32 %v5481, %v5410
    %v5498 = vadd.f32 %v5482, %v5415
    %v5499 = vadd.f32 %v5483, %v5420
    %v5500 = vadd.f32 %v5484, %v5425
    %v5501 = vadd.f32 %v5485, %v5430
    %v5502 = vadd.f32 %v5486, %v5435
    %v5503 = vadd.f32 %v5487, %v5440
    %v5504 = vadd.f32 %v5488, %v5445
    %v5505 = vadd.f32 %v5489, %v5450
    %v5506 = vadd.f32 %v5490, %v5455
    %v5507 = vadd.f32 %v5491, %v5460
    %v5508 = vadd.f32 %v5492, %v5465
    %v5509 = vadd.f32 %v5493, %v5470
    %v5510 = vadd.f32 %v5494, %v5475
    %v5511 = vxor.u32 %v5495, 2147483648
    %v5512 = vxor.u32 %v5496, 2147483648
    %v5513 = vxor.u32 %v5497, 2147483648
    %v5514 = vxor.u32 %v5498, 2147483648
    %v5515 = vxor.u32 %v5499, 2147483648
    %v5516 = vxor.u32 %v5500, 2147483648
    %v5517 = vxor.u32 %v5501, 2147483648
    %v5518 = vxor.u32 %v5502, 2147483648
    %v5519 = vxor.u32 %v5503, 2147483648
    %v5520 = vxor.u32 %v5504, 2147483648
    %v5521 = vxor.u32 %v5505, 2147483648
    %v5522 = vxor.u32 %v5506, 2147483648
    %v5523 = vxor.u32 %v5507, 2147483648
    %v5524 = vxor.u32 %v5508, 2147483648
    %v5525 = vxor.u32 %v5509, 2147483648
    %v5526 = vxor.u32 %v5510, 2147483648
    %v5527 = vmul.f32 %v5511, 1.442695
    %v5528 = vpow.pop %v5527
    %v5529 = vmul.f32 %v5512, 1.442695
    %v5530 = vpow.pop %v5529
    %v5531 = vmul.f32 %v5513, 1.442695
    %v5532 = vpow.pop %v5531
    %v5533 = vmul.f32 %v5514, 1.442695
    %v5534 = vpow.pop %v5533
    %v5535 = vmul.f32 %v5515, 1.442695
    %v5536 = vpow.pop %v5535
    %v5537 = vmul.f32 %v5516, 1.442695
    %v5538 = vpow.pop %v5537
    %v5539 = vmul.f32 %v5517, 1.442695
    %v5540 = vpow.pop %v5539
    %v5541 = vmul.f32 %v5518, 1.442695
    %v5542 = vpow.pop %v5541
    %v5543 = vmul.f32 %v5519, 1.442695
    %v5544 = vpow.pop %v5543
    %v5545 = vmul.f32 %v5520, 1.442695
    %v5546 = vpow.pop %v5545
    %v5547 = vmul.f32 %v5521, 1.442695
    %v5548 = vpow.pop %v5547
    %v5549 = vmul.f32 %v5522, 1.442695
    %v5550 = vpow.pop %v5549
    %v5551 = vmul.f32 %v5523, 1.442695
    %v5552 = vpow.pop %v5551
    %v5553 = vmul.f32 %v5524, 1.442695
    %v5554 = vpow.pop %v5553
    %v5555 = vmul.f32 %v5525, 1.442695
    %v5556 = vpow.pop %v5555
    %v5557 = vmul.f32 %v5526, 1.442695
    %v5558 = vpow.pop %v5557
    %v5559 = vadd.f32 %v5528, 1.0
    %v5560 = vadd.f32 %v5530, 1.0
    %v5561 = vadd.f32 %v5532, 1.0
    %v5562 = vadd.f32 %v5534, 1.0
    %v5563 = vadd.f32 %v5536, 1.0
    %v5564 = vadd.f32 %v5538, 1.0
    %v5565 = vadd.f32 %v5540, 1.0
    %v5566 = vadd.f32 %v5542, 1.0
    %v5567 = vadd.f32 %v5544, 1.0
    %v5568 = vadd.f32 %v5546, 1.0
    %v5569 = vadd.f32 %v5548, 1.0
    %v5570 = vadd.f32 %v5550, 1.0
    %v5571 = vadd.f32 %v5552, 1.0
    %v5572 = vadd.f32 %v5554, 1.0
    %v5573 = vadd.f32 %v5556, 1.0
    %v5574 = vadd.f32 %v5558, 1.0
    %v5575 = vrcp.pop %v5559
    %v5576 = vmul.f32 1.0, %v5575
    %v5577 = vrcp.pop %v5560
    %v5578 = vmul.f32 1.0, %v5577
    %v5579 = vrcp.pop %v5561
    %v5580 = vmul.f32 1.0, %v5579
    %v5581 = vrcp.pop %v5562
    %v5582 = vmul.f32 1.0, %v5581
    %v5583 = vrcp.pop %v5563
    %v5584 = vmul.f32 1.0, %v5583
    %v5585 = vrcp.pop %v5564
    %v5586 = vmul.f32 1.0, %v5585
    %v5587 = vrcp.pop %v5565
    %v5588 = vmul.f32 1.0, %v5587
    %v5589 = vrcp.pop %v5566
    %v5590 = vmul.f32 1.0, %v5589
    %v5591 = vrcp.pop %v5567
    %v5592 = vmul.f32 1.0, %v5591
    %v5593 = vrcp.pop %v5568
    %v5594 = vmul.f32 1.0, %v5593
    %v5595 = vrcp.pop %v5569
    %v5596 = vmul.f32 1.0, %v5595
    %v5597 = vrcp.pop %v5570
    %v5598 = vmul.f32 1.0, %v5597
    %v5599 = vrcp.pop %v5571
    %v5600 = vmul.f32 1.0, %v5599
    %v5601 = vrcp.pop %v5572
    %v5602 = vmul.f32 1.0, %v5601
    %v5603 = vrcp.pop %v5573
    %v5604 = vmul.f32 1.0, %v5603
    %v5605 = vrcp.pop %v5574
    %v5606 = vmul.f32 1.0, %v5605
    %v5607 = vadd.f32 %v5400, %v2070
    %v5608 = vadd.f32 %v5405, %v2070
    %v5609 = vadd.f32 %v5410, %v2070
    %v5610 = vadd.f32 %v5415, %v2070
    %v5611 = vadd.f32 %v5420, %v2070
    %v5612 = vadd.f32 %v5425, %v2070
    %v5613 = vadd.f32 %v5430, %v2070
    %v5614 = vadd.f32 %v5435, %v2070
    %v5615 = vadd.f32 %v5440, %v2070
    %v5616 = vadd.f32 %v5445, %v2070
    %v5617 = vadd.f32 %v5450, %v2070
    %v5618 = vadd.f32 %v5455, %v2070
    %v5619 = vadd.f32 %v5460, %v2070
    %v5620 = vadd.f32 %v5465, %v2070
    %v5621 = vadd.f32 %v5470, %v2070
    %v5622 = vadd.f32 %v5475, %v2070
    %5639 = vrot.lane.b32.xlu0 %v5607, 64
    %v5640 = vpop.permute.xlu0 %5639
    %5641 = vrot.lane.b32.xlu0 %v5608, 64
    %v5642 = vpop.permute.xlu0 %5641
    %5643 = vrot.lane.b32.xlu0 %v5609, 64
    %v5644 = vpop.permute.xlu0 %5643
    %5645 = vrot.lane.b32.xlu0 %v5610, 64
    %v5646 = vpop.permute.xlu0 %5645
    %5647 = vrot.lane.b32.xlu0 %v5611, 64
    %v5648 = vpop.permute.xlu0 %5647
    %5649 = vrot.lane.b32.xlu0 %v5612, 64
    %v5650 = vpop.permute.xlu0 %5649
    %5651 = vrot.lane.b32.xlu0 %v5613, 64
    %v5652 = vpop.permute.xlu0 %5651
    %5653 = vrot.lane.b32.xlu0 %v5614, 64
    %v5654 = vpop.permute.xlu0 %5653
    %5655 = vrot.lane.b32.xlu0 %v5615, 64
    %v5656 = vpop.permute.xlu0 %5655
    %5657 = vrot.lane.b32.xlu0 %v5616, 64
    %v5658 = vpop.permute.xlu0 %5657
    %5659 = vrot.lane.b32.xlu0 %v5617, 64
    %v5660 = vpop.permute.xlu0 %5659
    %5661 = vrot.lane.b32.xlu0 %v5618, 64
    %v5662 = vpop.permute.xlu0 %5661
    %5663 = vrot.lane.b32.xlu0 %v5619, 64
    %v5664 = vpop.permute.xlu0 %5663
    %5665 = vrot.lane.b32.xlu0 %v5620, 64
    %v5666 = vpop.permute.xlu0 %5665
    %5667 = vrot.lane.b32.xlu0 %v5621, 64
    %v5668 = vpop.permute.xlu0 %5667
    %5669 = vrot.lane.b32.xlu0 %v5622, 64
    %v5670 = vpop.permute.xlu0 %5669
    %v5687 = vmul.f32 %v5576, %v5640
    %v5688 = vmul.f32 %v5578, %v5642
    %v5689 = vmul.f32 %v5580, %v5644
    %v5690 = vmul.f32 %v5582, %v5646
    %v5691 = vmul.f32 %v5584, %v5648
    %v5692 = vmul.f32 %v5586, %v5650
    %v5693 = vmul.f32 %v5588, %v5652
    %v5694 = vmul.f32 %v5590, %v5654
    %v5695 = vmul.f32 %v5592, %v5656
    %v5696 = vmul.f32 %v5594, %v5658
    %v5697 = vmul.f32 %v5596, %v5660
    %v5698 = vmul.f32 %v5598, %v5662
    %v5699 = vmul.f32 %v5600, %v5664
    %v5700 = vmul.f32 %v5602, %v5666
    %v5701 = vmul.f32 %v5604, %v5668
    %v5702 = vmul.f32 %v5606, %v5670
    %5719 = vrot.lane.b32.xlu0 %v5687, 64
    %v5720 = vpop.permute.xlu0 %5719
    %5721 = vrot.lane.b32.xlu0 %v5688, 64
    %v5722 = vpop.permute.xlu0 %5721
    %5723 = vrot.lane.b32.xlu0 %v5689, 64
    %v5724 = vpop.permute.xlu0 %5723
    %5725 = vrot.lane.b32.xlu0 %v5690, 64
    %v5726 = vpop.permute.xlu0 %5725
    %5727 = vrot.lane.b32.xlu0 %v5691, 64
    %v5728 = vpop.permute.xlu0 %5727
    %5729 = vrot.lane.b32.xlu0 %v5692, 64
    %v5730 = vpop.permute.xlu0 %5729
    %5731 = vrot.lane.b32.xlu0 %v5693, 64
    %v5732 = vpop.permute.xlu0 %5731
    %5733 = vrot.lane.b32.xlu0 %v5694, 64
    %v5734 = vpop.permute.xlu0 %5733
    %5735 = vrot.lane.b32.xlu0 %v5695, 64
    %v5736 = vpop.permute.xlu0 %5735
    %5737 = vrot.lane.b32.xlu0 %v5696, 64
    %v5738 = vpop.permute.xlu0 %5737
    %5739 = vrot.lane.b32.xlu0 %v5697, 64
    %v5740 = vpop.permute.xlu0 %5739
    %5741 = vrot.lane.b32.xlu0 %v5698, 64
    %v5742 = vpop.permute.xlu0 %5741
    %5743 = vrot.lane.b32.xlu0 %v5699, 64
    %v5744 = vpop.permute.xlu0 %5743
    %5745 = vrot.lane.b32.xlu0 %v5700, 64
    %v5746 = vpop.permute.xlu0 %5745
    %5747 = vrot.lane.b32.xlu0 %v5701, 64
    %v5748 = vpop.permute.xlu0 %5747
    %5749 = vrot.lane.b32.xlu0 %v5702, 64
    %v5750 = vpop.permute.xlu0 %5749
    %v5767 = vadd.f32 %v5479, %v5720
    %v5768 = vadd.f32 %v5480, %v5722
    %v5769 = vadd.f32 %v5481, %v5724
    %v5770 = vadd.f32 %v5482, %v5726
    %v5771 = vadd.f32 %v5483, %v5728
    %v5772 = vadd.f32 %v5484, %v5730
    %v5773 = vadd.f32 %v5485, %v5732
    %v5774 = vadd.f32 %v5486, %v5734
    %v5775 = vadd.f32 %v5487, %v5736
    %v5776 = vadd.f32 %v5488, %v5738
    %v5777 = vadd.f32 %v5489, %v5740
    %v5778 = vadd.f32 %v5490, %v5742
    %v5779 = vadd.f32 %v5491, %v5744
    %v5780 = vadd.f32 %v5492, %v5746
    %v5781 = vadd.f32 %v5493, %v5748
    %v5782 = vadd.f32 %v5494, %v5750
    %v5783 = vtanh.pop %v5767
    %v5784 = vtanh.pop %v5768
    %v5785 = vtanh.pop %v5769
    %v5786 = vtanh.pop %v5770
    %v5787 = vtanh.pop %v5771
    %v5788 = vtanh.pop %v5772
    %v5789 = vtanh.pop %v5773
    %v5790 = vtanh.pop %v5774
    %v5791 = vtanh.pop %v5775
    %v5792 = vtanh.pop %v5776
    %v5793 = vtanh.pop %v5777
    %v5794 = vtanh.pop %v5778
    %v5795 = vtanh.pop %v5779
    %v5796 = vtanh.pop %v5780
    %v5797 = vtanh.pop %v5781
    %v5798 = vtanh.pop %v5782
    %v5799 = vsub.f32 1.0, %v5576
    %v5800 = vsub.f32 1.0, %v5578
    %v5801 = vsub.f32 1.0, %v5580
    %v5802 = vsub.f32 1.0, %v5582
    %v5803 = vsub.f32 1.0, %v5584
    %v5804 = vsub.f32 1.0, %v5586
    %v5805 = vsub.f32 1.0, %v5588
    %v5806 = vsub.f32 1.0, %v5590
    %v5807 = vsub.f32 1.0, %v5592
    %v5808 = vsub.f32 1.0, %v5594
    %v5809 = vsub.f32 1.0, %v5596
    %v5810 = vsub.f32 1.0, %v5598
    %v5811 = vsub.f32 1.0, %v5600
    %v5812 = vsub.f32 1.0, %v5602
    %v5813 = vsub.f32 1.0, %v5604
    %v5814 = vsub.f32 1.0, %v5606
    %5831 = vrot.lane.b32.xlu0 %v5783, 96
    %v5832 = vpop.permute.xlu0 %5831
    %5833 = vrot.lane.b32.xlu0 %v5784, 96
    %v5834 = vpop.permute.xlu0 %5833
    %5835 = vrot.lane.b32.xlu0 %v5785, 96
    %v5836 = vpop.permute.xlu0 %5835
    %5837 = vrot.lane.b32.xlu0 %v5786, 96
    %v5838 = vpop.permute.xlu0 %5837
    %5839 = vrot.lane.b32.xlu0 %v5787, 96
    %v5840 = vpop.permute.xlu0 %5839
    %5841 = vrot.lane.b32.xlu0 %v5788, 96
    %v5842 = vpop.permute.xlu0 %5841
    %5843 = vrot.lane.b32.xlu0 %v5789, 96
    %v5844 = vpop.permute.xlu0 %5843
    %5845 = vrot.lane.b32.xlu0 %v5790, 96
    %v5846 = vpop.permute.xlu0 %5845
    %5847 = vrot.lane.b32.xlu0 %v5791, 96
    %v5848 = vpop.permute.xlu0 %5847
    %5849 = vrot.lane.b32.xlu0 %v5792, 96
    %v5850 = vpop.permute.xlu0 %5849
    %5851 = vrot.lane.b32.xlu0 %v5793, 96
    %v5852 = vpop.permute.xlu0 %5851
    %5853 = vrot.lane.b32.xlu0 %v5794, 96
    %v5854 = vpop.permute.xlu0 %5853
    %5855 = vrot.lane.b32.xlu0 %v5795, 96
    %v5856 = vpop.permute.xlu0 %5855
    %5857 = vrot.lane.b32.xlu0 %v5796, 96
    %v5858 = vpop.permute.xlu0 %5857
    %5859 = vrot.lane.b32.xlu0 %v5797, 96
    %v5860 = vpop.permute.xlu0 %5859
    %5861 = vrot.lane.b32.xlu0 %v5798, 96
    %v5862 = vpop.permute.xlu0 %5861
    %v5879 = vmul.f32 %v5799, %v5832
    %v5880 = vmul.f32 %v5800, %v5834
    %v5881 = vmul.f32 %v5801, %v5836
    %v5882 = vmul.f32 %v5802, %v5838
    %v5883 = vmul.f32 %v5803, %v5840
    %v5884 = vmul.f32 %v5804, %v5842
    %v5885 = vmul.f32 %v5805, %v5844
    %v5886 = vmul.f32 %v5806, %v5846
    %v5887 = vmul.f32 %v5807, %v5848
    %v5888 = vmul.f32 %v5808, %v5850
    %v5889 = vmul.f32 %v5809, %v5852
    %v5890 = vmul.f32 %v5810, %v5854
    %v5891 = vmul.f32 %v5811, %v5856
    %v5892 = vmul.f32 %v5812, %v5858
    %v5893 = vmul.f32 %v5813, %v5860
    %v5894 = vmul.f32 %v5814, %v5862
    %v5895 = vmul.f32 %v5576, %v5204
    %v5896 = vmul.f32 %v5578, %v5205
    %v5897 = vmul.f32 %v5580, %v5206
    %v5898 = vmul.f32 %v5582, %v5207
    %v5899 = vmul.f32 %v5584, %v5208
    %v5900 = vmul.f32 %v5586, %v5209
    %v5901 = vmul.f32 %v5588, %v5210
    %v5902 = vmul.f32 %v5590, %v5211
    %v5903 = vmul.f32 %v5592, %v5212
    %v5904 = vmul.f32 %v5594, %v5213
    %v5905 = vmul.f32 %v5596, %v5214
    %v5906 = vmul.f32 %v5598, %v5215
    %v5907 = vmul.f32 %v5600, %v5216
    %v5908 = vmul.f32 %v5602, %v5217
    %v5909 = vmul.f32 %v5604, %v5218
    %v5910 = vmul.f32 %v5606, %v5219
    %v5911 = vadd.f32 %v5879, %v5895
    %v5912 = vadd.f32 %v5880, %v5896
    %v5913 = vadd.f32 %v5881, %v5897
    %v5914 = vadd.f32 %v5882, %v5898
    %v5915 = vadd.f32 %v5883, %v5899
    %v5916 = vadd.f32 %v5884, %v5900
    %v5917 = vadd.f32 %v5885, %v5901
    %v5918 = vadd.f32 %v5886, %v5902
    %v5919 = vadd.f32 %v5887, %v5903
    %v5920 = vadd.f32 %v5888, %v5904
    %v5921 = vadd.f32 %v5889, %v5905
    %v5922 = vadd.f32 %v5890, %v5906
    %v5923 = vadd.f32 %v5891, %v5907
    %v5924 = vadd.f32 %v5892, %v5908
    %v5925 = vadd.f32 %v5893, %v5909
    %v5926 = vadd.f32 %v5894, %v5910
    %5943 = vrot.lane.b32.xlu0 %v5911, 96
    %v5944 = vpop.permute.xlu0 %5943
    %5945 = vrot.lane.b32.xlu0 %v5912, 96
    %v5946 = vpop.permute.xlu0 %5945
    %5947 = vrot.lane.b32.xlu0 %v5913, 96
    %v5948 = vpop.permute.xlu0 %5947
    %5949 = vrot.lane.b32.xlu0 %v5914, 96
    %v5950 = vpop.permute.xlu0 %5949
    %5951 = vrot.lane.b32.xlu0 %v5915, 96
    %v5952 = vpop.permute.xlu0 %5951
    %5953 = vrot.lane.b32.xlu0 %v5916, 96
    %v5954 = vpop.permute.xlu0 %5953
    %5955 = vrot.lane.b32.xlu0 %v5917, 96
    %v5956 = vpop.permute.xlu0 %5955
    %5957 = vrot.lane.b32.xlu0 %v5918, 96
    %v5958 = vpop.permute.xlu0 %5957
    %5959 = vrot.lane.b32.xlu0 %v5919, 96
    %v5960 = vpop.permute.xlu0 %5959
    %5961 = vrot.lane.b32.xlu0 %v5920, 96
    %v5962 = vpop.permute.xlu0 %5961
    %5963 = vrot.lane.b32.xlu0 %v5921, 96
    %v5964 = vpop.permute.xlu0 %5963
    %5965 = vrot.lane.b32.xlu0 %v5922, 96
    %v5966 = vpop.permute.xlu0 %5965
    %5967 = vrot.lane.b32.xlu0 %v5923, 96
    %v5968 = vpop.permute.xlu0 %5967
    %5969 = vrot.lane.b32.xlu0 %v5924, 96
    %v5970 = vpop.permute.xlu0 %5969
    %5971 = vrot.lane.b32.xlu0 %v5925, 96
    %v5972 = vpop.permute.xlu0 %5971
    %5973 = vrot.lane.b32.xlu0 %v5926, 96
    %v5974 = vpop.permute.xlu0 %5973
    %s5991 = scalar_lea.vmem [#allocation3], 768
    %5992 = vst.msk [vmem:[%s5991] sm:$0xff] %vm1745, %v5944
    %5993 = vst.msk [vmem:[%s5991 + $0x8] sm:$0xff] %vm1745, %v5946
    %5994 = vst.msk [vmem:[%s5991 + $0x10] sm:$0xff] %vm1745, %v5948
    %5995 = vst.msk [vmem:[%s5991 + $0x18] sm:$0xff] %vm1745, %v5950
    %5996 = vst.msk [vmem:[%s5991 + $0x20] sm:$0xff] %vm1745, %v5952
    %5997 = vst.msk [vmem:[%s5991 + $0x28] sm:$0xff] %vm1745, %v5954
    %5998 = vst.msk [vmem:[%s5991 + $0x30] sm:$0xff] %vm1745, %v5956
    %5999 = vst.msk [vmem:[%s5991 + $0x38] sm:$0xff] %vm1745, %v5958
    %6000 = vst.msk [vmem:[%s5991 + $0x40] sm:$0xff] %vm1745, %v5960
    %6001 = vst.msk [vmem:[%s5991 + $0x48] sm:$0xff] %vm1745, %v5962
    %6002 = vst.msk [vmem:[%s5991 + $0x50] sm:$0xff] %vm1745, %v5964
    %6003 = vst.msk [vmem:[%s5991 + $0x58] sm:$0xff] %vm1745, %v5966
    %6004 = vst.msk [vmem:[%s5991 + $0x60] sm:$0xff] %vm1745, %v5968
    %6005 = vst.msk [vmem:[%s5991 + $0x68] sm:$0xff] %vm1745, %v5970
    %6006 = vst.msk [vmem:[%s5991 + $0x70] sm:$0xff] %vm1745, %v5972
    %6007 = vst.msk [vmem:[%s5991 + $0x78] sm:$0xff] %vm1745, %v5974
    %v6008 = vsel %vm1745, %v5944, 0
    %v6010 = vsel %vm1745, %v5946, 0
    %v6012 = vsel %vm1745, %v5948, 0
    %v6014 = vsel %vm1745, %v5950, 0
    %v6016 = vsel %vm1745, %v5952, 0
    %v6018 = vsel %vm1745, %v5954, 0
    %v6020 = vsel %vm1745, %v5956, 0
    %v6022 = vsel %vm1745, %v5958, 0
    %v6024 = vsel %vm1745, %v5960, 0
    %v6026 = vsel %vm1745, %v5962, 0
    %v6028 = vsel %vm1745, %v5964, 0
    %v6030 = vsel %vm1745, %v5966, 0
    %v6032 = vsel %vm1745, %v5968, 0
    %v6034 = vsel %vm1745, %v5970, 0
    %v6036 = vsel %vm1745, %v5972, 0
    %v6038 = vsel %vm1745, %v5974, 0
    %6040 = vmatprep.subr.mxu0 0.0
    %6041 = vmatpush1.msra.mxu0 %v1353
    %6042 = vmatprep.subr.mxu0 0.0
    %6043 = vmatpush1.msra.mxu0 %v1354
    %6044 = vmatprep.subr.mxu0 0.0
    %6045 = vmatpush1.msra.mxu0 %v1355
    %6046 = vmatprep.subr.mxu0 0.0
    %6047 = vmatpush1.msra.mxu0 %v1356
    %6048 = vmatprep.subr.mxu0 0.0
    %6049 = vmatpush1.msra.mxu0 0.0
    %6050 = vmatprep.subr.mxu0 0.0
    %6051 = vmatpush1.msra.mxu0 0.0
    %6052 = vmatprep.subr.mxu0 0.0
    %6053 = vmatpush1.msra.mxu0 0.0
    %6054 = vmatprep.subr.mxu0 0.0
    %6055 = vmatpush1.msra.mxu0 0.0
    %6056 = vmatprep.subr.mxu0 0.0
    %6057 = vmatpush1.msra.mxu0 0.0
    %6058 = vmatprep.subr.mxu0 0.0
    %6059 = vmatpush1.msra.mxu0 0.0
    %6060 = vmatprep.subr.mxu0 0.0
    %6061 = vmatpush1.msra.mxu0 0.0
    %6062 = vmatprep.subr.mxu0 0.0
    %6063 = vmatpush1.msra.mxu0 0.0
    %6064 = vmatprep.subr.mxu0 0.0
    %6065 = vmatpush1.msra.mxu0 0.0
    %6066 = vmatprep.subr.mxu0 0.0
    %6067 = vmatpush1.msra.mxu0 0.0
    %6068 = vmatprep.subr.mxu0 0.0
    %6069 = vmatpush1.msra.mxu0 0.0
    %6070 = vmatprep.subr.mxu0 0.0
    %6071 = vmatpush1.msra.mxu0 0.0
    %6072 = vmatprep.subr.mxu0 0.0
    %6073 = vmatpush1.msra.mxu0 0.0
    %6074 = vmatprep.subr.mxu0 0.0
    %6075 = vmatpush1.msra.mxu0 0.0
    %6076 = vmatprep.subr.mxu0 0.0
    %6077 = vmatpush1.msra.mxu0 0.0
    %6078 = vmatprep.subr.mxu0 0.0
    %6079 = vmatpush1.msra.mxu0 0.0
    %6080 = vmatprep.subr.mxu0 0.0
    %6081 = vmatpush1.msra.mxu0 0.0
    %6082 = vmatprep.subr.mxu0 0.0
    %6083 = vmatpush1.msra.mxu0 0.0
    %6084 = vmatprep.subr.mxu0 0.0
    %6085 = vmatpush1.msra.mxu0 0.0
    %6086 = vmatprep.subr.mxu0 0.0
    %6087 = vmatpush1.msra.mxu0 0.0
    %6088 = vmatprep.subr.mxu0 0.0
    %6089 = vmatpush1.msra.mxu0 0.0
    %6090 = vmatprep.subr.mxu0 0.0
    %6091 = vmatpush1.msra.mxu0 0.0
    %6092 = vmatprep.subr.mxu0 0.0
    %6093 = vmatpush1.msra.mxu0 0.0
    %6094 = vmatprep.subr.mxu0 0.0
    %6095 = vmatpush1.msra.mxu0 0.0
    %6096 = vmatprep.subr.mxu0 0.0
    %6097 = vmatpush1.msra.mxu0 0.0
    %6098 = vmatprep.subr.mxu0 0.0
    %6099 = vmatpush1.msra.mxu0 0.0
    %6100 = vmatprep.subr.mxu0 0.0
    %6101 = vmatpush1.msra.mxu0 0.0
    %6102 = vmatprep.subr.mxu0 0.0
    %6103 = vmatpush1.msra.mxu0 0.0
    %6104 = vmatprep.mubr.f32.mxu0 0.0
    %6105 = vmatmul.mubr.f32.gmra.mrb[0].mxu0 %v6008
    %v6106 = vpop.f32.mrb[0].mxu0
    %v6107 = vadd.f32 0.0, %v6106
    %v6108 = vpop.f32.mrb[0].mxu0
    %6109 = vmatprep.mubr.f32.mxu0 0.0
    %6110 = vmatmul.mubr.f32.gmra.mrb[0].mxu0 %v6010
    %v6111 = vpop.f32.mrb[0].mxu0
    %v6112 = vadd.f32 0.0, %v6111
    %v6113 = vpop.f32.mrb[0].mxu0
    %6114 = vmatprep.mubr.f32.mxu0 0.0
    %6115 = vmatmul.mubr.f32.gmra.mrb[0].mxu0 %v6012
    %v6116 = vpop.f32.mrb[0].mxu0
    %v6117 = vadd.f32 0.0, %v6116
    %v6118 = vpop.f32.mrb[0].mxu0
    %6119 = vmatprep.mubr.f32.mxu0 0.0
    %6120 = vmatmul.mubr.f32.gmra.mrb[0].mxu0 %v6014
    %v6121 = vpop.f32.mrb[0].mxu0
    %v6122 = vadd.f32 0.0, %v6121
    %v6123 = vpop.f32.mrb[0].mxu0
    %6124 = vmatprep.mubr.f32.mxu0 0.0
    %6125 = vmatmul.mubr.f32.gmra.mrb[0].mxu0 %v6016
    %v6126 = vpop.f32.mrb[0].mxu0
    %v6127 = vadd.f32 0.0, %v6126
    %v6128 = vpop.f32.mrb[0].mxu0
    %6129 = vmatprep.mubr.f32.mxu0 0.0
    %6130 = vmatmul.mubr.f32.gmra.mrb[0].mxu0 %v6018
    %v6131 = vpop.f32.mrb[0].mxu0
    %v6132 = vadd.f32 0.0, %v6131
    %v6133 = vpop.f32.mrb[0].mxu0
    %6134 = vmatprep.mubr.f32.mxu0 0.0
    %6135 = vmatmul.mubr.f32.gmra.mrb[0].mxu0 %v6020
    %v6136 = vpop.f32.mrb[0].mxu0
    %v6137 = vadd.f32 0.0, %v6136
    %v6138 = vpop.f32.mrb[0].mxu0
    %6139 = vmatprep.mubr.f32.mxu0 0.0
    %6140 = vmatmul.mubr.f32.gmra.mrb[0].mxu0 %v6022
    %v6141 = vpop.f32.mrb[0].mxu0
    %v6142 = vadd.f32 0.0, %v6141
    %v6143 = vpop.f32.mrb[0].mxu0
    %6144 = vmatprep.mubr.f32.mxu0 0.0
    %6145 = vmatmul.mubr.f32.gmra.mrb[0].mxu0 %v6024
    %v6146 = vpop.f32.mrb[0].mxu0
    %v6147 = vadd.f32 0.0, %v6146
    %v6148 = vpop.f32.mrb[0].mxu0
    %6149 = vmatprep.mubr.f32.mxu0 0.0
    %6150 = vmatmul.mubr.f32.gmra.mrb[0].mxu0 %v6026
    %v6151 = vpop.f32.mrb[0].mxu0
    %v6152 = vadd.f32 0.0, %v6151
    %v6153 = vpop.f32.mrb[0].mxu0
    %6154 = vmatprep.mubr.f32.mxu0 0.0
    %6155 = vmatmul.mubr.f32.gmra.mrb[0].mxu0 %v6028
    %v6156 = vpop.f32.mrb[0].mxu0
    %v6157 = vadd.f32 0.0, %v6156
    %v6158 = vpop.f32.mrb[0].mxu0
    %6159 = vmatprep.mubr.f32.mxu0 0.0
    %6160 = vmatmul.mubr.f32.gmra.mrb[0].mxu0 %v6030
    %v6161 = vpop.f32.mrb[0].mxu0
    %v6162 = vadd.f32 0.0, %v6161
    %v6163 = vpop.f32.mrb[0].mxu0
    %6164 = vmatprep.mubr.f32.mxu0 0.0
    %6165 = vmatmul.mubr.f32.gmra.mrb[0].mxu0 %v6032
    %v6166 = vpop.f32.mrb[0].mxu0
    %v6167 = vadd.f32 0.0, %v6166
    %v6168 = vpop.f32.mrb[0].mxu0
    %6169 = vmatprep.mubr.f32.mxu0 0.0
    %6170 = vmatmul.mubr.f32.gmra.mrb[0].mxu0 %v6034
    %v6171 = vpop.f32.mrb[0].mxu0
    %v6172 = vadd.f32 0.0, %v6171
    %v6173 = vpop.f32.mrb[0].mxu0
    %6174 = vmatprep.mubr.f32.mxu0 0.0
    %6175 = vmatmul.mubr.f32.gmra.mrb[0].mxu0 %v6036
    %v6176 = vpop.f32.mrb[0].mxu0
    %v6177 = vadd.f32 0.0, %v6176
    %v6178 = vpop.f32.mrb[0].mxu0
    %6179 = vmatprep.mubr.f32.mxu0 0.0
    %6180 = vmatmul.mubr.f32.gmra.mrb[0].mxu0 %v6038
    %v6181 = vpop.f32.mrb[0].mxu0
    %v6182 = vadd.f32 0.0, %v6181
    %v6183 = vpop.f32.mrb[0].mxu0
    %6184 = vdwg.mxu0
    %s6185 = scalar_lea.vmem [#allocation2], 896
    %v6186 = vld [vmem:[%s6185] sm:$0xff]
    %v6187 = vld [vmem:[%s6185 + $0x8] sm:$0xff]
    %v6188 = vld [vmem:[%s6185 + $0x10] sm:$0xff]
    %v6189 = vld [vmem:[%s6185 + $0x18] sm:$0xff]
    %v6190 = vld [vmem:[%s6185 + $0x20] sm:$0xff]
    %v6191 = vld [vmem:[%s6185 + $0x28] sm:$0xff]
    %v6192 = vld [vmem:[%s6185 + $0x30] sm:$0xff]
    %v6193 = vld [vmem:[%s6185 + $0x38] sm:$0xff]
    %v6194 = vld [vmem:[%s6185 + $0x40] sm:$0xff]
    %v6195 = vld [vmem:[%s6185 + $0x48] sm:$0xff]
    %v6196 = vld [vmem:[%s6185 + $0x50] sm:$0xff]
    %v6197 = vld [vmem:[%s6185 + $0x58] sm:$0xff]
    %v6198 = vld [vmem:[%s6185 + $0x60] sm:$0xff]
    %v6199 = vld [vmem:[%s6185 + $0x68] sm:$0xff]
    %v6200 = vld [vmem:[%s6185 + $0x70] sm:$0xff]
    %v6201 = vld [vmem:[%s6185 + $0x78] sm:$0xff]
    %v6202 = vadd.f32 %v6186, %v6107
    %v6203 = vadd.f32 %v6187, %v6112
    %v6204 = vadd.f32 %v6188, %v6117
    %v6205 = vadd.f32 %v6189, %v6122
    %v6206 = vadd.f32 %v6190, %v6127
    %v6207 = vadd.f32 %v6191, %v6132
    %v6208 = vadd.f32 %v6192, %v6137
    %v6209 = vadd.f32 %v6193, %v6142
    %v6210 = vadd.f32 %v6194, %v6147
    %v6211 = vadd.f32 %v6195, %v6152
    %v6212 = vadd.f32 %v6196, %v6157
    %v6213 = vadd.f32 %v6197, %v6162
    %v6214 = vadd.f32 %v6198, %v6167
    %v6215 = vadd.f32 %v6199, %v6172
    %v6216 = vadd.f32 %v6200, %v6177
    %v6217 = vadd.f32 %v6201, %v6182
    %v6218 = vxor.u32 %v6202, 2147483648
    %v6219 = vxor.u32 %v6203, 2147483648
    %v6220 = vxor.u32 %v6204, 2147483648
    %v6221 = vxor.u32 %v6205, 2147483648
    %v6222 = vxor.u32 %v6206, 2147483648
    %v6223 = vxor.u32 %v6207, 2147483648
    %v6224 = vxor.u32 %v6208, 2147483648
    %v6225 = vxor.u32 %v6209, 2147483648
    %v6226 = vxor.u32 %v6210, 2147483648
    %v6227 = vxor.u32 %v6211, 2147483648
    %v6228 = vxor.u32 %v6212, 2147483648
    %v6229 = vxor.u32 %v6213, 2147483648
    %v6230 = vxor.u32 %v6214, 2147483648
    %v6231 = vxor.u32 %v6215, 2147483648
    %v6232 = vxor.u32 %v6216, 2147483648
    %v6233 = vxor.u32 %v6217, 2147483648
    %v6234 = vmul.f32 %v6218, 1.442695
    %v6235 = vpow.pop %v6234
    %v6236 = vmul.f32 %v6219, 1.442695
    %v6237 = vpow.pop %v6236
    %v6238 = vmul.f32 %v6220, 1.442695
    %v6239 = vpow.pop %v6238
    %v6240 = vmul.f32 %v6221, 1.442695
    %v6241 = vpow.pop %v6240
    %v6242 = vmul.f32 %v6222, 1.442695
    %v6243 = vpow.pop %v6242
    %v6244 = vmul.f32 %v6223, 1.442695
    %v6245 = vpow.pop %v6244
    %v6246 = vmul.f32 %v6224, 1.442695
    %v6247 = vpow.pop %v6246
    %v6248 = vmul.f32 %v6225, 1.442695
    %v6249 = vpow.pop %v6248
    %v6250 = vmul.f32 %v6226, 1.442695
    %v6251 = vpow.pop %v6250
    %v6252 = vmul.f32 %v6227, 1.442695
    %v6253 = vpow.pop %v6252
    %v6254 = vmul.f32 %v6228, 1.442695
    %v6255 = vpow.pop %v6254
    %v6256 = vmul.f32 %v6229, 1.442695
    %v6257 = vpow.pop %v6256
    %v6258 = vmul.f32 %v6230, 1.442695
    %v6259 = vpow.pop %v6258
    %v6260 = vmul.f32 %v6231, 1.442695
    %v6261 = vpow.pop %v6260
    %v6262 = vmul.f32 %v6232, 1.442695
    %v6263 = vpow.pop %v6262
    %v6264 = vmul.f32 %v6233, 1.442695
    %v6265 = vpow.pop %v6264
    %v6266 = vadd.f32 %v6235, 1.0
    %v6267 = vadd.f32 %v6237, 1.0
    %v6268 = vadd.f32 %v6239, 1.0
    %v6269 = vadd.f32 %v6241, 1.0
    %v6270 = vadd.f32 %v6243, 1.0
    %v6271 = vadd.f32 %v6245, 1.0
    %v6272 = vadd.f32 %v6247, 1.0
    %v6273 = vadd.f32 %v6249, 1.0
    %v6274 = vadd.f32 %v6251, 1.0
    %v6275 = vadd.f32 %v6253, 1.0
    %v6276 = vadd.f32 %v6255, 1.0
    %v6277 = vadd.f32 %v6257, 1.0
    %v6278 = vadd.f32 %v6259, 1.0
    %v6279 = vadd.f32 %v6261, 1.0
    %v6280 = vadd.f32 %v6263, 1.0
    %v6281 = vadd.f32 %v6265, 1.0
    %v6282 = vrcp.pop %v6266
    %v6283 = vmul.f32 1.0, %v6282
    %v6284 = vrcp.pop %v6267
    %v6285 = vmul.f32 1.0, %v6284
    %v6286 = vrcp.pop %v6268
    %v6287 = vmul.f32 1.0, %v6286
    %v6288 = vrcp.pop %v6269
    %v6289 = vmul.f32 1.0, %v6288
    %v6290 = vrcp.pop %v6270
    %v6291 = vmul.f32 1.0, %v6290
    %v6292 = vrcp.pop %v6271
    %v6293 = vmul.f32 1.0, %v6292
    %v6294 = vrcp.pop %v6272
    %v6295 = vmul.f32 1.0, %v6294
    %v6296 = vrcp.pop %v6273
    %v6297 = vmul.f32 1.0, %v6296
    %v6298 = vrcp.pop %v6274
    %v6299 = vmul.f32 1.0, %v6298
    %v6300 = vrcp.pop %v6275
    %v6301 = vmul.f32 1.0, %v6300
    %v6302 = vrcp.pop %v6276
    %v6303 = vmul.f32 1.0, %v6302
    %v6304 = vrcp.pop %v6277
    %v6305 = vmul.f32 1.0, %v6304
    %v6306 = vrcp.pop %v6278
    %v6307 = vmul.f32 1.0, %v6306
    %v6308 = vrcp.pop %v6279
    %v6309 = vmul.f32 1.0, %v6308
    %v6310 = vrcp.pop %v6280
    %v6311 = vmul.f32 1.0, %v6310
    %v6312 = vrcp.pop %v6281
    %v6313 = vmul.f32 1.0, %v6312
    %v6314 = vadd.f32 %v6107, %v2070
    %v6315 = vadd.f32 %v6112, %v2070
    %v6316 = vadd.f32 %v6117, %v2070
    %v6317 = vadd.f32 %v6122, %v2070
    %v6318 = vadd.f32 %v6127, %v2070
    %v6319 = vadd.f32 %v6132, %v2070
    %v6320 = vadd.f32 %v6137, %v2070
    %v6321 = vadd.f32 %v6142, %v2070
    %v6322 = vadd.f32 %v6147, %v2070
    %v6323 = vadd.f32 %v6152, %v2070
    %v6324 = vadd.f32 %v6157, %v2070
    %v6325 = vadd.f32 %v6162, %v2070
    %v6326 = vadd.f32 %v6167, %v2070
    %v6327 = vadd.f32 %v6172, %v2070
    %v6328 = vadd.f32 %v6177, %v2070
    %v6329 = vadd.f32 %v6182, %v2070
    %6346 = vrot.lane.b32.xlu0 %v6314, 64
    %v6347 = vpop.permute.xlu0 %6346
    %6348 = vrot.lane.b32.xlu0 %v6315, 64
    %v6349 = vpop.permute.xlu0 %6348
    %6350 = vrot.lane.b32.xlu0 %v6316, 64
    %v6351 = vpop.permute.xlu0 %6350
    %6352 = vrot.lane.b32.xlu0 %v6317, 64
    %v6353 = vpop.permute.xlu0 %6352
    %6354 = vrot.lane.b32.xlu0 %v6318, 64
    %v6355 = vpop.permute.xlu0 %6354
    %6356 = vrot.lane.b32.xlu0 %v6319, 64
    %v6357 = vpop.permute.xlu0 %6356
    %6358 = vrot.lane.b32.xlu0 %v6320, 64
    %v6359 = vpop.permute.xlu0 %6358
    %6360 = vrot.lane.b32.xlu0 %v6321, 64
    %v6361 = vpop.permute.xlu0 %6360
    %6362 = vrot.lane.b32.xlu0 %v6322, 64
    %v6363 = vpop.permute.xlu0 %6362
    %6364 = vrot.lane.b32.xlu0 %v6323, 64
    %v6365 = vpop.permute.xlu0 %6364
    %6366 = vrot.lane.b32.xlu0 %v6324, 64
    %v6367 = vpop.permute.xlu0 %6366
    %6368 = vrot.lane.b32.xlu0 %v6325, 64
    %v6369 = vpop.permute.xlu0 %6368
    %6370 = vrot.lane.b32.xlu0 %v6326, 64
    %v6371 = vpop.permute.xlu0 %6370
    %6372 = vrot.lane.b32.xlu0 %v6327, 64
    %v6373 = vpop.permute.xlu0 %6372
    %6374 = vrot.lane.b32.xlu0 %v6328, 64
    %v6375 = vpop.permute.xlu0 %6374
    %6376 = vrot.lane.b32.xlu0 %v6329, 64
    %v6377 = vpop.permute.xlu0 %6376
    %v6394 = vmul.f32 %v6283, %v6347
    %v6395 = vmul.f32 %v6285, %v6349
    %v6396 = vmul.f32 %v6287, %v6351
    %v6397 = vmul.f32 %v6289, %v6353
    %v6398 = vmul.f32 %v6291, %v6355
    %v6399 = vmul.f32 %v6293, %v6357
    %v6400 = vmul.f32 %v6295, %v6359
    %v6401 = vmul.f32 %v6297, %v6361
    %v6402 = vmul.f32 %v6299, %v6363
    %v6403 = vmul.f32 %v6301, %v6365
    %v6404 = vmul.f32 %v6303, %v6367
    %v6405 = vmul.f32 %v6305, %v6369
    %v6406 = vmul.f32 %v6307, %v6371
    %v6407 = vmul.f32 %v6309, %v6373
    %v6408 = vmul.f32 %v6311, %v6375
    %v6409 = vmul.f32 %v6313, %v6377
    %6426 = vrot.lane.b32.xlu0 %v6394, 64
    %v6427 = vpop.permute.xlu0 %6426
    %6428 = vrot.lane.b32.xlu0 %v6395, 64
    %v6429 = vpop.permute.xlu0 %6428
    %6430 = vrot.lane.b32.xlu0 %v6396, 64
    %v6431 = vpop.permute.xlu0 %6430
    %6432 = vrot.lane.b32.xlu0 %v6397, 64
    %v6433 = vpop.permute.xlu0 %6432
    %6434 = vrot.lane.b32.xlu0 %v6398, 64
    %v6435 = vpop.permute.xlu0 %6434
    %6436 = vrot.lane.b32.xlu0 %v6399, 64
    %v6437 = vpop.permute.xlu0 %6436
    %6438 = vrot.lane.b32.xlu0 %v6400, 64
    %v6439 = vpop.permute.xlu0 %6438
    %6440 = vrot.lane.b32.xlu0 %v6401, 64
    %v6441 = vpop.permute.xlu0 %6440
    %6442 = vrot.lane.b32.xlu0 %v6402, 64
    %v6443 = vpop.permute.xlu0 %6442
    %6444 = vrot.lane.b32.xlu0 %v6403, 64
    %v6445 = vpop.permute.xlu0 %6444
    %6446 = vrot.lane.b32.xlu0 %v6404, 64
    %v6447 = vpop.permute.xlu0 %6446
    %6448 = vrot.lane.b32.xlu0 %v6405, 64
    %v6449 = vpop.permute.xlu0 %6448
    %6450 = vrot.lane.b32.xlu0 %v6406, 64
    %v6451 = vpop.permute.xlu0 %6450
    %6452 = vrot.lane.b32.xlu0 %v6407, 64
    %v6453 = vpop.permute.xlu0 %6452
    %6454 = vrot.lane.b32.xlu0 %v6408, 64
    %v6455 = vpop.permute.xlu0 %6454
    %6456 = vrot.lane.b32.xlu0 %v6409, 64
    %v6457 = vpop.permute.xlu0 %6456
    %v6474 = vadd.f32 %v6186, %v6427
    %v6475 = vadd.f32 %v6187, %v6429
    %v6476 = vadd.f32 %v6188, %v6431
    %v6477 = vadd.f32 %v6189, %v6433
    %v6478 = vadd.f32 %v6190, %v6435
    %v6479 = vadd.f32 %v6191, %v6437
    %v6480 = vadd.f32 %v6192, %v6439
    %v6481 = vadd.f32 %v6193, %v6441
    %v6482 = vadd.f32 %v6194, %v6443
    %v6483 = vadd.f32 %v6195, %v6445
    %v6484 = vadd.f32 %v6196, %v6447
    %v6485 = vadd.f32 %v6197, %v6449
    %v6486 = vadd.f32 %v6198, %v6451
    %v6487 = vadd.f32 %v6199, %v6453
    %v6488 = vadd.f32 %v6200, %v6455
    %v6489 = vadd.f32 %v6201, %v6457
    %v6490 = vtanh.pop %v6474
    %v6491 = vtanh.pop %v6475
    %v6492 = vtanh.pop %v6476
    %v6493 = vtanh.pop %v6477
    %v6494 = vtanh.pop %v6478
    %v6495 = vtanh.pop %v6479
    %v6496 = vtanh.pop %v6480
    %v6497 = vtanh.pop %v6481
    %v6498 = vtanh.pop %v6482
    %v6499 = vtanh.pop %v6483
    %v6500 = vtanh.pop %v6484
    %v6501 = vtanh.pop %v6485
    %v6502 = vtanh.pop %v6486
    %v6503 = vtanh.pop %v6487
    %v6504 = vtanh.pop %v6488
    %v6505 = vtanh.pop %v6489
    %v6506 = vsub.f32 1.0, %v6283
    %v6507 = vsub.f32 1.0, %v6285
    %v6508 = vsub.f32 1.0, %v6287
    %v6509 = vsub.f32 1.0, %v6289
    %v6510 = vsub.f32 1.0, %v6291
    %v6511 = vsub.f32 1.0, %v6293
    %v6512 = vsub.f32 1.0, %v6295
    %v6513 = vsub.f32 1.0, %v6297
    %v6514 = vsub.f32 1.0, %v6299
    %v6515 = vsub.f32 1.0, %v6301
    %v6516 = vsub.f32 1.0, %v6303
    %v6517 = vsub.f32 1.0, %v6305
    %v6518 = vsub.f32 1.0, %v6307
    %v6519 = vsub.f32 1.0, %v6309
    %v6520 = vsub.f32 1.0, %v6311
    %v6521 = vsub.f32 1.0, %v6313
    %6538 = vrot.lane.b32.xlu0 %v6490, 96
    %v6539 = vpop.permute.xlu0 %6538
    %6540 = vrot.lane.b32.xlu0 %v6491, 96
    %v6541 = vpop.permute.xlu0 %6540
    %6542 = vrot.lane.b32.xlu0 %v6492, 96
    %v6543 = vpop.permute.xlu0 %6542
    %6544 = vrot.lane.b32.xlu0 %v6493, 96
    %v6545 = vpop.permute.xlu0 %6544
    %6546 = vrot.lane.b32.xlu0 %v6494, 96
    %v6547 = vpop.permute.xlu0 %6546
    %6548 = vrot.lane.b32.xlu0 %v6495, 96
    %v6549 = vpop.permute.xlu0 %6548
    %6550 = vrot.lane.b32.xlu0 %v6496, 96
    %v6551 = vpop.permute.xlu0 %6550
    %6552 = vrot.lane.b32.xlu0 %v6497, 96
    %v6553 = vpop.permute.xlu0 %6552
    %6554 = vrot.lane.b32.xlu0 %v6498, 96
    %v6555 = vpop.permute.xlu0 %6554
    %6556 = vrot.lane.b32.xlu0 %v6499, 96
    %v6557 = vpop.permute.xlu0 %6556
    %6558 = vrot.lane.b32.xlu0 %v6500, 96
    %v6559 = vpop.permute.xlu0 %6558
    %6560 = vrot.lane.b32.xlu0 %v6501, 96
    %v6561 = vpop.permute.xlu0 %6560
    %6562 = vrot.lane.b32.xlu0 %v6502, 96
    %v6563 = vpop.permute.xlu0 %6562
    %6564 = vrot.lane.b32.xlu0 %v6503, 96
    %v6565 = vpop.permute.xlu0 %6564
    %6566 = vrot.lane.b32.xlu0 %v6504, 96
    %v6567 = vpop.permute.xlu0 %6566
    %6568 = vrot.lane.b32.xlu0 %v6505, 96
    %v6569 = vpop.permute.xlu0 %6568
    %v6586 = vmul.f32 %v6506, %v6539
    %v6587 = vmul.f32 %v6507, %v6541
    %v6588 = vmul.f32 %v6508, %v6543
    %v6589 = vmul.f32 %v6509, %v6545
    %v6590 = vmul.f32 %v6510, %v6547
    %v6591 = vmul.f32 %v6511, %v6549
    %v6592 = vmul.f32 %v6512, %v6551
    %v6593 = vmul.f32 %v6513, %v6553
    %v6594 = vmul.f32 %v6514, %v6555
    %v6595 = vmul.f32 %v6515, %v6557
    %v6596 = vmul.f32 %v6516, %v6559
    %v6597 = vmul.f32 %v6517, %v6561
    %v6598 = vmul.f32 %v6518, %v6563
    %v6599 = vmul.f32 %v6519, %v6565
    %v6600 = vmul.f32 %v6520, %v6567
    %v6601 = vmul.f32 %v6521, %v6569
    %v6602 = vmul.f32 %v6283, %v5911
    %v6603 = vmul.f32 %v6285, %v5912
    %v6604 = vmul.f32 %v6287, %v5913
    %v6605 = vmul.f32 %v6289, %v5914
    %v6606 = vmul.f32 %v6291, %v5915
    %v6607 = vmul.f32 %v6293, %v5916
    %v6608 = vmul.f32 %v6295, %v5917
    %v6609 = vmul.f32 %v6297, %v5918
    %v6610 = vmul.f32 %v6299, %v5919
    %v6611 = vmul.f32 %v6301, %v5920
    %v6612 = vmul.f32 %v6303, %v5921
    %v6613 = vmul.f32 %v6305, %v5922
    %v6614 = vmul.f32 %v6307, %v5923
    %v6615 = vmul.f32 %v6309, %v5924
    %v6616 = vmul.f32 %v6311, %v5925
    %v6617 = vmul.f32 %v6313, %v5926
    %v6618 = vadd.f32 %v6586, %v6602
    %v6619 = vadd.f32 %v6587, %v6603
    %v6620 = vadd.f32 %v6588, %v6604
    %v6621 = vadd.f32 %v6589, %v6605
    %v6622 = vadd.f32 %v6590, %v6606
    %v6623 = vadd.f32 %v6591, %v6607
    %v6624 = vadd.f32 %v6592, %v6608
    %v6625 = vadd.f32 %v6593, %v6609
    %v6626 = vadd.f32 %v6594, %v6610
    %v6627 = vadd.f32 %v6595, %v6611
    %v6628 = vadd.f32 %v6596, %v6612
    %v6629 = vadd.f32 %v6597, %v6613
    %v6630 = vadd.f32 %v6598, %v6614
    %v6631 = vadd.f32 %v6599, %v6615
    %v6632 = vadd.f32 %v6600, %v6616
    %v6633 = vadd.f32 %v6601, %v6617
    %6650 = vrot.lane.b32.xlu0 %v6618, 96
    %v6651 = vpop.permute.xlu0 %6650
    %6652 = vrot.lane.b32.xlu0 %v6619, 96
    %v6653 = vpop.permute.xlu0 %6652
    %6654 = vrot.lane.b32.xlu0 %v6620, 96
    %v6655 = vpop.permute.xlu0 %6654
    %6656 = vrot.lane.b32.xlu0 %v6621, 96
    %v6657 = vpop.permute.xlu0 %6656
    %6658 = vrot.lane.b32.xlu0 %v6622, 96
    %v6659 = vpop.permute.xlu0 %6658
    %6660 = vrot.lane.b32.xlu0 %v6623, 96
    %v6661 = vpop.permute.xlu0 %6660
    %6662 = vrot.lane.b32.xlu0 %v6624, 96
    %v6663 = vpop.permute.xlu0 %6662
    %6664 = vrot.lane.b32.xlu0 %v6625, 96
    %v6665 = vpop.permute.xlu0 %6664
    %6666 = vrot.lane.b32.xlu0 %v6626, 96
    %v6667 = vpop.permute.xlu0 %6666
    %6668 = vrot.lane.b32.xlu0 %v6627, 96
    %v6669 = vpop.permute.xlu0 %6668
    %6670 = vrot.lane.b32.xlu0 %v6628, 96
    %v6671 = vpop.permute.xlu0 %6670
    %6672 = vrot.lane.b32.xlu0 %v6629, 96
    %v6673 = vpop.permute.xlu0 %6672
    %6674 = vrot.lane.b32.xlu0 %v6630, 96
    %v6675 = vpop.permute.xlu0 %6674
    %6676 = vrot.lane.b32.xlu0 %v6631, 96
    %v6677 = vpop.permute.xlu0 %6676
    %6678 = vrot.lane.b32.xlu0 %v6632, 96
    %v6679 = vpop.permute.xlu0 %6678
    %6680 = vrot.lane.b32.xlu0 %v6633, 96
    %v6681 = vpop.permute.xlu0 %6680
    %s6698 = scalar_lea.vmem [#allocation3], 896
    %6699 = vst.msk [vmem:[%s6698] sm:$0xff] %vm1745, %v6651
    %6700 = vst.msk [vmem:[%s6698 + $0x8] sm:$0xff] %vm1745, %v6653
    %6701 = vst.msk [vmem:[%s6698 + $0x10] sm:$0xff] %vm1745, %v6655
    %6702 = vst.msk [vmem:[%s6698 + $0x18] sm:$0xff] %vm1745, %v6657
    %6703 = vst.msk [vmem:[%s6698 + $0x20] sm:$0xff] %vm1745, %v6659
    %6704 = vst.msk [vmem:[%s6698 + $0x28] sm:$0xff] %vm1745, %v6661
    %6705 = vst.msk [vmem:[%s6698 + $0x30] sm:$0xff] %vm1745, %v6663
    %6706 = vst.msk [vmem:[%s6698 + $0x38] sm:$0xff] %vm1745, %v6665
    %6707 = vst.msk [vmem:[%s6698 + $0x40] sm:$0xff] %vm1745, %v6667
    %6708 = vst.msk [vmem:[%s6698 + $0x48] sm:$0xff] %vm1745, %v6669
    %6709 = vst.msk [vmem:[%s6698 + $0x50] sm:$0xff] %vm1745, %v6671
    %6710 = vst.msk [vmem:[%s6698 + $0x58] sm:$0xff] %vm1745, %v6673
    %6711 = vst.msk [vmem:[%s6698 + $0x60] sm:$0xff] %vm1745, %v6675
    %6712 = vst.msk [vmem:[%s6698 + $0x68] sm:$0xff] %vm1745, %v6677
    %6713 = vst.msk [vmem:[%s6698 + $0x70] sm:$0xff] %vm1745, %v6679
    %6714 = vst.msk [vmem:[%s6698 + $0x78] sm:$0xff] %vm1745, %v6681
    %v6715 = vld [vmem:[%s4] sm:$0xff]
    %v6716 = vld [vmem:[%s4 + $0x8] sm:$0xff]
    %v6717 = vld [vmem:[%s4 + $0x10] sm:$0xff]
    %v6718 = vld [vmem:[%s4 + $0x18] sm:$0xff]
    %v6719 = vpack.c.bf16 %v6619, %v6618
    %v6720 = vpack.c.bf16 %v6621, %v6620
    %v6721 = vpack.c.bf16 %v6623, %v6622
    %v6722 = vpack.c.bf16 %v6625, %v6624
    %v6723 = vpack.c.bf16 %v6627, %v6626
    %v6724 = vpack.c.bf16 %v6629, %v6628
    %v6725 = vpack.c.bf16 %v6631, %v6630
    %v6726 = vpack.c.bf16 %v6633, %v6632
    %6735 = vrot.lane.b32.xlu0 %v6719, 96
    %v6736 = vpop.permute.xlu0 %6735
    %6737 = vrot.lane.b32.xlu0 %v6720, 96
    %v6738 = vpop.permute.xlu0 %6737
    %6739 = vrot.lane.b32.xlu0 %v6721, 96
    %v6740 = vpop.permute.xlu0 %6739
    %6741 = vrot.lane.b32.xlu0 %v6722, 96
    %v6742 = vpop.permute.xlu0 %6741
    %6743 = vrot.lane.b32.xlu0 %v6723, 96
    %v6744 = vpop.permute.xlu0 %6743
    %6745 = vrot.lane.b32.xlu0 %v6724, 96
    %v6746 = vpop.permute.xlu0 %6745
    %6747 = vrot.lane.b32.xlu0 %v6725, 96
    %v6748 = vpop.permute.xlu0 %6747
    %6749 = vrot.lane.b32.xlu0 %v6726, 96
    %v6750 = vpop.permute.xlu0 %6749
    %v6755 = vunpack.c.l.b16 %v6715
    %v6756 = vunpack.c.l.b16 %v6716
    %v6757 = vunpack.c.l.b16 %v6717
    %v6758 = vunpack.c.l.b16 %v6718
    %v6759 = vpack.c.b16 %v6756, %v6755
    %v6760 = vpack.c.b16 %v6758, %v6757
    %v6764 = vsel %vm1745, %v6736, 0
    %v6767 = vsel %vm1745, %v6738, 0
    %v6770 = vsel %vm1745, %v6740, 0
    %v6773 = vsel %vm1745, %v6742, 0
    %v6776 = vsel %vm1745, %v6744, 0
    %v6779 = vsel %vm1745, %v6746, 0
    %v6782 = vsel %vm1745, %v6748, 0
    %v6785 = vsel %vm1745, %v6750, 0
    %6787 = vmatprep.subr.bf16.mxu0 0
    %6788 = vmatpush1.bf16.msra.mxu0 %v6759
    %6789 = vmatprep.subr.bf16.mxu0 0
    %6790 = vmatpush1.bf16.msra.mxu0 %v6760
    %6791 = vmatprep.subr.bf16.mxu0 0
    %6792 = vmatpush1.bf16.msra.mxu0 0
    %6793 = vmatprep.subr.bf16.mxu0 0
    %6794 = vmatpush1.bf16.msra.mxu0 0
    %6795 = vmatprep.subr.bf16.mxu0 0
    %6796 = vmatpush1.bf16.msra.mxu0 0
    %6797 = vmatprep.subr.bf16.mxu0 0
    %6798 = vmatpush1.bf16.msra.mxu0 0
    %6799 = vmatprep.subr.bf16.mxu0 0
    %6800 = vmatpush1.bf16.msra.mxu0 0
    %6801 = vmatprep.subr.bf16.mxu0 0
    %6802 = vmatpush1.bf16.msra.mxu0 0
    %6803 = vmatprep.subr.bf16.mxu0 0
    %6804 = vmatpush1.bf16.msra.mxu0 0
    %6805 = vmatprep.subr.bf16.mxu0 0
    %6806 = vmatpush1.bf16.msra.mxu0 0
    %6807 = vmatprep.subr.bf16.mxu0 0
    %6808 = vmatpush1.bf16.msra.mxu0 0
    %6809 = vmatprep.subr.bf16.mxu0 0
    %6810 = vmatpush1.bf16.msra.mxu0 0
    %6811 = vmatprep.subr.bf16.mxu0 0
    %6812 = vmatpush1.bf16.msra.mxu0 0
    %6813 = vmatprep.subr.bf16.mxu0 0
    %6814 = vmatpush1.bf16.msra.mxu0 0
    %6815 = vmatprep.subr.bf16.mxu0 0
    %6816 = vmatpush1.bf16.msra.mxu0 0
    %6817 = vmatprep.subr.bf16.mxu0 0
    %6818 = vmatpush1.bf16.msra.mxu0 0
    %6819 = vmatprep.mubr.bf16.mxu0 0
    %6820 = vmatmul.mubr.bf16.gmra.mrb[0].mxu0 %v6764
    %v6821 = vpop.f32.mrb[0].mxu0
    %v6822 = vadd.f32 0.0, %v6821
    %v6823 = vpop.f32.mrb[0].mxu0
    %v6824 = vpop.f32.mrb[0].mxu0
    %v6825 = vadd.f32 0.0, %v6824
    %v6826 = vpop.f32.mrb[0].mxu0
    %6827 = vmatprep.mubr.bf16.mxu0 0
    %6828 = vmatmul.mubr.bf16.gmra.mrb[0].mxu0 %v6767
    %v6829 = vpop.f32.mrb[0].mxu0
    %v6830 = vadd.f32 0.0, %v6829
    %v6831 = vpop.f32.mrb[0].mxu0
    %v6832 = vpop.f32.mrb[0].mxu0
    %v6833 = vadd.f32 0.0, %v6832
    %v6834 = vpop.f32.mrb[0].mxu0
    %6835 = vmatprep.mubr.bf16.mxu0 0
    %6836 = vmatmul.mubr.bf16.gmra.mrb[0].mxu0 %v6770
    %v6837 = vpop.f32.mrb[0].mxu0
    %v6838 = vadd.f32 0.0, %v6837
    %v6839 = vpop.f32.mrb[0].mxu0
    %v6840 = vpop.f32.mrb[0].mxu0
    %v6841 = vadd.f32 0.0, %v6840
    %v6842 = vpop.f32.mrb[0].mxu0
    %6843 = vmatprep.mubr.bf16.mxu0 0
    %6844 = vmatmul.mubr.bf16.gmra.mrb[0].mxu0 %v6773
    %v6845 = vpop.f32.mrb[0].mxu0
    %v6846 = vadd.f32 0.0, %v6845
    %v6847 = vpop.f32.mrb[0].mxu0
    %v6848 = vpop.f32.mrb[0].mxu0
    %v6849 = vadd.f32 0.0, %v6848
    %v6850 = vpop.f32.mrb[0].mxu0
    %6851 = vmatprep.mubr.bf16.mxu0 0
    %6852 = vmatmul.mubr.bf16.gmra.mrb[0].mxu0 %v6776
    %v6853 = vpop.f32.mrb[0].mxu0
    %v6854 = vadd.f32 0.0, %v6853
    %v6855 = vpop.f32.mrb[0].mxu0
    %v6856 = vpop.f32.mrb[0].mxu0
    %v6857 = vadd.f32 0.0, %v6856
    %v6858 = vpop.f32.mrb[0].mxu0
    %6859 = vmatprep.mubr.bf16.mxu0 0
    %6860 = vmatmul.mubr.bf16.gmra.mrb[0].mxu0 %v6779
    %v6861 = vpop.f32.mrb[0].mxu0
    %v6862 = vadd.f32 0.0, %v6861
    %v6863 = vpop.f32.mrb[0].mxu0
    %v6864 = vpop.f32.mrb[0].mxu0
    %v6865 = vadd.f32 0.0, %v6864
    %v6866 = vpop.f32.mrb[0].mxu0
    %6867 = vmatprep.mubr.bf16.mxu0 0
    %6868 = vmatmul.mubr.bf16.gmra.mrb[0].mxu0 %v6782
    %v6869 = vpop.f32.mrb[0].mxu0
    %v6870 = vadd.f32 0.0, %v6869
    %v6871 = vpop.f32.mrb[0].mxu0
    %v6872 = vpop.f32.mrb[0].mxu0
    %v6873 = vadd.f32 0.0, %v6872
    %v6874 = vpop.f32.mrb[0].mxu0
    %6875 = vmatprep.mubr.bf16.mxu0 0
    %6876 = vmatmul.mubr.bf16.gmra.mrb[0].mxu0 %v6785
    %v6877 = vpop.f32.mrb[0].mxu0
    %v6878 = vadd.f32 0.0, %v6877
    %v6879 = vpop.f32.mrb[0].mxu0
    %v6880 = vpop.f32.mrb[0].mxu0
    %v6881 = vadd.f32 0.0, %v6880
    %v6882 = vpop.f32.mrb[0].mxu0
    %6883 = vdwg.mxu0
    %v6884 = vld [vmem:[#allocation3] sm:$0xff]
    %v6885 = vld [vmem:[#allocation3 + $0x8] sm:$0xff]
    %v6886 = vld [vmem:[#allocation3 + $0x10] sm:$0xff]
    %v6887 = vld [vmem:[#allocation3 + $0x18] sm:$0xff]
    %v6888 = vld [vmem:[#allocation3 + $0x20] sm:$0xff]
    %v6889 = vld [vmem:[#allocation3 + $0x28] sm:$0xff]
    %v6890 = vld [vmem:[#allocation3 + $0x30] sm:$0xff]
    %v6891 = vld [vmem:[#allocation3 + $0x38] sm:$0xff]
    %v6892 = vld [vmem:[#allocation3 + $0x40] sm:$0xff]
    %v6893 = vld [vmem:[#allocation3 + $0x48] sm:$0xff]
    %v6894 = vld [vmem:[#allocation3 + $0x50] sm:$0xff]
    %v6895 = vld [vmem:[#allocation3 + $0x58] sm:$0xff]
    %v6896 = vld [vmem:[#allocation3 + $0x60] sm:$0xff]
    %v6897 = vld [vmem:[#allocation3 + $0x68] sm:$0xff]
    %v6898 = vld [vmem:[#allocation3 + $0x70] sm:$0xff]
    %v6899 = vld [vmem:[#allocation3 + $0x78] sm:$0xff]
    %v6900 = vld [vmem:[#allocation3 + $0x80] sm:$0xff]
    %v6901 = vld [vmem:[#allocation3 + $0x88] sm:$0xff]
    %v6902 = vld [vmem:[#allocation3 + $0x90] sm:$0xff]
    %v6903 = vld [vmem:[#allocation3 + $0x98] sm:$0xff]
    %v6904 = vld [vmem:[#allocation3 + $0xa0] sm:$0xff]
    %v6905 = vld [vmem:[#allocation3 + $0xa8] sm:$0xff]
    %v6906 = vld [vmem:[#allocation3 + $0xb0] sm:$0xff]
    %v6907 = vld [vmem:[#allocation3 + $0xb8] sm:$0xff]
    %v6908 = vld [vmem:[#allocation3 + $0xc0] sm:$0xff]
    %v6909 = vld [vmem:[#allocation3 + $0xc8] sm:$0xff]
    %v6910 = vld [vmem:[#allocation3 + $0xd0] sm:$0xff]
    %v6911 = vld [vmem:[#allocation3 + $0xd8] sm:$0xff]
    %v6912 = vld [vmem:[#allocation3 + $0xe0] sm:$0xff]
    %v6913 = vld [vmem:[#allocation3 + $0xe8] sm:$0xff]
    %v6914 = vld [vmem:[#allocation3 + $0xf0] sm:$0xff]
    %v6915 = vld [vmem:[#allocation3 + $0xf8] sm:$0xff]
    %v6916 = vld [vmem:[#allocation3 + $0x100] sm:$0xff]
    %v6917 = vld [vmem:[#allocation3 + $0x108] sm:$0xff]
    %v6918 = vld [vmem:[#allocation3 + $0x110] sm:$0xff]
    %v6919 = vld [vmem:[#allocation3 + $0x118] sm:$0xff]
    %v6920 = vld [vmem:[#allocation3 + $0x120] sm:$0xff]
    %v6921 = vld [vmem:[#allocation3 + $0x128] sm:$0xff]
    %v6922 = vld [vmem:[#allocation3 + $0x130] sm:$0xff]
    %v6923 = vld [vmem:[#allocation3 + $0x138] sm:$0xff]
    %v6924 = vld [vmem:[#allocation3 + $0x140] sm:$0xff]
    %v6925 = vld [vmem:[#allocation3 + $0x148] sm:$0xff]
    %v6926 = vld [vmem:[#allocation3 + $0x150] sm:$0xff]
    %v6927 = vld [vmem:[#allocation3 + $0x158] sm:$0xff]
    %v6928 = vld [vmem:[#allocation3 + $0x160] sm:$0xff]
    %v6929 = vld [vmem:[#allocation3 + $0x168] sm:$0xff]
    %v6930 = vld [vmem:[#allocation3 + $0x170] sm:$0xff]
    %v6931 = vld [vmem:[#allocation3 + $0x178] sm:$0xff]
    %v6932 = vld [vmem:[#allocation3 + $0x180] sm:$0xff]
    %v6933 = vld [vmem:[#allocation3 + $0x188] sm:$0xff]
    %v6934 = vld [vmem:[#allocation3 + $0x190] sm:$0xff]
    %v6935 = vld [vmem:[#allocation3 + $0x198] sm:$0xff]
    %v6936 = vld [vmem:[#allocation3 + $0x1a0] sm:$0xff]
    %v6937 = vld [vmem:[#allocation3 + $0x1a8] sm:$0xff]
    %v6938 = vld [vmem:[#allocation3 + $0x1b0] sm:$0xff]
    %v6939 = vld [vmem:[#allocation3 + $0x1b8] sm:$0xff]
    %v6940 = vld [vmem:[#allocation3 + $0x1c0] sm:$0xff]
    %v6941 = vld [vmem:[#allocation3 + $0x1c8] sm:$0xff]
    %v6942 = vld [vmem:[#allocation3 + $0x1d0] sm:$0xff]
    %v6943 = vld [vmem:[#allocation3 + $0x1d8] sm:$0xff]
    %v6944 = vld [vmem:[#allocation3 + $0x1e0] sm:$0xff]
    %v6945 = vld [vmem:[#allocation3 + $0x1e8] sm:$0xff]
    %v6946 = vld [vmem:[#allocation3 + $0x1f0] sm:$0xff]
    %v6947 = vld [vmem:[#allocation3 + $0x1f8] sm:$0xff]
    %v6948 = vld [vmem:[#allocation3 + $0x200] sm:$0xff]
    %v6949 = vld [vmem:[#allocation3 + $0x208] sm:$0xff]
    %v6950 = vld [vmem:[#allocation3 + $0x210] sm:$0xff]
    %v6951 = vld [vmem:[#allocation3 + $0x218] sm:$0xff]
    %v6952 = vld [vmem:[#allocation3 + $0x220] sm:$0xff]
    %v6953 = vld [vmem:[#allocation3 + $0x228] sm:$0xff]
    %v6954 = vld [vmem:[#allocation3 + $0x230] sm:$0xff]
    %v6955 = vld [vmem:[#allocation3 + $0x238] sm:$0xff]
    %v6956 = vld [vmem:[#allocation3 + $0x240] sm:$0xff]
    %v6957 = vld [vmem:[#allocation3 + $0x248] sm:$0xff]
    %v6958 = vld [vmem:[#allocation3 + $0x250] sm:$0xff]
    %v6959 = vld [vmem:[#allocation3 + $0x258] sm:$0xff]
    %v6960 = vld [vmem:[#allocation3 + $0x260] sm:$0xff]
    %v6961 = vld [vmem:[#allocation3 + $0x268] sm:$0xff]
    %v6962 = vld [vmem:[#allocation3 + $0x270] sm:$0xff]
    %v6963 = vld [vmem:[#allocation3 + $0x278] sm:$0xff]
    %v6964 = vld [vmem:[#allocation3 + $0x280] sm:$0xff]
    %v6965 = vld [vmem:[#allocation3 + $0x288] sm:$0xff]
    %v6966 = vld [vmem:[#allocation3 + $0x290] sm:$0xff]
    %v6967 = vld [vmem:[#allocation3 + $0x298] sm:$0xff]
    %v6968 = vld [vmem:[#allocation3 + $0x2a0] sm:$0xff]
    %v6969 = vld [vmem:[#allocation3 + $0x2a8] sm:$0xff]
    %v6970 = vld [vmem:[#allocation3 + $0x2b0] sm:$0xff]
    %v6971 = vld [vmem:[#allocation3 + $0x2b8] sm:$0xff]
    %v6972 = vld [vmem:[#allocation3 + $0x2c0] sm:$0xff]
    %v6973 = vld [vmem:[#allocation3 + $0x2c8] sm:$0xff]
    %v6974 = vld [vmem:[#allocation3 + $0x2d0] sm:$0xff]
    %v6975 = vld [vmem:[#allocation3 + $0x2d8] sm:$0xff]
    %v6976 = vld [vmem:[#allocation3 + $0x2e0] sm:$0xff]
    %v6977 = vld [vmem:[#allocation3 + $0x2e8] sm:$0xff]
    %v6978 = vld [vmem:[#allocation3 + $0x2f0] sm:$0xff]
    %v6979 = vld [vmem:[#allocation3 + $0x2f8] sm:$0xff]
    %v6980 = vld [vmem:[#allocation3 + $0x300] sm:$0xff]
    %v6981 = vld [vmem:[#allocation3 + $0x308] sm:$0xff]
    %v6982 = vld [vmem:[#allocation3 + $0x310] sm:$0xff]
    %v6983 = vld [vmem:[#allocation3 + $0x318] sm:$0xff]
    %v6984 = vld [vmem:[#allocation3 + $0x320] sm:$0xff]
    %v6985 = vld [vmem:[#allocation3 + $0x328] sm:$0xff]
    %v6986 = vld [vmem:[#allocation3 + $0x330] sm:$0xff]
    %v6987 = vld [vmem:[#allocation3 + $0x338] sm:$0xff]
    %v6988 = vld [vmem:[#allocation3 + $0x340] sm:$0xff]
    %v6989 = vld [vmem:[#allocation3 + $0x348] sm:$0xff]
    %v6990 = vld [vmem:[#allocation3 + $0x350] sm:$0xff]
    %v6991 = vld [vmem:[#allocation3 + $0x358] sm:$0xff]
    %v6992 = vld [vmem:[#allocation3 + $0x360] sm:$0xff]
    %v6993 = vld [vmem:[#allocation3 + $0x368] sm:$0xff]
    %v6994 = vld [vmem:[#allocation3 + $0x370] sm:$0xff]
    %v6995 = vld [vmem:[#allocation3 + $0x378] sm:$0xff]
    %v6996 = vld [vmem:[#allocation3 + $0x380] sm:$0xff]
    %v6997 = vld [vmem:[#allocation3 + $0x388] sm:$0xff]
    %v6998 = vld [vmem:[#allocation3 + $0x390] sm:$0xff]
    %v6999 = vld [vmem:[#allocation3 + $0x398] sm:$0xff]
    %v7000 = vld [vmem:[#allocation3 + $0x3a0] sm:$0xff]
    %v7001 = vld [vmem:[#allocation3 + $0x3a8] sm:$0xff]
    %v7002 = vld [vmem:[#allocation3 + $0x3b0] sm:$0xff]
    %v7003 = vld [vmem:[#allocation3 + $0x3b8] sm:$0xff]
    %v7004 = vld [vmem:[#allocation3 + $0x3c0] sm:$0xff]
    %v7005 = vld [vmem:[#allocation3 + $0x3c8] sm:$0xff]
    %v7006 = vld [vmem:[#allocation3 + $0x3d0] sm:$0xff]
    %v7007 = vld [vmem:[#allocation3 + $0x3d8] sm:$0xff]
    %v7008 = vld [vmem:[#allocation3 + $0x3e0] sm:$0xff]
    %v7009 = vld [vmem:[#allocation3 + $0x3e8] sm:$0xff]
    %v7010 = vld [vmem:[#allocation3 + $0x3f0] sm:$0xff]
    %v7011 = vld [vmem:[#allocation3 + $0x3f8] sm:$0xff]
    %v7012 = vmul.f32 %v6884, %v6822
    %v7013 = vmul.f32 %v6885, %v6825
    %v7014 = vmul.f32 %v6886, %v6830
    %v7015 = vmul.f32 %v6887, %v6833
    %v7016 = vmul.f32 %v6888, %v6838
    %v7017 = vmul.f32 %v6889, %v6841
    %v7018 = vmul.f32 %v6890, %v6846
    %v7019 = vmul.f32 %v6891, %v6849
    %v7020 = vmul.f32 %v6892, %v6854
    %v7021 = vmul.f32 %v6893, %v6857
    %v7022 = vmul.f32 %v6894, %v6862
    %v7023 = vmul.f32 %v6895, %v6865
    %v7024 = vmul.f32 %v6896, %v6870
    %v7025 = vmul.f32 %v6897, %v6873
    %v7026 = vmul.f32 %v6898, %v6878
    %v7027 = vmul.f32 %v6899, %v6881
    %v7028 = vmul.f32 %v6900, %v6822
    %v7029 = vmul.f32 %v6901, %v6825
    %v7030 = vmul.f32 %v6902, %v6830
    %v7031 = vmul.f32 %v6903, %v6833
    %v7032 = vmul.f32 %v6904, %v6838
    %v7033 = vmul.f32 %v6905, %v6841
    %v7034 = vmul.f32 %v6906, %v6846
    %v7035 = vmul.f32 %v6907, %v6849
    %v7036 = vmul.f32 %v6908, %v6854
    %v7037 = vmul.f32 %v6909, %v6857
    %v7038 = vmul.f32 %v6910, %v6862
    %v7039 = vmul.f32 %v6911, %v6865
    %v7040 = vmul.f32 %v6912, %v6870
    %v7041 = vmul.f32 %v6913, %v6873
    %v7042 = vmul.f32 %v6914, %v6878
    %v7043 = vmul.f32 %v6915, %v6881
    %v7044 = vmul.f32 %v6916, %v6822
    %v7045 = vmul.f32 %v6917, %v6825
    %v7046 = vmul.f32 %v6918, %v6830
    %v7047 = vmul.f32 %v6919, %v6833
    %v7048 = vmul.f32 %v6920, %v6838
    %v7049 = vmul.f32 %v6921, %v6841
    %v7050 = vmul.f32 %v6922, %v6846
    %v7051 = vmul.f32 %v6923, %v6849
    %v7052 = vmul.f32 %v6924, %v6854
    %v7053 = vmul.f32 %v6925, %v6857
    %v7054 = vmul.f32 %v6926, %v6862
    %v7055 = vmul.f32 %v6927, %v6865
    %v7056 = vmul.f32 %v6928, %v6870
    %v7057 = vmul.f32 %v6929, %v6873
    %v7058 = vmul.f32 %v6930, %v6878
    %v7059 = vmul.f32 %v6931, %v6881
    %v7060 = vmul.f32 %v6932, %v6822
    %v7061 = vmul.f32 %v6933, %v6825
    %v7062 = vmul.f32 %v6934, %v6830
    %v7063 = vmul.f32 %v6935, %v6833
    %v7064 = vmul.f32 %v6936, %v6838
    %v7065 = vmul.f32 %v6937, %v6841
    %v7066 = vmul.f32 %v6938, %v6846
    %v7067 = vmul.f32 %v6939, %v6849
    %v7068 = vmul.f32 %v6940, %v6854
    %v7069 = vmul.f32 %v6941, %v6857
    %v7070 = vmul.f32 %v6942, %v6862
    %v7071 = vmul.f32 %v6943, %v6865
    %v7072 = vmul.f32 %v6944, %v6870
    %v7073 = vmul.f32 %v6945, %v6873
    %v7074 = vmul.f32 %v6946, %v6878
    %v7075 = vmul.f32 %v6947, %v6881
    %v7076 = vmul.f32 %v6948, %v6822
    %v7077 = vmul.f32 %v6949, %v6825
    %v7078 = vmul.f32 %v6950, %v6830
    %v7079 = vmul.f32 %v6951, %v6833
    %v7080 = vmul.f32 %v6952, %v6838
    %v7081 = vmul.f32 %v6953, %v6841
    %v7082 = vmul.f32 %v6954, %v6846
    %v7083 = vmul.f32 %v6955, %v6849
    %v7084 = vmul.f32 %v6956, %v6854
    %v7085 = vmul.f32 %v6957, %v6857
    %v7086 = vmul.f32 %v6958, %v6862
    %v7087 = vmul.f32 %v6959, %v6865
    %v7088 = vmul.f32 %v6960, %v6870
    %v7089 = vmul.f32 %v6961, %v6873
    %v7090 = vmul.f32 %v6962, %v6878
    %v7091 = vmul.f32 %v6963, %v6881
    %v7092 = vmul.f32 %v6964, %v6822
    %v7093 = vmul.f32 %v6965, %v6825
    %v7094 = vmul.f32 %v6966, %v6830
    %v7095 = vmul.f32 %v6967, %v6833
    %v7096 = vmul.f32 %v6968, %v6838
    %v7097 = vmul.f32 %v6969, %v6841
    %v7098 = vmul.f32 %v6970, %v6846
    %v7099 = vmul.f32 %v6971, %v6849
    %v7100 = vmul.f32 %v6972, %v6854
    %v7101 = vmul.f32 %v6973, %v6857
    %v7102 = vmul.f32 %v6974, %v6862
    %v7103 = vmul.f32 %v6975, %v6865
    %v7104 = vmul.f32 %v6976, %v6870
    %v7105 = vmul.f32 %v6977, %v6873
    %v7106 = vmul.f32 %v6978, %v6878
    %v7107 = vmul.f32 %v6979, %v6881
    %v7108 = vmul.f32 %v6980, %v6822
    %v7109 = vmul.f32 %v6981, %v6825
    %v7110 = vmul.f32 %v6982, %v6830
    %v7111 = vmul.f32 %v6983, %v6833
    %v7112 = vmul.f32 %v6984, %v6838
    %v7113 = vmul.f32 %v6985, %v6841
    %v7114 = vmul.f32 %v6986, %v6846
    %v7115 = vmul.f32 %v6987, %v6849
    %v7116 = vmul.f32 %v6988, %v6854
    %v7117 = vmul.f32 %v6989, %v6857
    %v7118 = vmul.f32 %v6990, %v6862
    %v7119 = vmul.f32 %v6991, %v6865
    %v7120 = vmul.f32 %v6992, %v6870
    %v7121 = vmul.f32 %v6993, %v6873
    %v7122 = vmul.f32 %v6994, %v6878
    %v7123 = vmul.f32 %v6995, %v6881
    %v7124 = vmul.f32 %v6996, %v6822
    %v7125 = vmul.f32 %v6997, %v6825
    %v7126 = vmul.f32 %v6998, %v6830
    %v7127 = vmul.f32 %v6999, %v6833
    %v7128 = vmul.f32 %v7000, %v6838
    %v7129 = vmul.f32 %v7001, %v6841
    %v7130 = vmul.f32 %v7002, %v6846
    %v7131 = vmul.f32 %v7003, %v6849
    %v7132 = vmul.f32 %v7004, %v6854
    %v7133 = vmul.f32 %v7005, %v6857
    %v7134 = vmul.f32 %v7006, %v6862
    %v7135 = vmul.f32 %v7007, %v6865
    %v7136 = vmul.f32 %v7008, %v6870
    %v7137 = vmul.f32 %v7009, %v6873
    %v7138 = vmul.f32 %v7010, %v6878
    %v7139 = vmul.f32 %v7011, %v6881
    %v7140 = vsel %vm1745, %v7012, 0.0
    %7141 = vadd.xlane.f32.xlu0 %v7140
    %v7142 = vpop.xlane.xlu0 %7141
    %v7143 = vsel %vm1745, %v7013, 0.0
    %7144 = vadd.xlane.f32.xlu0 %v7143
    %v7145 = vpop.xlane.xlu0 %7144
    %v7146 = vsel %vm1745, %v7014, 0.0
    %7147 = vadd.xlane.f32.xlu0 %v7146
    %v7148 = vpop.xlane.xlu0 %7147
    %v7149 = vsel %vm1745, %v7015, 0.0
    %7150 = vadd.xlane.f32.xlu0 %v7149
    %v7151 = vpop.xlane.xlu0 %7150
    %v7152 = vsel %vm1745, %v7016, 0.0
    %7153 = vadd.xlane.f32.xlu0 %v7152
    %v7154 = vpop.xlane.xlu0 %7153
    %v7155 = vsel %vm1745, %v7017, 0.0
    %7156 = vadd.xlane.f32.xlu0 %v7155
    %v7157 = vpop.xlane.xlu0 %7156
    %v7158 = vsel %vm1745, %v7018, 0.0
    %7159 = vadd.xlane.f32.xlu0 %v7158
    %v7160 = vpop.xlane.xlu0 %7159
    %v7161 = vsel %vm1745, %v7019, 0.0
    %7162 = vadd.xlane.f32.xlu0 %v7161
    %v7163 = vpop.xlane.xlu0 %7162
    %v7164 = vsel %vm1745, %v7020, 0.0
    %7165 = vadd.xlane.f32.xlu0 %v7164
    %v7166 = vpop.xlane.xlu0 %7165
    %v7167 = vsel %vm1745, %v7021, 0.0
    %7168 = vadd.xlane.f32.xlu0 %v7167
    %v7169 = vpop.xlane.xlu0 %7168
    %v7170 = vsel %vm1745, %v7022, 0.0
    %7171 = vadd.xlane.f32.xlu0 %v7170
    %v7172 = vpop.xlane.xlu0 %7171
    %v7173 = vsel %vm1745, %v7023, 0.0
    %7174 = vadd.xlane.f32.xlu0 %v7173
    %v7175 = vpop.xlane.xlu0 %7174
    %v7176 = vsel %vm1745, %v7024, 0.0
    %7177 = vadd.xlane.f32.xlu0 %v7176
    %v7178 = vpop.xlane.xlu0 %7177
    %v7179 = vsel %vm1745, %v7025, 0.0
    %7180 = vadd.xlane.f32.xlu0 %v7179
    %v7181 = vpop.xlane.xlu0 %7180
    %v7182 = vsel %vm1745, %v7026, 0.0
    %7183 = vadd.xlane.f32.xlu0 %v7182
    %v7184 = vpop.xlane.xlu0 %7183
    %v7185 = vsel %vm1745, %v7027, 0.0
    %7186 = vadd.xlane.f32.xlu0 %v7185
    %v7187 = vpop.xlane.xlu0 %7186
    %v7188 = vsel %vm1745, %v7028, 0.0
    %7189 = vadd.xlane.f32.xlu0 %v7188
    %v7190 = vpop.xlane.xlu0 %7189
    %v7191 = vsel %vm1745, %v7029, 0.0
    %7192 = vadd.xlane.f32.xlu0 %v7191
    %v7193 = vpop.xlane.xlu0 %7192
    %v7194 = vsel %vm1745, %v7030, 0.0
    %7195 = vadd.xlane.f32.xlu0 %v7194
    %v7196 = vpop.xlane.xlu0 %7195
    %v7197 = vsel %vm1745, %v7031, 0.0
    %7198 = vadd.xlane.f32.xlu0 %v7197
    %v7199 = vpop.xlane.xlu0 %7198
    %v7200 = vsel %vm1745, %v7032, 0.0
    %7201 = vadd.xlane.f32.xlu0 %v7200
    %v7202 = vpop.xlane.xlu0 %7201
    %v7203 = vsel %vm1745, %v7033, 0.0
    %7204 = vadd.xlane.f32.xlu0 %v7203
    %v7205 = vpop.xlane.xlu0 %7204
    %v7206 = vsel %vm1745, %v7034, 0.0
    %7207 = vadd.xlane.f32.xlu0 %v7206
    %v7208 = vpop.xlane.xlu0 %7207
    %v7209 = vsel %vm1745, %v7035, 0.0
    %7210 = vadd.xlane.f32.xlu0 %v7209
    %v7211 = vpop.xlane.xlu0 %7210
    %v7212 = vsel %vm1745, %v7036, 0.0
    %7213 = vadd.xlane.f32.xlu0 %v7212
    %v7214 = vpop.xlane.xlu0 %7213
    %v7215 = vsel %vm1745, %v7037, 0.0
    %7216 = vadd.xlane.f32.xlu0 %v7215
    %v7217 = vpop.xlane.xlu0 %7216
    %v7218 = vsel %vm1745, %v7038, 0.0
    %7219 = vadd.xlane.f32.xlu0 %v7218
    %v7220 = vpop.xlane.xlu0 %7219
    %v7221 = vsel %vm1745, %v7039, 0.0
    %7222 = vadd.xlane.f32.xlu0 %v7221
    %v7223 = vpop.xlane.xlu0 %7222
    %v7224 = vsel %vm1745, %v7040, 0.0
    %7225 = vadd.xlane.f32.xlu0 %v7224
    %v7226 = vpop.xlane.xlu0 %7225
    %v7227 = vsel %vm1745, %v7041, 0.0
    %7228 = vadd.xlane.f32.xlu0 %v7227
    %v7229 = vpop.xlane.xlu0 %7228
    %v7230 = vsel %vm1745, %v7042, 0.0
    %7231 = vadd.xlane.f32.xlu0 %v7230
    %v7232 = vpop.xlane.xlu0 %7231
    %v7233 = vsel %vm1745, %v7043, 0.0
    %7234 = vadd.xlane.f32.xlu0 %v7233
    %v7235 = vpop.xlane.xlu0 %7234
    %v7236 = vsel %vm1745, %v7044, 0.0
    %7237 = vadd.xlane.f32.xlu0 %v7236
    %v7238 = vpop.xlane.xlu0 %7237
    %v7239 = vsel %vm1745, %v7045, 0.0
    %7240 = vadd.xlane.f32.xlu0 %v7239
    %v7241 = vpop.xlane.xlu0 %7240
    %v7242 = vsel %vm1745, %v7046, 0.0
    %7243 = vadd.xlane.f32.xlu0 %v7242
    %v7244 = vpop.xlane.xlu0 %7243
    %v7245 = vsel %vm1745, %v7047, 0.0
    %7246 = vadd.xlane.f32.xlu0 %v7245
    %v7247 = vpop.xlane.xlu0 %7246
    %v7248 = vsel %vm1745, %v7048, 0.0
    %7249 = vadd.xlane.f32.xlu0 %v7248
    %v7250 = vpop.xlane.xlu0 %7249
    %v7251 = vsel %vm1745, %v7049, 0.0
    %7252 = vadd.xlane.f32.xlu0 %v7251
    %v7253 = vpop.xlane.xlu0 %7252
    %v7254 = vsel %vm1745, %v7050, 0.0
    %7255 = vadd.xlane.f32.xlu0 %v7254
    %v7256 = vpop.xlane.xlu0 %7255
    %v7257 = vsel %vm1745, %v7051, 0.0
    %7258 = vadd.xlane.f32.xlu0 %v7257
    %v7259 = vpop.xlane.xlu0 %7258
    %v7260 = vsel %vm1745, %v7052, 0.0
    %7261 = vadd.xlane.f32.xlu0 %v7260
    %v7262 = vpop.xlane.xlu0 %7261
    %v7263 = vsel %vm1745, %v7053, 0.0
    %7264 = vadd.xlane.f32.xlu0 %v7263
    %v7265 = vpop.xlane.xlu0 %7264
    %v7266 = vsel %vm1745, %v7054, 0.0
    %7267 = vadd.xlane.f32.xlu0 %v7266
    %v7268 = vpop.xlane.xlu0 %7267
    %v7269 = vsel %vm1745, %v7055, 0.0
    %7270 = vadd.xlane.f32.xlu0 %v7269
    %v7271 = vpop.xlane.xlu0 %7270
    %v7272 = vsel %vm1745, %v7056, 0.0
    %7273 = vadd.xlane.f32.xlu0 %v7272
    %v7274 = vpop.xlane.xlu0 %7273
    %v7275 = vsel %vm1745, %v7057, 0.0
    %7276 = vadd.xlane.f32.xlu0 %v7275
    %v7277 = vpop.xlane.xlu0 %7276
    %v7278 = vsel %vm1745, %v7058, 0.0
    %7279 = vadd.xlane.f32.xlu0 %v7278
    %v7280 = vpop.xlane.xlu0 %7279
    %v7281 = vsel %vm1745, %v7059, 0.0
    %7282 = vadd.xlane.f32.xlu0 %v7281
    %v7283 = vpop.xlane.xlu0 %7282
    %v7284 = vsel %vm1745, %v7060, 0.0
    %7285 = vadd.xlane.f32.xlu0 %v7284
    %v7286 = vpop.xlane.xlu0 %7285
    %v7287 = vsel %vm1745, %v7061, 0.0
    %7288 = vadd.xlane.f32.xlu0 %v7287
    %v7289 = vpop.xlane.xlu0 %7288
    %v7290 = vsel %vm1745, %v7062, 0.0
    %7291 = vadd.xlane.f32.xlu0 %v7290
    %v7292 = vpop.xlane.xlu0 %7291
    %v7293 = vsel %vm1745, %v7063, 0.0
    %7294 = vadd.xlane.f32.xlu0 %v7293
    %v7295 = vpop.xlane.xlu0 %7294
    %v7296 = vsel %vm1745, %v7064, 0.0
    %7297 = vadd.xlane.f32.xlu0 %v7296
    %v7298 = vpop.xlane.xlu0 %7297
    %v7299 = vsel %vm1745, %v7065, 0.0
    %7300 = vadd.xlane.f32.xlu0 %v7299
    %v7301 = vpop.xlane.xlu0 %7300
    %v7302 = vsel %vm1745, %v7066, 0.0
    %7303 = vadd.xlane.f32.xlu0 %v7302
    %v7304 = vpop.xlane.xlu0 %7303
    %v7305 = vsel %vm1745, %v7067, 0.0
    %7306 = vadd.xlane.f32.xlu0 %v7305
    %v7307 = vpop.xlane.xlu0 %7306
    %v7308 = vsel %vm1745, %v7068, 0.0
    %7309 = vadd.xlane.f32.xlu0 %v7308
    %v7310 = vpop.xlane.xlu0 %7309
    %v7311 = vsel %vm1745, %v7069, 0.0
    %7312 = vadd.xlane.f32.xlu0 %v7311
    %v7313 = vpop.xlane.xlu0 %7312
    %v7314 = vsel %vm1745, %v7070, 0.0
    %7315 = vadd.xlane.f32.xlu0 %v7314
    %v7316 = vpop.xlane.xlu0 %7315
    %v7317 = vsel %vm1745, %v7071, 0.0
    %7318 = vadd.xlane.f32.xlu0 %v7317
    %v7319 = vpop.xlane.xlu0 %7318
    %v7320 = vsel %vm1745, %v7072, 0.0
    %7321 = vadd.xlane.f32.xlu0 %v7320
    %v7322 = vpop.xlane.xlu0 %7321
    %v7323 = vsel %vm1745, %v7073, 0.0
    %7324 = vadd.xlane.f32.xlu0 %v7323
    %v7325 = vpop.xlane.xlu0 %7324
    %v7326 = vsel %vm1745, %v7074, 0.0
    %7327 = vadd.xlane.f32.xlu0 %v7326
    %v7328 = vpop.xlane.xlu0 %7327
    %v7329 = vsel %vm1745, %v7075, 0.0
    %7330 = vadd.xlane.f32.xlu0 %v7329
    %v7331 = vpop.xlane.xlu0 %7330
    %v7332 = vsel %vm1745, %v7076, 0.0
    %7333 = vadd.xlane.f32.xlu0 %v7332
    %v7334 = vpop.xlane.xlu0 %7333
    %v7335 = vsel %vm1745, %v7077, 0.0
    %7336 = vadd.xlane.f32.xlu0 %v7335
    %v7337 = vpop.xlane.xlu0 %7336
    %v7338 = vsel %vm1745, %v7078, 0.0
    %7339 = vadd.xlane.f32.xlu0 %v7338
    %v7340 = vpop.xlane.xlu0 %7339
    %v7341 = vsel %vm1745, %v7079, 0.0
    %7342 = vadd.xlane.f32.xlu0 %v7341
    %v7343 = vpop.xlane.xlu0 %7342
    %v7344 = vsel %vm1745, %v7080, 0.0
    %7345 = vadd.xlane.f32.xlu0 %v7344
    %v7346 = vpop.xlane.xlu0 %7345
    %v7347 = vsel %vm1745, %v7081, 0.0
    %7348 = vadd.xlane.f32.xlu0 %v7347
    %v7349 = vpop.xlane.xlu0 %7348
    %v7350 = vsel %vm1745, %v7082, 0.0
    %7351 = vadd.xlane.f32.xlu0 %v7350
    %v7352 = vpop.xlane.xlu0 %7351
    %v7353 = vsel %vm1745, %v7083, 0.0
    %7354 = vadd.xlane.f32.xlu0 %v7353
    %v7355 = vpop.xlane.xlu0 %7354
    %v7356 = vsel %vm1745, %v7084, 0.0
    %7357 = vadd.xlane.f32.xlu0 %v7356
    %v7358 = vpop.xlane.xlu0 %7357
    %v7359 = vsel %vm1745, %v7085, 0.0
    %7360 = vadd.xlane.f32.xlu0 %v7359
    %v7361 = vpop.xlane.xlu0 %7360
    %v7362 = vsel %vm1745, %v7086, 0.0
    %7363 = vadd.xlane.f32.xlu0 %v7362
    %v7364 = vpop.xlane.xlu0 %7363
    %v7365 = vsel %vm1745, %v7087, 0.0
    %7366 = vadd.xlane.f32.xlu0 %v7365
    %v7367 = vpop.xlane.xlu0 %7366
    %v7368 = vsel %vm1745, %v7088, 0.0
    %7369 = vadd.xlane.f32.xlu0 %v7368
    %v7370 = vpop.xlane.xlu0 %7369
    %v7371 = vsel %vm1745, %v7089, 0.0
    %7372 = vadd.xlane.f32.xlu0 %v7371
    %v7373 = vpop.xlane.xlu0 %7372
    %v7374 = vsel %vm1745, %v7090, 0.0
    %7375 = vadd.xlane.f32.xlu0 %v7374
    %v7376 = vpop.xlane.xlu0 %7375
    %v7377 = vsel %vm1745, %v7091, 0.0
    %7378 = vadd.xlane.f32.xlu0 %v7377
    %v7379 = vpop.xlane.xlu0 %7378
    %v7380 = vsel %vm1745, %v7092, 0.0
    %7381 = vadd.xlane.f32.xlu0 %v7380
    %v7382 = vpop.xlane.xlu0 %7381
    %v7383 = vsel %vm1745, %v7093, 0.0
    %7384 = vadd.xlane.f32.xlu0 %v7383
    %v7385 = vpop.xlane.xlu0 %7384
    %v7386 = vsel %vm1745, %v7094, 0.0
    %7387 = vadd.xlane.f32.xlu0 %v7386
    %v7388 = vpop.xlane.xlu0 %7387
    %v7389 = vsel %vm1745, %v7095, 0.0
    %7390 = vadd.xlane.f32.xlu0 %v7389
    %v7391 = vpop.xlane.xlu0 %7390
    %v7392 = vsel %vm1745, %v7096, 0.0
    %7393 = vadd.xlane.f32.xlu0 %v7392
    %v7394 = vpop.xlane.xlu0 %7393
    %v7395 = vsel %vm1745, %v7097, 0.0
    %7396 = vadd.xlane.f32.xlu0 %v7395
    %v7397 = vpop.xlane.xlu0 %7396
    %v7398 = vsel %vm1745, %v7098, 0.0
    %7399 = vadd.xlane.f32.xlu0 %v7398
    %v7400 = vpop.xlane.xlu0 %7399
    %v7401 = vsel %vm1745, %v7099, 0.0
    %7402 = vadd.xlane.f32.xlu0 %v7401
    %v7403 = vpop.xlane.xlu0 %7402
    %v7404 = vsel %vm1745, %v7100, 0.0
    %7405 = vadd.xlane.f32.xlu0 %v7404
    %v7406 = vpop.xlane.xlu0 %7405
    %v7407 = vsel %vm1745, %v7101, 0.0
    %7408 = vadd.xlane.f32.xlu0 %v7407
    %v7409 = vpop.xlane.xlu0 %7408
    %v7410 = vsel %vm1745, %v7102, 0.0
    %7411 = vadd.xlane.f32.xlu0 %v7410
    %v7412 = vpop.xlane.xlu0 %7411
    %v7413 = vsel %vm1745, %v7103, 0.0
    %7414 = vadd.xlane.f32.xlu0 %v7413
    %v7415 = vpop.xlane.xlu0 %7414
    %v7416 = vsel %vm1745, %v7104, 0.0
    %7417 = vadd.xlane.f32.xlu0 %v7416
    %v7418 = vpop.xlane.xlu0 %7417
    %v7419 = vsel %vm1745, %v7105, 0.0
    %7420 = vadd.xlane.f32.xlu0 %v7419
    %v7421 = vpop.xlane.xlu0 %7420
    %v7422 = vsel %vm1745, %v7106, 0.0
    %7423 = vadd.xlane.f32.xlu0 %v7422
    %v7424 = vpop.xlane.xlu0 %7423
    %v7425 = vsel %vm1745, %v7107, 0.0
    %7426 = vadd.xlane.f32.xlu0 %v7425
    %v7427 = vpop.xlane.xlu0 %7426
    %v7428 = vsel %vm1745, %v7108, 0.0
    %7429 = vadd.xlane.f32.xlu0 %v7428
    %v7430 = vpop.xlane.xlu0 %7429
    %v7431 = vsel %vm1745, %v7109, 0.0
    %7432 = vadd.xlane.f32.xlu0 %v7431
    %v7433 = vpop.xlane.xlu0 %7432
    %v7434 = vsel %vm1745, %v7110, 0.0
    %7435 = vadd.xlane.f32.xlu0 %v7434
    %v7436 = vpop.xlane.xlu0 %7435
    %v7437 = vsel %vm1745, %v7111, 0.0
    %7438 = vadd.xlane.f32.xlu0 %v7437
    %v7439 = vpop.xlane.xlu0 %7438
    %v7440 = vsel %vm1745, %v7112, 0.0
    %7441 = vadd.xlane.f32.xlu0 %v7440
    %v7442 = vpop.xlane.xlu0 %7441
    %v7443 = vsel %vm1745, %v7113, 0.0
    %7444 = vadd.xlane.f32.xlu0 %v7443
    %v7445 = vpop.xlane.xlu0 %7444
    %v7446 = vsel %vm1745, %v7114, 0.0
    %7447 = vadd.xlane.f32.xlu0 %v7446
    %v7448 = vpop.xlane.xlu0 %7447
    %v7449 = vsel %vm1745, %v7115, 0.0
    %7450 = vadd.xlane.f32.xlu0 %v7449
    %v7451 = vpop.xlane.xlu0 %7450
    %v7452 = vsel %vm1745, %v7116, 0.0
    %7453 = vadd.xlane.f32.xlu0 %v7452
    %v7454 = vpop.xlane.xlu0 %7453
    %v7455 = vsel %vm1745, %v7117, 0.0
    %7456 = vadd.xlane.f32.xlu0 %v7455
    %v7457 = vpop.xlane.xlu0 %7456
    %v7458 = vsel %vm1745, %v7118, 0.0
    %7459 = vadd.xlane.f32.xlu0 %v7458
    %v7460 = vpop.xlane.xlu0 %7459
    %v7461 = vsel %vm1745, %v7119, 0.0
    %7462 = vadd.xlane.f32.xlu0 %v7461
    %v7463 = vpop.xlane.xlu0 %7462
    %v7464 = vsel %vm1745, %v7120, 0.0
    %7465 = vadd.xlane.f32.xlu0 %v7464
    %v7466 = vpop.xlane.xlu0 %7465
    %v7467 = vsel %vm1745, %v7121, 0.0
    %7468 = vadd.xlane.f32.xlu0 %v7467
    %v7469 = vpop.xlane.xlu0 %7468
    %v7470 = vsel %vm1745, %v7122, 0.0
    %7471 = vadd.xlane.f32.xlu0 %v7470
    %v7472 = vpop.xlane.xlu0 %7471
    %v7473 = vsel %vm1745, %v7123, 0.0
    %7474 = vadd.xlane.f32.xlu0 %v7473
    %v7475 = vpop.xlane.xlu0 %7474
    %v7476 = vsel %vm1745, %v7124, 0.0
    %7477 = vadd.xlane.f32.xlu0 %v7476
    %v7478 = vpop.xlane.xlu0 %7477
    %v7479 = vsel %vm1745, %v7125, 0.0
    %7480 = vadd.xlane.f32.xlu0 %v7479
    %v7481 = vpop.xlane.xlu0 %7480
    %v7482 = vsel %vm1745, %v7126, 0.0
    %7483 = vadd.xlane.f32.xlu0 %v7482
    %v7484 = vpop.xlane.xlu0 %7483
    %v7485 = vsel %vm1745, %v7127, 0.0
    %7486 = vadd.xlane.f32.xlu0 %v7485
    %v7487 = vpop.xlane.xlu0 %7486
    %v7488 = vsel %vm1745, %v7128, 0.0
    %7489 = vadd.xlane.f32.xlu0 %v7488
    %v7490 = vpop.xlane.xlu0 %7489
    %v7491 = vsel %vm1745, %v7129, 0.0
    %7492 = vadd.xlane.f32.xlu0 %v7491
    %v7493 = vpop.xlane.xlu0 %7492
    %v7494 = vsel %vm1745, %v7130, 0.0
    %7495 = vadd.xlane.f32.xlu0 %v7494
    %v7496 = vpop.xlane.xlu0 %7495
    %v7497 = vsel %vm1745, %v7131, 0.0
    %7498 = vadd.xlane.f32.xlu0 %v7497
    %v7499 = vpop.xlane.xlu0 %7498
    %v7500 = vsel %vm1745, %v7132, 0.0
    %7501 = vadd.xlane.f32.xlu0 %v7500
    %v7502 = vpop.xlane.xlu0 %7501
    %v7503 = vsel %vm1745, %v7133, 0.0
    %7504 = vadd.xlane.f32.xlu0 %v7503
    %v7505 = vpop.xlane.xlu0 %7504
    %v7506 = vsel %vm1745, %v7134, 0.0
    %7507 = vadd.xlane.f32.xlu0 %v7506
    %v7508 = vpop.xlane.xlu0 %7507
    %v7509 = vsel %vm1745, %v7135, 0.0
    %7510 = vadd.xlane.f32.xlu0 %v7509
    %v7511 = vpop.xlane.xlu0 %7510
    %v7512 = vsel %vm1745, %v7136, 0.0
    %7513 = vadd.xlane.f32.xlu0 %v7512
    %v7514 = vpop.xlane.xlu0 %7513
    %v7515 = vsel %vm1745, %v7137, 0.0
    %7516 = vadd.xlane.f32.xlu0 %v7515
    %v7517 = vpop.xlane.xlu0 %7516
    %v7518 = vsel %vm1745, %v7138, 0.0
    %7519 = vadd.xlane.f32.xlu0 %v7518
    %v7520 = vpop.xlane.xlu0 %7519
    %v7521 = vsel %vm1745, %v7139, 0.0
    %7522 = vadd.xlane.f32.xlu0 %v7521
    %v7523 = vpop.xlane.xlu0 %7522
    %v7524 = vmax.f32 %v7142, %v7190
    %v7525 = vmax.f32 %v7524, %v7238
    %v7526 = vmax.f32 %v7525, %v7286
    %v7527 = vmax.f32 %v7526, %v7334
    %v7528 = vmax.f32 %v7527, %v7382
    %v7529 = vmax.f32 %v7528, %v7430
    %v7530 = vmax.f32 %v7529, %v7478
    %v7531 = vmax.f32 %v7145, %v7193
    %v7532 = vmax.f32 %v7531, %v7241
    %v7533 = vmax.f32 %v7532, %v7289
    %v7534 = vmax.f32 %v7533, %v7337
    %v7535 = vmax.f32 %v7534, %v7385
    %v7536 = vmax.f32 %v7535, %v7433
    %v7537 = vmax.f32 %v7536, %v7481
    %v7538 = vmax.f32 %v7148, %v7196
    %v7539 = vmax.f32 %v7538, %v7244
    %v7540 = vmax.f32 %v7539, %v7292
    %v7541 = vmax.f32 %v7540, %v7340
    %v7542 = vmax.f32 %v7541, %v7388
    %v7543 = vmax.f32 %v7542, %v7436
    %v7544 = vmax.f32 %v7543, %v7484
    %v7545 = vmax.f32 %v7151, %v7199
    %v7546 = vmax.f32 %v7545, %v7247
    %v7547 = vmax.f32 %v7546, %v7295
    %v7548 = vmax.f32 %v7547, %v7343
    %v7549 = vmax.f32 %v7548, %v7391
    %v7550 = vmax.f32 %v7549, %v7439
    %v7551 = vmax.f32 %v7550, %v7487
    %v7552 = vmax.f32 %v7154, %v7202
    %v7553 = vmax.f32 %v7552, %v7250
    %v7554 = vmax.f32 %v7553, %v7298
    %v7555 = vmax.f32 %v7554, %v7346
    %v7556 = vmax.f32 %v7555, %v7394
    %v7557 = vmax.f32 %v7556, %v7442
    %v7558 = vmax.f32 %v7557, %v7490
    %v7559 = vmax.f32 %v7157, %v7205
    %v7560 = vmax.f32 %v7559, %v7253
    %v7561 = vmax.f32 %v7560, %v7301
    %v7562 = vmax.f32 %v7561, %v7349
    %v7563 = vmax.f32 %v7562, %v7397
    %v7564 = vmax.f32 %v7563, %v7445
    %v7565 = vmax.f32 %v7564, %v7493
    %v7566 = vmax.f32 %v7160, %v7208
    %v7567 = vmax.f32 %v7566, %v7256
    %v7568 = vmax.f32 %v7567, %v7304
    %v7569 = vmax.f32 %v7568, %v7352
    %v7570 = vmax.f32 %v7569, %v7400
    %v7571 = vmax.f32 %v7570, %v7448
    %v7572 = vmax.f32 %v7571, %v7496
    %v7573 = vmax.f32 %v7163, %v7211
    %v7574 = vmax.f32 %v7573, %v7259
    %v7575 = vmax.f32 %v7574, %v7307
    %v7576 = vmax.f32 %v7575, %v7355
    %v7577 = vmax.f32 %v7576, %v7403
    %v7578 = vmax.f32 %v7577, %v7451
    %v7579 = vmax.f32 %v7578, %v7499
    %v7580 = vmax.f32 %v7166, %v7214
    %v7581 = vmax.f32 %v7580, %v7262
    %v7582 = vmax.f32 %v7581, %v7310
    %v7583 = vmax.f32 %v7582, %v7358
    %v7584 = vmax.f32 %v7583, %v7406
    %v7585 = vmax.f32 %v7584, %v7454
    %v7586 = vmax.f32 %v7585, %v7502
    %v7587 = vmax.f32 %v7169, %v7217
    %v7588 = vmax.f32 %v7587, %v7265
    %v7589 = vmax.f32 %v7588, %v7313
    %v7590 = vmax.f32 %v7589, %v7361
    %v7591 = vmax.f32 %v7590, %v7409
    %v7592 = vmax.f32 %v7591, %v7457
    %v7593 = vmax.f32 %v7592, %v7505
    %v7594 = vmax.f32 %v7172, %v7220
    %v7595 = vmax.f32 %v7594, %v7268
    %v7596 = vmax.f32 %v7595, %v7316
    %v7597 = vmax.f32 %v7596, %v7364
    %v7598 = vmax.f32 %v7597, %v7412
    %v7599 = vmax.f32 %v7598, %v7460
    %v7600 = vmax.f32 %v7599, %v7508
    %v7601 = vmax.f32 %v7175, %v7223
    %v7602 = vmax.f32 %v7601, %v7271
    %v7603 = vmax.f32 %v7602, %v7319
    %v7604 = vmax.f32 %v7603, %v7367
    %v7605 = vmax.f32 %v7604, %v7415
    %v7606 = vmax.f32 %v7605, %v7463
    %v7607 = vmax.f32 %v7606, %v7511
    %v7608 = vmax.f32 %v7178, %v7226
    %v7609 = vmax.f32 %v7608, %v7274
    %v7610 = vmax.f32 %v7609, %v7322
    %v7611 = vmax.f32 %v7610, %v7370
    %v7612 = vmax.f32 %v7611, %v7418
    %v7613 = vmax.f32 %v7612, %v7466
    %v7614 = vmax.f32 %v7613, %v7514
    %v7615 = vmax.f32 %v7181, %v7229
    %v7616 = vmax.f32 %v7615, %v7277
    %v7617 = vmax.f32 %v7616, %v7325
    %v7618 = vmax.f32 %v7617, %v7373
    %v7619 = vmax.f32 %v7618, %v7421
    %v7620 = vmax.f32 %v7619, %v7469
    %v7621 = vmax.f32 %v7620, %v7517
    %v7622 = vmax.f32 %v7184, %v7232
    %v7623 = vmax.f32 %v7622, %v7280
    %v7624 = vmax.f32 %v7623, %v7328
    %v7625 = vmax.f32 %v7624, %v7376
    %v7626 = vmax.f32 %v7625, %v7424
    %v7627 = vmax.f32 %v7626, %v7472
    %v7628 = vmax.f32 %v7627, %v7520
    %v7629 = vmax.f32 %v7187, %v7235
    %v7630 = vmax.f32 %v7629, %v7283
    %v7631 = vmax.f32 %v7630, %v7331
    %v7632 = vmax.f32 %v7631, %v7379
    %v7633 = vmax.f32 %v7632, %v7427
    %v7634 = vmax.f32 %v7633, %v7475
    %v7635 = vmax.f32 %v7634, %v7523
    %v7636 = vsub.f32 %v7142, %v7530
    %v7637 = vsub.f32 %v7145, %v7537
    %v7638 = vsub.f32 %v7148, %v7544
    %v7639 = vsub.f32 %v7151, %v7551
    %v7640 = vsub.f32 %v7154, %v7558
    %v7641 = vsub.f32 %v7157, %v7565
    %v7642 = vsub.f32 %v7160, %v7572
    %v7643 = vsub.f32 %v7163, %v7579
    %v7644 = vsub.f32 %v7166, %v7586
    %v7645 = vsub.f32 %v7169, %v7593
    %v7646 = vsub.f32 %v7172, %v7600
    %v7647 = vsub.f32 %v7175, %v7607
    %v7648 = vsub.f32 %v7178, %v7614
    %v7649 = vsub.f32 %v7181, %v7621
    %v7650 = vsub.f32 %v7184, %v7628
    %v7651 = vsub.f32 %v7187, %v7635
    %v7652 = vsub.f32 %v7190, %v7530
    %v7653 = vsub.f32 %v7193, %v7537
    %v7654 = vsub.f32 %v7196, %v7544
    %v7655 = vsub.f32 %v7199, %v7551
    %v7656 = vsub.f32 %v7202, %v7558
    %v7657 = vsub.f32 %v7205, %v7565
    %v7658 = vsub.f32 %v7208, %v7572
    %v7659 = vsub.f32 %v7211, %v7579
    %v7660 = vsub.f32 %v7214, %v7586
    %v7661 = vsub.f32 %v7217, %v7593
    %v7662 = vsub.f32 %v7220, %v7600
    %v7663 = vsub.f32 %v7223, %v7607
    %v7664 = vsub.f32 %v7226, %v7614
    %v7665 = vsub.f32 %v7229, %v7621
    %v7666 = vsub.f32 %v7232, %v7628
    %v7667 = vsub.f32 %v7235, %v7635
    %v7668 = vsub.f32 %v7238, %v7530
    %v7669 = vsub.f32 %v7241, %v7537
    %v7670 = vsub.f32 %v7244, %v7544
    %v7671 = vsub.f32 %v7247, %v7551
    %v7672 = vsub.f32 %v7250, %v7558
    %v7673 = vsub.f32 %v7253, %v7565
    %v7674 = vsub.f32 %v7256, %v7572
    %v7675 = vsub.f32 %v7259, %v7579
    %v7676 = vsub.f32 %v7262, %v7586
    %v7677 = vsub.f32 %v7265, %v7593
    %v7678 = vsub.f32 %v7268, %v7600
    %v7679 = vsub.f32 %v7271, %v7607
    %v7680 = vsub.f32 %v7274, %v7614
    %v7681 = vsub.f32 %v7277, %v7621
    %v7682 = vsub.f32 %v7280, %v7628
    %v7683 = vsub.f32 %v7283, %v7635
    %v7684 = vsub.f32 %v7286, %v7530
    %v7685 = vsub.f32 %v7289, %v7537
    %v7686 = vsub.f32 %v7292, %v7544
    %v7687 = vsub.f32 %v7295, %v7551
    %v7688 = vsub.f32 %v7298, %v7558
    %v7689 = vsub.f32 %v7301, %v7565
    %v7690 = vsub.f32 %v7304, %v7572
    %v7691 = vsub.f32 %v7307, %v7579
    %v7692 = vsub.f32 %v7310, %v7586
    %v7693 = vsub.f32 %v7313, %v7593
    %v7694 = vsub.f32 %v7316, %v7600
    %v7695 = vsub.f32 %v7319, %v7607
    %v7696 = vsub.f32 %v7322, %v7614
    %v7697 = vsub.f32 %v7325, %v7621
    %v7698 = vsub.f32 %v7328, %v7628
    %v7699 = vsub.f32 %v7331, %v7635
    %v7700 = vsub.f32 %v7334, %v7530
    %v7701 = vsub.f32 %v7337, %v7537
    %v7702 = vsub.f32 %v7340, %v7544
    %v7703 = vsub.f32 %v7343, %v7551
    %v7704 = vsub.f32 %v7346, %v7558
    %v7705 = vsub.f32 %v7349, %v7565
    %v7706 = vsub.f32 %v7352, %v7572
    %v7707 = vsub.f32 %v7355, %v7579
    %v7708 = vsub.f32 %v7358, %v7586
    %v7709 = vsub.f32 %v7361, %v7593
    %v7710 = vsub.f32 %v7364, %v7600
    %v7711 = vsub.f32 %v7367, %v7607
    %v7712 = vsub.f32 %v7370, %v7614
    %v7713 = vsub.f32 %v7373, %v7621
    %v7714 = vsub.f32 %v7376, %v7628
    %v7715 = vsub.f32 %v7379, %v7635
    %v7716 = vsub.f32 %v7382, %v7530
    %v7717 = vsub.f32 %v7385, %v7537
    %v7718 = vsub.f32 %v7388, %v7544
    %v7719 = vsub.f32 %v7391, %v7551
    %v7720 = vsub.f32 %v7394, %v7558
    %v7721 = vsub.f32 %v7397, %v7565
    %v7722 = vsub.f32 %v7400, %v7572
    %v7723 = vsub.f32 %v7403, %v7579
    %v7724 = vsub.f32 %v7406, %v7586
    %v7725 = vsub.f32 %v7409, %v7593
    %v7726 = vsub.f32 %v7412, %v7600
    %v7727 = vsub.f32 %v7415, %v7607
    %v7728 = vsub.f32 %v7418, %v7614
    %v7729 = vsub.f32 %v7421, %v7621
    %v7730 = vsub.f32 %v7424, %v7628
    %v7731 = vsub.f32 %v7427, %v7635
    %v7732 = vsub.f32 %v7430, %v7530
    %v7733 = vsub.f32 %v7433, %v7537
    %v7734 = vsub.f32 %v7436, %v7544
    %v7735 = vsub.f32 %v7439, %v7551
    %v7736 = vsub.f32 %v7442, %v7558
    %v7737 = vsub.f32 %v7445, %v7565
    %v7738 = vsub.f32 %v7448, %v7572
    %v7739 = vsub.f32 %v7451, %v7579
    %v7740 = vsub.f32 %v7454, %v7586
    %v7741 = vsub.f32 %v7457, %v7593
    %v7742 = vsub.f32 %v7460, %v7600
    %v7743 = vsub.f32 %v7463, %v7607
    %v7744 = vsub.f32 %v7466, %v7614
    %v7745 = vsub.f32 %v7469, %v7621
    %v7746 = vsub.f32 %v7472, %v7628
    %v7747 = vsub.f32 %v7475, %v7635
    %v7748 = vsub.f32 %v7478, %v7530
    %v7749 = vsub.f32 %v7481, %v7537
    %v7750 = vsub.f32 %v7484, %v7544
    %v7751 = vsub.f32 %v7487, %v7551
    %v7752 = vsub.f32 %v7490, %v7558
    %v7753 = vsub.f32 %v7493, %v7565
    %v7754 = vsub.f32 %v7496, %v7572
    %v7755 = vsub.f32 %v7499, %v7579
    %v7756 = vsub.f32 %v7502, %v7586
    %v7757 = vsub.f32 %v7505, %v7593
    %v7758 = vsub.f32 %v7508, %v7600
    %v7759 = vsub.f32 %v7511, %v7607
    %v7760 = vsub.f32 %v7514, %v7614
    %v7761 = vsub.f32 %v7517, %v7621
    %v7762 = vsub.f32 %v7520, %v7628
    %v7763 = vsub.f32 %v7523, %v7635
    %v7764 = vmul.f32 %v7636, 1.442695
    %v7765 = vpow.pop %v7764
    %v7766 = vmul.f32 %v7637, 1.442695
    %v7767 = vpow.pop %v7766
    %v7768 = vmul.f32 %v7638, 1.442695
    %v7769 = vpow.pop %v7768
    %v7770 = vmul.f32 %v7639, 1.442695
    %v7771 = vpow.pop %v7770
    %v7772 = vmul.f32 %v7640, 1.442695
    %v7773 = vpow.pop %v7772
    %v7774 = vmul.f32 %v7641, 1.442695
    %v7775 = vpow.pop %v7774
    %v7776 = vmul.f32 %v7642, 1.442695
    %v7777 = vpow.pop %v7776
    %v7778 = vmul.f32 %v7643, 1.442695
    %v7779 = vpow.pop %v7778
    %v7780 = vmul.f32 %v7644, 1.442695
    %v7781 = vpow.pop %v7780
    %v7782 = vmul.f32 %v7645, 1.442695
    %v7783 = vpow.pop %v7782
    %v7784 = vmul.f32 %v7646, 1.442695
    %v7785 = vpow.pop %v7784
    %v7786 = vmul.f32 %v7647, 1.442695
    %v7787 = vpow.pop %v7786
    %v7788 = vmul.f32 %v7648, 1.442695
    %v7789 = vpow.pop %v7788
    %v7790 = vmul.f32 %v7649, 1.442695
    %v7791 = vpow.pop %v7790
    %v7792 = vmul.f32 %v7650, 1.442695
    %v7793 = vpow.pop %v7792
    %v7794 = vmul.f32 %v7651, 1.442695
    %v7795 = vpow.pop %v7794
    %v7796 = vmul.f32 %v7652, 1.442695
    %v7797 = vpow.pop %v7796
    %v7798 = vmul.f32 %v7653, 1.442695
    %v7799 = vpow.pop %v7798
    %v7800 = vmul.f32 %v7654, 1.442695
    %v7801 = vpow.pop %v7800
    %v7802 = vmul.f32 %v7655, 1.442695
    %v7803 = vpow.pop %v7802
    %v7804 = vmul.f32 %v7656, 1.442695
    %v7805 = vpow.pop %v7804
    %v7806 = vmul.f32 %v7657, 1.442695
    %v7807 = vpow.pop %v7806
    %v7808 = vmul.f32 %v7658, 1.442695
    %v7809 = vpow.pop %v7808
    %v7810 = vmul.f32 %v7659, 1.442695
    %v7811 = vpow.pop %v7810
    %v7812 = vmul.f32 %v7660, 1.442695
    %v7813 = vpow.pop %v7812
    %v7814 = vmul.f32 %v7661, 1.442695
    %v7815 = vpow.pop %v7814
    %v7816 = vmul.f32 %v7662, 1.442695
    %v7817 = vpow.pop %v7816
    %v7818 = vmul.f32 %v7663, 1.442695
    %v7819 = vpow.pop %v7818
    %v7820 = vmul.f32 %v7664, 1.442695
    %v7821 = vpow.pop %v7820
    %v7822 = vmul.f32 %v7665, 1.442695
    %v7823 = vpow.pop %v7822
    %v7824 = vmul.f32 %v7666, 1.442695
    %v7825 = vpow.pop %v7824
    %v7826 = vmul.f32 %v7667, 1.442695
    %v7827 = vpow.pop %v7826
    %v7828 = vmul.f32 %v7668, 1.442695
    %v7829 = vpow.pop %v7828
    %v7830 = vmul.f32 %v7669, 1.442695
    %v7831 = vpow.pop %v7830
    %v7832 = vmul.f32 %v7670, 1.442695
    %v7833 = vpow.pop %v7832
    %v7834 = vmul.f32 %v7671, 1.442695
    %v7835 = vpow.pop %v7834
    %v7836 = vmul.f32 %v7672, 1.442695
    %v7837 = vpow.pop %v7836
    %v7838 = vmul.f32 %v7673, 1.442695
    %v7839 = vpow.pop %v7838
    %v7840 = vmul.f32 %v7674, 1.442695
    %v7841 = vpow.pop %v7840
    %v7842 = vmul.f32 %v7675, 1.442695
    %v7843 = vpow.pop %v7842
    %v7844 = vmul.f32 %v7676, 1.442695
    %v7845 = vpow.pop %v7844
    %v7846 = vmul.f32 %v7677, 1.442695
    %v7847 = vpow.pop %v7846
    %v7848 = vmul.f32 %v7678, 1.442695
    %v7849 = vpow.pop %v7848
    %v7850 = vmul.f32 %v7679, 1.442695
    %v7851 = vpow.pop %v7850
    %v7852 = vmul.f32 %v7680, 1.442695
    %v7853 = vpow.pop %v7852
    %v7854 = vmul.f32 %v7681, 1.442695
    %v7855 = vpow.pop %v7854
    %v7856 = vmul.f32 %v7682, 1.442695
    %v7857 = vpow.pop %v7856
    %v7858 = vmul.f32 %v7683, 1.442695
    %v7859 = vpow.pop %v7858
    %v7860 = vmul.f32 %v7684, 1.442695
    %v7861 = vpow.pop %v7860
    %v7862 = vmul.f32 %v7685, 1.442695
    %v7863 = vpow.pop %v7862
    %v7864 = vmul.f32 %v7686, 1.442695
    %v7865 = vpow.pop %v7864
    %v7866 = vmul.f32 %v7687, 1.442695
    %v7867 = vpow.pop %v7866
    %v7868 = vmul.f32 %v7688, 1.442695
    %v7869 = vpow.pop %v7868
    %v7870 = vmul.f32 %v7689, 1.442695
    %v7871 = vpow.pop %v7870
    %v7872 = vmul.f32 %v7690, 1.442695
    %v7873 = vpow.pop %v7872
    %v7874 = vmul.f32 %v7691, 1.442695
    %v7875 = vpow.pop %v7874
    %v7876 = vmul.f32 %v7692, 1.442695
    %v7877 = vpow.pop %v7876
    %v7878 = vmul.f32 %v7693, 1.442695
    %v7879 = vpow.pop %v7878
    %v7880 = vmul.f32 %v7694, 1.442695
    %v7881 = vpow.pop %v7880
    %v7882 = vmul.f32 %v7695, 1.442695
    %v7883 = vpow.pop %v7882
    %v7884 = vmul.f32 %v7696, 1.442695
    %v7885 = vpow.pop %v7884
    %v7886 = vmul.f32 %v7697, 1.442695
    %v7887 = vpow.pop %v7886
    %v7888 = vmul.f32 %v7698, 1.442695
    %v7889 = vpow.pop %v7888
    %v7890 = vmul.f32 %v7699, 1.442695
    %v7891 = vpow.pop %v7890
    %v7892 = vmul.f32 %v7700, 1.442695
    %v7893 = vpow.pop %v7892
    %v7894 = vmul.f32 %v7701, 1.442695
    %v7895 = vpow.pop %v7894
    %v7896 = vmul.f32 %v7702, 1.442695
    %v7897 = vpow.pop %v7896
    %v7898 = vmul.f32 %v7703, 1.442695
    %v7899 = vpow.pop %v7898
    %v7900 = vmul.f32 %v7704, 1.442695
    %v7901 = vpow.pop %v7900
    %v7902 = vmul.f32 %v7705, 1.442695
    %v7903 = vpow.pop %v7902
    %v7904 = vmul.f32 %v7706, 1.442695
    %v7905 = vpow.pop %v7904
    %v7906 = vmul.f32 %v7707, 1.442695
    %v7907 = vpow.pop %v7906
    %v7908 = vmul.f32 %v7708, 1.442695
    %v7909 = vpow.pop %v7908
    %v7910 = vmul.f32 %v7709, 1.442695
    %v7911 = vpow.pop %v7910
    %v7912 = vmul.f32 %v7710, 1.442695
    %v7913 = vpow.pop %v7912
    %v7914 = vmul.f32 %v7711, 1.442695
    %v7915 = vpow.pop %v7914
    %v7916 = vmul.f32 %v7712, 1.442695
    %v7917 = vpow.pop %v7916
    %v7918 = vmul.f32 %v7713, 1.442695
    %v7919 = vpow.pop %v7918
    %v7920 = vmul.f32 %v7714, 1.442695
    %v7921 = vpow.pop %v7920
    %v7922 = vmul.f32 %v7715, 1.442695
    %v7923 = vpow.pop %v7922
    %v7924 = vmul.f32 %v7716, 1.442695
    %v7925 = vpow.pop %v7924
    %v7926 = vmul.f32 %v7717, 1.442695
    %v7927 = vpow.pop %v7926
    %v7928 = vmul.f32 %v7718, 1.442695
    %v7929 = vpow.pop %v7928
    %v7930 = vmul.f32 %v7719, 1.442695
    %v7931 = vpow.pop %v7930
    %v7932 = vmul.f32 %v7720, 1.442695
    %v7933 = vpow.pop %v7932
    %v7934 = vmul.f32 %v7721, 1.442695
    %v7935 = vpow.pop %v7934
    %v7936 = vmul.f32 %v7722, 1.442695
    %v7937 = vpow.pop %v7936
    %v7938 = vmul.f32 %v7723, 1.442695
    %v7939 = vpow.pop %v7938
    %v7940 = vmul.f32 %v7724, 1.442695
    %v7941 = vpow.pop %v7940
    %v7942 = vmul.f32 %v7725, 1.442695
    %v7943 = vpow.pop %v7942
    %v7944 = vmul.f32 %v7726, 1.442695
    %v7945 = vpow.pop %v7944
    %v7946 = vmul.f32 %v7727, 1.442695
    %v7947 = vpow.pop %v7946
    %v7948 = vmul.f32 %v7728, 1.442695
    %v7949 = vpow.pop %v7948
    %v7950 = vmul.f32 %v7729, 1.442695
    %v7951 = vpow.pop %v7950
    %v7952 = vmul.f32 %v7730, 1.442695
    %v7953 = vpow.pop %v7952
    %v7954 = vmul.f32 %v7731, 1.442695
    %v7955 = vpow.pop %v7954
    %v7956 = vmul.f32 %v7732, 1.442695
    %v7957 = vpow.pop %v7956
    %v7958 = vmul.f32 %v7733, 1.442695
    %v7959 = vpow.pop %v7958
    %v7960 = vmul.f32 %v7734, 1.442695
    %v7961 = vpow.pop %v7960
    %v7962 = vmul.f32 %v7735, 1.442695
    %v7963 = vpow.pop %v7962
    %v7964 = vmul.f32 %v7736, 1.442695
    %v7965 = vpow.pop %v7964
    %v7966 = vmul.f32 %v7737, 1.442695
    %v7967 = vpow.pop %v7966
    %v7968 = vmul.f32 %v7738, 1.442695
    %v7969 = vpow.pop %v7968
    %v7970 = vmul.f32 %v7739, 1.442695
    %v7971 = vpow.pop %v7970
    %v7972 = vmul.f32 %v7740, 1.442695
    %v7973 = vpow.pop %v7972
    %v7974 = vmul.f32 %v7741, 1.442695
    %v7975 = vpow.pop %v7974
    %v7976 = vmul.f32 %v7742, 1.442695
    %v7977 = vpow.pop %v7976
    %v7978 = vmul.f32 %v7743, 1.442695
    %v7979 = vpow.pop %v7978
    %v7980 = vmul.f32 %v7744, 1.442695
    %v7981 = vpow.pop %v7980
    %v7982 = vmul.f32 %v7745, 1.442695
    %v7983 = vpow.pop %v7982
    %v7984 = vmul.f32 %v7746, 1.442695
    %v7985 = vpow.pop %v7984
    %v7986 = vmul.f32 %v7747, 1.442695
    %v7987 = vpow.pop %v7986
    %v7988 = vmul.f32 %v7748, 1.442695
    %v7989 = vpow.pop %v7988
    %v7990 = vmul.f32 %v7749, 1.442695
    %v7991 = vpow.pop %v7990
    %v7992 = vmul.f32 %v7750, 1.442695
    %v7993 = vpow.pop %v7992
    %v7994 = vmul.f32 %v7751, 1.442695
    %v7995 = vpow.pop %v7994
    %v7996 = vmul.f32 %v7752, 1.442695
    %v7997 = vpow.pop %v7996
    %v7998 = vmul.f32 %v7753, 1.442695
    %v7999 = vpow.pop %v7998
    %v8000 = vmul.f32 %v7754, 1.442695
    %v8001 = vpow.pop %v8000
    %v8002 = vmul.f32 %v7755, 1.442695
    %v8003 = vpow.pop %v8002
    %v8004 = vmul.f32 %v7756, 1.442695
    %v8005 = vpow.pop %v8004
    %v8006 = vmul.f32 %v7757, 1.442695
    %v8007 = vpow.pop %v8006
    %v8008 = vmul.f32 %v7758, 1.442695
    %v8009 = vpow.pop %v8008
    %v8010 = vmul.f32 %v7759, 1.442695
    %v8011 = vpow.pop %v8010
    %v8012 = vmul.f32 %v7760, 1.442695
    %v8013 = vpow.pop %v8012
    %v8014 = vmul.f32 %v7761, 1.442695
    %v8015 = vpow.pop %v8014
    %v8016 = vmul.f32 %v7762, 1.442695
    %v8017 = vpow.pop %v8016
    %v8018 = vmul.f32 %v7763, 1.442695
    %v8019 = vpow.pop %v8018
    %v8020 = vadd.f32 %v7765, %v7797
    %v8021 = vadd.f32 %v8020, %v7829
    %v8022 = vadd.f32 %v8021, %v7861
    %v8023 = vadd.f32 %v8022, %v7893
    %v8024 = vadd.f32 %v8023, %v7925
    %v8025 = vadd.f32 %v8024, %v7957
    %v8026 = vadd.f32 %v8025, %v7989
    %v8027 = vadd.f32 %v7767, %v7799
    %v8028 = vadd.f32 %v8027, %v7831
    %v8029 = vadd.f32 %v8028, %v7863
    %v8030 = vadd.f32 %v8029, %v7895
    %v8031 = vadd.f32 %v8030, %v7927
    %v8032 = vadd.f32 %v8031, %v7959
    %v8033 = vadd.f32 %v8032, %v7991
    %v8034 = vadd.f32 %v7769, %v7801
    %v8035 = vadd.f32 %v8034, %v7833
    %v8036 = vadd.f32 %v8035, %v7865
    %v8037 = vadd.f32 %v8036, %v7897
    %v8038 = vadd.f32 %v8037, %v7929
    %v8039 = vadd.f32 %v8038, %v7961
    %v8040 = vadd.f32 %v8039, %v7993
    %v8041 = vadd.f32 %v7771, %v7803
    %v8042 = vadd.f32 %v8041, %v7835
    %v8043 = vadd.f32 %v8042, %v7867
    %v8044 = vadd.f32 %v8043, %v7899
    %v8045 = vadd.f32 %v8044, %v7931
    %v8046 = vadd.f32 %v8045, %v7963
    %v8047 = vadd.f32 %v8046, %v7995
    %v8048 = vadd.f32 %v7773, %v7805
    %v8049 = vadd.f32 %v8048, %v7837
    %v8050 = vadd.f32 %v8049, %v7869
    %v8051 = vadd.f32 %v8050, %v7901
    %v8052 = vadd.f32 %v8051, %v7933
    %v8053 = vadd.f32 %v8052, %v7965
    %v8054 = vadd.f32 %v8053, %v7997
    %v8055 = vadd.f32 %v7775, %v7807
    %v8056 = vadd.f32 %v8055, %v7839
    %v8057 = vadd.f32 %v8056, %v7871
    %v8058 = vadd.f32 %v8057, %v7903
    %v8059 = vadd.f32 %v8058, %v7935
    %v8060 = vadd.f32 %v8059, %v7967
    %v8061 = vadd.f32 %v8060, %v7999
    %v8062 = vadd.f32 %v7777, %v7809
    %v8063 = vadd.f32 %v8062, %v7841
    %v8064 = vadd.f32 %v8063, %v7873
    %v8065 = vadd.f32 %v8064, %v7905
    %v8066 = vadd.f32 %v8065, %v7937
    %v8067 = vadd.f32 %v8066, %v7969
    %v8068 = vadd.f32 %v8067, %v8001
    %v8069 = vadd.f32 %v7779, %v7811
    %v8070 = vadd.f32 %v8069, %v7843
    %v8071 = vadd.f32 %v8070, %v7875
    %v8072 = vadd.f32 %v8071, %v7907
    %v8073 = vadd.f32 %v8072, %v7939
    %v8074 = vadd.f32 %v8073, %v7971
    %v8075 = vadd.f32 %v8074, %v8003
    %v8076 = vadd.f32 %v7781, %v7813
    %v8077 = vadd.f32 %v8076, %v7845
    %v8078 = vadd.f32 %v8077, %v7877
    %v8079 = vadd.f32 %v8078, %v7909
    %v8080 = vadd.f32 %v8079, %v7941
    %v8081 = vadd.f32 %v8080, %v7973
    %v8082 = vadd.f32 %v8081, %v8005
    %v8083 = vadd.f32 %v7783, %v7815
    %v8084 = vadd.f32 %v8083, %v7847
    %v8085 = vadd.f32 %v8084, %v7879
    %v8086 = vadd.f32 %v8085, %v7911
    %v8087 = vadd.f32 %v8086, %v7943
    %v8088 = vadd.f32 %v8087, %v7975
    %v8089 = vadd.f32 %v8088, %v8007
    %v8090 = vadd.f32 %v7785, %v7817
    %v8091 = vadd.f32 %v8090, %v7849
    %v8092 = vadd.f32 %v8091, %v7881
    %v8093 = vadd.f32 %v8092, %v7913
    %v8094 = vadd.f32 %v8093, %v7945
    %v8095 = vadd.f32 %v8094, %v7977
    %v8096 = vadd.f32 %v8095, %v8009
    %v8097 = vadd.f32 %v7787, %v7819
    %v8098 = vadd.f32 %v8097, %v7851
    %v8099 = vadd.f32 %v8098, %v7883
    %v8100 = vadd.f32 %v8099, %v7915
    %v8101 = vadd.f32 %v8100, %v7947
    %v8102 = vadd.f32 %v8101, %v7979
    %v8103 = vadd.f32 %v8102, %v8011
    %v8104 = vadd.f32 %v7789, %v7821
    %v8105 = vadd.f32 %v8104, %v7853
    %v8106 = vadd.f32 %v8105, %v7885
    %v8107 = vadd.f32 %v8106, %v7917
    %v8108 = vadd.f32 %v8107, %v7949
    %v8109 = vadd.f32 %v8108, %v7981
    %v8110 = vadd.f32 %v8109, %v8013
    %v8111 = vadd.f32 %v7791, %v7823
    %v8112 = vadd.f32 %v8111, %v7855
    %v8113 = vadd.f32 %v8112, %v7887
    %v8114 = vadd.f32 %v8113, %v7919
    %v8115 = vadd.f32 %v8114, %v7951
    %v8116 = vadd.f32 %v8115, %v7983
    %v8117 = vadd.f32 %v8116, %v8015
    %v8118 = vadd.f32 %v7793, %v7825
    %v8119 = vadd.f32 %v8118, %v7857
    %v8120 = vadd.f32 %v8119, %v7889
    %v8121 = vadd.f32 %v8120, %v7921
    %v8122 = vadd.f32 %v8121, %v7953
    %v8123 = vadd.f32 %v8122, %v7985
    %v8124 = vadd.f32 %v8123, %v8017
    %v8125 = vadd.f32 %v7795, %v7827
    %v8126 = vadd.f32 %v8125, %v7859
    %v8127 = vadd.f32 %v8126, %v7891
    %v8128 = vadd.f32 %v8127, %v7923
    %v8129 = vadd.f32 %v8128, %v7955
    %v8130 = vadd.f32 %v8129, %v7987
    %v8131 = vadd.f32 %v8130, %v8019
    %v8132 = vrcp.pop %v8026
    %v8133 = vrcp.pop %v8033
    %v8134 = vrcp.pop %v8040
    %v8135 = vrcp.pop %v8047
    %v8136 = vrcp.pop %v8054
    %v8137 = vrcp.pop %v8061
    %v8138 = vrcp.pop %v8068
    %v8139 = vrcp.pop %v8075
    %v8140 = vrcp.pop %v8082
    %v8141 = vrcp.pop %v8089
    %v8142 = vrcp.pop %v8096
    %v8143 = vrcp.pop %v8103
    %v8144 = vrcp.pop %v8110
    %v8145 = vrcp.pop %v8117
    %v8146 = vrcp.pop %v8124
    %v8147 = vrcp.pop %v8131
    %v8148 = vmul.f32 %v7765, %v8132
    %v8149 = vmul.f32 %v7767, %v8133
    %v8150 = vmul.f32 %v7769, %v8134
    %v8151 = vmul.f32 %v7771, %v8135
    %v8152 = vmul.f32 %v7773, %v8136
    %v8153 = vmul.f32 %v7775, %v8137
    %v8154 = vmul.f32 %v7777, %v8138
    %v8155 = vmul.f32 %v7779, %v8139
    %v8156 = vmul.f32 %v7781, %v8140
    %v8157 = vmul.f32 %v7783, %v8141
    %v8158 = vmul.f32 %v7785, %v8142
    %v8159 = vmul.f32 %v7787, %v8143
    %v8160 = vmul.f32 %v7789, %v8144
    %v8161 = vmul.f32 %v7791, %v8145
    %v8162 = vmul.f32 %v7793, %v8146
    %v8163 = vmul.f32 %v7795, %v8147
    %v8164 = vmul.f32 %v7797, %v8132
    %v8165 = vmul.f32 %v7799, %v8133
    %v8166 = vmul.f32 %v7801, %v8134
    %v8167 = vmul.f32 %v7803, %v8135
    %v8168 = vmul.f32 %v7805, %v8136
    %v8169 = vmul.f32 %v7807, %v8137
    %v8170 = vmul.f32 %v7809, %v8138
    %v8171 = vmul.f32 %v7811, %v8139
    %v8172 = vmul.f32 %v7813, %v8140
    %v8173 = vmul.f32 %v7815, %v8141
    %v8174 = vmul.f32 %v7817, %v8142
    %v8175 = vmul.f32 %v7819, %v8143
    %v8176 = vmul.f32 %v7821, %v8144
    %v8177 = vmul.f32 %v7823, %v8145
    %v8178 = vmul.f32 %v7825, %v8146
    %v8179 = vmul.f32 %v7827, %v8147
    %v8180 = vmul.f32 %v7829, %v8132
    %v8181 = vmul.f32 %v7831, %v8133
    %v8182 = vmul.f32 %v7833, %v8134
    %v8183 = vmul.f32 %v7835, %v8135
    %v8184 = vmul.f32 %v7837, %v8136
    %v8185 = vmul.f32 %v7839, %v8137
    %v8186 = vmul.f32 %v7841, %v8138
    %v8187 = vmul.f32 %v7843, %v8139
    %v8188 = vmul.f32 %v7845, %v8140
    %v8189 = vmul.f32 %v7847, %v8141
    %v8190 = vmul.f32 %v7849, %v8142
    %v8191 = vmul.f32 %v7851, %v8143
    %v8192 = vmul.f32 %v7853, %v8144
    %v8193 = vmul.f32 %v7855, %v8145
    %v8194 = vmul.f32 %v7857, %v8146
    %v8195 = vmul.f32 %v7859, %v8147
    %v8196 = vmul.f32 %v7861, %v8132
    %v8197 = vmul.f32 %v7863, %v8133
    %v8198 = vmul.f32 %v7865, %v8134
    %v8199 = vmul.f32 %v7867, %v8135
    %v8200 = vmul.f32 %v7869, %v8136
    %v8201 = vmul.f32 %v7871, %v8137
    %v8202 = vmul.f32 %v7873, %v8138
    %v8203 = vmul.f32 %v7875, %v8139
    %v8204 = vmul.f32 %v7877, %v8140
    %v8205 = vmul.f32 %v7879, %v8141
    %v8206 = vmul.f32 %v7881, %v8142
    %v8207 = vmul.f32 %v7883, %v8143
    %v8208 = vmul.f32 %v7885, %v8144
    %v8209 = vmul.f32 %v7887, %v8145
    %v8210 = vmul.f32 %v7889, %v8146
    %v8211 = vmul.f32 %v7891, %v8147
    %v8212 = vmul.f32 %v7893, %v8132
    %v8213 = vmul.f32 %v7895, %v8133
    %v8214 = vmul.f32 %v7897, %v8134
    %v8215 = vmul.f32 %v7899, %v8135
    %v8216 = vmul.f32 %v7901, %v8136
    %v8217 = vmul.f32 %v7903, %v8137
    %v8218 = vmul.f32 %v7905, %v8138
    %v8219 = vmul.f32 %v7907, %v8139
    %v8220 = vmul.f32 %v7909, %v8140
    %v8221 = vmul.f32 %v7911, %v8141
    %v8222 = vmul.f32 %v7913, %v8142
    %v8223 = vmul.f32 %v7915, %v8143
    %v8224 = vmul.f32 %v7917, %v8144
    %v8225 = vmul.f32 %v7919, %v8145
    %v8226 = vmul.f32 %v7921, %v8146
    %v8227 = vmul.f32 %v7923, %v8147
    %v8228 = vmul.f32 %v7925, %v8132
    %v8229 = vmul.f32 %v7927, %v8133
    %v8230 = vmul.f32 %v7929, %v8134
    %v8231 = vmul.f32 %v7931, %v8135
    %v8232 = vmul.f32 %v7933, %v8136
    %v8233 = vmul.f32 %v7935, %v8137
    %v8234 = vmul.f32 %v7937, %v8138
    %v8235 = vmul.f32 %v7939, %v8139
    %v8236 = vmul.f32 %v7941, %v8140
    %v8237 = vmul.f32 %v7943, %v8141
    %v8238 = vmul.f32 %v7945, %v8142
    %v8239 = vmul.f32 %v7947, %v8143
    %v8240 = vmul.f32 %v7949, %v8144
    %v8241 = vmul.f32 %v7951, %v8145
    %v8242 = vmul.f32 %v7953, %v8146
    %v8243 = vmul.f32 %v7955, %v8147
    %v8244 = vmul.f32 %v7957, %v8132
    %v8245 = vmul.f32 %v7959, %v8133
    %v8246 = vmul.f32 %v7961, %v8134
    %v8247 = vmul.f32 %v7963, %v8135
    %v8248 = vmul.f32 %v7965, %v8136
    %v8249 = vmul.f32 %v7967, %v8137
    %v8250 = vmul.f32 %v7969, %v8138
    %v8251 = vmul.f32 %v7971, %v8139
    %v8252 = vmul.f32 %v7973, %v8140
    %v8253 = vmul.f32 %v7975, %v8141
    %v8254 = vmul.f32 %v7977, %v8142
    %v8255 = vmul.f32 %v7979, %v8143
    %v8256 = vmul.f32 %v7981, %v8144
    %v8257 = vmul.f32 %v7983, %v8145
    %v8258 = vmul.f32 %v7985, %v8146
    %v8259 = vmul.f32 %v7987, %v8147
    %v8260 = vmul.f32 %v7989, %v8132
    %v8261 = vmul.f32 %v7991, %v8133
    %v8262 = vmul.f32 %v7993, %v8134
    %v8263 = vmul.f32 %v7995, %v8135
    %v8264 = vmul.f32 %v7997, %v8136
    %v8265 = vmul.f32 %v7999, %v8137
    %v8266 = vmul.f32 %v8001, %v8138
    %v8267 = vmul.f32 %v8003, %v8139
    %v8268 = vmul.f32 %v8005, %v8140
    %v8269 = vmul.f32 %v8007, %v8141
    %v8270 = vmul.f32 %v8009, %v8142
    %v8271 = vmul.f32 %v8011, %v8143
    %v8272 = vmul.f32 %v8013, %v8144
    %v8273 = vmul.f32 %v8015, %v8145
    %v8274 = vmul.f32 %v8017, %v8146
    %v8275 = vmul.f32 %v8019, %v8147
    %v8276 = vmul.f32 %v8148, %v6884
    %v8277 = vmul.f32 %v8149, %v6885
    %v8278 = vmul.f32 %v8150, %v6886
    %v8279 = vmul.f32 %v8151, %v6887
    %v8280 = vmul.f32 %v8152, %v6888
    %v8281 = vmul.f32 %v8153, %v6889
    %v8282 = vmul.f32 %v8154, %v6890
    %v8283 = vmul.f32 %v8155, %v6891
    %v8284 = vmul.f32 %v8156, %v6892
    %v8285 = vmul.f32 %v8157, %v6893
    %v8286 = vmul.f32 %v8158, %v6894
    %v8287 = vmul.f32 %v8159, %v6895
    %v8288 = vmul.f32 %v8160, %v6896
    %v8289 = vmul.f32 %v8161, %v6897
    %v8290 = vmul.f32 %v8162, %v6898
    %v8291 = vmul.f32 %v8163, %v6899
    %v8292 = vmul.f32 %v8164, %v6900
    %v8293 = vmul.f32 %v8165, %v6901
    %v8294 = vmul.f32 %v8166, %v6902
    %v8295 = vmul.f32 %v8167, %v6903
    %v8296 = vmul.f32 %v8168, %v6904
    %v8297 = vmul.f32 %v8169, %v6905
    %v8298 = vmul.f32 %v8170, %v6906
    %v8299 = vmul.f32 %v8171, %v6907
    %v8300 = vmul.f32 %v8172, %v6908
    %v8301 = vmul.f32 %v8173, %v6909
    %v8302 = vmul.f32 %v8174, %v6910
    %v8303 = vmul.f32 %v8175, %v6911
    %v8304 = vmul.f32 %v8176, %v6912
    %v8305 = vmul.f32 %v8177, %v6913
    %v8306 = vmul.f32 %v8178, %v6914
    %v8307 = vmul.f32 %v8179, %v6915
    %v8308 = vmul.f32 %v8180, %v6916
    %v8309 = vmul.f32 %v8181, %v6917
    %v8310 = vmul.f32 %v8182, %v6918
    %v8311 = vmul.f32 %v8183, %v6919
    %v8312 = vmul.f32 %v8184, %v6920
    %v8313 = vmul.f32 %v8185, %v6921
    %v8314 = vmul.f32 %v8186, %v6922
    %v8315 = vmul.f32 %v8187, %v6923
    %v8316 = vmul.f32 %v8188, %v6924
    %v8317 = vmul.f32 %v8189, %v6925
    %v8318 = vmul.f32 %v8190, %v6926
    %v8319 = vmul.f32 %v8191, %v6927
    %v8320 = vmul.f32 %v8192, %v6928
    %v8321 = vmul.f32 %v8193, %v6929
    %v8322 = vmul.f32 %v8194, %v6930
    %v8323 = vmul.f32 %v8195, %v6931
    %v8324 = vmul.f32 %v8196, %v6932
    %v8325 = vmul.f32 %v8197, %v6933
    %v8326 = vmul.f32 %v8198, %v6934
    %v8327 = vmul.f32 %v8199, %v6935
    %v8328 = vmul.f32 %v8200, %v6936
    %v8329 = vmul.f32 %v8201, %v6937
    %v8330 = vmul.f32 %v8202, %v6938
    %v8331 = vmul.f32 %v8203, %v6939
    %v8332 = vmul.f32 %v8204, %v6940
    %v8333 = vmul.f32 %v8205, %v6941
    %v8334 = vmul.f32 %v8206, %v6942
    %v8335 = vmul.f32 %v8207, %v6943
    %v8336 = vmul.f32 %v8208, %v6944
    %v8337 = vmul.f32 %v8209, %v6945
    %v8338 = vmul.f32 %v8210, %v6946
    %v8339 = vmul.f32 %v8211, %v6947
    %v8340 = vmul.f32 %v8212, %v6948
    %v8341 = vmul.f32 %v8213, %v6949
    %v8342 = vmul.f32 %v8214, %v6950
    %v8343 = vmul.f32 %v8215, %v6951
    %v8344 = vmul.f32 %v8216, %v6952
    %v8345 = vmul.f32 %v8217, %v6953
    %v8346 = vmul.f32 %v8218, %v6954
    %v8347 = vmul.f32 %v8219, %v6955
    %v8348 = vmul.f32 %v8220, %v6956
    %v8349 = vmul.f32 %v8221, %v6957
    %v8350 = vmul.f32 %v8222, %v6958
    %v8351 = vmul.f32 %v8223, %v6959
    %v8352 = vmul.f32 %v8224, %v6960
    %v8353 = vmul.f32 %v8225, %v6961
    %v8354 = vmul.f32 %v8226, %v6962
    %v8355 = vmul.f32 %v8227, %v6963
    %v8356 = vmul.f32 %v8228, %v6964
    %v8357 = vmul.f32 %v8229, %v6965
    %v8358 = vmul.f32 %v8230, %v6966
    %v8359 = vmul.f32 %v8231, %v6967
    %v8360 = vmul.f32 %v8232, %v6968
    %v8361 = vmul.f32 %v8233, %v6969
    %v8362 = vmul.f32 %v8234, %v6970
    %v8363 = vmul.f32 %v8235, %v6971
    %v8364 = vmul.f32 %v8236, %v6972
    %v8365 = vmul.f32 %v8237, %v6973
    %v8366 = vmul.f32 %v8238, %v6974
    %v8367 = vmul.f32 %v8239, %v6975
    %v8368 = vmul.f32 %v8240, %v6976
    %v8369 = vmul.f32 %v8241, %v6977
    %v8370 = vmul.f32 %v8242, %v6978
    %v8371 = vmul.f32 %v8243, %v6979
    %v8372 = vmul.f32 %v8244, %v6980
    %v8373 = vmul.f32 %v8245, %v6981
    %v8374 = vmul.f32 %v8246, %v6982
    %v8375 = vmul.f32 %v8247, %v6983
    %v8376 = vmul.f32 %v8248, %v6984
    %v8377 = vmul.f32 %v8249, %v6985
    %v8378 = vmul.f32 %v8250, %v6986
    %v8379 = vmul.f32 %v8251, %v6987
    %v8380 = vmul.f32 %v8252, %v6988
    %v8381 = vmul.f32 %v8253, %v6989
    %v8382 = vmul.f32 %v8254, %v6990
    %v8383 = vmul.f32 %v8255, %v6991
    %v8384 = vmul.f32 %v8256, %v6992
    %v8385 = vmul.f32 %v8257, %v6993
    %v8386 = vmul.f32 %v8258, %v6994
    %v8387 = vmul.f32 %v8259, %v6995
    %v8388 = vmul.f32 %v8260, %v6996
    %v8389 = vmul.f32 %v8261, %v6997
    %v8390 = vmul.f32 %v8262, %v6998
    %v8391 = vmul.f32 %v8263, %v6999
    %v8392 = vmul.f32 %v8264, %v7000
    %v8393 = vmul.f32 %v8265, %v7001
    %v8394 = vmul.f32 %v8266, %v7002
    %v8395 = vmul.f32 %v8267, %v7003
    %v8396 = vmul.f32 %v8268, %v7004
    %v8397 = vmul.f32 %v8269, %v7005
    %v8398 = vmul.f32 %v8270, %v7006
    %v8399 = vmul.f32 %v8271, %v7007
    %v8400 = vmul.f32 %v8272, %v7008
    %v8401 = vmul.f32 %v8273, %v7009
    %v8402 = vmul.f32 %v8274, %v7010
    %v8403 = vmul.f32 %v8275, %v7011
    %v8404 = vld [vmem:[%s5] sm:$0xff]
    %v8405 = vld [vmem:[%s5 + $0x8] sm:$0xff]
    %v8406 = vld [vmem:[%s5 + $0x10] sm:$0xff]
    %v8407 = vld [vmem:[%s5 + $0x18] sm:$0xff]
    %v8408 = vld [vmem:[%s5 + $0x20] sm:$0xff]
    %v8409 = vld [vmem:[%s5 + $0x28] sm:$0xff]
    %v8410 = vld [vmem:[%s5 + $0x30] sm:$0xff]
    %v8411 = vld [vmem:[%s5 + $0x38] sm:$0xff]
    %v8412 = vld [vmem:[%s5 + $0x40] sm:$0xff]
    %v8413 = vld [vmem:[%s5 + $0x48] sm:$0xff]
    %v8414 = vld [vmem:[%s5 + $0x50] sm:$0xff]
    %v8415 = vld [vmem:[%s5 + $0x58] sm:$0xff]
    %v8416 = vld [vmem:[%s5 + $0x60] sm:$0xff]
    %v8417 = vld [vmem:[%s5 + $0x68] sm:$0xff]
    %v8418 = vld [vmem:[%s5 + $0x70] sm:$0xff]
    %v8419 = vld [vmem:[%s5 + $0x78] sm:$0xff]
    %v8420 = vld [vmem:[%s5 + $0x80] sm:$0xff]
    %v8421 = vld [vmem:[%s5 + $0x88] sm:$0xff]
    %v8422 = vld [vmem:[%s5 + $0x90] sm:$0xff]
    %v8423 = vld [vmem:[%s5 + $0x98] sm:$0xff]
    %v8424 = vld [vmem:[%s5 + $0xa0] sm:$0xff]
    %v8425 = vld [vmem:[%s5 + $0xa8] sm:$0xff]
    %v8426 = vld [vmem:[%s5 + $0xb0] sm:$0xff]
    %v8427 = vld [vmem:[%s5 + $0xb8] sm:$0xff]
    %v8428 = vld [vmem:[%s5 + $0xc0] sm:$0xff]
    %v8429 = vld [vmem:[%s5 + $0xc8] sm:$0xff]
    %v8430 = vld [vmem:[%s5 + $0xd0] sm:$0xff]
    %v8431 = vld [vmem:[%s5 + $0xd8] sm:$0xff]
    %v8432 = vld [vmem:[%s5 + $0xe0] sm:$0xff]
    %v8433 = vld [vmem:[%s5 + $0xe8] sm:$0xff]
    %v8434 = vld [vmem:[%s5 + $0xf0] sm:$0xff]
    %v8435 = vld [vmem:[%s5 + $0xf8] sm:$0xff]
    %v8436 = vld [vmem:[%s5 + $0x100] sm:$0xff]
    %v8437 = vld [vmem:[%s5 + $0x108] sm:$0xff]
    %v8438 = vld [vmem:[%s5 + $0x110] sm:$0xff]
    %v8439 = vld [vmem:[%s5 + $0x118] sm:$0xff]
    %v8440 = vld [vmem:[%s5 + $0x120] sm:$0xff]
    %v8441 = vld [vmem:[%s5 + $0x128] sm:$0xff]
    %v8442 = vld [vmem:[%s5 + $0x130] sm:$0xff]
    %v8443 = vld [vmem:[%s5 + $0x138] sm:$0xff]
    %v8444 = vld [vmem:[%s5 + $0x140] sm:$0xff]
    %v8445 = vld [vmem:[%s5 + $0x148] sm:$0xff]
    %v8446 = vld [vmem:[%s5 + $0x150] sm:$0xff]
    %v8447 = vld [vmem:[%s5 + $0x158] sm:$0xff]
    %v8448 = vld [vmem:[%s5 + $0x160] sm:$0xff]
    %v8449 = vld [vmem:[%s5 + $0x168] sm:$0xff]
    %v8450 = vld [vmem:[%s5 + $0x170] sm:$0xff]
    %v8451 = vld [vmem:[%s5 + $0x178] sm:$0xff]
    %v8452 = vld [vmem:[%s5 + $0x180] sm:$0xff]
    %v8453 = vld [vmem:[%s5 + $0x188] sm:$0xff]
    %v8454 = vld [vmem:[%s5 + $0x190] sm:$0xff]
    %v8455 = vld [vmem:[%s5 + $0x198] sm:$0xff]
    %v8456 = vld [vmem:[%s5 + $0x1a0] sm:$0xff]
    %v8457 = vld [vmem:[%s5 + $0x1a8] sm:$0xff]
    %v8458 = vld [vmem:[%s5 + $0x1b0] sm:$0xff]
    %v8459 = vld [vmem:[%s5 + $0x1b8] sm:$0xff]
    %v8460 = vld [vmem:[%s5 + $0x1c0] sm:$0xff]
    %v8461 = vld [vmem:[%s5 + $0x1c8] sm:$0xff]
    %v8462 = vld [vmem:[%s5 + $0x1d0] sm:$0xff]
    %v8463 = vld [vmem:[%s5 + $0x1d8] sm:$0xff]
    %v8464 = vld [vmem:[%s5 + $0x1e0] sm:$0xff]
    %v8465 = vld [vmem:[%s5 + $0x1e8] sm:$0xff]
    %v8466 = vld [vmem:[%s5 + $0x1f0] sm:$0xff]
    %v8467 = vld [vmem:[%s5 + $0x1f8] sm:$0xff]
    %v8468 = vld [vmem:[%s5 + $0x200] sm:$0xff]
    %v8469 = vld [vmem:[%s5 + $0x208] sm:$0xff]
    %v8470 = vld [vmem:[%s5 + $0x210] sm:$0xff]
    %v8471 = vld [vmem:[%s5 + $0x218] sm:$0xff]
    %v8472 = vld [vmem:[%s5 + $0x220] sm:$0xff]
    %v8473 = vld [vmem:[%s5 + $0x228] sm:$0xff]
    %v8474 = vld [vmem:[%s5 + $0x230] sm:$0xff]
    %v8475 = vld [vmem:[%s5 + $0x238] sm:$0xff]
    %v8476 = vld [vmem:[%s5 + $0x240] sm:$0xff]
    %v8477 = vld [vmem:[%s5 + $0x248] sm:$0xff]
    %v8478 = vld [vmem:[%s5 + $0x250] sm:$0xff]
    %v8479 = vld [vmem:[%s5 + $0x258] sm:$0xff]
    %v8480 = vld [vmem:[%s5 + $0x260] sm:$0xff]
    %v8481 = vld [vmem:[%s5 + $0x268] sm:$0xff]
    %v8482 = vld [vmem:[%s5 + $0x270] sm:$0xff]
    %v8483 = vld [vmem:[%s5 + $0x278] sm:$0xff]
    %v8484 = vld [vmem:[%s5 + $0x280] sm:$0xff]
    %v8485 = vld [vmem:[%s5 + $0x288] sm:$0xff]
    %v8486 = vld [vmem:[%s5 + $0x290] sm:$0xff]
    %v8487 = vld [vmem:[%s5 + $0x298] sm:$0xff]
    %v8488 = vld [vmem:[%s5 + $0x2a0] sm:$0xff]
    %v8489 = vld [vmem:[%s5 + $0x2a8] sm:$0xff]
    %v8490 = vld [vmem:[%s5 + $0x2b0] sm:$0xff]
    %v8491 = vld [vmem:[%s5 + $0x2b8] sm:$0xff]
    %v8492 = vld [vmem:[%s5 + $0x2c0] sm:$0xff]
    %v8493 = vld [vmem:[%s5 + $0x2c8] sm:$0xff]
    %v8494 = vld [vmem:[%s5 + $0x2d0] sm:$0xff]
    %v8495 = vld [vmem:[%s5 + $0x2d8] sm:$0xff]
    %v8496 = vld [vmem:[%s5 + $0x2e0] sm:$0xff]
    %v8497 = vld [vmem:[%s5 + $0x2e8] sm:$0xff]
    %v8498 = vld [vmem:[%s5 + $0x2f0] sm:$0xff]
    %v8499 = vld [vmem:[%s5 + $0x2f8] sm:$0xff]
    %v8500 = vld [vmem:[%s5 + $0x300] sm:$0xff]
    %v8501 = vld [vmem:[%s5 + $0x308] sm:$0xff]
    %v8502 = vld [vmem:[%s5 + $0x310] sm:$0xff]
    %v8503 = vld [vmem:[%s5 + $0x318] sm:$0xff]
    %v8504 = vld [vmem:[%s5 + $0x320] sm:$0xff]
    %v8505 = vld [vmem:[%s5 + $0x328] sm:$0xff]
    %v8506 = vld [vmem:[%s5 + $0x330] sm:$0xff]
    %v8507 = vld [vmem:[%s5 + $0x338] sm:$0xff]
    %v8508 = vld [vmem:[%s5 + $0x340] sm:$0xff]
    %v8509 = vld [vmem:[%s5 + $0x348] sm:$0xff]
    %v8510 = vld [vmem:[%s5 + $0x350] sm:$0xff]
    %v8511 = vld [vmem:[%s5 + $0x358] sm:$0xff]
    %v8512 = vld [vmem:[%s5 + $0x360] sm:$0xff]
    %v8513 = vld [vmem:[%s5 + $0x368] sm:$0xff]
    %v8514 = vld [vmem:[%s5 + $0x370] sm:$0xff]
    %v8515 = vld [vmem:[%s5 + $0x378] sm:$0xff]
    %v8516 = vld [vmem:[%s5 + $0x380] sm:$0xff]
    %v8517 = vld [vmem:[%s5 + $0x388] sm:$0xff]
    %v8518 = vld [vmem:[%s5 + $0x390] sm:$0xff]
    %v8519 = vld [vmem:[%s5 + $0x398] sm:$0xff]
    %v8520 = vld [vmem:[%s5 + $0x3a0] sm:$0xff]
    %v8521 = vld [vmem:[%s5 + $0x3a8] sm:$0xff]
    %v8522 = vld [vmem:[%s5 + $0x3b0] sm:$0xff]
    %v8523 = vld [vmem:[%s5 + $0x3b8] sm:$0xff]
    %v8524 = vld [vmem:[%s5 + $0x3c0] sm:$0xff]
    %v8525 = vld [vmem:[%s5 + $0x3c8] sm:$0xff]
    %v8526 = vld [vmem:[%s5 + $0x3d0] sm:$0xff]
    %v8527 = vld [vmem:[%s5 + $0x3d8] sm:$0xff]
    %v8528 = vld [vmem:[%s5 + $0x3e0] sm:$0xff]
    %v8529 = vld [vmem:[%s5 + $0x3e8] sm:$0xff]
    %v8530 = vld [vmem:[%s5 + $0x3f0] sm:$0xff]
    %v8531 = vld [vmem:[%s5 + $0x3f8] sm:$0xff]
    %8533 = vset.pattern.permute.xlu0 0
    %8534 = vperm.xlu0 %8533, %v8404
    %v8535 = vpop.permute.xlu0 %8534
    %8538 = vset.pattern.permute.xlu0 0
    %8539 = vperm.xlu0 %8538, %v8405
    %v8540 = vpop.permute.xlu0 %8539
    %8543 = vset.pattern.permute.xlu0 0
    %8544 = vperm.xlu0 %8543, %v8406
    %v8545 = vpop.permute.xlu0 %8544
    %8548 = vset.pattern.permute.xlu0 0
    %8549 = vperm.xlu0 %8548, %v8407
    %v8550 = vpop.permute.xlu0 %8549
    %8553 = vset.pattern.permute.xlu0 0
    %8554 = vperm.xlu0 %8553, %v8408
    %v8555 = vpop.permute.xlu0 %8554
    %8558 = vset.pattern.permute.xlu0 0
    %8559 = vperm.xlu0 %8558, %v8409
    %v8560 = vpop.permute.xlu0 %8559
    %8563 = vset.pattern.permute.xlu0 0
    %8564 = vperm.xlu0 %8563, %v8410
    %v8565 = vpop.permute.xlu0 %8564
    %8568 = vset.pattern.permute.xlu0 0
    %8569 = vperm.xlu0 %8568, %v8411
    %v8570 = vpop.permute.xlu0 %8569
    %8573 = vset.pattern.permute.xlu0 0
    %8574 = vperm.xlu0 %8573, %v8412
    %v8575 = vpop.permute.xlu0 %8574
    %8578 = vset.pattern.permute.xlu0 0
    %8579 = vperm.xlu0 %8578, %v8413
    %v8580 = vpop.permute.xlu0 %8579
    %8583 = vset.pattern.permute.xlu0 0
    %8584 = vperm.xlu0 %8583, %v8414
    %v8585 = vpop.permute.xlu0 %8584
    %8588 = vset.pattern.permute.xlu0 0
    %8589 = vperm.xlu0 %8588, %v8415
    %v8590 = vpop.permute.xlu0 %8589
    %8593 = vset.pattern.permute.xlu0 0
    %8594 = vperm.xlu0 %8593, %v8416
    %v8595 = vpop.permute.xlu0 %8594
    %8598 = vset.pattern.permute.xlu0 0
    %8599 = vperm.xlu0 %8598, %v8417
    %v8600 = vpop.permute.xlu0 %8599
    %8603 = vset.pattern.permute.xlu0 0
    %8604 = vperm.xlu0 %8603, %v8418
    %v8605 = vpop.permute.xlu0 %8604
    %8608 = vset.pattern.permute.xlu0 0
    %8609 = vperm.xlu0 %8608, %v8419
    %v8610 = vpop.permute.xlu0 %8609
    %8613 = vset.pattern.permute.xlu0 0
    %8614 = vperm.xlu0 %8613, %v8420
    %v8615 = vpop.permute.xlu0 %8614
    %8618 = vset.pattern.permute.xlu0 0
    %8619 = vperm.xlu0 %8618, %v8421
    %v8620 = vpop.permute.xlu0 %8619
    %8623 = vset.pattern.permute.xlu0 0
    %8624 = vperm.xlu0 %8623, %v8422
    %v8625 = vpop.permute.xlu0 %8624
    %8628 = vset.pattern.permute.xlu0 0
    %8629 = vperm.xlu0 %8628, %v8423
    %v8630 = vpop.permute.xlu0 %8629
    %8633 = vset.pattern.permute.xlu0 0
    %8634 = vperm.xlu0 %8633, %v8424
    %v8635 = vpop.permute.xlu0 %8634
    %8638 = vset.pattern.permute.xlu0 0
    %8639 = vperm.xlu0 %8638, %v8425
    %v8640 = vpop.permute.xlu0 %8639
    %8643 = vset.pattern.permute.xlu0 0
    %8644 = vperm.xlu0 %8643, %v8426
    %v8645 = vpop.permute.xlu0 %8644
    %8648 = vset.pattern.permute.xlu0 0
    %8649 = vperm.xlu0 %8648, %v8427
    %v8650 = vpop.permute.xlu0 %8649
    %8653 = vset.pattern.permute.xlu0 0
    %8654 = vperm.xlu0 %8653, %v8428
    %v8655 = vpop.permute.xlu0 %8654
    %8658 = vset.pattern.permute.xlu0 0
    %8659 = vperm.xlu0 %8658, %v8429
    %v8660 = vpop.permute.xlu0 %8659
    %8663 = vset.pattern.permute.xlu0 0
    %8664 = vperm.xlu0 %8663, %v8430
    %v8665 = vpop.permute.xlu0 %8664
    %8668 = vset.pattern.permute.xlu0 0
    %8669 = vperm.xlu0 %8668, %v8431
    %v8670 = vpop.permute.xlu0 %8669
    %8673 = vset.pattern.permute.xlu0 0
    %8674 = vperm.xlu0 %8673, %v8432
    %v8675 = vpop.permute.xlu0 %8674
    %8678 = vset.pattern.permute.xlu0 0
    %8679 = vperm.xlu0 %8678, %v8433
    %v8680 = vpop.permute.xlu0 %8679
    %8683 = vset.pattern.permute.xlu0 0
    %8684 = vperm.xlu0 %8683, %v8434
    %v8685 = vpop.permute.xlu0 %8684
    %8688 = vset.pattern.permute.xlu0 0
    %8689 = vperm.xlu0 %8688, %v8435
    %v8690 = vpop.permute.xlu0 %8689
    %8693 = vset.pattern.permute.xlu0 0
    %8694 = vperm.xlu0 %8693, %v8436
    %v8695 = vpop.permute.xlu0 %8694
    %8698 = vset.pattern.permute.xlu0 0
    %8699 = vperm.xlu0 %8698, %v8437
    %v8700 = vpop.permute.xlu0 %8699
    %8703 = vset.pattern.permute.xlu0 0
    %8704 = vperm.xlu0 %8703, %v8438
    %v8705 = vpop.permute.xlu0 %8704
    %8708 = vset.pattern.permute.xlu0 0
    %8709 = vperm.xlu0 %8708, %v8439
    %v8710 = vpop.permute.xlu0 %8709
    %8713 = vset.pattern.permute.xlu0 0
    %8714 = vperm.xlu0 %8713, %v8440
    %v8715 = vpop.permute.xlu0 %8714
    %8718 = vset.pattern.permute.xlu0 0
    %8719 = vperm.xlu0 %8718, %v8441
    %v8720 = vpop.permute.xlu0 %8719
    %8723 = vset.pattern.permute.xlu0 0
    %8724 = vperm.xlu0 %8723, %v8442
    %v8725 = vpop.permute.xlu0 %8724
    %8728 = vset.pattern.permute.xlu0 0
    %8729 = vperm.xlu0 %8728, %v8443
    %v8730 = vpop.permute.xlu0 %8729
    %8733 = vset.pattern.permute.xlu0 0
    %8734 = vperm.xlu0 %8733, %v8444
    %v8735 = vpop.permute.xlu0 %8734
    %8738 = vset.pattern.permute.xlu0 0
    %8739 = vperm.xlu0 %8738, %v8445
    %v8740 = vpop.permute.xlu0 %8739
    %8743 = vset.pattern.permute.xlu0 0
    %8744 = vperm.xlu0 %8743, %v8446
    %v8745 = vpop.permute.xlu0 %8744
    %8748 = vset.pattern.permute.xlu0 0
    %8749 = vperm.xlu0 %8748, %v8447
    %v8750 = vpop.permute.xlu0 %8749
    %8753 = vset.pattern.permute.xlu0 0
    %8754 = vperm.xlu0 %8753, %v8448
    %v8755 = vpop.permute.xlu0 %8754
    %8758 = vset.pattern.permute.xlu0 0
    %8759 = vperm.xlu0 %8758, %v8449
    %v8760 = vpop.permute.xlu0 %8759
    %8763 = vset.pattern.permute.xlu0 0
    %8764 = vperm.xlu0 %8763, %v8450
    %v8765 = vpop.permute.xlu0 %8764
    %8768 = vset.pattern.permute.xlu0 0
    %8769 = vperm.xlu0 %8768, %v8451
    %v8770 = vpop.permute.xlu0 %8769
    %8773 = vset.pattern.permute.xlu0 0
    %8774 = vperm.xlu0 %8773, %v8452
    %v8775 = vpop.permute.xlu0 %8774
    %8778 = vset.pattern.permute.xlu0 0
    %8779 = vperm.xlu0 %8778, %v8453
    %v8780 = vpop.permute.xlu0 %8779
    %8783 = vset.pattern.permute.xlu0 0
    %8784 = vperm.xlu0 %8783, %v8454
    %v8785 = vpop.permute.xlu0 %8784
    %8788 = vset.pattern.permute.xlu0 0
    %8789 = vperm.xlu0 %8788, %v8455
    %v8790 = vpop.permute.xlu0 %8789
    %8793 = vset.pattern.permute.xlu0 0
    %8794 = vperm.xlu0 %8793, %v8456
    %v8795 = vpop.permute.xlu0 %8794
    %8798 = vset.pattern.permute.xlu0 0
    %8799 = vperm.xlu0 %8798, %v8457
    %v8800 = vpop.permute.xlu0 %8799
    %8803 = vset.pattern.permute.xlu0 0
    %8804 = vperm.xlu0 %8803, %v8458
    %v8805 = vpop.permute.xlu0 %8804
    %8808 = vset.pattern.permute.xlu0 0
    %8809 = vperm.xlu0 %8808, %v8459
    %v8810 = vpop.permute.xlu0 %8809
    %8813 = vset.pattern.permute.xlu0 0
    %8814 = vperm.xlu0 %8813, %v8460
    %v8815 = vpop.permute.xlu0 %8814
    %8818 = vset.pattern.permute.xlu0 0
    %8819 = vperm.xlu0 %8818, %v8461
    %v8820 = vpop.permute.xlu0 %8819
    %8823 = vset.pattern.permute.xlu0 0
    %8824 = vperm.xlu0 %8823, %v8462
    %v8825 = vpop.permute.xlu0 %8824
    %8828 = vset.pattern.permute.xlu0 0
    %8829 = vperm.xlu0 %8828, %v8463
    %v8830 = vpop.permute.xlu0 %8829
    %8833 = vset.pattern.permute.xlu0 0
    %8834 = vperm.xlu0 %8833, %v8464
    %v8835 = vpop.permute.xlu0 %8834
    %8838 = vset.pattern.permute.xlu0 0
    %8839 = vperm.xlu0 %8838, %v8465
    %v8840 = vpop.permute.xlu0 %8839
    %8843 = vset.pattern.permute.xlu0 0
    %8844 = vperm.xlu0 %8843, %v8466
    %v8845 = vpop.permute.xlu0 %8844
    %8848 = vset.pattern.permute.xlu0 0
    %8849 = vperm.xlu0 %8848, %v8467
    %v8850 = vpop.permute.xlu0 %8849
    %8853 = vset.pattern.permute.xlu0 0
    %8854 = vperm.xlu0 %8853, %v8468
    %v8855 = vpop.permute.xlu0 %8854
    %8858 = vset.pattern.permute.xlu0 0
    %8859 = vperm.xlu0 %8858, %v8469
    %v8860 = vpop.permute.xlu0 %8859
    %8863 = vset.pattern.permute.xlu0 0
    %8864 = vperm.xlu0 %8863, %v8470
    %v8865 = vpop.permute.xlu0 %8864
    %8868 = vset.pattern.permute.xlu0 0
    %8869 = vperm.xlu0 %8868, %v8471
    %v8870 = vpop.permute.xlu0 %8869
    %8873 = vset.pattern.permute.xlu0 0
    %8874 = vperm.xlu0 %8873, %v8472
    %v8875 = vpop.permute.xlu0 %8874
    %8878 = vset.pattern.permute.xlu0 0
    %8879 = vperm.xlu0 %8878, %v8473
    %v8880 = vpop.permute.xlu0 %8879
    %8883 = vset.pattern.permute.xlu0 0
    %8884 = vperm.xlu0 %8883, %v8474
    %v8885 = vpop.permute.xlu0 %8884
    %8888 = vset.pattern.permute.xlu0 0
    %8889 = vperm.xlu0 %8888, %v8475
    %v8890 = vpop.permute.xlu0 %8889
    %8893 = vset.pattern.permute.xlu0 0
    %8894 = vperm.xlu0 %8893, %v8476
    %v8895 = vpop.permute.xlu0 %8894
    %8898 = vset.pattern.permute.xlu0 0
    %8899 = vperm.xlu0 %8898, %v8477
    %v8900 = vpop.permute.xlu0 %8899
    %8903 = vset.pattern.permute.xlu0 0
    %8904 = vperm.xlu0 %8903, %v8478
    %v8905 = vpop.permute.xlu0 %8904
    %8908 = vset.pattern.permute.xlu0 0
    %8909 = vperm.xlu0 %8908, %v8479
    %v8910 = vpop.permute.xlu0 %8909
    %8913 = vset.pattern.permute.xlu0 0
    %8914 = vperm.xlu0 %8913, %v8480
    %v8915 = vpop.permute.xlu0 %8914
    %8918 = vset.pattern.permute.xlu0 0
    %8919 = vperm.xlu0 %8918, %v8481
    %v8920 = vpop.permute.xlu0 %8919
    %8923 = vset.pattern.permute.xlu0 0
    %8924 = vperm.xlu0 %8923, %v8482
    %v8925 = vpop.permute.xlu0 %8924
    %8928 = vset.pattern.permute.xlu0 0
    %8929 = vperm.xlu0 %8928, %v8483
    %v8930 = vpop.permute.xlu0 %8929
    %8933 = vset.pattern.permute.xlu0 0
    %8934 = vperm.xlu0 %8933, %v8484
    %v8935 = vpop.permute.xlu0 %8934
    %8938 = vset.pattern.permute.xlu0 0
    %8939 = vperm.xlu0 %8938, %v8485
    %v8940 = vpop.permute.xlu0 %8939
    %8943 = vset.pattern.permute.xlu0 0
    %8944 = vperm.xlu0 %8943, %v8486
    %v8945 = vpop.permute.xlu0 %8944
    %8948 = vset.pattern.permute.xlu0 0
    %8949 = vperm.xlu0 %8948, %v8487
    %v8950 = vpop.permute.xlu0 %8949
    %8953 = vset.pattern.permute.xlu0 0
    %8954 = vperm.xlu0 %8953, %v8488
    %v8955 = vpop.permute.xlu0 %8954
    %8958 = vset.pattern.permute.xlu0 0
    %8959 = vperm.xlu0 %8958, %v8489
    %v8960 = vpop.permute.xlu0 %8959
    %8963 = vset.pattern.permute.xlu0 0
    %8964 = vperm.xlu0 %8963, %v8490
    %v8965 = vpop.permute.xlu0 %8964
    %8968 = vset.pattern.permute.xlu0 0
    %8969 = vperm.xlu0 %8968, %v8491
    %v8970 = vpop.permute.xlu0 %8969
    %8973 = vset.pattern.permute.xlu0 0
    %8974 = vperm.xlu0 %8973, %v8492
    %v8975 = vpop.permute.xlu0 %8974
    %8978 = vset.pattern.permute.xlu0 0
    %8979 = vperm.xlu0 %8978, %v8493
    %v8980 = vpop.permute.xlu0 %8979
    %8983 = vset.pattern.permute.xlu0 0
    %8984 = vperm.xlu0 %8983, %v8494
    %v8985 = vpop.permute.xlu0 %8984
    %8988 = vset.pattern.permute.xlu0 0
    %8989 = vperm.xlu0 %8988, %v8495
    %v8990 = vpop.permute.xlu0 %8989
    %8993 = vset.pattern.permute.xlu0 0
    %8994 = vperm.xlu0 %8993, %v8496
    %v8995 = vpop.permute.xlu0 %8994
    %8998 = vset.pattern.permute.xlu0 0
    %8999 = vperm.xlu0 %8998, %v8497
    %v9000 = vpop.permute.xlu0 %8999
    %9003 = vset.pattern.permute.xlu0 0
    %9004 = vperm.xlu0 %9003, %v8498
    %v9005 = vpop.permute.xlu0 %9004
    %9008 = vset.pattern.permute.xlu0 0
    %9009 = vperm.xlu0 %9008, %v8499
    %v9010 = vpop.permute.xlu0 %9009
    %9013 = vset.pattern.permute.xlu0 0
    %9014 = vperm.xlu0 %9013, %v8500
    %v9015 = vpop.permute.xlu0 %9014
    %9018 = vset.pattern.permute.xlu0 0
    %9019 = vperm.xlu0 %9018, %v8501
    %v9020 = vpop.permute.xlu0 %9019
    %9023 = vset.pattern.permute.xlu0 0
    %9024 = vperm.xlu0 %9023, %v8502
    %v9025 = vpop.permute.xlu0 %9024
    %9028 = vset.pattern.permute.xlu0 0
    %9029 = vperm.xlu0 %9028, %v8503
    %v9030 = vpop.permute.xlu0 %9029
    %9033 = vset.pattern.permute.xlu0 0
    %9034 = vperm.xlu0 %9033, %v8504
    %v9035 = vpop.permute.xlu0 %9034
    %9038 = vset.pattern.permute.xlu0 0
    %9039 = vperm.xlu0 %9038, %v8505
    %v9040 = vpop.permute.xlu0 %9039
    %9043 = vset.pattern.permute.xlu0 0
    %9044 = vperm.xlu0 %9043, %v8506
    %v9045 = vpop.permute.xlu0 %9044
    %9048 = vset.pattern.permute.xlu0 0
    %9049 = vperm.xlu0 %9048, %v8507
    %v9050 = vpop.permute.xlu0 %9049
    %9053 = vset.pattern.permute.xlu0 0
    %9054 = vperm.xlu0 %9053, %v8508
    %v9055 = vpop.permute.xlu0 %9054
    %9058 = vset.pattern.permute.xlu0 0
    %9059 = vperm.xlu0 %9058, %v8509
    %v9060 = vpop.permute.xlu0 %9059
    %9063 = vset.pattern.permute.xlu0 0
    %9064 = vperm.xlu0 %9063, %v8510
    %v9065 = vpop.permute.xlu0 %9064
    %9068 = vset.pattern.permute.xlu0 0
    %9069 = vperm.xlu0 %9068, %v8511
    %v9070 = vpop.permute.xlu0 %9069
    %9073 = vset.pattern.permute.xlu0 0
    %9074 = vperm.xlu0 %9073, %v8512
    %v9075 = vpop.permute.xlu0 %9074
    %9078 = vset.pattern.permute.xlu0 0
    %9079 = vperm.xlu0 %9078, %v8513
    %v9080 = vpop.permute.xlu0 %9079
    %9083 = vset.pattern.permute.xlu0 0
    %9084 = vperm.xlu0 %9083, %v8514
    %v9085 = vpop.permute.xlu0 %9084
    %9088 = vset.pattern.permute.xlu0 0
    %9089 = vperm.xlu0 %9088, %v8515
    %v9090 = vpop.permute.xlu0 %9089
    %9093 = vset.pattern.permute.xlu0 0
    %9094 = vperm.xlu0 %9093, %v8516
    %v9095 = vpop.permute.xlu0 %9094
    %9098 = vset.pattern.permute.xlu0 0
    %9099 = vperm.xlu0 %9098, %v8517
    %v9100 = vpop.permute.xlu0 %9099
    %9103 = vset.pattern.permute.xlu0 0
    %9104 = vperm.xlu0 %9103, %v8518
    %v9105 = vpop.permute.xlu0 %9104
    %9108 = vset.pattern.permute.xlu0 0
    %9109 = vperm.xlu0 %9108, %v8519
    %v9110 = vpop.permute.xlu0 %9109
    %9113 = vset.pattern.permute.xlu0 0
    %9114 = vperm.xlu0 %9113, %v8520
    %v9115 = vpop.permute.xlu0 %9114
    %9118 = vset.pattern.permute.xlu0 0
    %9119 = vperm.xlu0 %9118, %v8521
    %v9120 = vpop.permute.xlu0 %9119
    %9123 = vset.pattern.permute.xlu0 0
    %9124 = vperm.xlu0 %9123, %v8522
    %v9125 = vpop.permute.xlu0 %9124
    %9128 = vset.pattern.permute.xlu0 0
    %9129 = vperm.xlu0 %9128, %v8523
    %v9130 = vpop.permute.xlu0 %9129
    %9133 = vset.pattern.permute.xlu0 0
    %9134 = vperm.xlu0 %9133, %v8524
    %v9135 = vpop.permute.xlu0 %9134
    %9138 = vset.pattern.permute.xlu0 0
    %9139 = vperm.xlu0 %9138, %v8525
    %v9140 = vpop.permute.xlu0 %9139
    %9143 = vset.pattern.permute.xlu0 0
    %9144 = vperm.xlu0 %9143, %v8526
    %v9145 = vpop.permute.xlu0 %9144
    %9148 = vset.pattern.permute.xlu0 0
    %9149 = vperm.xlu0 %9148, %v8527
    %v9150 = vpop.permute.xlu0 %9149
    %9153 = vset.pattern.permute.xlu0 0
    %9154 = vperm.xlu0 %9153, %v8528
    %v9155 = vpop.permute.xlu0 %9154
    %9158 = vset.pattern.permute.xlu0 0
    %9159 = vperm.xlu0 %9158, %v8529
    %v9160 = vpop.permute.xlu0 %9159
    %9163 = vset.pattern.permute.xlu0 0
    %9164 = vperm.xlu0 %9163, %v8530
    %v9165 = vpop.permute.xlu0 %9164
    %9168 = vset.pattern.permute.xlu0 0
    %9169 = vperm.xlu0 %9168, %v8531
    %v9170 = vpop.permute.xlu0 %9169
    %v9172 = vmul.f32 %v8535, %v8276
    %v9173 = vmul.f32 %v8540, %v8277
    %v9174 = vmul.f32 %v8545, %v8278
    %v9175 = vmul.f32 %v8550, %v8279
    %v9176 = vmul.f32 %v8555, %v8280
    %v9177 = vmul.f32 %v8560, %v8281
    %v9178 = vmul.f32 %v8565, %v8282
    %v9179 = vmul.f32 %v8570, %v8283
    %v9180 = vmul.f32 %v8575, %v8284
    %v9181 = vmul.f32 %v8580, %v8285
    %v9182 = vmul.f32 %v8585, %v8286
    %v9183 = vmul.f32 %v8590, %v8287
    %v9184 = vmul.f32 %v8595, %v8288
    %v9185 = vmul.f32 %v8600, %v8289
    %v9186 = vmul.f32 %v8605, %v8290
    %v9187 = vmul.f32 %v8610, %v8291
    %v9188 = vmul.f32 %v8615, %v8292
    %v9189 = vmul.f32 %v8620, %v8293
    %v9190 = vmul.f32 %v8625, %v8294
    %v9191 = vmul.f32 %v8630, %v8295
    %v9192 = vmul.f32 %v8635, %v8296
    %v9193 = vmul.f32 %v8640, %v8297
    %v9194 = vmul.f32 %v8645, %v8298
    %v9195 = vmul.f32 %v8650, %v8299
    %v9196 = vmul.f32 %v8655, %v8300
    %v9197 = vmul.f32 %v8660, %v8301
    %v9198 = vmul.f32 %v8665, %v8302
    %v9199 = vmul.f32 %v8670, %v8303
    %v9200 = vmul.f32 %v8675, %v8304
    %v9201 = vmul.f32 %v8680, %v8305
    %v9202 = vmul.f32 %v8685, %v8306
    %v9203 = vmul.f32 %v8690, %v8307
    %v9204 = vmul.f32 %v8695, %v8308
    %v9205 = vmul.f32 %v8700, %v8309
    %v9206 = vmul.f32 %v8705, %v8310
    %v9207 = vmul.f32 %v8710, %v8311
    %v9208 = vmul.f32 %v8715, %v8312
    %v9209 = vmul.f32 %v8720, %v8313
    %v9210 = vmul.f32 %v8725, %v8314
    %v9211 = vmul.f32 %v8730, %v8315
    %v9212 = vmul.f32 %v8735, %v8316
    %v9213 = vmul.f32 %v8740, %v8317
    %v9214 = vmul.f32 %v8745, %v8318
    %v9215 = vmul.f32 %v8750, %v8319
    %v9216 = vmul.f32 %v8755, %v8320
    %v9217 = vmul.f32 %v8760, %v8321
    %v9218 = vmul.f32 %v8765, %v8322
    %v9219 = vmul.f32 %v8770, %v8323
    %v9220 = vmul.f32 %v8775, %v8324
    %v9221 = vmul.f32 %v8780, %v8325
    %v9222 = vmul.f32 %v8785, %v8326
    %v9223 = vmul.f32 %v8790, %v8327
    %v9224 = vmul.f32 %v8795, %v8328
    %v9225 = vmul.f32 %v8800, %v8329
    %v9226 = vmul.f32 %v8805, %v8330
    %v9227 = vmul.f32 %v8810, %v8331
    %v9228 = vmul.f32 %v8815, %v8332
    %v9229 = vmul.f32 %v8820, %v8333
    %v9230 = vmul.f32 %v8825, %v8334
    %v9231 = vmul.f32 %v8830, %v8335
    %v9232 = vmul.f32 %v8835, %v8336
    %v9233 = vmul.f32 %v8840, %v8337
    %v9234 = vmul.f32 %v8845, %v8338
    %v9235 = vmul.f32 %v8850, %v8339
    %v9236 = vmul.f32 %v8855, %v8340
    %v9237 = vmul.f32 %v8860, %v8341
    %v9238 = vmul.f32 %v8865, %v8342
    %v9239 = vmul.f32 %v8870, %v8343
    %v9240 = vmul.f32 %v8875, %v8344
    %v9241 = vmul.f32 %v8880, %v8345
    %v9242 = vmul.f32 %v8885, %v8346
    %v9243 = vmul.f32 %v8890, %v8347
    %v9244 = vmul.f32 %v8895, %v8348
    %v9245 = vmul.f32 %v8900, %v8349
    %v9246 = vmul.f32 %v8905, %v8350
    %v9247 = vmul.f32 %v8910, %v8351
    %v9248 = vmul.f32 %v8915, %v8352
    %v9249 = vmul.f32 %v8920, %v8353
    %v9250 = vmul.f32 %v8925, %v8354
    %v9251 = vmul.f32 %v8930, %v8355
    %v9252 = vmul.f32 %v8935, %v8356
    %v9253 = vmul.f32 %v8940, %v8357
    %v9254 = vmul.f32 %v8945, %v8358
    %v9255 = vmul.f32 %v8950, %v8359
    %v9256 = vmul.f32 %v8955, %v8360
    %v9257 = vmul.f32 %v8960, %v8361
    %v9258 = vmul.f32 %v8965, %v8362
    %v9259 = vmul.f32 %v8970, %v8363
    %v9260 = vmul.f32 %v8975, %v8364
    %v9261 = vmul.f32 %v8980, %v8365
    %v9262 = vmul.f32 %v8985, %v8366
    %v9263 = vmul.f32 %v8990, %v8367
    %v9264 = vmul.f32 %v8995, %v8368
    %v9265 = vmul.f32 %v9000, %v8369
    %v9266 = vmul.f32 %v9005, %v8370
    %v9267 = vmul.f32 %v9010, %v8371
    %v9268 = vmul.f32 %v9015, %v8372
    %v9269 = vmul.f32 %v9020, %v8373
    %v9270 = vmul.f32 %v9025, %v8374
    %v9271 = vmul.f32 %v9030, %v8375
    %v9272 = vmul.f32 %v9035, %v8376
    %v9273 = vmul.f32 %v9040, %v8377
    %v9274 = vmul.f32 %v9045, %v8378
    %v9275 = vmul.f32 %v9050, %v8379
    %v9276 = vmul.f32 %v9055, %v8380
    %v9277 = vmul.f32 %v9060, %v8381
    %v9278 = vmul.f32 %v9065, %v8382
    %v9279 = vmul.f32 %v9070, %v8383
    %v9280 = vmul.f32 %v9075, %v8384
    %v9281 = vmul.f32 %v9080, %v8385
    %v9282 = vmul.f32 %v9085, %v8386
    %v9283 = vmul.f32 %v9090, %v8387
    %v9284 = vmul.f32 %v9095, %v8388
    %v9285 = vmul.f32 %v9100, %v8389
    %v9286 = vmul.f32 %v9105, %v8390
    %v9287 = vmul.f32 %v9110, %v8391
    %v9288 = vmul.f32 %v9115, %v8392
    %v9289 = vmul.f32 %v9120, %v8393
    %v9290 = vmul.f32 %v9125, %v8394
    %v9291 = vmul.f32 %v9130, %v8395
    %v9292 = vmul.f32 %v9135, %v8396
    %v9293 = vmul.f32 %v9140, %v8397
    %v9294 = vmul.f32 %v9145, %v8398
    %v9295 = vmul.f32 %v9150, %v8399
    %v9296 = vmul.f32 %v9155, %v8400
    %v9297 = vmul.f32 %v9160, %v8401
    %v9298 = vmul.f32 %v9165, %v8402
    %v9299 = vmul.f32 %v9170, %v8403
    %v9300 = vmax.f32 %v9172, 0.0
    %v9301 = vmax.f32 %v9173, 0.0
    %v9302 = vmax.f32 %v9174, 0.0
    %v9303 = vmax.f32 %v9175, 0.0
    %v9304 = vmax.f32 %v9176, 0.0
    %v9305 = vmax.f32 %v9177, 0.0
    %v9306 = vmax.f32 %v9178, 0.0
    %v9307 = vmax.f32 %v9179, 0.0
    %v9308 = vmax.f32 %v9180, 0.0
    %v9309 = vmax.f32 %v9181, 0.0
    %v9310 = vmax.f32 %v9182, 0.0
    %v9311 = vmax.f32 %v9183, 0.0
    %v9312 = vmax.f32 %v9184, 0.0
    %v9313 = vmax.f32 %v9185, 0.0
    %v9314 = vmax.f32 %v9186, 0.0
    %v9315 = vmax.f32 %v9187, 0.0
    %v9316 = vmax.f32 %v9188, 0.0
    %v9317 = vmax.f32 %v9189, 0.0
    %v9318 = vmax.f32 %v9190, 0.0
    %v9319 = vmax.f32 %v9191, 0.0
    %v9320 = vmax.f32 %v9192, 0.0
    %v9321 = vmax.f32 %v9193, 0.0
    %v9322 = vmax.f32 %v9194, 0.0
    %v9323 = vmax.f32 %v9195, 0.0
    %v9324 = vmax.f32 %v9196, 0.0
    %v9325 = vmax.f32 %v9197, 0.0
    %v9326 = vmax.f32 %v9198, 0.0
    %v9327 = vmax.f32 %v9199, 0.0
    %v9328 = vmax.f32 %v9200, 0.0
    %v9329 = vmax.f32 %v9201, 0.0
    %v9330 = vmax.f32 %v9202, 0.0
    %v9331 = vmax.f32 %v9203, 0.0
    %v9332 = vmax.f32 %v9204, 0.0
    %v9333 = vmax.f32 %v9205, 0.0
    %v9334 = vmax.f32 %v9206, 0.0
    %v9335 = vmax.f32 %v9207, 0.0
    %v9336 = vmax.f32 %v9208, 0.0
    %v9337 = vmax.f32 %v9209, 0.0
    %v9338 = vmax.f32 %v9210, 0.0
    %v9339 = vmax.f32 %v9211, 0.0
    %v9340 = vmax.f32 %v9212, 0.0
    %v9341 = vmax.f32 %v9213, 0.0
    %v9342 = vmax.f32 %v9214, 0.0
    %v9343 = vmax.f32 %v9215, 0.0
    %v9344 = vmax.f32 %v9216, 0.0
    %v9345 = vmax.f32 %v9217, 0.0
    %v9346 = vmax.f32 %v9218, 0.0
    %v9347 = vmax.f32 %v9219, 0.0
    %v9348 = vmax.f32 %v9220, 0.0
    %v9349 = vmax.f32 %v9221, 0.0
    %v9350 = vmax.f32 %v9222, 0.0
    %v9351 = vmax.f32 %v9223, 0.0
    %v9352 = vmax.f32 %v9224, 0.0
    %v9353 = vmax.f32 %v9225, 0.0
    %v9354 = vmax.f32 %v9226, 0.0
    %v9355 = vmax.f32 %v9227, 0.0
    %v9356 = vmax.f32 %v9228, 0.0
    %v9357 = vmax.f32 %v9229, 0.0
    %v9358 = vmax.f32 %v9230, 0.0
    %v9359 = vmax.f32 %v9231, 0.0
    %v9360 = vmax.f32 %v9232, 0.0
    %v9361 = vmax.f32 %v9233, 0.0
    %v9362 = vmax.f32 %v9234, 0.0
    %v9363 = vmax.f32 %v9235, 0.0
    %v9364 = vmax.f32 %v9236, 0.0
    %v9365 = vmax.f32 %v9237, 0.0
    %v9366 = vmax.f32 %v9238, 0.0
    %v9367 = vmax.f32 %v9239, 0.0
    %v9368 = vmax.f32 %v9240, 0.0
    %v9369 = vmax.f32 %v9241, 0.0
    %v9370 = vmax.f32 %v9242, 0.0
    %v9371 = vmax.f32 %v9243, 0.0
    %v9372 = vmax.f32 %v9244, 0.0
    %v9373 = vmax.f32 %v9245, 0.0
    %v9374 = vmax.f32 %v9246, 0.0
    %v9375 = vmax.f32 %v9247, 0.0
    %v9376 = vmax.f32 %v9248, 0.0
    %v9377 = vmax.f32 %v9249, 0.0
    %v9378 = vmax.f32 %v9250, 0.0
    %v9379 = vmax.f32 %v9251, 0.0
    %v9380 = vmax.f32 %v9252, 0.0
    %v9381 = vmax.f32 %v9253, 0.0
    %v9382 = vmax.f32 %v9254, 0.0
    %v9383 = vmax.f32 %v9255, 0.0
    %v9384 = vmax.f32 %v9256, 0.0
    %v9385 = vmax.f32 %v9257, 0.0
    %v9386 = vmax.f32 %v9258, 0.0
    %v9387 = vmax.f32 %v9259, 0.0
    %v9388 = vmax.f32 %v9260, 0.0
    %v9389 = vmax.f32 %v9261, 0.0
    %v9390 = vmax.f32 %v9262, 0.0
    %v9391 = vmax.f32 %v9263, 0.0
    %v9392 = vmax.f32 %v9264, 0.0
    %v9393 = vmax.f32 %v9265, 0.0
    %v9394 = vmax.f32 %v9266, 0.0
    %v9395 = vmax.f32 %v9267, 0.0
    %v9396 = vmax.f32 %v9268, 0.0
    %v9397 = vmax.f32 %v9269, 0.0
    %v9398 = vmax.f32 %v9270, 0.0
    %v9399 = vmax.f32 %v9271, 0.0
    %v9400 = vmax.f32 %v9272, 0.0
    %v9401 = vmax.f32 %v9273, 0.0
    %v9402 = vmax.f32 %v9274, 0.0
    %v9403 = vmax.f32 %v9275, 0.0
    %v9404 = vmax.f32 %v9276, 0.0
    %v9405 = vmax.f32 %v9277, 0.0
    %v9406 = vmax.f32 %v9278, 0.0
    %v9407 = vmax.f32 %v9279, 0.0
    %v9408 = vmax.f32 %v9280, 0.0
    %v9409 = vmax.f32 %v9281, 0.0
    %v9410 = vmax.f32 %v9282, 0.0
    %v9411 = vmax.f32 %v9283, 0.0
    %v9412 = vmax.f32 %v9284, 0.0
    %v9413 = vmax.f32 %v9285, 0.0
    %v9414 = vmax.f32 %v9286, 0.0
    %v9415 = vmax.f32 %v9287, 0.0
    %v9416 = vmax.f32 %v9288, 0.0
    %v9417 = vmax.f32 %v9289, 0.0
    %v9418 = vmax.f32 %v9290, 0.0
    %v9419 = vmax.f32 %v9291, 0.0
    %v9420 = vmax.f32 %v9292, 0.0
    %v9421 = vmax.f32 %v9293, 0.0
    %v9422 = vmax.f32 %v9294, 0.0
    %v9423 = vmax.f32 %v9295, 0.0
    %v9424 = vmax.f32 %v9296, 0.0
    %v9425 = vmax.f32 %v9297, 0.0
    %v9426 = vmax.f32 %v9298, 0.0
    %v9427 = vmax.f32 %v9299, 0.0
    %v9428 = vadd.f32 %v8276, %v9300
    %v9429 = vadd.f32 %v8277, %v9301
    %v9430 = vadd.f32 %v8278, %v9302
    %v9431 = vadd.f32 %v8279, %v9303
    %v9432 = vadd.f32 %v8280, %v9304
    %v9433 = vadd.f32 %v8281, %v9305
    %v9434 = vadd.f32 %v8282, %v9306
    %v9435 = vadd.f32 %v8283, %v9307
    %v9436 = vadd.f32 %v8284, %v9308
    %v9437 = vadd.f32 %v8285, %v9309
    %v9438 = vadd.f32 %v8286, %v9310
    %v9439 = vadd.f32 %v8287, %v9311
    %v9440 = vadd.f32 %v8288, %v9312
    %v9441 = vadd.f32 %v8289, %v9313
    %v9442 = vadd.f32 %v8290, %v9314
    %v9443 = vadd.f32 %v8291, %v9315
    %v9444 = vadd.f32 %v8292, %v9316
    %v9445 = vadd.f32 %v8293, %v9317
    %v9446 = vadd.f32 %v8294, %v9318
    %v9447 = vadd.f32 %v8295, %v9319
    %v9448 = vadd.f32 %v8296, %v9320
    %v9449 = vadd.f32 %v8297, %v9321
    %v9450 = vadd.f32 %v8298, %v9322
    %v9451 = vadd.f32 %v8299, %v9323
    %v9452 = vadd.f32 %v8300, %v9324
    %v9453 = vadd.f32 %v8301, %v9325
    %v9454 = vadd.f32 %v8302, %v9326
    %v9455 = vadd.f32 %v8303, %v9327
    %v9456 = vadd.f32 %v8304, %v9328
    %v9457 = vadd.f32 %v8305, %v9329
    %v9458 = vadd.f32 %v8306, %v9330
    %v9459 = vadd.f32 %v8307, %v9331
    %v9460 = vadd.f32 %v8308, %v9332
    %v9461 = vadd.f32 %v8309, %v9333
    %v9462 = vadd.f32 %v8310, %v9334
    %v9463 = vadd.f32 %v8311, %v9335
    %v9464 = vadd.f32 %v8312, %v9336
    %v9465 = vadd.f32 %v8313, %v9337
    %v9466 = vadd.f32 %v8314, %v9338
    %v9467 = vadd.f32 %v8315, %v9339
    %v9468 = vadd.f32 %v8316, %v9340
    %v9469 = vadd.f32 %v8317, %v9341
    %v9470 = vadd.f32 %v8318, %v9342
    %v9471 = vadd.f32 %v8319, %v9343
    %v9472 = vadd.f32 %v8320, %v9344
    %v9473 = vadd.f32 %v8321, %v9345
    %v9474 = vadd.f32 %v8322, %v9346
    %v9475 = vadd.f32 %v8323, %v9347
    %v9476 = vadd.f32 %v8324, %v9348
    %v9477 = vadd.f32 %v8325, %v9349
    %v9478 = vadd.f32 %v8326, %v9350
    %v9479 = vadd.f32 %v8327, %v9351
    %v9480 = vadd.f32 %v8328, %v9352
    %v9481 = vadd.f32 %v8329, %v9353
    %v9482 = vadd.f32 %v8330, %v9354
    %v9483 = vadd.f32 %v8331, %v9355
    %v9484 = vadd.f32 %v8332, %v9356
    %v9485 = vadd.f32 %v8333, %v9357
    %v9486 = vadd.f32 %v8334, %v9358
    %v9487 = vadd.f32 %v8335, %v9359
    %v9488 = vadd.f32 %v8336, %v9360
    %v9489 = vadd.f32 %v8337, %v9361
    %v9490 = vadd.f32 %v8338, %v9362
    %v9491 = vadd.f32 %v8339, %v9363
    %v9492 = vadd.f32 %v8340, %v9364
    %v9493 = vadd.f32 %v8341, %v9365
    %v9494 = vadd.f32 %v8342, %v9366
    %v9495 = vadd.f32 %v8343, %v9367
    %v9496 = vadd.f32 %v8344, %v9368
    %v9497 = vadd.f32 %v8345, %v9369
    %v9498 = vadd.f32 %v8346, %v9370
    %v9499 = vadd.f32 %v8347, %v9371
    %v9500 = vadd.f32 %v8348, %v9372
    %v9501 = vadd.f32 %v8349, %v9373
    %v9502 = vadd.f32 %v8350, %v9374
    %v9503 = vadd.f32 %v8351, %v9375
    %v9504 = vadd.f32 %v8352, %v9376
    %v9505 = vadd.f32 %v8353, %v9377
    %v9506 = vadd.f32 %v8354, %v9378
    %v9507 = vadd.f32 %v8355, %v9379
    %v9508 = vadd.f32 %v8356, %v9380
    %v9509 = vadd.f32 %v8357, %v9381
    %v9510 = vadd.f32 %v8358, %v9382
    %v9511 = vadd.f32 %v8359, %v9383
    %v9512 = vadd.f32 %v8360, %v9384
    %v9513 = vadd.f32 %v8361, %v9385
    %v9514 = vadd.f32 %v8362, %v9386
    %v9515 = vadd.f32 %v8363, %v9387
    %v9516 = vadd.f32 %v8364, %v9388
    %v9517 = vadd.f32 %v8365, %v9389
    %v9518 = vadd.f32 %v8366, %v9390
    %v9519 = vadd.f32 %v8367, %v9391
    %v9520 = vadd.f32 %v8368, %v9392
    %v9521 = vadd.f32 %v8369, %v9393
    %v9522 = vadd.f32 %v8370, %v9394
    %v9523 = vadd.f32 %v8371, %v9395
    %v9524 = vadd.f32 %v8372, %v9396
    %v9525 = vadd.f32 %v8373, %v9397
    %v9526 = vadd.f32 %v8374, %v9398
    %v9527 = vadd.f32 %v8375, %v9399
    %v9528 = vadd.f32 %v8376, %v9400
    %v9529 = vadd.f32 %v8377, %v9401
    %v9530 = vadd.f32 %v8378, %v9402
    %v9531 = vadd.f32 %v8379, %v9403
    %v9532 = vadd.f32 %v8380, %v9404
    %v9533 = vadd.f32 %v8381, %v9405
    %v9534 = vadd.f32 %v8382, %v9406
    %v9535 = vadd.f32 %v8383, %v9407
    %v9536 = vadd.f32 %v8384, %v9408
    %v9537 = vadd.f32 %v8385, %v9409
    %v9538 = vadd.f32 %v8386, %v9410
    %v9539 = vadd.f32 %v8387, %v9411
    %v9540 = vadd.f32 %v8388, %v9412
    %v9541 = vadd.f32 %v8389, %v9413
    %v9542 = vadd.f32 %v8390, %v9414
    %v9543 = vadd.f32 %v8391, %v9415
    %v9544 = vadd.f32 %v8392, %v9416
    %v9545 = vadd.f32 %v8393, %v9417
    %v9546 = vadd.f32 %v8394, %v9418
    %v9547 = vadd.f32 %v8395, %v9419
    %v9548 = vadd.f32 %v8396, %v9420
    %v9549 = vadd.f32 %v8397, %v9421
    %v9550 = vadd.f32 %v8398, %v9422
    %v9551 = vadd.f32 %v8399, %v9423
    %v9552 = vadd.f32 %v8400, %v9424
    %v9553 = vadd.f32 %v8401, %v9425
    %v9554 = vadd.f32 %v8402, %v9426
    %v9555 = vadd.f32 %v8403, %v9427
    %v9556 = vsel %vm1745, %v9428, 0.0
    %v9557 = vsel %vm1745, %v9444, 0.0
    %v9558 = vadd.f32 %v9556, %v9557
    %v9559 = vsel %vm1745, %v9460, 0.0
    %v9560 = vadd.f32 %v9558, %v9559
    %v9561 = vsel %vm1745, %v9476, 0.0
    %v9562 = vadd.f32 %v9560, %v9561
    %v9563 = vsel %vm1745, %v9492, 0.0
    %v9564 = vadd.f32 %v9562, %v9563
    %v9565 = vsel %vm1745, %v9508, 0.0
    %v9566 = vadd.f32 %v9564, %v9565
    %v9567 = vsel %vm1745, %v9524, 0.0
    %v9568 = vadd.f32 %v9566, %v9567
    %v9569 = vsel %vm1745, %v9540, 0.0
    %v9570 = vadd.f32 %v9568, %v9569
    %v9571 = vsel %vm1745, %v9429, 0.0
    %v9572 = vsel %vm1745, %v9445, 0.0
    %v9573 = vadd.f32 %v9571, %v9572
    %v9574 = vsel %vm1745, %v9461, 0.0
    %v9575 = vadd.f32 %v9573, %v9574
    %v9576 = vsel %vm1745, %v9477, 0.0
    %v9577 = vadd.f32 %v9575, %v9576
    %v9578 = vsel %vm1745, %v9493, 0.0
    %v9579 = vadd.f32 %v9577, %v9578
    %v9580 = vsel %vm1745, %v9509, 0.0
    %v9581 = vadd.f32 %v9579, %v9580
    %v9582 = vsel %vm1745, %v9525, 0.0
    %v9583 = vadd.f32 %v9581, %v9582
    %v9584 = vsel %vm1745, %v9541, 0.0
    %v9585 = vadd.f32 %v9583, %v9584
    %v9586 = vsel %vm1745, %v9430, 0.0
    %v9587 = vsel %vm1745, %v9446, 0.0
    %v9588 = vadd.f32 %v9586, %v9587
    %v9589 = vsel %vm1745, %v9462, 0.0
    %v9590 = vadd.f32 %v9588, %v9589
    %v9591 = vsel %vm1745, %v9478, 0.0
    %v9592 = vadd.f32 %v9590, %v9591
    %v9593 = vsel %vm1745, %v9494, 0.0
    %v9594 = vadd.f32 %v9592, %v9593
    %v9595 = vsel %vm1745, %v9510, 0.0
    %v9596 = vadd.f32 %v9594, %v9595
    %v9597 = vsel %vm1745, %v9526, 0.0
    %v9598 = vadd.f32 %v9596, %v9597
    %v9599 = vsel %vm1745, %v9542, 0.0
    %v9600 = vadd.f32 %v9598, %v9599
    %v9601 = vsel %vm1745, %v9431, 0.0
    %v9602 = vsel %vm1745, %v9447, 0.0
    %v9603 = vadd.f32 %v9601, %v9602
    %v9604 = vsel %vm1745, %v9463, 0.0
    %v9605 = vadd.f32 %v9603, %v9604
    %v9606 = vsel %vm1745, %v9479, 0.0
    %v9607 = vadd.f32 %v9605, %v9606
    %v9608 = vsel %vm1745, %v9495, 0.0
    %v9609 = vadd.f32 %v9607, %v9608
    %v9610 = vsel %vm1745, %v9511, 0.0
    %v9611 = vadd.f32 %v9609, %v9610
    %v9612 = vsel %vm1745, %v9527, 0.0
    %v9613 = vadd.f32 %v9611, %v9612
    %v9614 = vsel %vm1745, %v9543, 0.0
    %v9615 = vadd.f32 %v9613, %v9614
    %v9616 = vsel %vm1745, %v9432, 0.0
    %v9617 = vsel %vm1745, %v9448, 0.0
    %v9618 = vadd.f32 %v9616, %v9617
    %v9619 = vsel %vm1745, %v9464, 0.0
    %v9620 = vadd.f32 %v9618, %v9619
    %v9621 = vsel %vm1745, %v9480, 0.0
    %v9622 = vadd.f32 %v9620, %v9621
    %v9623 = vsel %vm1745, %v9496, 0.0
    %v9624 = vadd.f32 %v9622, %v9623
    %v9625 = vsel %vm1745, %v9512, 0.0
    %v9626 = vadd.f32 %v9624, %v9625
    %v9627 = vsel %vm1745, %v9528, 0.0
    %v9628 = vadd.f32 %v9626, %v9627
    %v9629 = vsel %vm1745, %v9544, 0.0
    %v9630 = vadd.f32 %v9628, %v9629
    %v9631 = vsel %vm1745, %v9433, 0.0
    %v9632 = vsel %vm1745, %v9449, 0.0
    %v9633 = vadd.f32 %v9631, %v9632
    %v9634 = vsel %vm1745, %v9465, 0.0
    %v9635 = vadd.f32 %v9633, %v9634
    %v9636 = vsel %vm1745, %v9481, 0.0
    %v9637 = vadd.f32 %v9635, %v9636
    %v9638 = vsel %vm1745, %v9497, 0.0
    %v9639 = vadd.f32 %v9637, %v9638
    %v9640 = vsel %vm1745, %v9513, 0.0
    %v9641 = vadd.f32 %v9639, %v9640
    %v9642 = vsel %vm1745, %v9529, 0.0
    %v9643 = vadd.f32 %v9641, %v9642
    %v9644 = vsel %vm1745, %v9545, 0.0
    %v9645 = vadd.f32 %v9643, %v9644
    %v9646 = vsel %vm1745, %v9434, 0.0
    %v9647 = vsel %vm1745, %v9450, 0.0
    %v9648 = vadd.f32 %v9646, %v9647
    %v9649 = vsel %vm1745, %v9466, 0.0
    %v9650 = vadd.f32 %v9648, %v9649
    %v9651 = vsel %vm1745, %v9482, 0.0
    %v9652 = vadd.f32 %v9650, %v9651
    %v9653 = vsel %vm1745, %v9498, 0.0
    %v9654 = vadd.f32 %v9652, %v9653
    %v9655 = vsel %vm1745, %v9514, 0.0
    %v9656 = vadd.f32 %v9654, %v9655
    %v9657 = vsel %vm1745, %v9530, 0.0
    %v9658 = vadd.f32 %v9656, %v9657
    %v9659 = vsel %vm1745, %v9546, 0.0
    %v9660 = vadd.f32 %v9658, %v9659
    %v9661 = vsel %vm1745, %v9435, 0.0
    %v9662 = vsel %vm1745, %v9451, 0.0
    %v9663 = vadd.f32 %v9661, %v9662
    %v9664 = vsel %vm1745, %v9467, 0.0
    %v9665 = vadd.f32 %v9663, %v9664
    %v9666 = vsel %vm1745, %v9483, 0.0
    %v9667 = vadd.f32 %v9665, %v9666
    %v9668 = vsel %vm1745, %v9499, 0.0
    %v9669 = vadd.f32 %v9667, %v9668
    %v9670 = vsel %vm1745, %v9515, 0.0
    %v9671 = vadd.f32 %v9669, %v9670
    %v9672 = vsel %vm1745, %v9531, 0.0
    %v9673 = vadd.f32 %v9671, %v9672
    %v9674 = vsel %vm1745, %v9547, 0.0
    %v9675 = vadd.f32 %v9673, %v9674
    %v9676 = vsel %vm1745, %v9436, 0.0
    %v9677 = vsel %vm1745, %v9452, 0.0
    %v9678 = vadd.f32 %v9676, %v9677
    %v9679 = vsel %vm1745, %v9468, 0.0
    %v9680 = vadd.f32 %v9678, %v9679
    %v9681 = vsel %vm1745, %v9484, 0.0
    %v9682 = vadd.f32 %v9680, %v9681
    %v9683 = vsel %vm1745, %v9500, 0.0
    %v9684 = vadd.f32 %v9682, %v9683
    %v9685 = vsel %vm1745, %v9516, 0.0
    %v9686 = vadd.f32 %v9684, %v9685
    %v9687 = vsel %vm1745, %v9532, 0.0
    %v9688 = vadd.f32 %v9686, %v9687
    %v9689 = vsel %vm1745, %v9548, 0.0
    %v9690 = vadd.f32 %v9688, %v9689
    %v9691 = vsel %vm1745, %v9437, 0.0
    %v9692 = vsel %vm1745, %v9453, 0.0
    %v9693 = vadd.f32 %v9691, %v9692
    %v9694 = vsel %vm1745, %v9469, 0.0
    %v9695 = vadd.f32 %v9693, %v9694
    %v9696 = vsel %vm1745, %v9485, 0.0
    %v9697 = vadd.f32 %v9695, %v9696
    %v9698 = vsel %vm1745, %v9501, 0.0
    %v9699 = vadd.f32 %v9697, %v9698
    %v9700 = vsel %vm1745, %v9517, 0.0
    %v9701 = vadd.f32 %v9699, %v9700
    %v9702 = vsel %vm1745, %v9533, 0.0
    %v9703 = vadd.f32 %v9701, %v9702
    %v9704 = vsel %vm1745, %v9549, 0.0
    %v9705 = vadd.f32 %v9703, %v9704
    %v9706 = vsel %vm1745, %v9438, 0.0
    %v9707 = vsel %vm1745, %v9454, 0.0
    %v9708 = vadd.f32 %v9706, %v9707
    %v9709 = vsel %vm1745, %v9470, 0.0
    %v9710 = vadd.f32 %v9708, %v9709
    %v9711 = vsel %vm1745, %v9486, 0.0
    %v9712 = vadd.f32 %v9710, %v9711
    %v9713 = vsel %vm1745, %v9502, 0.0
    %v9714 = vadd.f32 %v9712, %v9713
    %v9715 = vsel %vm1745, %v9518, 0.0
    %v9716 = vadd.f32 %v9714, %v9715
    %v9717 = vsel %vm1745, %v9534, 0.0
    %v9718 = vadd.f32 %v9716, %v9717
    %v9719 = vsel %vm1745, %v9550, 0.0
    %v9720 = vadd.f32 %v9718, %v9719
    %v9721 = vsel %vm1745, %v9439, 0.0
    %v9722 = vsel %vm1745, %v9455, 0.0
    %v9723 = vadd.f32 %v9721, %v9722
    %v9724 = vsel %vm1745, %v9471, 0.0
    %v9725 = vadd.f32 %v9723, %v9724
    %v9726 = vsel %vm1745, %v9487, 0.0
    %v9727 = vadd.f32 %v9725, %v9726
    %v9728 = vsel %vm1745, %v9503, 0.0
    %v9729 = vadd.f32 %v9727, %v9728
    %v9730 = vsel %vm1745, %v9519, 0.0
    %v9731 = vadd.f32 %v9729, %v9730
    %v9732 = vsel %vm1745, %v9535, 0.0
    %v9733 = vadd.f32 %v9731, %v9732
    %v9734 = vsel %vm1745, %v9551, 0.0
    %v9735 = vadd.f32 %v9733, %v9734
    %v9736 = vsel %vm1745, %v9440, 0.0
    %v9737 = vsel %vm1745, %v9456, 0.0
    %v9738 = vadd.f32 %v9736, %v9737
    %v9739 = vsel %vm1745, %v9472, 0.0
    %v9740 = vadd.f32 %v9738, %v9739
    %v9741 = vsel %vm1745, %v9488, 0.0
    %v9742 = vadd.f32 %v9740, %v9741
    %v9743 = vsel %vm1745, %v9504, 0.0
    %v9744 = vadd.f32 %v9742, %v9743
    %v9745 = vsel %vm1745, %v9520, 0.0
    %v9746 = vadd.f32 %v9744, %v9745
    %v9747 = vsel %vm1745, %v9536, 0.0
    %v9748 = vadd.f32 %v9746, %v9747
    %v9749 = vsel %vm1745, %v9552, 0.0
    %v9750 = vadd.f32 %v9748, %v9749
    %v9751 = vsel %vm1745, %v9441, 0.0
    %v9752 = vsel %vm1745, %v9457, 0.0
    %v9753 = vadd.f32 %v9751, %v9752
    %v9754 = vsel %vm1745, %v9473, 0.0
    %v9755 = vadd.f32 %v9753, %v9754
    %v9756 = vsel %vm1745, %v9489, 0.0
    %v9757 = vadd.f32 %v9755, %v9756
    %v9758 = vsel %vm1745, %v9505, 0.0
    %v9759 = vadd.f32 %v9757, %v9758
    %v9760 = vsel %vm1745, %v9521, 0.0
    %v9761 = vadd.f32 %v9759, %v9760
    %v9762 = vsel %vm1745, %v9537, 0.0
    %v9763 = vadd.f32 %v9761, %v9762
    %v9764 = vsel %vm1745, %v9553, 0.0
    %v9765 = vadd.f32 %v9763, %v9764
    %v9766 = vsel %vm1745, %v9442, 0.0
    %v9767 = vsel %vm1745, %v9458, 0.0
    %v9768 = vadd.f32 %v9766, %v9767
    %v9769 = vsel %vm1745, %v9474, 0.0
    %v9770 = vadd.f32 %v9768, %v9769
    %v9771 = vsel %vm1745, %v9490, 0.0
    %v9772 = vadd.f32 %v9770, %v9771
    %v9773 = vsel %vm1745, %v9506, 0.0
    %v9774 = vadd.f32 %v9772, %v9773
    %v9775 = vsel %vm1745, %v9522, 0.0
    %v9776 = vadd.f32 %v9774, %v9775
    %v9777 = vsel %vm1745, %v9538, 0.0
    %v9778 = vadd.f32 %v9776, %v9777
    %v9779 = vsel %vm1745, %v9554, 0.0
    %v9780 = vadd.f32 %v9778, %v9779
    %v9781 = vsel %vm1745, %v9443, 0.0
    %v9782 = vsel %vm1745, %v9459, 0.0
    %v9783 = vadd.f32 %v9781, %v9782
    %v9784 = vsel %vm1745, %v9475, 0.0
    %v9785 = vadd.f32 %v9783, %v9784
    %v9786 = vsel %vm1745, %v9491, 0.0
    %v9787 = vadd.f32 %v9785, %v9786
    %v9788 = vsel %vm1745, %v9507, 0.0
    %v9789 = vadd.f32 %v9787, %v9788
    %v9790 = vsel %vm1745, %v9523, 0.0
    %v9791 = vadd.f32 %v9789, %v9790
    %v9792 = vsel %vm1745, %v9539, 0.0
    %v9793 = vadd.f32 %v9791, %v9792
    %v9794 = vsel %vm1745, %v9555, 0.0
    %v9795 = vadd.f32 %v9793, %v9794
    %v9796 = vpack.c.bf16 %v9585, %v9570
    %v9797 = vpack.c.bf16 %v9615, %v9600
    %v9798 = vpack.c.bf16 %v9645, %v9630
    %v9799 = vpack.c.bf16 %v9675, %v9660
    %v9800 = vpack.c.bf16 %v9705, %v9690
    %v9801 = vpack.c.bf16 %v9735, %v9720
    %v9802 = vpack.c.bf16 %v9765, %v9750
    %v9803 = vpack.c.bf16 %v9795, %v9780
    %v9804 = vpack.c.bf16 %v6825, %v6822
    %v9805 = vpack.c.bf16 %v6833, %v6830
    %v9806 = vpack.c.bf16 %v6841, %v6838
    %v9807 = vpack.c.bf16 %v6849, %v6846
    %v9808 = vpack.c.bf16 %v6857, %v6854
    %v9809 = vpack.c.bf16 %v6865, %v6862
    %v9810 = vpack.c.bf16 %v6873, %v6870
    %v9811 = vpack.c.bf16 %v6881, %v6878
    %9812 = vrot.lane.b32.xlu0 %v6759, 64
    %v9813 = vpop.permute.xlu0 %9812
    %9814 = vrot.lane.b32.xlu0 %v6760, 64
    %v9815 = vpop.permute.xlu0 %9814
    %v9819 = vsel %vm1745, %v9804, 0
    %v9822 = vsel %vm1745, %v9805, 0
    %v9825 = vsel %vm1745, %v9806, 0
    %v9828 = vsel %vm1745, %v9807, 0
    %v9831 = vsel %vm1745, %v9808, 0
    %v9834 = vsel %vm1745, %v9809, 0
    %v9837 = vsel %vm1745, %v9810, 0
    %v9840 = vsel %vm1745, %v9811, 0
    %9842 = vmatprep.subr.bf16.mxu0 0
    %9843 = vmatpush1.bf16.msra.mxu0 %v9813
    %9844 = vmatprep.subr.bf16.mxu0 0
    %9845 = vmatpush1.bf16.msra.mxu0 %v9815
    %9846 = vmatprep.subr.bf16.mxu0 0
    %9847 = vmatpush1.bf16.msra.mxu0 0
    %9848 = vmatprep.subr.bf16.mxu0 0
    %9849 = vmatpush1.bf16.msra.mxu0 0
    %9850 = vmatprep.subr.bf16.mxu0 0
    %9851 = vmatpush1.bf16.msra.mxu0 0
    %9852 = vmatprep.subr.bf16.mxu0 0
    %9853 = vmatpush1.bf16.msra.mxu0 0
    %9854 = vmatprep.subr.bf16.mxu0 0
    %9855 = vmatpush1.bf16.msra.mxu0 0
    %9856 = vmatprep.subr.bf16.mxu0 0
    %9857 = vmatpush1.bf16.msra.mxu0 0
    %9858 = vmatprep.subr.bf16.mxu0 0
    %9859 = vmatpush1.bf16.msra.mxu0 0
    %9860 = vmatprep.subr.bf16.mxu0 0
    %9861 = vmatpush1.bf16.msra.mxu0 0
    %9862 = vmatprep.subr.bf16.mxu0 0
    %9863 = vmatpush1.bf16.msra.mxu0 0
    %9864 = vmatprep.subr.bf16.mxu0 0
    %9865 = vmatpush1.bf16.msra.mxu0 0
    %9866 = vmatprep.subr.bf16.mxu0 0
    %9867 = vmatpush1.bf16.msra.mxu0 0
    %9868 = vmatprep.subr.bf16.mxu0 0
    %9869 = vmatpush1.bf16.msra.mxu0 0
    %9870 = vmatprep.subr.bf16.mxu0 0
    %9871 = vmatpush1.bf16.msra.mxu0 0
    %9872 = vmatprep.subr.bf16.mxu0 0
    %9873 = vmatpush1.bf16.msra.mxu0 0
    %9874 = vmatprep.mubr.bf16.mxu0 0
    %9875 = vmatmul.mubr.bf16.gmra.mrb[0].mxu0 %v9819
    %v9876 = vpop.f32.mrb[0].mxu0
    %v9877 = vadd.f32 0.0, %v9876
    %v9878 = vpop.f32.mrb[0].mxu0
    %v9879 = vpop.f32.mrb[0].mxu0
    %v9880 = vadd.f32 0.0, %v9879
    %v9881 = vpop.f32.mrb[0].mxu0
    %9882 = vmatprep.mubr.bf16.mxu0 0
    %9883 = vmatmul.mubr.bf16.gmra.mrb[0].mxu0 %v9822
    %v9884 = vpop.f32.mrb[0].mxu0
    %v9885 = vadd.f32 0.0, %v9884
    %v9886 = vpop.f32.mrb[0].mxu0
    %v9887 = vpop.f32.mrb[0].mxu0
    %v9888 = vadd.f32 0.0, %v9887
    %v9889 = vpop.f32.mrb[0].mxu0
    %9890 = vmatprep.mubr.bf16.mxu0 0
    %9891 = vmatmul.mubr.bf16.gmra.mrb[0].mxu0 %v9825
    %v9892 = vpop.f32.mrb[0].mxu0
    %v9893 = vadd.f32 0.0, %v9892
    %v9894 = vpop.f32.mrb[0].mxu0
    %v9895 = vpop.f32.mrb[0].mxu0
    %v9896 = vadd.f32 0.0, %v9895
    %v9897 = vpop.f32.mrb[0].mxu0
    %9898 = vmatprep.mubr.bf16.mxu0 0
    %9899 = vmatmul.mubr.bf16.gmra.mrb[0].mxu0 %v9828
    %v9900 = vpop.f32.mrb[0].mxu0
    %v9901 = vadd.f32 0.0, %v9900
    %v9902 = vpop.f32.mrb[0].mxu0
    %v9903 = vpop.f32.mrb[0].mxu0
    %v9904 = vadd.f32 0.0, %v9903
    %v9905 = vpop.f32.mrb[0].mxu0
    %9906 = vmatprep.mubr.bf16.mxu0 0
    %9907 = vmatmul.mubr.bf16.gmra.mrb[0].mxu0 %v9831
    %v9908 = vpop.f32.mrb[0].mxu0
    %v9909 = vadd.f32 0.0, %v9908
    %v9910 = vpop.f32.mrb[0].mxu0
    %v9911 = vpop.f32.mrb[0].mxu0
    %v9912 = vadd.f32 0.0, %v9911
    %v9913 = vpop.f32.mrb[0].mxu0
    %9914 = vmatprep.mubr.bf16.mxu0 0
    %9915 = vmatmul.mubr.bf16.gmra.mrb[0].mxu0 %v9834
    %v9916 = vpop.f32.mrb[0].mxu0
    %v9917 = vadd.f32 0.0, %v9916
    %v9918 = vpop.f32.mrb[0].mxu0
    %v9919 = vpop.f32.mrb[0].mxu0
    %v9920 = vadd.f32 0.0, %v9919
    %v9921 = vpop.f32.mrb[0].mxu0
    %9922 = vmatprep.mubr.bf16.mxu0 0
    %9923 = vmatmul.mubr.bf16.gmra.mrb[0].mxu0 %v9837
    %v9924 = vpop.f32.mrb[0].mxu0
    %v9925 = vadd.f32 0.0, %v9924
    %v9926 = vpop.f32.mrb[0].mxu0
    %v9927 = vpop.f32.mrb[0].mxu0
    %v9928 = vadd.f32 0.0, %v9927
    %v9929 = vpop.f32.mrb[0].mxu0
    %9930 = vmatprep.mubr.bf16.mxu0 0
    %9931 = vmatmul.mubr.bf16.gmra.mrb[0].mxu0 %v9840
    %v9932 = vpop.f32.mrb[0].mxu0
    %v9933 = vadd.f32 0.0, %v9932
    %v9934 = vpop.f32.mrb[0].mxu0
    %v9935 = vpop.f32.mrb[0].mxu0
    %v9936 = vadd.f32 0.0, %v9935
    %v9937 = vpop.f32.mrb[0].mxu0
    %9938 = vdwg.mxu0
    %9939 = vrot.lane.b32.xlu0 %v6759, 96
    %v9940 = vpop.permute.xlu0 %9939
    %9941 = vrot.lane.b32.xlu0 %v6760, 96
    %v9942 = vpop.permute.xlu0 %9941
    %v9946 = vsel %vm1745, %v9796, 0
    %v9949 = vsel %vm1745, %v9797, 0
    %v9952 = vsel %vm1745, %v9798, 0
    %v9955 = vsel %vm1745, %v9799, 0
    %v9958 = vsel %vm1745, %v9800, 0
    %v9961 = vsel %vm1745, %v9801, 0
    %v9964 = vsel %vm1745, %v9802, 0
    %v9967 = vsel %vm1745, %v9803, 0
    %9969 = vmatprep.subr.bf16.mxu0 0
    %9970 = vmatpush1.bf16.msra.mxu0 %v9940
    %9971 = vmatprep.subr.bf16.mxu0 0
    %9972 = vmatpush1.bf16.msra.mxu0 %v9942
    %9973 = vmatprep.subr.bf16.mxu0 0
    %9974 = vmatpush1.bf16.msra.mxu0 0
    %9975 = vmatprep.subr.bf16.mxu0 0
    %9976 = vmatpush1.bf16.msra.mxu0 0
    %9977 = vmatprep.subr.bf16.mxu0 0
    %9978 = vmatpush1.bf16.msra.mxu0 0
    %9979 = vmatprep.subr.bf16.mxu0 0
    %9980 = vmatpush1.bf16.msra.mxu0 0
    %9981 = vmatprep.subr.bf16.mxu0 0
    %9982 = vmatpush1.bf16.msra.mxu0 0
    %9983 = vmatprep.subr.bf16.mxu0 0
    %9984 = vmatpush1.bf16.msra.mxu0 0
    %9985 = vmatprep.subr.bf16.mxu0 0
    %9986 = vmatpush1.bf16.msra.mxu0 0
    %9987 = vmatprep.subr.bf16.mxu0 0
    %9988 = vmatpush1.bf16.msra.mxu0 0
    %9989 = vmatprep.subr.bf16.mxu0 0
    %9990 = vmatpush1.bf16.msra.mxu0 0
    %9991 = vmatprep.subr.bf16.mxu0 0
    %9992 = vmatpush1.bf16.msra.mxu0 0
    %9993 = vmatprep.subr.bf16.mxu0 0
    %9994 = vmatpush1.bf16.msra.mxu0 0
    %9995 = vmatprep.subr.bf16.mxu0 0
    %9996 = vmatpush1.bf16.msra.mxu0 0
    %9997 = vmatprep.subr.bf16.mxu0 0
    %9998 = vmatpush1.bf16.msra.mxu0 0
    %9999 = vmatprep.subr.bf16.mxu0 0
    %10000 = vmatpush1.bf16.msra.mxu0 0
    %10001 = vmatprep.mubr.bf16.mxu0 0
    %10002 = vmatmul.mubr.bf16.gmra.mrb[0].mxu0 %v9946
    %v10003 = vpop.f32.mrb[0].mxu0
    %v10004 = vadd.f32 %v9877, %v10003
    %v10005 = vpop.f32.mrb[0].mxu0
    %v10006 = vpop.f32.mrb[0].mxu0
    %v10007 = vadd.f32 %v9880, %v10006
    %v10008 = vpop.f32.mrb[0].mxu0
    %10009 = vmatprep.mubr.bf16.mxu0 0
    %10010 = vmatmul.mubr.bf16.gmra.mrb[0].mxu0 %v9949
    %v10011 = vpop.f32.mrb[0].mxu0
    %v10012 = vadd.f32 %v9885, %v10011
    %v10013 = vpop.f32.mrb[0].mxu0
    %v10014 = vpop.f32.mrb[0].mxu0
    %v10015 = vadd.f32 %v9888, %v10014
    %v10016 = vpop.f32.mrb[0].mxu0
    %10017 = vmatprep.mubr.bf16.mxu0 0
    %10018 = vmatmul.mubr.bf16.gmra.mrb[0].mxu0 %v9952
    %v10019 = vpop.f32.mrb[0].mxu0
    %v10020 = vadd.f32 %v9893, %v10019
    %v10021 = vpop.f32.mrb[0].mxu0
    %v10022 = vpop.f32.mrb[0].mxu0
    %v10023 = vadd.f32 %v9896, %v10022
    %v10024 = vpop.f32.mrb[0].mxu0
    %10025 = vmatprep.mubr.bf16.mxu0 0
    %10026 = vmatmul.mubr.bf16.gmra.mrb[0].mxu0 %v9955
    %v10027 = vpop.f32.mrb[0].mxu0
    %v10028 = vadd.f32 %v9901, %v10027
    %v10029 = vpop.f32.mrb[0].mxu0
    %v10030 = vpop.f32.mrb[0].mxu0
    %v10031 = vadd.f32 %v9904, %v10030
    %v10032 = vpop.f32.mrb[0].mxu0
    %10033 = vmatprep.mubr.bf16.mxu0 0
    %10034 = vmatmul.mubr.bf16.gmra.mrb[0].mxu0 %v9958
    %v10035 = vpop.f32.mrb[0].mxu0
    %v10036 = vadd.f32 %v9909, %v10035
    %v10037 = vpop.f32.mrb[0].mxu0
    %v10038 = vpop.f32.mrb[0].mxu0
    %v10039 = vadd.f32 %v9912, %v10038
    %v10040 = vpop.f32.mrb[0].mxu0
    %10041 = vmatprep.mubr.bf16.mxu0 0
    %10042 = vmatmul.mubr.bf16.gmra.mrb[0].mxu0 %v9961
    %v10043 = vpop.f32.mrb[0].mxu0
    %v10044 = vadd.f32 %v9917, %v10043
    %v10045 = vpop.f32.mrb[0].mxu0
    %v10046 = vpop.f32.mrb[0].mxu0
    %v10047 = vadd.f32 %v9920, %v10046
    %v10048 = vpop.f32.mrb[0].mxu0
    %10049 = vmatprep.mubr.bf16.mxu0 0
    %10050 = vmatmul.mubr.bf16.gmra.mrb[0].mxu0 %v9964
    %v10051 = vpop.f32.mrb[0].mxu0
    %v10052 = vadd.f32 %v9925, %v10051
    %v10053 = vpop.f32.mrb[0].mxu0
    %v10054 = vpop.f32.mrb[0].mxu0
    %v10055 = vadd.f32 %v9928, %v10054
    %v10056 = vpop.f32.mrb[0].mxu0
    %10057 = vmatprep.mubr.bf16.mxu0 0
    %10058 = vmatmul.mubr.bf16.gmra.mrb[0].mxu0 %v9967
    %v10059 = vpop.f32.mrb[0].mxu0
    %v10060 = vadd.f32 %v9933, %v10059
    %v10061 = vpop.f32.mrb[0].mxu0
    %v10062 = vpop.f32.mrb[0].mxu0
    %v10063 = vadd.f32 %v9936, %v10062
    %v10064 = vpop.f32.mrb[0].mxu0
    %10065 = vdwg.mxu0
    %v10066 = vtanh.pop %v10004
    %v10067 = vtanh.pop %v10007
    %v10068 = vtanh.pop %v10012
    %v10069 = vtanh.pop %v10015
    %v10070 = vtanh.pop %v10020
    %v10071 = vtanh.pop %v10023
    %v10072 = vtanh.pop %v10028
    %v10073 = vtanh.pop %v10031
    %v10074 = vtanh.pop %v10036
    %v10075 = vtanh.pop %v10039
    %v10076 = vtanh.pop %v10044
    %v10077 = vtanh.pop %v10047
    %v10078 = vtanh.pop %v10052
    %v10079 = vtanh.pop %v10055
    %v10080 = vtanh.pop %v10060
    %v10081 = vtanh.pop %v10063
    %v10082 = vld [vmem:[%s6] sm:$0xf]
    %v10083 = vld [vmem:[%s6 + $0x4] sm:$0xf]
    %v10084 = vld [vmem:[%s6 + $0x8] sm:$0xf]
    %v10085 = vld [vmem:[%s6 + $0xc] sm:$0xf]
    %v10086 = vld [vmem:[%s6 + $0x10] sm:$0xf]
    %v10087 = vld [vmem:[%s6 + $0x14] sm:$0xf]
    %v10088 = vld [vmem:[%s6 + $0x18] sm:$0xf]
    %v10089 = vld [vmem:[%s6 + $0x1c] sm:$0xf]
    %v10090 = vld [vmem:[%s6 + $0x20] sm:$0xf]
    %v10091 = vld [vmem:[%s6 + $0x24] sm:$0xf]
    %v10092 = vld [vmem:[%s6 + $0x28] sm:$0xf]
    %v10093 = vld [vmem:[%s6 + $0x2c] sm:$0xf]
    %v10094 = vld [vmem:[%s6 + $0x30] sm:$0xf]
    %v10095 = vld [vmem:[%s6 + $0x34] sm:$0xf]
    %v10096 = vld [vmem:[%s6 + $0x38] sm:$0xf]
    %v10097 = vld [vmem:[%s6 + $0x3c] sm:$0xf]
    %v10098 = vpack.c.bf16 %v10067, %v10066
    %v10099 = vpack.c.bf16 %v10069, %v10068
    %v10100 = vpack.c.bf16 %v10071, %v10070
    %v10101 = vpack.c.bf16 %v10073, %v10072
    %v10102 = vpack.c.bf16 %v10075, %v10074
    %v10103 = vpack.c.bf16 %v10077, %v10076
    %v10104 = vpack.c.bf16 %v10079, %v10078
    %v10105 = vpack.c.bf16 %v10081, %v10080
    %10106 = vrot.lane.b32.xlu0 %v6759, 32
    %v10107 = vpop.permute.xlu0 %10106
    %10108 = vrot.lane.b32.xlu0 %v6760, 32
    %v10109 = vpop.permute.xlu0 %10108
    %v10113 = vsel %vm1745, %v10098, 0
    %v10116 = vsel %vm1745, %v10099, 0
    %v10119 = vsel %vm1745, %v10100, 0
    %v10122 = vsel %vm1745, %v10101, 0
    %v10125 = vsel %vm1745, %v10102, 0
    %v10128 = vsel %vm1745, %v10103, 0
    %v10131 = vsel %vm1745, %v10104, 0
    %v10134 = vsel %vm1745, %v10105, 0
    %10136 = vmatprep.subr.bf16.mxu0 0
    %10137 = vmatpush1.bf16.msra.mxu0 %v10107
    %10138 = vmatprep.subr.bf16.mxu0 0
    %10139 = vmatpush1.bf16.msra.mxu0 %v10109
    %10140 = vmatprep.subr.bf16.mxu0 0
    %10141 = vmatpush1.bf16.msra.mxu0 0
    %10142 = vmatprep.subr.bf16.mxu0 0
    %10143 = vmatpush1.bf16.msra.mxu0 0
    %10144 = vmatprep.subr.bf16.mxu0 0
    %10145 = vmatpush1.bf16.msra.mxu0 0
    %10146 = vmatprep.subr.bf16.mxu0 0
    %10147 = vmatpush1.bf16.msra.mxu0 0
    %10148 = vmatprep.subr.bf16.mxu0 0
    %10149 = vmatpush1.bf16.msra.mxu0 0
    %10150 = vmatprep.subr.bf16.mxu0 0
    %10151 = vmatpush1.bf16.msra.mxu0 0
    %10152 = vmatprep.subr.bf16.mxu0 0
    %10153 = vmatpush1.bf16.msra.mxu0 0
    %10154 = vmatprep.subr.bf16.mxu0 0
    %10155 = vmatpush1.bf16.msra.mxu0 0
    %10156 = vmatprep.subr.bf16.mxu0 0
    %10157 = vmatpush1.bf16.msra.mxu0 0
    %10158 = vmatprep.subr.bf16.mxu0 0
    %10159 = vmatpush1.bf16.msra.mxu0 0
    %10160 = vmatprep.subr.bf16.mxu0 0
    %10161 = vmatpush1.bf16.msra.mxu0 0
    %10162 = vmatprep.subr.bf16.mxu0 0
    %10163 = vmatpush1.bf16.msra.mxu0 0
    %10164 = vmatprep.subr.bf16.mxu0 0
    %10165 = vmatpush1.bf16.msra.mxu0 0
    %10166 = vmatprep.subr.bf16.mxu0 0
    %10167 = vmatpush1.bf16.msra.mxu0 0
    %10168 = vmatprep.mubr.bf16.mxu0 0
    %10169 = vmatmul.mubr.bf16.gmra.mrb[0].mxu0 %v10113
    %v10170 = vpop.f32.mrb[0].mxu0
    %v10171 = vadd.f32 0.0, %v10170
    %v10172 = vpop.f32.mrb[0].mxu0
    %v10173 = vpop.f32.mrb[0].mxu0
    %v10174 = vadd.f32 0.0, %v10173
    %v10175 = vpop.f32.mrb[0].mxu0
    %10176 = vmatprep.mubr.bf16.mxu0 0
    %10177 = vmatmul.mubr.bf16.gmra.mrb[0].mxu0 %v10116
    %v10178 = vpop.f32.mrb[0].mxu0
    %v10179 = vadd.f32 0.0, %v10178
    %v10180 = vpop.f32.mrb[0].mxu0
    %v10181 = vpop.f32.mrb[0].mxu0
    %v10182 = vadd.f32 0.0, %v10181
    %v10183 = vpop.f32.mrb[0].mxu0
    %10184 = vmatprep.mubr.bf16.mxu0 0
    %10185 = vmatmul.mubr.bf16.gmra.mrb[0].mxu0 %v10119
    %v10186 = vpop.f32.mrb[0].mxu0
    %v10187 = vadd.f32 0.0, %v10186
    %v10188 = vpop.f32.mrb[0].mxu0
    %v10189 = vpop.f32.mrb[0].mxu0
    %v10190 = vadd.f32 0.0, %v10189
    %v10191 = vpop.f32.mrb[0].mxu0
    %10192 = vmatprep.mubr.bf16.mxu0 0
    %10193 = vmatmul.mubr.bf16.gmra.mrb[0].mxu0 %v10122
    %v10194 = vpop.f32.mrb[0].mxu0
    %v10195 = vadd.f32 0.0, %v10194
    %v10196 = vpop.f32.mrb[0].mxu0
    %v10197 = vpop.f32.mrb[0].mxu0
    %v10198 = vadd.f32 0.0, %v10197
    %v10199 = vpop.f32.mrb[0].mxu0
    %10200 = vmatprep.mubr.bf16.mxu0 0
    %10201 = vmatmul.mubr.bf16.gmra.mrb[0].mxu0 %v10125
    %v10202 = vpop.f32.mrb[0].mxu0
    %v10203 = vadd.f32 0.0, %v10202
    %v10204 = vpop.f32.mrb[0].mxu0
    %v10205 = vpop.f32.mrb[0].mxu0
    %v10206 = vadd.f32 0.0, %v10205
    %v10207 = vpop.f32.mrb[0].mxu0
    %10208 = vmatprep.mubr.bf16.mxu0 0
    %10209 = vmatmul.mubr.bf16.gmra.mrb[0].mxu0 %v10128
    %v10210 = vpop.f32.mrb[0].mxu0
    %v10211 = vadd.f32 0.0, %v10210
    %v10212 = vpop.f32.mrb[0].mxu0
    %v10213 = vpop.f32.mrb[0].mxu0
    %v10214 = vadd.f32 0.0, %v10213
    %v10215 = vpop.f32.mrb[0].mxu0
    %10216 = vmatprep.mubr.bf16.mxu0 0
    %10217 = vmatmul.mubr.bf16.gmra.mrb[0].mxu0 %v10131
    %v10218 = vpop.f32.mrb[0].mxu0
    %v10219 = vadd.f32 0.0, %v10218
    %v10220 = vpop.f32.mrb[0].mxu0
    %v10221 = vpop.f32.mrb[0].mxu0
    %v10222 = vadd.f32 0.0, %v10221
    %v10223 = vpop.f32.mrb[0].mxu0
    %10224 = vmatprep.mubr.bf16.mxu0 0
    %10225 = vmatmul.mubr.bf16.gmra.mrb[0].mxu0 %v10134
    %v10226 = vpop.f32.mrb[0].mxu0
    %v10227 = vadd.f32 0.0, %v10226
    %v10228 = vpop.f32.mrb[0].mxu0
    %v10229 = vpop.f32.mrb[0].mxu0
    %v10230 = vadd.f32 0.0, %v10229
    %v10231 = vpop.f32.mrb[0].mxu0
    %10232 = vdwg.mxu0
    %v10233 = vpack.c.bf16 %v10174, %v10171
    %v10234 = vpack.c.bf16 %v10182, %v10179
    %v10235 = vpack.c.bf16 %v10190, %v10187
    %v10236 = vpack.c.bf16 %v10198, %v10195
    %v10237 = vpack.c.bf16 %v10206, %v10203
    %v10238 = vpack.c.bf16 %v10214, %v10211
    %v10239 = vpack.c.bf16 %v10222, %v10219
    %v10240 = vpack.c.bf16 %v10230, %v10227
    %v10257 = vunpack.c.l.b16 %v10082
    %v10258 = vunpack.c.l.b16 %v10083
    %v10259 = vunpack.c.l.b16 %v10084
    %v10260 = vunpack.c.l.b16 %v10085
    %v10261 = vunpack.c.l.b16 %v10086
    %v10262 = vunpack.c.l.b16 %v10087
    %v10263 = vunpack.c.l.b16 %v10088
    %v10264 = vunpack.c.l.b16 %v10089
    %v10265 = vunpack.c.l.b16 %v10090
    %v10266 = vunpack.c.l.b16 %v10091
    %v10267 = vunpack.c.l.b16 %v10092
    %v10268 = vunpack.c.l.b16 %v10093
    %v10269 = vunpack.c.l.b16 %v10094
    %v10270 = vunpack.c.l.b16 %v10095
    %v10271 = vunpack.c.l.b16 %v10096
    %v10272 = vunpack.c.l.b16 %v10097
    %v10273 = vpack.c.b16 %v10258, %v10257
    %v10274 = vpack.c.b16 %v10260, %v10259
    %v10275 = vpack.c.b16 %v10262, %v10261
    %v10276 = vpack.c.b16 %v10264, %v10263
    %v10277 = vpack.c.b16 %v10266, %v10265
    %v10278 = vpack.c.b16 %v10268, %v10267
    %v10279 = vpack.c.b16 %v10270, %v10269
    %v10280 = vpack.c.b16 %v10272, %v10271
    %10289 = vmatprep.subr.bf16.mxu0 0
    %10290 = vmatpush1.bf16.msra.mxu0 %v10233
    %10291 = vmatprep.subr.bf16.mxu0 0
    %10292 = vmatpush1.bf16.msra.mxu0 %v10234
    %10293 = vmatprep.subr.bf16.mxu0 0
    %10294 = vmatpush1.bf16.msra.mxu0 %v10235
    %10295 = vmatprep.subr.bf16.mxu0 0
    %10296 = vmatpush1.bf16.msra.mxu0 %v10236
    %10297 = vmatprep.subr.bf16.mxu0 0
    %10298 = vmatpush1.bf16.msra.mxu0 %v10237
    %10299 = vmatprep.subr.bf16.mxu0 0
    %10300 = vmatpush1.bf16.msra.mxu0 %v10238
    %10301 = vmatprep.subr.bf16.mxu0 0
    %10302 = vmatpush1.bf16.msra.mxu0 %v10239
    %10303 = vmatprep.subr.bf16.mxu0 0
    %10304 = vmatpush1.bf16.msra.mxu0 %v10240
    %10305 = vmatprep.subr.bf16.mxu0 0
    %10306 = vmatpush1.bf16.msra.mxu0 0
    %10307 = vmatprep.subr.bf16.mxu0 0
    %10308 = vmatpush1.bf16.msra.mxu0 0
    %10309 = vmatprep.subr.bf16.mxu0 0
    %10310 = vmatpush1.bf16.msra.mxu0 0
    %10311 = vmatprep.subr.bf16.mxu0 0
    %10312 = vmatpush1.bf16.msra.mxu0 0
    %10313 = vmatprep.subr.bf16.mxu0 0
    %10314 = vmatpush1.bf16.msra.mxu0 0
    %10315 = vmatprep.subr.bf16.mxu0 0
    %10316 = vmatpush1.bf16.msra.mxu0 0
    %10317 = vmatprep.subr.bf16.mxu0 0
    %10318 = vmatpush1.bf16.msra.mxu0 0
    %10319 = vmatprep.subr.bf16.mxu0 0
    %10320 = vmatpush1.bf16.msra.mxu0 0
    %10321 = vmatprep.mubr.bf16.mxu0 0
    %10322 = vmatmul.mubr.bf16.gmra.mrb[0].mxu0 %v10273
    %v10323 = vpop.f32.mrb[0].mxu0
    %v10324 = vadd.f32 0.0, %v10323
    %v10325 = vpop.f32.mrb[0].mxu0
    %v10326 = vpop.f32.mrb[0].mxu0
    %v10327 = vadd.f32 0.0, %v10326
    %v10328 = vpop.f32.mrb[0].mxu0
    %10329 = vmatprep.mubr.bf16.mxu0 0
    %10330 = vmatmul.mubr.bf16.gmra.mrb[0].mxu0 %v10274
    %v10331 = vpop.f32.mrb[0].mxu0
    %v10332 = vadd.f32 0.0, %v10331
    %v10333 = vpop.f32.mrb[0].mxu0
    %v10334 = vpop.f32.mrb[0].mxu0
    %v10335 = vadd.f32 0.0, %v10334
    %v10336 = vpop.f32.mrb[0].mxu0
    %10337 = vmatprep.mubr.bf16.mxu0 0
    %10338 = vmatmul.mubr.bf16.gmra.mrb[0].mxu0 %v10275
    %v10339 = vpop.f32.mrb[0].mxu0
    %v10340 = vadd.f32 0.0, %v10339
    %v10341 = vpop.f32.mrb[0].mxu0
    %v10342 = vpop.f32.mrb[0].mxu0
    %v10343 = vadd.f32 0.0, %v10342
    %v10344 = vpop.f32.mrb[0].mxu0
    %10345 = vmatprep.mubr.bf16.mxu0 0
    %10346 = vmatmul.mubr.bf16.gmra.mrb[0].mxu0 %v10276
    %v10347 = vpop.f32.mrb[0].mxu0
    %v10348 = vadd.f32 0.0, %v10347
    %v10349 = vpop.f32.mrb[0].mxu0
    %v10350 = vpop.f32.mrb[0].mxu0
    %v10351 = vadd.f32 0.0, %v10350
    %v10352 = vpop.f32.mrb[0].mxu0
    %10353 = vmatprep.mubr.bf16.mxu0 0
    %10354 = vmatmul.mubr.bf16.gmra.mrb[0].mxu0 %v10277
    %v10355 = vpop.f32.mrb[0].mxu0
    %v10356 = vadd.f32 0.0, %v10355
    %v10357 = vpop.f32.mrb[0].mxu0
    %v10358 = vpop.f32.mrb[0].mxu0
    %v10359 = vadd.f32 0.0, %v10358
    %v10360 = vpop.f32.mrb[0].mxu0
    %10361 = vmatprep.mubr.bf16.mxu0 0
    %10362 = vmatmul.mubr.bf16.gmra.mrb[0].mxu0 %v10278
    %v10363 = vpop.f32.mrb[0].mxu0
    %v10364 = vadd.f32 0.0, %v10363
    %v10365 = vpop.f32.mrb[0].mxu0
    %v10366 = vpop.f32.mrb[0].mxu0
    %v10367 = vadd.f32 0.0, %v10366
    %v10368 = vpop.f32.mrb[0].mxu0
    %10369 = vmatprep.mubr.bf16.mxu0 0
    %10370 = vmatmul.mubr.bf16.gmra.mrb[0].mxu0 %v10279
    %v10371 = vpop.f32.mrb[0].mxu0
    %v10372 = vadd.f32 0.0, %v10371
    %v10373 = vpop.f32.mrb[0].mxu0
    %v10374 = vpop.f32.mrb[0].mxu0
    %v10375 = vadd.f32 0.0, %v10374
    %v10376 = vpop.f32.mrb[0].mxu0
    %10377 = vmatprep.mubr.bf16.mxu0 0
    %10378 = vmatmul.mubr.bf16.gmra.mrb[0].mxu0 %v10280
    %v10379 = vpop.f32.mrb[0].mxu0
    %v10380 = vadd.f32 0.0, %v10379
    %v10381 = vpop.f32.mrb[0].mxu0
    %v10382 = vpop.f32.mrb[0].mxu0
    %v10383 = vadd.f32 0.0, %v10382
    %v10384 = vpop.f32.mrb[0].mxu0
    %10385 = vdwg.mxu0
    %vm10386 = vcmp.ge.f32.partialorder %v10324, 0.0
    %vm10387 = vcmp.ge.f32.partialorder %v10327, 0.0
    %vm10388 = vcmp.ge.f32.partialorder %v10332, 0.0
    %vm10389 = vcmp.ge.f32.partialorder %v10335, 0.0
    %vm10390 = vcmp.ge.f32.partialorder %v10340, 0.0
    %vm10391 = vcmp.ge.f32.partialorder %v10343, 0.0
    %vm10392 = vcmp.ge.f32.partialorder %v10348, 0.0
    %vm10393 = vcmp.ge.f32.partialorder %v10351, 0.0
    %vm10394 = vcmp.ge.f32.partialorder %v10356, 0.0
    %vm10395 = vcmp.ge.f32.partialorder %v10359, 0.0
    %vm10396 = vcmp.ge.f32.partialorder %v10364, 0.0
    %vm10397 = vcmp.ge.f32.partialorder %v10367, 0.0
    %vm10398 = vcmp.ge.f32.partialorder %v10372, 0.0
    %vm10399 = vcmp.ge.f32.partialorder %v10375, 0.0
    %vm10400 = vcmp.ge.f32.partialorder %v10380, 0.0
    %vm10401 = vcmp.ge.f32.partialorder %v10383, 0.0
    %v10402 = vmul.f32 %v10324, 0.2
    %v10403 = vmul.f32 %v10327, 0.2
    %v10404 = vmul.f32 %v10332, 0.2
    %v10405 = vmul.f32 %v10335, 0.2
    %v10406 = vmul.f32 %v10340, 0.2
    %v10407 = vmul.f32 %v10343, 0.2
    %v10408 = vmul.f32 %v10348, 0.2
    %v10409 = vmul.f32 %v10351, 0.2
    %v10410 = vmul.f32 %v10356, 0.2
    %v10411 = vmul.f32 %v10359, 0.2
    %v10412 = vmul.f32 %v10364, 0.2
    %v10413 = vmul.f32 %v10367, 0.2
    %v10414 = vmul.f32 %v10372, 0.2
    %v10415 = vmul.f32 %v10375, 0.2
    %v10416 = vmul.f32 %v10380, 0.2
    %v10417 = vmul.f32 %v10383, 0.2
    %v10418 = vsel %vm10386, %v10324, %v10402
    %v10419 = vsel %vm10387, %v10327, %v10403
    %v10420 = vsel %vm10388, %v10332, %v10404
    %v10421 = vsel %vm10389, %v10335, %v10405
    %v10422 = vsel %vm10390, %v10340, %v10406
    %v10423 = vsel %vm10391, %v10343, %v10407
    %v10424 = vsel %vm10392, %v10348, %v10408
    %v10425 = vsel %vm10393, %v10351, %v10409
    %v10426 = vsel %vm10394, %v10356, %v10410
    %v10427 = vsel %vm10395, %v10359, %v10411
    %v10428 = vsel %vm10396, %v10364, %v10412
    %v10429 = vsel %vm10397, %v10367, %v10413
    %v10430 = vsel %vm10398, %v10372, %v10414
    %v10431 = vsel %vm10399, %v10375, %v10415
    %v10432 = vsel %vm10400, %v10380, %v10416
    %v10433 = vsel %vm10401, %v10383, %v10417
    %v10434 = vpack.c.bf16 %v10419, %v10418
    %v10435 = vpack.c.bf16 %v10421, %v10420
    %v10436 = vpack.c.bf16 %v10423, %v10422
    %v10437 = vpack.c.bf16 %v10425, %v10424
    %v10438 = vpack.c.bf16 %v10427, %v10426
    %v10439 = vpack.c.bf16 %v10429, %v10428
    %v10440 = vpack.c.bf16 %v10431, %v10430
    %v10441 = vpack.c.bf16 %v10433, %v10432
    %v10442 = vunpack.c.h.b16 %v6715
    %v10443 = vunpack.c.h.b16 %v6716
    %v10444 = vunpack.c.h.b16 %v6717
    %v10445 = vunpack.c.h.b16 %v6718
    %v10446 = vpack.c.b16 %v10443, %v10442
    %v10447 = vpack.c.b16 %v10445, %v10444
    %v10451 = vsel %vm1745, %v10434, 0
    %v10454 = vsel %vm1745, %v10435, 0
    %v10457 = vsel %vm1745, %v10436, 0
    %v10460 = vsel %vm1745, %v10437, 0
    %v10463 = vsel %vm1745, %v10438, 0
    %v10466 = vsel %vm1745, %v10439, 0
    %v10469 = vsel %vm1745, %v10440, 0
    %v10472 = vsel %vm1745, %v10441, 0
    %10474 = vmatprep.subr.bf16.mxu0 0
    %10475 = vmatpush1.bf16.msra.mxu0 %v10446
    %10476 = vmatprep.subr.bf16.mxu0 0
    %10477 = vmatpush1.bf16.msra.mxu0 %v10447
    %10478 = vmatprep.subr.bf16.mxu0 0
    %10479 = vmatpush1.bf16.msra.mxu0 0
    %10480 = vmatprep.subr.bf16.mxu0 0
    %10481 = vmatpush1.bf16.msra.mxu0 0
    %10482 = vmatprep.subr.bf16.mxu0 0
    %10483 = vmatpush1.bf16.msra.mxu0 0
    %10484 = vmatprep.subr.bf16.mxu0 0
    %10485 = vmatpush1.bf16.msra.mxu0 0
    %10486 = vmatprep.subr.bf16.mxu0 0
    %10487 = vmatpush1.bf16.msra.mxu0 0
    %10488 = vmatprep.subr.bf16.mxu0 0
    %10489 = vmatpush1.bf16.msra.mxu0 0
    %10490 = vmatprep.subr.bf16.mxu0 0
    %10491 = vmatpush1.bf16.msra.mxu0 0
    %10492 = vmatprep.subr.bf16.mxu0 0
    %10493 = vmatpush1.bf16.msra.mxu0 0
    %10494 = vmatprep.subr.bf16.mxu0 0
    %10495 = vmatpush1.bf16.msra.mxu0 0
    %10496 = vmatprep.subr.bf16.mxu0 0
    %10497 = vmatpush1.bf16.msra.mxu0 0
    %10498 = vmatprep.subr.bf16.mxu0 0
    %10499 = vmatpush1.bf16.msra.mxu0 0
    %10500 = vmatprep.subr.bf16.mxu0 0
    %10501 = vmatpush1.bf16.msra.mxu0 0
    %10502 = vmatprep.subr.bf16.mxu0 0
    %10503 = vmatpush1.bf16.msra.mxu0 0
    %10504 = vmatprep.subr.bf16.mxu0 0
    %10505 = vmatpush1.bf16.msra.mxu0 0
    %10506 = vmatprep.mubr.bf16.mxu0 0
    %10507 = vmatmul.mubr.bf16.gmra.mrb[0].mxu0 %v10451
    %v10508 = vpop.f32.mrb[0].mxu0
    %v10509 = vadd.f32 0.0, %v10508
    %v10510 = vpop.f32.mrb[0].mxu0
    %v10511 = vpop.f32.mrb[0].mxu0
    %v10512 = vadd.f32 0.0, %v10511
    %v10513 = vpop.f32.mrb[0].mxu0
    %10514 = vmatprep.mubr.bf16.mxu0 0
    %10515 = vmatmul.mubr.bf16.gmra.mrb[0].mxu0 %v10454
    %v10516 = vpop.f32.mrb[0].mxu0
    %v10517 = vadd.f32 0.0, %v10516
    %v10518 = vpop.f32.mrb[0].mxu0
    %v10519 = vpop.f32.mrb[0].mxu0
    %v10520 = vadd.f32 0.0, %v10519
    %v10521 = vpop.f32.mrb[0].mxu0
    %10522 = vmatprep.mubr.bf16.mxu0 0
    %10523 = vmatmul.mubr.bf16.gmra.mrb[0].mxu0 %v10457
    %v10524 = vpop.f32.mrb[0].mxu0
    %v10525 = vadd.f32 0.0, %v10524
    %v10526 = vpop.f32.mrb[0].mxu0
    %v10527 = vpop.f32.mrb[0].mxu0
    %v10528 = vadd.f32 0.0, %v10527
    %v10529 = vpop.f32.mrb[0].mxu0
    %10530 = vmatprep.mubr.bf16.mxu0 0
    %10531 = vmatmul.mubr.bf16.gmra.mrb[0].mxu0 %v10460
    %v10532 = vpop.f32.mrb[0].mxu0
    %v10533 = vadd.f32 0.0, %v10532
    %v10534 = vpop.f32.mrb[0].mxu0
    %v10535 = vpop.f32.mrb[0].mxu0
    %v10536 = vadd.f32 0.0, %v10535
    %v10537 = vpop.f32.mrb[0].mxu0
    %10538 = vmatprep.mubr.bf16.mxu0 0
    %10539 = vmatmul.mubr.bf16.gmra.mrb[0].mxu0 %v10463
    %v10540 = vpop.f32.mrb[0].mxu0
    %v10541 = vadd.f32 0.0, %v10540
    %v10542 = vpop.f32.mrb[0].mxu0
    %v10543 = vpop.f32.mrb[0].mxu0
    %v10544 = vadd.f32 0.0, %v10543
    %v10545 = vpop.f32.mrb[0].mxu0
    %10546 = vmatprep.mubr.bf16.mxu0 0
    %10547 = vmatmul.mubr.bf16.gmra.mrb[0].mxu0 %v10466
    %v10548 = vpop.f32.mrb[0].mxu0
    %v10549 = vadd.f32 0.0, %v10548
    %v10550 = vpop.f32.mrb[0].mxu0
    %v10551 = vpop.f32.mrb[0].mxu0
    %v10552 = vadd.f32 0.0, %v10551
    %v10553 = vpop.f32.mrb[0].mxu0
    %10554 = vmatprep.mubr.bf16.mxu0 0
    %10555 = vmatmul.mubr.bf16.gmra.mrb[0].mxu0 %v10469
    %v10556 = vpop.f32.mrb[0].mxu0
    %v10557 = vadd.f32 0.0, %v10556
    %v10558 = vpop.f32.mrb[0].mxu0
    %v10559 = vpop.f32.mrb[0].mxu0
    %v10560 = vadd.f32 0.0, %v10559
    %v10561 = vpop.f32.mrb[0].mxu0
    %10562 = vmatprep.mubr.bf16.mxu0 0
    %10563 = vmatmul.mubr.bf16.gmra.mrb[0].mxu0 %v10472
    %v10564 = vpop.f32.mrb[0].mxu0
    %v10565 = vadd.f32 0.0, %v10564
    %v10566 = vpop.f32.mrb[0].mxu0
    %v10567 = vpop.f32.mrb[0].mxu0
    %v10568 = vadd.f32 0.0, %v10567
    %v10569 = vpop.f32.mrb[0].mxu0
    %10570 = vdwg.mxu0
    %v10571 = vpack.c.bf16 %v10512, %v10509
    %v10572 = vpack.c.bf16 %v10520, %v10517
    %v10573 = vpack.c.bf16 %v10528, %v10525
    %v10574 = vpack.c.bf16 %v10536, %v10533
    %v10575 = vpack.c.bf16 %v10544, %v10541
    %v10576 = vpack.c.bf16 %v10552, %v10549
    %v10577 = vpack.c.bf16 %v10560, %v10557
    %v10578 = vpack.c.bf16 %v10568, %v10565
    %10579 = vrot.lane.b32.xlu0 %v1472, 96
    %v10580 = vpop.permute.xlu0 %10579
    %10582 = vmatprep.subr.bf16.mxu0 0
    %10583 = vmatpush1.bf16.msra.mxu0 %v10571
    %10584 = vmatprep.subr.bf16.mxu0 0
    %10585 = vmatpush1.bf16.msra.mxu0 %v10572
    %10586 = vmatprep.subr.bf16.mxu0 0
    %10587 = vmatpush1.bf16.msra.mxu0 %v10573
    %10588 = vmatprep.subr.bf16.mxu0 0
    %10589 = vmatpush1.bf16.msra.mxu0 %v10574
    %10590 = vmatprep.subr.bf16.mxu0 0
    %10591 = vmatpush1.bf16.msra.mxu0 %v10575
    %10592 = vmatprep.subr.bf16.mxu0 0
    %10593 = vmatpush1.bf16.msra.mxu0 %v10576
    %10594 = vmatprep.subr.bf16.mxu0 0
    %10595 = vmatpush1.bf16.msra.mxu0 %v10577
    %10596 = vmatprep.subr.bf16.mxu0 0
    %10597 = vmatpush1.bf16.msra.mxu0 %v10578
    %10598 = vmatprep.subr.bf16.mxu0 0
    %10599 = vmatpush1.bf16.msra.mxu0 0
    %10600 = vmatprep.subr.bf16.mxu0 0
    %10601 = vmatpush1.bf16.msra.mxu0 0
    %10602 = vmatprep.subr.bf16.mxu0 0
    %10603 = vmatpush1.bf16.msra.mxu0 0
    %10604 = vmatprep.subr.bf16.mxu0 0
    %10605 = vmatpush1.bf16.msra.mxu0 0
    %10606 = vmatprep.subr.bf16.mxu0 0
    %10607 = vmatpush1.bf16.msra.mxu0 0
    %10608 = vmatprep.subr.bf16.mxu0 0
    %10609 = vmatpush1.bf16.msra.mxu0 0
    %10610 = vmatprep.subr.bf16.mxu0 0
    %10611 = vmatpush1.bf16.msra.mxu0 0
    %10612 = vmatprep.subr.bf16.mxu0 0
    %10613 = vmatpush1.bf16.msra.mxu0 0
    %10614 = vmatprep.mubr.bf16.mxu0 0
    %10615 = vmatmul.mubr.bf16.gmra.mrb[0].mxu0 %v10273
    %v10616 = vpop.f32.mrb[0].mxu0
    %v10617 = vadd.f32 %v10580, %v10616
    %v10618 = vpop.f32.mrb[0].mxu0
    %v10619 = vpop.f32.mrb[0].mxu0
    %v10620 = vadd.f32 %v10580, %v10619
    %v10621 = vpop.f32.mrb[0].mxu0
    %10622 = vmatprep.mubr.bf16.mxu0 0
    %10623 = vmatmul.mubr.bf16.gmra.mrb[0].mxu0 %v10274
    %v10624 = vpop.f32.mrb[0].mxu0
    %v10625 = vadd.f32 %v10580, %v10624
    %v10626 = vpop.f32.mrb[0].mxu0
    %v10627 = vpop.f32.mrb[0].mxu0
    %v10628 = vadd.f32 %v10580, %v10627
    %v10629 = vpop.f32.mrb[0].mxu0
    %10630 = vmatprep.mubr.bf16.mxu0 0
    %10631 = vmatmul.mubr.bf16.gmra.mrb[0].mxu0 %v10275
    %v10632 = vpop.f32.mrb[0].mxu0
    %v10633 = vadd.f32 %v10580, %v10632
    %v10634 = vpop.f32.mrb[0].mxu0
    %v10635 = vpop.f32.mrb[0].mxu0
    %v10636 = vadd.f32 %v10580, %v10635
    %v10637 = vpop.f32.mrb[0].mxu0
    %10638 = vmatprep.mubr.bf16.mxu0 0
    %10639 = vmatmul.mubr.bf16.gmra.mrb[0].mxu0 %v10276
    %v10640 = vpop.f32.mrb[0].mxu0
    %v10641 = vadd.f32 %v10580, %v10640
    %v10642 = vpop.f32.mrb[0].mxu0
    %v10643 = vpop.f32.mrb[0].mxu0
    %v10644 = vadd.f32 %v10580, %v10643
    %v10645 = vpop.f32.mrb[0].mxu0
    %10646 = vmatprep.mubr.bf16.mxu0 0
    %10647 = vmatmul.mubr.bf16.gmra.mrb[0].mxu0 %v10277
    %v10648 = vpop.f32.mrb[0].mxu0
    %v10649 = vadd.f32 %v10580, %v10648
    %v10650 = vpop.f32.mrb[0].mxu0
    %v10651 = vpop.f32.mrb[0].mxu0
    %v10652 = vadd.f32 %v10580, %v10651
    %v10653 = vpop.f32.mrb[0].mxu0
    %10654 = vmatprep.mubr.bf16.mxu0 0
    %10655 = vmatmul.mubr.bf16.gmra.mrb[0].mxu0 %v10278
    %v10656 = vpop.f32.mrb[0].mxu0
    %v10657 = vadd.f32 %v10580, %v10656
    %v10658 = vpop.f32.mrb[0].mxu0
    %v10659 = vpop.f32.mrb[0].mxu0
    %v10660 = vadd.f32 %v10580, %v10659
    %v10661 = vpop.f32.mrb[0].mxu0
    %10662 = vmatprep.mubr.bf16.mxu0 0
    %10663 = vmatmul.mubr.bf16.gmra.mrb[0].mxu0 %v10279
    %v10664 = vpop.f32.mrb[0].mxu0
    %v10665 = vadd.f32 %v10580, %v10664
    %v10666 = vpop.f32.mrb[0].mxu0
    %v10667 = vpop.f32.mrb[0].mxu0
    %v10668 = vadd.f32 %v10580, %v10667
    %v10669 = vpop.f32.mrb[0].mxu0
    %10670 = vmatprep.mubr.bf16.mxu0 0
    %10671 = vmatmul.mubr.bf16.gmra.mrb[0].mxu0 %v10280
    %v10672 = vpop.f32.mrb[0].mxu0
    %v10673 = vadd.f32 %v10580, %v10672
    %v10674 = vpop.f32.mrb[0].mxu0
    %v10675 = vpop.f32.mrb[0].mxu0
    %v10676 = vadd.f32 %v10580, %v10675
    %v10677 = vpop.f32.mrb[0].mxu0
    %10678 = vdwg.mxu0
    %vm10679 = vcmp.ge.f32.partialorder %v10617, 0.0
    %vm10680 = vcmp.ge.f32.partialorder %v10620, 0.0
    %vm10681 = vcmp.ge.f32.partialorder %v10625, 0.0
    %vm10682 = vcmp.ge.f32.partialorder %v10628, 0.0
    %vm10683 = vcmp.ge.f32.partialorder %v10633, 0.0
    %vm10684 = vcmp.ge.f32.partialorder %v10636, 0.0
    %vm10685 = vcmp.ge.f32.partialorder %v10641, 0.0
    %vm10686 = vcmp.ge.f32.partialorder %v10644, 0.0
    %vm10687 = vcmp.ge.f32.partialorder %v10649, 0.0
    %vm10688 = vcmp.ge.f32.partialorder %v10652, 0.0
    %vm10689 = vcmp.ge.f32.partialorder %v10657, 0.0
    %vm10690 = vcmp.ge.f32.partialorder %v10660, 0.0
    %vm10691 = vcmp.ge.f32.partialorder %v10665, 0.0
    %vm10692 = vcmp.ge.f32.partialorder %v10668, 0.0
    %vm10693 = vcmp.ge.f32.partialorder %v10673, 0.0
    %vm10694 = vcmp.ge.f32.partialorder %v10676, 0.0
    %v10695 = vmul.f32 %v10617, 0.2
    %v10696 = vmul.f32 %v10620, 0.2
    %v10697 = vmul.f32 %v10625, 0.2
    %v10698 = vmul.f32 %v10628, 0.2
    %v10699 = vmul.f32 %v10633, 0.2
    %v10700 = vmul.f32 %v10636, 0.2
    %v10701 = vmul.f32 %v10641, 0.2
    %v10702 = vmul.f32 %v10644, 0.2
    %v10703 = vmul.f32 %v10649, 0.2
    %v10704 = vmul.f32 %v10652, 0.2
    %v10705 = vmul.f32 %v10657, 0.2
    %v10706 = vmul.f32 %v10660, 0.2
    %v10707 = vmul.f32 %v10665, 0.2
    %v10708 = vmul.f32 %v10668, 0.2
    %v10709 = vmul.f32 %v10673, 0.2
    %v10710 = vmul.f32 %v10676, 0.2
    %v10711 = vsel %vm10679, %v10617, %v10695
    %v10712 = vsel %vm10680, %v10620, %v10696
    %v10713 = vsel %vm10681, %v10625, %v10697
    %v10714 = vsel %vm10682, %v10628, %v10698
    %v10715 = vsel %vm10683, %v10633, %v10699
    %v10716 = vsel %vm10684, %v10636, %v10700
    %v10717 = vsel %vm10685, %v10641, %v10701
    %v10718 = vsel %vm10686, %v10644, %v10702
    %v10719 = vsel %vm10687, %v10649, %v10703
    %v10720 = vsel %vm10688, %v10652, %v10704
    %v10721 = vsel %vm10689, %v10657, %v10705
    %v10722 = vsel %vm10690, %v10660, %v10706
    %v10723 = vsel %vm10691, %v10665, %v10707
    %v10724 = vsel %vm10692, %v10668, %v10708
    %v10725 = vsel %vm10693, %v10673, %v10709
    %v10726 = vsel %vm10694, %v10676, %v10710
    %10728 = vset.pattern.permute.xlu0 64
    %10729 = vperm.xlu0 %10728, %v28
    %v10730 = vpop.permute.xlu0 %10729
    %v10731 = vrot.slane %v28, 2
    %v10732 = vrot.slane %v10730, 1
    %v10734 = vsel %vm1745, %v10731, 0
    %v10737 = vsel %vm1745, %v10711, 0
    %v10740 = vsel %vm1745, %v10712, 0
    %v10743 = vsel %vm1745, %v10713, 0
    %v10746 = vsel %vm1745, %v10714, 0
    %v10749 = vsel %vm1745, %v10715, 0
    %v10752 = vsel %vm1745, %v10716, 0
    %v10755 = vsel %vm1745, %v10717, 0
    %v10758 = vsel %vm1745, %v10718, 0
    %v10761 = vsel %vm1745, %v10719, 0
    %v10764 = vsel %vm1745, %v10720, 0
    %v10767 = vsel %vm1745, %v10721, 0
    %v10770 = vsel %vm1745, %v10722, 0
    %v10773 = vsel %vm1745, %v10723, 0
    %v10776 = vsel %vm1745, %v10724, 0
    %v10779 = vsel %vm1745, %v10725, 0
    %v10782 = vsel %vm1745, %v10726, 0
    %10784 = vmatprep.subr.mxu0 0.0
    %10785 = vmatpush1.xpose.msra.mxu0 %v10737
    %10786 = vmatprep.subr.mxu0 0.0
    %10787 = vmatpush1.xpose.msra.mxu0 %v10740
    %10788 = vmatprep.subr.mxu0 0.0
    %10789 = vmatpush1.xpose.msra.mxu0 %v10743
    %10790 = vmatprep.subr.mxu0 0.0
    %10791 = vmatpush1.xpose.msra.mxu0 %v10746
    %10792 = vmatprep.subr.mxu0 0.0
    %10793 = vmatpush1.xpose.msra.mxu0 %v10749
    %10794 = vmatprep.subr.mxu0 0.0
    %10795 = vmatpush1.xpose.msra.mxu0 %v10752
    %10796 = vmatprep.subr.mxu0 0.0
    %10797 = vmatpush1.xpose.msra.mxu0 %v10755
    %10798 = vmatprep.subr.mxu0 0.0
    %10799 = vmatpush1.xpose.msra.mxu0 %v10758
    %10800 = vmatprep.subr.mxu0 0.0
    %10801 = vmatpush1.xpose.msra.mxu0 %v10761
    %10802 = vmatprep.subr.mxu0 0.0
    %10803 = vmatpush1.xpose.msra.mxu0 %v10764
    %10804 = vmatprep.subr.mxu0 0.0
    %10805 = vmatpush1.xpose.msra.mxu0 %v10767
    %10806 = vmatprep.subr.mxu0 0.0
    %10807 = vmatpush1.xpose.msra.mxu0 %v10770
    %10808 = vmatprep.subr.mxu0 0.0
    %10809 = vmatpush1.xpose.msra.mxu0 %v10773
    %10810 = vmatprep.subr.mxu0 0.0
    %10811 = vmatpush1.xpose.msra.mxu0 %v10776
    %10812 = vmatprep.subr.mxu0 0.0
    %10813 = vmatpush1.xpose.msra.mxu0 %v10779
    %10814 = vmatprep.subr.mxu0 0.0
    %10815 = vmatpush1.xpose.msra.mxu0 %v10782
    %10816 = vmatprep.subr.mxu0 0.0
    %10817 = vmatpush1.xpose.msra.mxu0 0.0
    %10818 = vmatprep.subr.mxu0 0.0
    %10819 = vmatpush1.xpose.msra.mxu0 0.0
    %10820 = vmatprep.subr.mxu0 0.0
    %10821 = vmatpush1.xpose.msra.mxu0 0.0
    %10822 = vmatprep.subr.mxu0 0.0
    %10823 = vmatpush1.xpose.msra.mxu0 0.0
    %10824 = vmatprep.subr.mxu0 0.0
    %10825 = vmatpush1.xpose.msra.mxu0 0.0
    %10826 = vmatprep.subr.mxu0 0.0
    %10827 = vmatpush1.xpose.msra.mxu0 0.0
    %10828 = vmatprep.subr.mxu0 0.0
    %10829 = vmatpush1.xpose.msra.mxu0 0.0
    %10830 = vmatprep.subr.mxu0 0.0
    %10831 = vmatpush1.xpose.msra.mxu0 0.0
    %10832 = vmatprep.subr.mxu0 0.0
    %10833 = vmatpush1.xpose.msra.mxu0 0.0
    %10834 = vmatprep.subr.mxu0 0.0
    %10835 = vmatpush1.xpose.msra.mxu0 0.0
    %10836 = vmatprep.subr.mxu0 0.0
    %10837 = vmatpush1.xpose.msra.mxu0 0.0
    %10838 = vmatprep.subr.mxu0 0.0
    %10839 = vmatpush1.xpose.msra.mxu0 0.0
    %10840 = vmatprep.subr.mxu0 0.0
    %10841 = vmatpush1.xpose.msra.mxu0 0.0
    %10842 = vmatprep.subr.mxu0 0.0
    %10843 = vmatpush1.xpose.msra.mxu0 0.0
    %10844 = vmatprep.subr.mxu0 0.0
    %10845 = vmatpush1.xpose.msra.mxu0 0.0
    %10846 = vmatprep.subr.mxu0 0.0
    %10847 = vmatpush1.xpose.msra.mxu0 0.0
    %10848 = vmatprep.mubr.f32.mxu0 0.0
    %10849 = vmatmul.mubr.f32.gmra.mrb[0].mxu0 %v10734
    %v10850 = vpop.f32.mrb[0].mxu0
    %v10851 = vadd.f32 %v10732, %v10850
    %v10852 = vpop.f32.mrb[0].mxu0
    %10853 = vdwg.mxu0
    %vm10854 = vcmp.ge.f32.partialorder %v10851, 0.0
    %v10855 = vmul.f32 %v10851, 0.01
    %v10856 = vsel %vm10854, %v10851, %v10855
    %10857 = vst [vmem:[#allocation4] sm:$0x1] %v10856
    // Predicated region
    $region30: #{tpu_custom_call.1} parent=1 // pred_check
      _
    $region31: #{tpu_custom_call.1} parent=1 // pred_check_branch
      %10859 = sbr.rel (0) target = $region33
    $region32: #{tpu_custom_call.1} parent=1 // pred_region
      %s10861 = ssub.s32 16, 16
      %10862 = vsyncadd [#allocation5], %s10861
      %s10864 = sshll.u32 [#allocation4], 4
      %s10865 = int_to_ptr.vmem [resolvable:$true] %s10864
      %10867 = dma.vmem_to_hbm [thread:$0]  %s10865, 16, %s7, [#allocation5]
    $region33: #{tpu_custom_call.1} parent=1 // pred_fallthru
      _
    // Predicated region
    $region34: #{tpu_custom_call.1} parent=1 // pred_check
      _
    $region35: #{tpu_custom_call.1} parent=1 // pred_check_branch
      %10869 = sbr.rel (0) target = $region37
    $region36: #{tpu_custom_call.1} parent=1 // pred_region
      %10870 = dma.done [#allocation5], 16
    $region37: #{tpu_custom_call.1} parent=1 // pred_fallthru
      _
    %10871 = vsyncpa [#allocation5], 1

</llo_original>
